<compile_context>
chip_gen: v7x
topology: tpu7x:2x2x1
jax: 0.10.0
libtpu: 0.0.40
codegen_flags: <defaults>
</compile_context>

<pallas_src>
import math
import numpy as np

import jax
import jax.numpy as jnp
from jax.experimental import pallas as pl
from jax.experimental.pallas import tpu as pltpu

# ----------------------------- config (small) -----------------------------
D_HID = 32          # dim_decoder_hidden
D_STYLE = 16        # dim_latent (CNF style)
KSIZE = 3           # kernel_size_decoder
N_BLOCK = 2         # n_DecVCBlock
LIST_UPSCALE = [1, 2]
DIM_MEL = 16
VOCAB = 50          # HuBERT vocab_size
N_HEAD = 2
D_K = D_HID // 2
D_V = D_HID // 2
D_INNER = D_HID * 4
N_FFT = 2           # fft_block_2 / fft_block_3
FF_K = 9            # FFT conv kernel sizes [9, 1]
N_CONV = 4 * N_BLOCK


# ------------------- structural constant arrays (numpy, tiny) ---------------
def _make_constants(B, T0):
    """Small structural constants: cond row-broadcast matrices, nearest-upsample
    matrices, per-row time indices (for conv boundary masks), per-row batch
    indices (for the in-kernel block-diagonal attention mask)."""
    bcast, up, tidx = {}, {}, {}

    def add_tidx(T):
        if T not in tidx:
            tidx[T] = np.tile(np.arange(T, dtype=np.float32), B).reshape(B * T, 1)

    def add_bcast(T):
        if T not in bcast:
            r = np.zeros((B * T, B), np.float32)
            for b in range(B):
                r[b * T:(b + 1) * T, b] = 1.0
            bcast[T] = r

    T = T0
    for u in LIST_UPSCALE:
        add_bcast(T)
        add_tidx(T)
        if u != 1:
            key = (T, u)
            if key not in up:
                m = np.zeros((B * T * u, B * T), np.float32)
                for b in range(B):
                    for s in range(T * u):
                        m[b * T * u + s, b * T + s // u] = 1.0   # nearest
                up[key] = m
            T = T * u
            add_tidx(T)
    add_tidx(T)   # final T (FFT feed-forward conv)

    bidx = np.repeat(np.arange(B, dtype=np.float32), T)
    return dict(bcast=bcast, up=up, tidx=tidx,
                bidx_r=bidx.reshape(B * T, 1),
                bidx_c=bidx.reshape(1, B * T))


# ----------------------- weight fusion (wrapper-side) -----------------------
def _fuse_params(params):
    """All weight stacking / layout plumbing happens here (trace time), never
    inside the kernel."""
    scale = 1.0 / math.sqrt(D_K)

    # fused conditioning: column block j = layer j
    cond_w = jnp.transpose(params['conv_cond_w'], (1, 0, 2)).reshape(
        D_STYLE, N_CONV * D_HID)
    cond_b = jnp.transpose(params['conv_cond_b'], (1, 0, 2)).reshape(
        1, N_CONV * D_HID)

    # im2col-stacked conv weights: row index = k*C_in + c_in
    conv_w = params['conv_w'].reshape(N_CONV, KSIZE * D_HID, D_HID)
    ffw1 = params['fft_ffw1'].reshape(N_FFT, FF_K * D_HID, D_INNER)

    def heads_cat(w):   # (F, H, Din, d) -> (F, Din, H*d), column block = head
        F, H, Din, d = w.shape
        return jnp.transpose(w, (0, 2, 1, 3)).reshape(F, Din, H * d)

    def heads_cat_b(b):  # (F, H, 1, d) -> (F, 1, H*d)
        F, H, _, d = b.shape
        return jnp.transpose(b, (0, 2, 1, 3)).reshape(F, 1, H * d)

    # fused QKV projection, columns = [Q heads | K heads | V heads];
    # 1/sqrt(d_k) folded into the Q part.
    qkv_w = jnp.concatenate([heads_cat(params['fft_wq'] * scale),
                             heads_cat(params['fft_wk']),
                             heads_cat(params['fft_wv'])], axis=-1)
    qkv_b = jnp.concatenate([heads_cat_b(params['fft_bq'] * scale),
                             heads_cat_b(params['fft_bk']),
                             heads_cat_b(params['fft_bv'])], axis=-1)
    # fused output projection: row block = head (matches lane-concat of ctx)
    wo = params['fft_wo'].reshape(N_FFT, N_HEAD * D_V, D_HID)

    return dict(
        emb=params['emb'],
        cond_w=cond_w, cond_b=cond_b,
        conv_w=conv_w, conv_b=params['conv_b'],
        qkv_w=qkv_w, qkv_b=qkv_b,
        wo=wo, bo=params['fft_bo'],
        ln1_g=params['fft_ln1_g'], ln1_b=params['fft_ln1_b'],
        ffw1=ffw1, ffb1=params['fft_ffb1'],
        ffw2=params['fft_ffw2'], ffb2=params['fft_ffb2'],
        ln2_g=params['fft_ln2_g'], ln2_b=params['fft_ln2_b'],
        pl_w=params['pl_w'],
    )


# ------------------------------ fused forward -------------------------------
def decoder_forward_impl(params, unit, z_style):
    B, T0 = unit.shape
    T_out = T0
    for u in LIST_UPSCALE:
        T_out *= u

    consts = _make_constants(B, T0)
    fused = _fuse_params(params)

    p_leaves, p_def = jax.tree_util.tree_flatten(fused)
    c_leaves, c_def = jax.tree_util.tree_flatten(consts)
    n_p, n_c = len(p_leaves), len(c_leaves)

    unit_flat = unit.reshape(B * T0, 1).astype(jnp.int32)
    z_in = z_style.astype(jnp.float32)
    f32 = jnp.float32

    def kernel(*refs):
        unit_ref, z_ref = refs[0], refs[1]
        pr = jax.tree_util.tree_unflatten(p_def, refs[2:2 + n_p])
        cr = jax.tree_util.tree_unflatten(c_def, refs[2 + n_p:2 + n_p + n_c])
        out_ref = refs[2 + n_p + n_c]

        # ---- unit embedding: gather expressed as one-hot @ table (MXU) ----
        ids = unit_ref[...]                                        # (B*T0, 1) i32
        lanes = jax.lax.broadcasted_iota(jnp.int32, (B * T0, VOCAB), 1)
        onehot = (ids == lanes).astype(f32)
        h = jnp.dot(onehot, pr['emb'][...], preferred_element_type=f32)

        # ---- fused conditioning: one matmul for all 8 conv layers ----
        zc = (jnp.dot(z_ref[...], pr['cond_w'][...], preferred_element_type=f32)
              + pr['cond_b'][...])                                 # (B, 8*D_HID)

        bz_cache = {}

        def bz(T):   # broadcast zc to rows, once per T (lane-dense 256-wide slab)
            if T not in bz_cache:
                bz_cache[T] = jnp.dot(cr['bcast'][T][...], zc,
                                      preferred_element_type=f32)
            return bz_cache[T]

        def cond_add(x, T, j):
            # TODO(synk): `Conv` body not in the reference source; reconstructed
            # as cond-add -> same-padded Conv1d -> ReLU (dropout = eval identity).
            return x + bz(T)[:, j * D_HID:(j + 1) * D_HID]

        def conv_im2col(x, T, K, w, b, relu):
            """Same-padded Conv1d over time as ONE matmul on an im2col slab.
            Shifted copies come from pltpu.roll (XLU) + boundary mask (VPU)."""
            n = x.shape[0]
            pad_l = (K - 1) // 2
            t = cr['tidx'][T][...]                                 # (B*T, 1) f32
            cols = []
            for k in range(K):
                d = k - pad_l
                if d == 0:
                    cols.append(x)
                    continue
                shifted = pltpu.roll(x, shift=(-d) % n, axis=0)    # row r <- r+d
                valid = (t <= float(T - 1 - d)) if d > 0 else (t >= float(-d))
                cols.append(jnp.where(valid, shifted, 0.0))
            slab = jnp.concatenate(cols, axis=-1)                  # (B*T, K*C)
            y = jnp.dot(slab, w, preferred_element_type=f32) + b
            return jnp.maximum(y, 0.0) if relu else y

        def conv_fwd(x, T, j):
            return conv_im2col(cond_add(x, T, j), T, KSIZE,
                               pr['conv_w'][j], pr['conv_b'][j], relu=True)

        def layer_norm(x, g, b):
            mean = jnp.mean(x, axis=-1, keepdims=True)
            var = jnp.mean((x - mean) * (x - mean), axis=-1, keepdims=True)
            return (x - mean) * jax.lax.rsqrt(var + 1e-5) * g + b

        # block-diagonal batch attention bias, generated in-kernel (no big const)
        attn_bias = jnp.where(cr['bidx_r'][...] == cr['bidx_c'][...], 0.0, -1e9)

        def fft_block(x, T, blk):
            # TODO(synk): FFTBlock body not in the reference source; reconstructed
            # as FastSpeech post-LN block (MHA + LN, conv(9)->ReLU->conv(1) + LN).
            qkv = (jnp.dot(x, pr['qkv_w'][blk], preferred_element_type=f32)
                   + pr['qkv_b'][blk])                             # (B*T, 3*H*Dk)
            ctxs = []
            for hd in range(N_HEAD):
                q = qkv[:, hd * D_K:(hd + 1) * D_K]
                k = qkv[:, N_HEAD * D_K + hd * D_K:
                           N_HEAD * D_K + (hd + 1) * D_K]
                v = qkv[:, 2 * N_HEAD * D_K + hd * D_V:
                           2 * N_HEAD * D_K + (hd + 1) * D_V]
                s = jax.lax.dot_general(q, k, (((1,), (1,)), ((), ())),
                                        preferred_element_type=f32)
                s = s + attn_bias                                  # scale folded in Wq
                s = s - jnp.max(s, axis=-1, keepdims=True)
                p = jnp.exp(s)
                p = p * pl.reciprocal(jnp.sum(p, axis=-1, keepdims=True),
                                      approx=True)                 # EUP divide
                ctxs.append(jnp.dot(p, v, preferred_element_type=f32))
            ctx = jnp.concatenate(ctxs, axis=-1)                   # (B*T, H*Dv)
            o = (jnp.dot(ctx, pr['wo'][blk], preferred_element_type=f32)
                 + pr['bo'][blk])
            h1 = layer_norm(o + x, pr['ln1_g'][blk], pr['ln1_b'][blk])
            ff = conv_im2col(h1, T, FF_K, pr['ffw1'][blk], pr['ffb1'][blk],
                             relu=True)
            ff = (jnp.dot(ff, pr['ffw2'][blk], preferred_element_type=f32)
                  + pr['ffb2'][blk])
            return layer_norm(ff + h1, pr['ln2_g'][blk], pr['ln2_b'][blk])

        # -------------------------- DecVCBlocks --------------------------
        T = T0
        for bi, u in enumerate(LIST_UPSCALE):
            j0 = 4 * bi
            h1 = conv_fwd(h, T, j0 + 0)
            h1 = conv_fwd(h1, T, j0 + 1)
            hmid = h + h1
            h2 = conv_fwd(hmid, T, j0 + 2)
            # conv4 / UpConv: cond-add at T, nearest-upsample, conv + relu
            h3 = cond_add(h2, T, j0 + 3)
            if u != 1:
                U = cr['up'][(T, u)][...]
                # fused upsample of h3 and the residual in one matmul
                both = jnp.dot(U, jnp.concatenate([h3, hmid], axis=-1),
                               preferred_element_type=f32)         # (B*T*u, 2C)
                h3 = both[:, :D_HID]
                hres = both[:, D_HID:]
                T = T * u
            else:
                hres = hmid
            h3 = conv_im2col(h3, T, KSIZE, pr['conv_w'][j0 + 3],
                             pr['conv_b'][j0 + 3], relu=True)
            h = h3 + hres

        # --------------------- mel heads + FFT blocks ---------------------
        m1 = jnp.dot(h, pr['pl_w'][0], preferred_element_type=f32)
        h = fft_block(h, T, 0)
        m2 = jnp.dot(h, pr['pl_w'][1], preferred_element_type=f32)
        h = fft_block(h, T, 1)
        m3 = jnp.dot(h, pr['pl_w'][2], preferred_element_type=f32)
        # single lane-dense output slab; split/transpose handled by XLA wrapper
        out_ref[...] = jnp.concatenate([m1, m2, m3], axis=-1)

    out = pl.pallas_call(
        kernel,
        out_shape=jax.ShapeDtypeStruct((B * T_out, 3 * DIM_MEL), jnp.float32),
    )(unit_flat, z_in, *p_leaves, *c_leaves)

    # (B*T, 3*dim_mel) slab -> three (B, dim_mel, T), matching `.transpose(1, 2)`
    mels = [out[:, i * DIM_MEL:(i + 1) * DIM_MEL]
            .reshape(B, T_out, DIM_MEL).transpose(0, 2, 1)
            for i in range(3)]
    return mels


decoder_forward = jax.jit(decoder_forward_impl)


# ----------------------------- parameter init ------------------------------
def init_params(key):
    counter = [0]

    def nxt():
        counter[0] += 1
        return jax.random.fold_in(key, counter[0])

    def w(shape, scale=0.05):
        return scale * jax.random.normal(nxt(), shape, dtype=jnp.float32)

    params = dict(
        emb=w((VOCAB, D_HID), scale=0.1),
        conv_cond_w=w((N_CONV, D_STYLE, D_HID)),
        conv_cond_b=jnp.zeros((N_CONV, 1, D_HID), jnp.float32),
        conv_w=w((N_CONV, KSIZE, D_HID, D_HID)),
        conv_b=jnp.zeros((N_CONV, 1, D_HID), jnp.float32),
        fft_wq=w((N_FFT, N_HEAD, D_HID, D_K)),
        fft_bq=jnp.zeros((N_FFT, N_HEAD, 1, D_K), jnp.float32),
        fft_wk=w((N_FFT, N_HEAD, D_HID, D_K)),
        fft_bk=jnp.zeros((N_FFT, N_HEAD, 1, D_K), jnp.float32),
        fft_wv=w((N_FFT, N_HEAD, D_HID, D_V)),
        fft_bv=jnp.zeros((N_FFT, N_HEAD, 1, D_V), jnp.float32),
        fft_wo=w((N_FFT, N_HEAD, D_V, D_HID)),
        fft_bo=jnp.zeros((N_FFT, 1, D_HID), jnp.float32),
        fft_ln1_g=jnp.ones((N_FFT, 1, D_HID), jnp.float32),
        fft_ln1_b=jnp.zeros((N_FFT, 1, D_HID), jnp.float32),
        fft_ffw1=w((N_FFT, FF_K, D_HID, D_INNER)),
        fft_ffb1=jnp.zeros((N_FFT, 1, D_INNER), jnp.float32),
        fft_ffw2=w((N_FFT, D_INNER, D_HID)),
        fft_ffb2=jnp.zeros((N_FFT, 1, D_HID), jnp.float32),
        fft_ln2_g=jnp.ones((N_FFT, 1, D_HID), jnp.float32),
        fft_ln2_b=jnp.zeros((N_FFT, 1, D_HID), jnp.float32),
        pl_w=w((3, D_HID, DIM_MEL)),
    )
    return params


# ----------------------------------- main -----------------------------------
if __name__ == "__main__":
    key = jax.random.PRNGKey(0)
    params = init_params(key)

    B, T = 2, 8
    unit = jax.random.randint(jax.random.fold_in(key, 1000), (B, T), 0, VOCAB)
    z_style = jax.random.normal(jax.random.fold_in(key, 1001), (B, D_STYLE),
                                dtype=jnp.float32)

    mels = decoder_forward(params, unit, z_style)
    mels = [jax.block_until_ready(m) for m in mels]

    # sanity: shapes (B, dim_mel, T'), T' = T * prod(list_upscale) = 16
    T_out = T
    for u in LIST_UPSCALE:
        T_out *= u
    assert all(m.shape == (B, DIM_MEL, T_out) for m in mels), [m.shape for m in mels]
    assert all(bool(jnp.all(jnp.isfinite(m))) for m in mels)

    print("KERNEL_OK")
</pallas_src>

<mosaic_0001>
module attributes {stable_mosaic.version = 11 : i64} {
  func.func @kernel(%arg0: memref<16x1xi32, #tpu.memory_space<vmem>>, %arg1: memref<2x16xf32, #tpu.memory_space<vmem>>, %arg2: memref<2x1x32xf32, #tpu.memory_space<vmem>>, %arg3: memref<1x256xf32, #tpu.memory_space<vmem>>, %arg4: memref<16x256xf32, #tpu.memory_space<vmem>>, %arg5: memref<8x1x32xf32, #tpu.memory_space<vmem>>, %arg6: memref<8x96x32xf32, #tpu.memory_space<vmem>>, %arg7: memref<50x32xf32, #tpu.memory_space<vmem>>, %arg8: memref<2x1x128xf32, #tpu.memory_space<vmem>>, %arg9: memref<2x1x32xf32, #tpu.memory_space<vmem>>, %arg10: memref<2x288x128xf32, #tpu.memory_space<vmem>>, %arg11: memref<2x128x32xf32, #tpu.memory_space<vmem>>, %arg12: memref<2x1x32xf32, #tpu.memory_space<vmem>>, %arg13: memref<2x1x32xf32, #tpu.memory_space<vmem>>, %arg14: memref<2x1x32xf32, #tpu.memory_space<vmem>>, %arg15: memref<2x1x32xf32, #tpu.memory_space<vmem>>, %arg16: memref<3x32x16xf32, #tpu.memory_space<vmem>>, %arg17: memref<2x1x96xf32, #tpu.memory_space<vmem>>, %arg18: memref<2x32x96xf32, #tpu.memory_space<vmem>>, %arg19: memref<2x32x32xf32, #tpu.memory_space<vmem>>, %arg20: memref<16x2xf32, #tpu.memory_space<vmem>>, %arg21: memref<1x32xf32, #tpu.memory_space<vmem>>, %arg22: memref<32x1xf32, #tpu.memory_space<vmem>>, %arg23: memref<16x1xf32, #tpu.memory_space<vmem>>, %arg24: memref<32x1xf32, #tpu.memory_space<vmem>>, %arg25: memref<32x16xf32, #tpu.memory_space<vmem>>, %arg26: memref<32x48xf32, #tpu.memory_space<vmem>>) attributes {dimension_semantics = [], scalar_prefetch = 0 : i64, scratch_operands = 0 : i64, tpu.core_type = #tpu.core_type<tc>} {
    %c0 = arith.constant 0 : index
    %c0_0 = arith.constant 0 : index
    %0 = vector.load %arg0[%c0, %c0_0] : memref<16x1xi32, #tpu.memory_space<vmem>>, vector<16x1xi32>
    %1 = tpu.iota {dimensions = array<i32: 1>} : vector<16x50xi32>
    %2 = vector.broadcast %0 : vector<16x1xi32> to vector<16x50xi32>
    %3 = arith.cmpi eq, %2, %1 : vector<16x50xi32>
    %4 = arith.extui %3 : vector<16x50xi1> to vector<16x50xi32>
    %5 = arith.sitofp %4 : vector<16x50xi32> to vector<16x50xf32>
    %c0_1 = arith.constant 0 : index
    %c0_2 = arith.constant 0 : index
    %6 = vector.load %arg7[%c0_1, %c0_2] : memref<50x32xf32, #tpu.memory_space<vmem>>, vector<50x32xf32>
    %cst = arith.constant dense<0.000000e+00> : vector<16x32xf32>
    %7 = tpu.matmul %5, %6, %cst {dimension_numbers = #tpu.dot_dimension_numbers<[1], [0], [0], [1], [0, 0, 1, 1], [], []>} : vector<16x50xf32>, vector<50x32xf32>, vector<16x32xf32> -> vector<16x32xf32>
    %c0_3 = arith.constant 0 : index
    %c0_4 = arith.constant 0 : index
    %8 = vector.load %arg1[%c0_3, %c0_4] : memref<2x16xf32, #tpu.memory_space<vmem>>, vector<2x16xf32>
    %c0_5 = arith.constant 0 : index
    %c0_6 = arith.constant 0 : index
    %9 = vector.load %arg4[%c0_5, %c0_6] : memref<16x256xf32, #tpu.memory_space<vmem>>, vector<16x256xf32>
    %cst_7 = arith.constant dense<0.000000e+00> : vector<2x256xf32>
    %10 = tpu.matmul %8, %9, %cst_7 {dimension_numbers = #tpu.dot_dimension_numbers<[1], [0], [0], [1], [0, 0, 1, 1], [], []>} : vector<2x16xf32>, vector<16x256xf32>, vector<2x256xf32> -> vector<2x256xf32>
    %c0_8 = arith.constant 0 : index
    %c0_9 = arith.constant 0 : index
    %11 = vector.load %arg3[%c0_8, %c0_9] : memref<1x256xf32, #tpu.memory_space<vmem>>, vector<1x256xf32>
    %12 = vector.broadcast %11 : vector<1x256xf32> to vector<2x256xf32>
    %13 = arith.addf %10, %12 : vector<2x256xf32>
    %c0_10 = arith.constant 0 : index
    %c0_11 = arith.constant 0 : index
    %14 = vector.load %arg22[%c0_10, %c0_11] : memref<32x1xf32, #tpu.memory_space<vmem>>, vector<32x1xf32>
    %c0_12 = arith.constant 0 : index
    %c0_13 = arith.constant 0 : index
    %15 = vector.load %arg21[%c0_12, %c0_13] : memref<1x32xf32, #tpu.memory_space<vmem>>, vector<1x32xf32>
    %16 = vector.broadcast %14 : vector<32x1xf32> to vector<32x32xf32>
    %17 = vector.broadcast %15 : vector<1x32xf32> to vector<32x32xf32>
    %18 = arith.cmpf oeq, %16, %17 : vector<32x32xf32>
    %cst_14 = arith.constant 0.000000e+00 : f32
    %cst_15 = arith.constant -1.000000e+09 : f32
    %19 = vector.broadcast %cst_14 : f32 to vector<32x32xf32>
    %20 = vector.broadcast %cst_15 : f32 to vector<32x32xf32>
    %21 = arith.select %18, %19, %20 : vector<32x32xi1>, vector<32x32xf32>
    %c0_16 = arith.constant 0 : index
    %c0_17 = arith.constant 0 : index
    %22 = vector.load %arg20[%c0_16, %c0_17] : memref<16x2xf32, #tpu.memory_space<vmem>>, vector<16x2xf32>
    %cst_18 = arith.constant dense<0.000000e+00> : vector<16x256xf32>
    %23 = tpu.matmul %22, %13, %cst_18 {dimension_numbers = #tpu.dot_dimension_numbers<[1], [0], [0], [1], [0, 0, 1, 1], [], []>} : vector<16x2xf32>, vector<2x256xf32>, vector<16x256xf32> -> vector<16x256xf32>
    %24 = vector.extract_strided_slice %23 {offsets = [0, 0], sizes = [16, 32], strides = [1, 1]} : vector<16x256xf32> to vector<16x32xf32>
    %25 = arith.addf %7, %24 : vector<16x32xf32>
    %c0_19 = arith.constant 0 : index
    %c0_20 = arith.constant 0 : index
    %c0_21 = arith.constant 0 : index
    %26 = vector.load %arg6[%c0_19, %c0_20, %c0_21] : memref<8x96x32xf32, #tpu.memory_space<vmem>>, vector<1x96x32xf32>
    %27 = vector.shape_cast %26 : vector<1x96x32xf32> to vector<96x32xf32>
    %c0_22 = arith.constant 0 : index
    %c0_23 = arith.constant 0 : index
    %c0_24 = arith.constant 0 : index
    %28 = vector.load %arg5[%c0_22, %c0_23, %c0_24] : memref<8x1x32xf32, #tpu.memory_space<vmem>>, vector<1x1x32xf32>
    %29 = vector.shape_cast %28 : vector<1x1x32xf32> to vector<1x32xf32>
    %c0_25 = arith.constant 0 : index
    %c0_26 = arith.constant 0 : index
    %30 = vector.load %arg23[%c0_25, %c0_26] : memref<16x1xf32, #tpu.memory_space<vmem>>, vector<16x1xf32>
    %c1_i32 = arith.constant 1 : i32
    %31 = tpu.dynamic_rotate %25 by %c1_i32 dim 0 : vector<16x32xf32>, i32 -> vector<16x32xf32>
    %cst_27 = arith.constant 1.000000e+00 : f32
    %32 = vector.broadcast %cst_27 : f32 to vector<16x1xf32>
    %33 = arith.cmpf oge, %30, %32 : vector<16x1xf32>
    %cst_28 = arith.constant 0.000000e+00 : f32
    %34 = vector.shape_cast %33 : vector<16x1xi1> to vector<16x1xi1>
    %35 = vector.broadcast %34 : vector<16x1xi1> to vector<16x32xi1>
    %36 = vector.broadcast %cst_28 : f32 to vector<16x32xf32>
    %37 = arith.select %35, %31, %36 : vector<16x32xi1>, vector<16x32xf32>
    %c15_i32 = arith.constant 15 : i32
    %38 = tpu.dynamic_rotate %25 by %c15_i32 dim 0 : vector<16x32xf32>, i32 -> vector<16x32xf32>
    %cst_29 = arith.constant 6.000000e+00 : f32
    %39 = vector.broadcast %cst_29 : f32 to vector<16x1xf32>
    %40 = arith.cmpf ole, %30, %39 : vector<16x1xf32>
    %cst_30 = arith.constant 0.000000e+00 : f32
    %41 = vector.shape_cast %40 : vector<16x1xi1> to vector<16x1xi1>
    %42 = vector.broadcast %41 : vector<16x1xi1> to vector<16x32xi1>
    %43 = vector.broadcast %cst_30 : f32 to vector<16x32xf32>
    %44 = arith.select %42, %38, %43 : vector<16x32xi1>, vector<16x32xf32>
    %45 = tpu.concatenate %37, %25, %44 in 1 : vector<16x32xf32>, vector<16x32xf32>, vector<16x32xf32> -> vector<16x96xf32>
    %cst_31 = arith.constant dense<0.000000e+00> : vector<16x32xf32>
    %46 = tpu.matmul %45, %27, %cst_31 {dimension_numbers = #tpu.dot_dimension_numbers<[1], [0], [0], [1], [0, 0, 1, 1], [], []>} : vector<16x96xf32>, vector<96x32xf32>, vector<16x32xf32> -> vector<16x32xf32>
    %47 = vector.broadcast %29 : vector<1x32xf32> to vector<16x32xf32>
    %48 = arith.addf %46, %47 : vector<16x32xf32>
    %cst_32 = arith.constant 0.000000e+00 : f32
    %49 = vector.broadcast %cst_32 : f32 to vector<16x32xf32>
    %50 = arith.maximumf %48, %49 : vector<16x32xf32>
    %51 = vector.extract_strided_slice %23 {offsets = [0, 32], sizes = [16, 32], strides = [1, 1]} : vector<16x256xf32> to vector<16x32xf32>
    %52 = arith.addf %50, %51 : vector<16x32xf32>
    %c1 = arith.constant 1 : index
    %c0_33 = arith.constant 0 : index
    %c0_34 = arith.constant 0 : index
    %53 = vector.load %arg6[%c1, %c0_33, %c0_34] : memref<8x96x32xf32, #tpu.memory_space<vmem>>, vector<1x96x32xf32>
    %54 = vector.shape_cast %53 : vector<1x96x32xf32> to vector<96x32xf32>
    %c1_35 = arith.constant 1 : index
    %c0_36 = arith.constant 0 : index
    %c0_37 = arith.constant 0 : index
    %55 = vector.load %arg5[%c1_35, %c0_36, %c0_37] : memref<8x1x32xf32, #tpu.memory_space<vmem>>, vector<1x1x32xf32>
    %56 = vector.shape_cast %55 : vector<1x1x32xf32> to vector<1x32xf32>
    %c0_38 = arith.constant 0 : index
    %c0_39 = arith.constant 0 : index
    %57 = vector.load %arg23[%c0_38, %c0_39] : memref<16x1xf32, #tpu.memory_space<vmem>>, vector<16x1xf32>
    %c1_i32_40 = arith.constant 1 : i32
    %58 = tpu.dynamic_rotate %52 by %c1_i32_40 dim 0 : vector<16x32xf32>, i32 -> vector<16x32xf32>
    %cst_41 = arith.constant 1.000000e+00 : f32
    %59 = vector.broadcast %cst_41 : f32 to vector<16x1xf32>
    %60 = arith.cmpf oge, %57, %59 : vector<16x1xf32>
    %cst_42 = arith.constant 0.000000e+00 : f32
    %61 = vector.shape_cast %60 : vector<16x1xi1> to vector<16x1xi1>
    %62 = vector.broadcast %61 : vector<16x1xi1> to vector<16x32xi1>
    %63 = vector.broadcast %cst_42 : f32 to vector<16x32xf32>
    %64 = arith.select %62, %58, %63 : vector<16x32xi1>, vector<16x32xf32>
    %c15_i32_43 = arith.constant 15 : i32
    %65 = tpu.dynamic_rotate %52 by %c15_i32_43 dim 0 : vector<16x32xf32>, i32 -> vector<16x32xf32>
    %cst_44 = arith.constant 6.000000e+00 : f32
    %66 = vector.broadcast %cst_44 : f32 to vector<16x1xf32>
    %67 = arith.cmpf ole, %57, %66 : vector<16x1xf32>
    %cst_45 = arith.constant 0.000000e+00 : f32
    %68 = vector.shape_cast %67 : vector<16x1xi1> to vector<16x1xi1>
    %69 = vector.broadcast %68 : vector<16x1xi1> to vector<16x32xi1>
    %70 = vector.broadcast %cst_45 : f32 to vector<16x32xf32>
    %71 = arith.select %69, %65, %70 : vector<16x32xi1>, vector<16x32xf32>
    %72 = tpu.concatenate %64, %52, %71 in 1 : vector<16x32xf32>, vector<16x32xf32>, vector<16x32xf32> -> vector<16x96xf32>
    %cst_46 = arith.constant dense<0.000000e+00> : vector<16x32xf32>
    %73 = tpu.matmul %72, %54, %cst_46 {dimension_numbers = #tpu.dot_dimension_numbers<[1], [0], [0], [1], [0, 0, 1, 1], [], []>} : vector<16x96xf32>, vector<96x32xf32>, vector<16x32xf32> -> vector<16x32xf32>
    %74 = vector.broadcast %56 : vector<1x32xf32> to vector<16x32xf32>
    %75 = arith.addf %73, %74 : vector<16x32xf32>
    %cst_47 = arith.constant 0.000000e+00 : f32
    %76 = vector.broadcast %cst_47 : f32 to vector<16x32xf32>
    %77 = arith.maximumf %75, %76 : vector<16x32xf32>
    %78 = arith.addf %7, %77 : vector<16x32xf32>
    %79 = vector.extract_strided_slice %23 {offsets = [0, 64], sizes = [16, 32], strides = [1, 1]} : vector<16x256xf32> to vector<16x32xf32>
    %80 = arith.addf %78, %79 : vector<16x32xf32>
    %c2 = arith.constant 2 : index
    %c0_48 = arith.constant 0 : index
    %c0_49 = arith.constant 0 : index
    %81 = vector.load %arg6[%c2, %c0_48, %c0_49] : memref<8x96x32xf32, #tpu.memory_space<vmem>>, vector<1x96x32xf32>
    %82 = vector.shape_cast %81 : vector<1x96x32xf32> to vector<96x32xf32>
    %c2_50 = arith.constant 2 : index
    %c0_51 = arith.constant 0 : index
    %c0_52 = arith.constant 0 : index
    %83 = vector.load %arg5[%c2_50, %c0_51, %c0_52] : memref<8x1x32xf32, #tpu.memory_space<vmem>>, vector<1x1x32xf32>
    %84 = vector.shape_cast %83 : vector<1x1x32xf32> to vector<1x32xf32>
    %c0_53 = arith.constant 0 : index
    %c0_54 = arith.constant 0 : index
    %85 = vector.load %arg23[%c0_53, %c0_54] : memref<16x1xf32, #tpu.memory_space<vmem>>, vector<16x1xf32>
    %c1_i32_55 = arith.constant 1 : i32
    %86 = tpu.dynamic_rotate %80 by %c1_i32_55 dim 0 : vector<16x32xf32>, i32 -> vector<16x32xf32>
    %cst_56 = arith.constant 1.000000e+00 : f32
    %87 = vector.broadcast %cst_56 : f32 to vector<16x1xf32>
    %88 = arith.cmpf oge, %85, %87 : vector<16x1xf32>
    %cst_57 = arith.constant 0.000000e+00 : f32
    %89 = vector.shape_cast %88 : vector<16x1xi1> to vector<16x1xi1>
    %90 = vector.broadcast %89 : vector<16x1xi1> to vector<16x32xi1>
    %91 = vector.broadcast %cst_57 : f32 to vector<16x32xf32>
    %92 = arith.select %90, %86, %91 : vector<16x32xi1>, vector<16x32xf32>
    %c15_i32_58 = arith.constant 15 : i32
    %93 = tpu.dynamic_rotate %80 by %c15_i32_58 dim 0 : vector<16x32xf32>, i32 -> vector<16x32xf32>
    %cst_59 = arith.constant 6.000000e+00 : f32
    %94 = vector.broadcast %cst_59 : f32 to vector<16x1xf32>
    %95 = arith.cmpf ole, %85, %94 : vector<16x1xf32>
    %cst_60 = arith.constant 0.000000e+00 : f32
    %96 = vector.shape_cast %95 : vector<16x1xi1> to vector<16x1xi1>
    %97 = vector.broadcast %96 : vector<16x1xi1> to vector<16x32xi1>
    %98 = vector.broadcast %cst_60 : f32 to vector<16x32xf32>
    %99 = arith.select %97, %93, %98 : vector<16x32xi1>, vector<16x32xf32>
    %100 = tpu.concatenate %92, %80, %99 in 1 : vector<16x32xf32>, vector<16x32xf32>, vector<16x32xf32> -> vector<16x96xf32>
    %cst_61 = arith.constant dense<0.000000e+00> : vector<16x32xf32>
    %101 = tpu.matmul %100, %82, %cst_61 {dimension_numbers = #tpu.dot_dimension_numbers<[1], [0], [0], [1], [0, 0, 1, 1], [], []>} : vector<16x96xf32>, vector<96x32xf32>, vector<16x32xf32> -> vector<16x32xf32>
    %102 = vector.broadcast %84 : vector<1x32xf32> to vector<16x32xf32>
    %103 = arith.addf %101, %102 : vector<16x32xf32>
    %cst_62 = arith.constant 0.000000e+00 : f32
    %104 = vector.broadcast %cst_62 : f32 to vector<16x32xf32>
    %105 = arith.maximumf %103, %104 : vector<16x32xf32>
    %106 = vector.extract_strided_slice %23 {offsets = [0, 96], sizes = [16, 32], strides = [1, 1]} : vector<16x256xf32> to vector<16x32xf32>
    %107 = arith.addf %105, %106 : vector<16x32xf32>
    %c3 = arith.constant 3 : index
    %c0_63 = arith.constant 0 : index
    %c0_64 = arith.constant 0 : index
    %108 = vector.load %arg6[%c3, %c0_63, %c0_64] : memref<8x96x32xf32, #tpu.memory_space<vmem>>, vector<1x96x32xf32>
    %109 = vector.shape_cast %108 : vector<1x96x32xf32> to vector<96x32xf32>
    %c3_65 = arith.constant 3 : index
    %c0_66 = arith.constant 0 : index
    %c0_67 = arith.constant 0 : index
    %110 = vector.load %arg5[%c3_65, %c0_66, %c0_67] : memref<8x1x32xf32, #tpu.memory_space<vmem>>, vector<1x1x32xf32>
    %111 = vector.shape_cast %110 : vector<1x1x32xf32> to vector<1x32xf32>
    %c0_68 = arith.constant 0 : index
    %c0_69 = arith.constant 0 : index
    %112 = vector.load %arg23[%c0_68, %c0_69] : memref<16x1xf32, #tpu.memory_space<vmem>>, vector<16x1xf32>
    %c1_i32_70 = arith.constant 1 : i32
    %113 = tpu.dynamic_rotate %107 by %c1_i32_70 dim 0 : vector<16x32xf32>, i32 -> vector<16x32xf32>
    %cst_71 = arith.constant 1.000000e+00 : f32
    %114 = vector.broadcast %cst_71 : f32 to vector<16x1xf32>
    %115 = arith.cmpf oge, %112, %114 : vector<16x1xf32>
    %cst_72 = arith.constant 0.000000e+00 : f32
    %116 = vector.shape_cast %115 : vector<16x1xi1> to vector<16x1xi1>
    %117 = vector.broadcast %116 : vector<16x1xi1> to vector<16x32xi1>
    %118 = vector.broadcast %cst_72 : f32 to vector<16x32xf32>
    %119 = arith.select %117, %113, %118 : vector<16x32xi1>, vector<16x32xf32>
    %c15_i32_73 = arith.constant 15 : i32
    %120 = tpu.dynamic_rotate %107 by %c15_i32_73 dim 0 : vector<16x32xf32>, i32 -> vector<16x32xf32>
    %cst_74 = arith.constant 6.000000e+00 : f32
    %121 = vector.broadcast %cst_74 : f32 to vector<16x1xf32>
    %122 = arith.cmpf ole, %112, %121 : vector<16x1xf32>
    %cst_75 = arith.constant 0.000000e+00 : f32
    %123 = vector.shape_cast %122 : vector<16x1xi1> to vector<16x1xi1>
    %124 = vector.broadcast %123 : vector<16x1xi1> to vector<16x32xi1>
    %125 = vector.broadcast %cst_75 : f32 to vector<16x32xf32>
    %126 = arith.select %124, %120, %125 : vector<16x32xi1>, vector<16x32xf32>
    %127 = tpu.concatenate %119, %107, %126 in 1 : vector<16x32xf32>, vector<16x32xf32>, vector<16x32xf32> -> vector<16x96xf32>
    %cst_76 = arith.constant dense<0.000000e+00> : vector<16x32xf32>
    %128 = tpu.matmul %127, %109, %cst_76 {dimension_numbers = #tpu.dot_dimension_numbers<[1], [0], [0], [1], [0, 0, 1, 1], [], []>} : vector<16x96xf32>, vector<96x32xf32>, vector<16x32xf32> -> vector<16x32xf32>
    %129 = vector.broadcast %111 : vector<1x32xf32> to vector<16x32xf32>
    %130 = arith.addf %128, %129 : vector<16x32xf32>
    %cst_77 = arith.constant 0.000000e+00 : f32
    %131 = vector.broadcast %cst_77 : f32 to vector<16x32xf32>
    %132 = arith.maximumf %130, %131 : vector<16x32xf32>
    %133 = arith.addf %132, %78 : vector<16x32xf32>
    %134 = vector.extract_strided_slice %23 {offsets = [0, 128], sizes = [16, 32], strides = [1, 1]} : vector<16x256xf32> to vector<16x32xf32>
    %135 = arith.addf %133, %134 : vector<16x32xf32>
    %c4 = arith.constant 4 : index
    %c0_78 = arith.constant 0 : index
    %c0_79 = arith.constant 0 : index
    %136 = vector.load %arg6[%c4, %c0_78, %c0_79] : memref<8x96x32xf32, #tpu.memory_space<vmem>>, vector<1x96x32xf32>
    %137 = vector.shape_cast %136 : vector<1x96x32xf32> to vector<96x32xf32>
    %c4_80 = arith.constant 4 : index
    %c0_81 = arith.constant 0 : index
    %c0_82 = arith.constant 0 : index
    %138 = vector.load %arg5[%c4_80, %c0_81, %c0_82] : memref<8x1x32xf32, #tpu.memory_space<vmem>>, vector<1x1x32xf32>
    %139 = vector.shape_cast %138 : vector<1x1x32xf32> to vector<1x32xf32>
    %c0_83 = arith.constant 0 : index
    %c0_84 = arith.constant 0 : index
    %140 = vector.load %arg23[%c0_83, %c0_84] : memref<16x1xf32, #tpu.memory_space<vmem>>, vector<16x1xf32>
    %c1_i32_85 = arith.constant 1 : i32
    %141 = tpu.dynamic_rotate %135 by %c1_i32_85 dim 0 : vector<16x32xf32>, i32 -> vector<16x32xf32>
    %cst_86 = arith.constant 1.000000e+00 : f32
    %142 = vector.broadcast %cst_86 : f32 to vector<16x1xf32>
    %143 = arith.cmpf oge, %140, %142 : vector<16x1xf32>
    %cst_87 = arith.constant 0.000000e+00 : f32
    %144 = vector.shape_cast %143 : vector<16x1xi1> to vector<16x1xi1>
    %145 = vector.broadcast %144 : vector<16x1xi1> to vector<16x32xi1>
    %146 = vector.broadcast %cst_87 : f32 to vector<16x32xf32>
    %147 = arith.select %145, %141, %146 : vector<16x32xi1>, vector<16x32xf32>
    %c15_i32_88 = arith.constant 15 : i32
    %148 = tpu.dynamic_rotate %135 by %c15_i32_88 dim 0 : vector<16x32xf32>, i32 -> vector<16x32xf32>
    %cst_89 = arith.constant 6.000000e+00 : f32
    %149 = vector.broadcast %cst_89 : f32 to vector<16x1xf32>
    %150 = arith.cmpf ole, %140, %149 : vector<16x1xf32>
    %cst_90 = arith.constant 0.000000e+00 : f32
    %151 = vector.shape_cast %150 : vector<16x1xi1> to vector<16x1xi1>
    %152 = vector.broadcast %151 : vector<16x1xi1> to vector<16x32xi1>
    %153 = vector.broadcast %cst_90 : f32 to vector<16x32xf32>
    %154 = arith.select %152, %148, %153 : vector<16x32xi1>, vector<16x32xf32>
    %155 = tpu.concatenate %147, %135, %154 in 1 : vector<16x32xf32>, vector<16x32xf32>, vector<16x32xf32> -> vector<16x96xf32>
    %cst_91 = arith.constant dense<0.000000e+00> : vector<16x32xf32>
    %156 = tpu.matmul %155, %137, %cst_91 {dimension_numbers = #tpu.dot_dimension_numbers<[1], [0], [0], [1], [0, 0, 1, 1], [], []>} : vector<16x96xf32>, vector<96x32xf32>, vector<16x32xf32> -> vector<16x32xf32>
    %157 = vector.broadcast %139 : vector<1x32xf32> to vector<16x32xf32>
    %158 = arith.addf %156, %157 : vector<16x32xf32>
    %cst_92 = arith.constant 0.000000e+00 : f32
    %159 = vector.broadcast %cst_92 : f32 to vector<16x32xf32>
    %160 = arith.maximumf %158, %159 : vector<16x32xf32>
    %161 = vector.extract_strided_slice %23 {offsets = [0, 160], sizes = [16, 32], strides = [1, 1]} : vector<16x256xf32> to vector<16x32xf32>
    %162 = arith.addf %160, %161 : vector<16x32xf32>
    %c5 = arith.constant 5 : index
    %c0_93 = arith.constant 0 : index
    %c0_94 = arith.constant 0 : index
    %163 = vector.load %arg6[%c5, %c0_93, %c0_94] : memref<8x96x32xf32, #tpu.memory_space<vmem>>, vector<1x96x32xf32>
    %164 = vector.shape_cast %163 : vector<1x96x32xf32> to vector<96x32xf32>
    %c5_95 = arith.constant 5 : index
    %c0_96 = arith.constant 0 : index
    %c0_97 = arith.constant 0 : index
    %165 = vector.load %arg5[%c5_95, %c0_96, %c0_97] : memref<8x1x32xf32, #tpu.memory_space<vmem>>, vector<1x1x32xf32>
    %166 = vector.shape_cast %165 : vector<1x1x32xf32> to vector<1x32xf32>
    %c0_98 = arith.constant 0 : index
    %c0_99 = arith.constant 0 : index
    %167 = vector.load %arg23[%c0_98, %c0_99] : memref<16x1xf32, #tpu.memory_space<vmem>>, vector<16x1xf32>
    %c1_i32_100 = arith.constant 1 : i32
    %168 = tpu.dynamic_rotate %162 by %c1_i32_100 dim 0 : vector<16x32xf32>, i32 -> vector<16x32xf32>
    %cst_101 = arith.constant 1.000000e+00 : f32
    %169 = vector.broadcast %cst_101 : f32 to vector<16x1xf32>
    %170 = arith.cmpf oge, %167, %169 : vector<16x1xf32>
    %cst_102 = arith.constant 0.000000e+00 : f32
    %171 = vector.shape_cast %170 : vector<16x1xi1> to vector<16x1xi1>
    %172 = vector.broadcast %171 : vector<16x1xi1> to vector<16x32xi1>
    %173 = vector.broadcast %cst_102 : f32 to vector<16x32xf32>
    %174 = arith.select %172, %168, %173 : vector<16x32xi1>, vector<16x32xf32>
    %c15_i32_103 = arith.constant 15 : i32
    %175 = tpu.dynamic_rotate %162 by %c15_i32_103 dim 0 : vector<16x32xf32>, i32 -> vector<16x32xf32>
    %cst_104 = arith.constant 6.000000e+00 : f32
    %176 = vector.broadcast %cst_104 : f32 to vector<16x1xf32>
    %177 = arith.cmpf ole, %167, %176 : vector<16x1xf32>
    %cst_105 = arith.constant 0.000000e+00 : f32
    %178 = vector.shape_cast %177 : vector<16x1xi1> to vector<16x1xi1>
    %179 = vector.broadcast %178 : vector<16x1xi1> to vector<16x32xi1>
    %180 = vector.broadcast %cst_105 : f32 to vector<16x32xf32>
    %181 = arith.select %179, %175, %180 : vector<16x32xi1>, vector<16x32xf32>
    %182 = tpu.concatenate %174, %162, %181 in 1 : vector<16x32xf32>, vector<16x32xf32>, vector<16x32xf32> -> vector<16x96xf32>
    %cst_106 = arith.constant dense<0.000000e+00> : vector<16x32xf32>
    %183 = tpu.matmul %182, %164, %cst_106 {dimension_numbers = #tpu.dot_dimension_numbers<[1], [0], [0], [1], [0, 0, 1, 1], [], []>} : vector<16x96xf32>, vector<96x32xf32>, vector<16x32xf32> -> vector<16x32xf32>
    %184 = vector.broadcast %166 : vector<1x32xf32> to vector<16x32xf32>
    %185 = arith.addf %183, %184 : vector<16x32xf32>
    %cst_107 = arith.constant 0.000000e+00 : f32
    %186 = vector.broadcast %cst_107 : f32 to vector<16x32xf32>
    %187 = arith.maximumf %185, %186 : vector<16x32xf32>
    %188 = arith.addf %133, %187 : vector<16x32xf32>
    %189 = vector.extract_strided_slice %23 {offsets = [0, 192], sizes = [16, 32], strides = [1, 1]} : vector<16x256xf32> to vector<16x32xf32>
    %190 = arith.addf %188, %189 : vector<16x32xf32>
    %c6 = arith.constant 6 : index
    %c0_108 = arith.constant 0 : index
    %c0_109 = arith.constant 0 : index
    %191 = vector.load %arg6[%c6, %c0_108, %c0_109] : memref<8x96x32xf32, #tpu.memory_space<vmem>>, vector<1x96x32xf32>
    %192 = vector.shape_cast %191 : vector<1x96x32xf32> to vector<96x32xf32>
    %c6_110 = arith.constant 6 : index
    %c0_111 = arith.constant 0 : index
    %c0_112 = arith.constant 0 : index
    %193 = vector.load %arg5[%c6_110, %c0_111, %c0_112] : memref<8x1x32xf32, #tpu.memory_space<vmem>>, vector<1x1x32xf32>
    %194 = vector.shape_cast %193 : vector<1x1x32xf32> to vector<1x32xf32>
    %c0_113 = arith.constant 0 : index
    %c0_114 = arith.constant 0 : index
    %195 = vector.load %arg23[%c0_113, %c0_114] : memref<16x1xf32, #tpu.memory_space<vmem>>, vector<16x1xf32>
    %c1_i32_115 = arith.constant 1 : i32
    %196 = tpu.dynamic_rotate %190 by %c1_i32_115 dim 0 : vector<16x32xf32>, i32 -> vector<16x32xf32>
    %cst_116 = arith.constant 1.000000e+00 : f32
    %197 = vector.broadcast %cst_116 : f32 to vector<16x1xf32>
    %198 = arith.cmpf oge, %195, %197 : vector<16x1xf32>
    %cst_117 = arith.constant 0.000000e+00 : f32
    %199 = vector.shape_cast %198 : vector<16x1xi1> to vector<16x1xi1>
    %200 = vector.broadcast %199 : vector<16x1xi1> to vector<16x32xi1>
    %201 = vector.broadcast %cst_117 : f32 to vector<16x32xf32>
    %202 = arith.select %200, %196, %201 : vector<16x32xi1>, vector<16x32xf32>
    %c15_i32_118 = arith.constant 15 : i32
    %203 = tpu.dynamic_rotate %190 by %c15_i32_118 dim 0 : vector<16x32xf32>, i32 -> vector<16x32xf32>
    %cst_119 = arith.constant 6.000000e+00 : f32
    %204 = vector.broadcast %cst_119 : f32 to vector<16x1xf32>
    %205 = arith.cmpf ole, %195, %204 : vector<16x1xf32>
    %cst_120 = arith.constant 0.000000e+00 : f32
    %206 = vector.shape_cast %205 : vector<16x1xi1> to vector<16x1xi1>
    %207 = vector.broadcast %206 : vector<16x1xi1> to vector<16x32xi1>
    %208 = vector.broadcast %cst_120 : f32 to vector<16x32xf32>
    %209 = arith.select %207, %203, %208 : vector<16x32xi1>, vector<16x32xf32>
    %210 = tpu.concatenate %202, %190, %209 in 1 : vector<16x32xf32>, vector<16x32xf32>, vector<16x32xf32> -> vector<16x96xf32>
    %cst_121 = arith.constant dense<0.000000e+00> : vector<16x32xf32>
    %211 = tpu.matmul %210, %192, %cst_121 {dimension_numbers = #tpu.dot_dimension_numbers<[1], [0], [0], [1], [0, 0, 1, 1], [], []>} : vector<16x96xf32>, vector<96x32xf32>, vector<16x32xf32> -> vector<16x32xf32>
    %212 = vector.broadcast %194 : vector<1x32xf32> to vector<16x32xf32>
    %213 = arith.addf %211, %212 : vector<16x32xf32>
    %cst_122 = arith.constant 0.000000e+00 : f32
    %214 = vector.broadcast %cst_122 : f32 to vector<16x32xf32>
    %215 = arith.maximumf %213, %214 : vector<16x32xf32>
    %216 = vector.extract_strided_slice %23 {offsets = [0, 224], sizes = [16, 32], strides = [1, 1]} : vector<16x256xf32> to vector<16x32xf32>
    %217 = arith.addf %215, %216 : vector<16x32xf32>
    %c0_123 = arith.constant 0 : index
    %c0_124 = arith.constant 0 : index
    %218 = vector.load %arg25[%c0_123, %c0_124] : memref<32x16xf32, #tpu.memory_space<vmem>>, vector<32x16xf32>
    %219 = tpu.concatenate %217, %188 in 1 : vector<16x32xf32>, vector<16x32xf32> -> vector<16x64xf32>
    %cst_125 = arith.constant dense<0.000000e+00> : vector<32x64xf32>
    %220 = tpu.matmul %218, %219, %cst_125 {dimension_numbers = #tpu.dot_dimension_numbers<[1], [0], [0], [1], [0, 0, 1, 1], [], []>} : vector<32x16xf32>, vector<16x64xf32>, vector<32x64xf32> -> vector<32x64xf32>
    %221 = vector.extract_strided_slice %220 {offsets = [0, 0], sizes = [32, 32], strides = [1, 1]} : vector<32x64xf32> to vector<32x32xf32>
    %222 = vector.extract_strided_slice %220 {offsets = [0, 32], sizes = [32, 32], strides = [1, 1]} : vector<32x64xf32> to vector<32x32xf32>
    %c7 = arith.constant 7 : index
    %c0_126 = arith.constant 0 : index
    %c0_127 = arith.constant 0 : index
    %223 = vector.load %arg6[%c7, %c0_126, %c0_127] : memref<8x96x32xf32, #tpu.memory_space<vmem>>, vector<1x96x32xf32>
    %224 = vector.shape_cast %223 : vector<1x96x32xf32> to vector<96x32xf32>
    %c7_128 = arith.constant 7 : index
    %c0_129 = arith.constant 0 : index
    %c0_130 = arith.constant 0 : index
    %225 = vector.load %arg5[%c7_128, %c0_129, %c0_130] : memref<8x1x32xf32, #tpu.memory_space<vmem>>, vector<1x1x32xf32>
    %226 = vector.shape_cast %225 : vector<1x1x32xf32> to vector<1x32xf32>
    %c0_131 = arith.constant 0 : index
    %c0_132 = arith.constant 0 : index
    %227 = vector.load %arg24[%c0_131, %c0_132] : memref<32x1xf32, #tpu.memory_space<vmem>>, vector<32x1xf32>
    %c1_i32_133 = arith.constant 1 : i32
    %228 = tpu.dynamic_rotate %221 by %c1_i32_133 dim 0 : vector<32x32xf32>, i32 -> vector<32x32xf32>
    %cst_134 = arith.constant 1.000000e+00 : f32
    %229 = vector.broadcast %cst_134 : f32 to vector<32x1xf32>
    %230 = arith.cmpf oge, %227, %229 : vector<32x1xf32>
    %cst_135 = arith.constant 0.000000e+00 : f32
    %231 = vector.shape_cast %230 : vector<32x1xi1> to vector<32x1xi1>
    %232 = vector.broadcast %231 : vector<32x1xi1> to vector<32x32xi1>
    %233 = vector.broadcast %cst_135 : f32 to vector<32x32xf32>
    %234 = arith.select %232, %228, %233 : vector<32x32xi1>, vector<32x32xf32>
    %c31_i32 = arith.constant 31 : i32
    %235 = tpu.dynamic_rotate %221 by %c31_i32 dim 0 : vector<32x32xf32>, i32 -> vector<32x32xf32>
    %cst_136 = arith.constant 1.400000e+01 : f32
    %236 = vector.broadcast %cst_136 : f32 to vector<32x1xf32>
    %237 = arith.cmpf ole, %227, %236 : vector<32x1xf32>
    %cst_137 = arith.constant 0.000000e+00 : f32
    %238 = vector.shape_cast %237 : vector<32x1xi1> to vector<32x1xi1>
    %239 = vector.broadcast %238 : vector<32x1xi1> to vector<32x32xi1>
    %240 = vector.broadcast %cst_137 : f32 to vector<32x32xf32>
    %241 = arith.select %239, %235, %240 : vector<32x32xi1>, vector<32x32xf32>
    %242 = tpu.concatenate %234, %221, %241 in 1 : vector<32x32xf32>, vector<32x32xf32>, vector<32x32xf32> -> vector<32x96xf32>
    %cst_138 = arith.constant dense<0.000000e+00> : vector<32x32xf32>
    %243 = tpu.matmul %242, %224, %cst_138 {dimension_numbers = #tpu.dot_dimension_numbers<[1], [0], [0], [1], [0, 0, 1, 1], [], []>} : vector<32x96xf32>, vector<96x32xf32>, vector<32x32xf32> -> vector<32x32xf32>
    %244 = vector.broadcast %226 : vector<1x32xf32> to vector<32x32xf32>
    %245 = arith.addf %243, %244 : vector<32x32xf32>
    %cst_139 = arith.constant 0.000000e+00 : f32
    %246 = vector.broadcast %cst_139 : f32 to vector<32x32xf32>
    %247 = arith.maximumf %245, %246 : vector<32x32xf32>
    %248 = arith.addf %247, %222 : vector<32x32xf32>
    %c0_140 = arith.constant 0 : index
    %c0_141 = arith.constant 0 : index
    %c0_142 = arith.constant 0 : index
    %249 = vector.load %arg16[%c0_140, %c0_141, %c0_142] : memref<3x32x16xf32, #tpu.memory_space<vmem>>, vector<1x32x16xf32>
    %250 = vector.shape_cast %249 : vector<1x32x16xf32> to vector<32x16xf32>
    %cst_143 = arith.constant dense<0.000000e+00> : vector<32x16xf32>
    %251 = tpu.matmul %248, %250, %cst_143 {dimension_numbers = #tpu.dot_dimension_numbers<[1], [0], [0], [1], [0, 0, 1, 1], [], []>} : vector<32x32xf32>, vector<32x16xf32>, vector<32x16xf32> -> vector<32x16xf32>
    %c0_144 = arith.constant 0 : index
    %c0_145 = arith.constant 0 : index
    %c0_146 = arith.constant 0 : index
    %252 = vector.load %arg18[%c0_144, %c0_145, %c0_146] : memref<2x32x96xf32, #tpu.memory_space<vmem>>, vector<1x32x96xf32>
    %253 = vector.shape_cast %252 : vector<1x32x96xf32> to vector<32x96xf32>
    %cst_147 = arith.constant dense<0.000000e+00> : vector<32x96xf32>
    %254 = tpu.matmul %248, %253, %cst_147 {dimension_numbers = #tpu.dot_dimension_numbers<[1], [0], [0], [1], [0, 0, 1, 1], [], []>} : vector<32x32xf32>, vector<32x96xf32>, vector<32x96xf32> -> vector<32x96xf32>
    %c0_148 = arith.constant 0 : index
    %c0_149 = arith.constant 0 : index
    %c0_150 = arith.constant 0 : index
    %255 = vector.load %arg17[%c0_148, %c0_149, %c0_150] : memref<2x1x96xf32, #tpu.memory_space<vmem>>, vector<1x1x96xf32>
    %256 = vector.shape_cast %255 : vector<1x1x96xf32> to vector<1x96xf32>
    %257 = vector.broadcast %256 : vector<1x96xf32> to vector<32x96xf32>
    %258 = arith.addf %254, %257 : vector<32x96xf32>
    %259 = vector.extract_strided_slice %258 {offsets = [0, 0], sizes = [32, 16], strides = [1, 1]} : vector<32x96xf32> to vector<32x16xf32>
    %260 = vector.extract_strided_slice %258 {offsets = [0, 32], sizes = [32, 16], strides = [1, 1]} : vector<32x96xf32> to vector<32x16xf32>
    %261 = vector.extract_strided_slice %258 {offsets = [0, 64], sizes = [32, 16], strides = [1, 1]} : vector<32x96xf32> to vector<32x16xf32>
    %cst_151 = arith.constant dense<0.000000e+00> : vector<32x32xf32>
    %262 = tpu.matmul %259, %260, %cst_151 {dimension_numbers = #tpu.dot_dimension_numbers<[1], [1], [0], [0], [0, 0, 1, 0], [], []>} : vector<32x16xf32>, vector<32x16xf32>, vector<32x32xf32> -> vector<32x32xf32>
    %263 = arith.addf %262, %21 : vector<32x32xf32>
    %cst_152 = arith.constant dense<0xFF800000> : vector<32xf32>
    %264 = vector.multi_reduction <maximumf>, %263, %cst_152 [1] : vector<32x32xf32> to vector<32xf32>
    %265 = vector.shape_cast %264 : vector<32xf32> to vector<32x1xf32>
    %266 = vector.broadcast %265 : vector<32x1xf32> to vector<32x32xf32>
    %267 = arith.subf %263, %266 : vector<32x32xf32>
    %268 = math.exp %267 : vector<32x32xf32>
    %cst_153 = arith.constant dense<0.000000e+00> : vector<32xf32>
    %269 = vector.multi_reduction <add>, %268, %cst_153 [1] : vector<32x32xf32> to vector<32xf32>
    %270 = vector.shape_cast %269 : vector<32xf32> to vector<32x1xf32>
    %271 = tpu.reciprocal %270 {approx = true} : vector<32x1xf32> -> vector<32x1xf32>
    %272 = vector.broadcast %271 : vector<32x1xf32> to vector<32x32xf32>
    %273 = arith.mulf %268, %272 : vector<32x32xf32>
    %cst_154 = arith.constant dense<0.000000e+00> : vector<32x16xf32>
    %274 = tpu.matmul %273, %261, %cst_154 {dimension_numbers = #tpu.dot_dimension_numbers<[1], [0], [0], [1], [0, 0, 1, 1], [], []>} : vector<32x32xf32>, vector<32x16xf32>, vector<32x16xf32> -> vector<32x16xf32>
    %275 = vector.extract_strided_slice %258 {offsets = [0, 16], sizes = [32, 16], strides = [1, 1]} : vector<32x96xf32> to vector<32x16xf32>
    %276 = vector.extract_strided_slice %258 {offsets = [0, 48], sizes = [32, 16], strides = [1, 1]} : vector<32x96xf32> to vector<32x16xf32>
    %277 = vector.extract_strided_slice %258 {offsets = [0, 80], sizes = [32, 16], strides = [1, 1]} : vector<32x96xf32> to vector<32x16xf32>
    %cst_155 = arith.constant dense<0.000000e+00> : vector<32x32xf32>
    %278 = tpu.matmul %275, %276, %cst_155 {dimension_numbers = #tpu.dot_dimension_numbers<[1], [1], [0], [0], [0, 0, 1, 0], [], []>} : vector<32x16xf32>, vector<32x16xf32>, vector<32x32xf32> -> vector<32x32xf32>
    %279 = arith.addf %278, %21 : vector<32x32xf32>
    %cst_156 = arith.constant dense<0xFF800000> : vector<32xf32>
    %280 = vector.multi_reduction <maximumf>, %279, %cst_156 [1] : vector<32x32xf32> to vector<32xf32>
    %281 = vector.shape_cast %280 : vector<32xf32> to vector<32x1xf32>
    %282 = vector.broadcast %281 : vector<32x1xf32> to vector<32x32xf32>
    %283 = arith.subf %279, %282 : vector<32x32xf32>
    %284 = math.exp %283 : vector<32x32xf32>
    %cst_157 = arith.constant dense<0.000000e+00> : vector<32xf32>
    %285 = vector.multi_reduction <add>, %284, %cst_157 [1] : vector<32x32xf32> to vector<32xf32>
    %286 = vector.shape_cast %285 : vector<32xf32> to vector<32x1xf32>
    %287 = tpu.reciprocal %286 {approx = true} : vector<32x1xf32> -> vector<32x1xf32>
    %288 = vector.broadcast %287 : vector<32x1xf32> to vector<32x32xf32>
    %289 = arith.mulf %284, %288 : vector<32x32xf32>
    %cst_158 = arith.constant dense<0.000000e+00> : vector<32x16xf32>
    %290 = tpu.matmul %289, %277, %cst_158 {dimension_numbers = #tpu.dot_dimension_numbers<[1], [0], [0], [1], [0, 0, 1, 1], [], []>} : vector<32x32xf32>, vector<32x16xf32>, vector<32x16xf32> -> vector<32x16xf32>
    %291 = tpu.concatenate %274, %290 in 1 : vector<32x16xf32>, vector<32x16xf32> -> vector<32x32xf32>
    %c0_159 = arith.constant 0 : index
    %c0_160 = arith.constant 0 : index
    %c0_161 = arith.constant 0 : index
    %292 = vector.load %arg19[%c0_159, %c0_160, %c0_161] : memref<2x32x32xf32, #tpu.memory_space<vmem>>, vector<1x32x32xf32>
    %293 = vector.shape_cast %292 : vector<1x32x32xf32> to vector<32x32xf32>
    %cst_162 = arith.constant dense<0.000000e+00> : vector<32x32xf32>
    %294 = tpu.matmul %291, %293, %cst_162 {dimension_numbers = #tpu.dot_dimension_numbers<[1], [0], [0], [1], [0, 0, 1, 1], [], []>} : vector<32x32xf32>, vector<32x32xf32>, vector<32x32xf32> -> vector<32x32xf32>
    %c0_163 = arith.constant 0 : index
    %c0_164 = arith.constant 0 : index
    %c0_165 = arith.constant 0 : index
    %295 = vector.load %arg2[%c0_163, %c0_164, %c0_165] : memref<2x1x32xf32, #tpu.memory_space<vmem>>, vector<1x1x32xf32>
    %296 = vector.shape_cast %295 : vector<1x1x32xf32> to vector<1x32xf32>
    %297 = vector.broadcast %296 : vector<1x32xf32> to vector<32x32xf32>
    %298 = arith.addf %294, %297 : vector<32x32xf32>
    %299 = arith.addf %298, %248 : vector<32x32xf32>
    %c0_166 = arith.constant 0 : index
    %c0_167 = arith.constant 0 : index
    %c0_168 = arith.constant 0 : index
    %300 = vector.load %arg13[%c0_166, %c0_167, %c0_168] : memref<2x1x32xf32, #tpu.memory_space<vmem>>, vector<1x1x32xf32>
    %301 = vector.shape_cast %300 : vector<1x1x32xf32> to vector<1x32xf32>
    %c0_169 = arith.constant 0 : index
    %c0_170 = arith.constant 0 : index
    %c0_171 = arith.constant 0 : index
    %302 = vector.load %arg12[%c0_169, %c0_170, %c0_171] : memref<2x1x32xf32, #tpu.memory_space<vmem>>, vector<1x1x32xf32>
    %303 = vector.shape_cast %302 : vector<1x1x32xf32> to vector<1x32xf32>
    %cst_172 = arith.constant dense<0.000000e+00> : vector<32xf32>
    %304 = vector.multi_reduction <add>, %299, %cst_172 [1] : vector<32x32xf32> to vector<32xf32>
    %305 = vector.shape_cast %304 : vector<32xf32> to vector<32x1xf32>
    %cst_173 = arith.constant 3.200000e+01 : f32
    %306 = vector.broadcast %cst_173 : f32 to vector<32x1xf32>
    %307 = arith.divf %305, %306 : vector<32x1xf32>
    %308 = vector.broadcast %307 : vector<32x1xf32> to vector<32x32xf32>
    %309 = arith.subf %299, %308 : vector<32x32xf32>
    %310 = vector.broadcast %307 : vector<32x1xf32> to vector<32x32xf32>
    %311 = arith.subf %299, %310 : vector<32x32xf32>
    %312 = arith.mulf %309, %311 : vector<32x32xf32>
    %cst_174 = arith.constant dense<0.000000e+00> : vector<32xf32>
    %313 = vector.multi_reduction <add>, %312, %cst_174 [1] : vector<32x32xf32> to vector<32xf32>
    %314 = vector.shape_cast %313 : vector<32xf32> to vector<32x1xf32>
    %cst_175 = arith.constant 3.200000e+01 : f32
    %315 = vector.broadcast %cst_175 : f32 to vector<32x1xf32>
    %316 = arith.divf %314, %315 : vector<32x1xf32>
    %317 = vector.broadcast %307 : vector<32x1xf32> to vector<32x32xf32>
    %318 = arith.subf %299, %317 : vector<32x32xf32>
    %cst_176 = arith.constant 9.99999974E-6 : f32
    %319 = vector.broadcast %cst_176 : f32 to vector<32x1xf32>
    %320 = arith.addf %316, %319 : vector<32x1xf32>
    %321 = math.rsqrt %320 : vector<32x1xf32>
    %322 = vector.broadcast %321 : vector<32x1xf32> to vector<32x32xf32>
    %323 = arith.mulf %318, %322 : vector<32x32xf32>
    %324 = vector.broadcast %301 : vector<1x32xf32> to vector<32x32xf32>
    %325 = arith.mulf %323, %324 : vector<32x32xf32>
    %326 = vector.broadcast %303 : vector<1x32xf32> to vector<32x32xf32>
    %327 = arith.addf %325, %326 : vector<32x32xf32>
    %c0_177 = arith.constant 0 : index
    %c0_178 = arith.constant 0 : index
    %c0_179 = arith.constant 0 : index
    %328 = vector.load %arg10[%c0_177, %c0_178, %c0_179] : memref<2x288x128xf32, #tpu.memory_space<vmem>>, vector<1x288x128xf32>
    %329 = vector.shape_cast %328 : vector<1x288x128xf32> to vector<288x128xf32>
    %c0_180 = arith.constant 0 : index
    %c0_181 = arith.constant 0 : index
    %c0_182 = arith.constant 0 : index
    %330 = vector.load %arg8[%c0_180, %c0_181, %c0_182] : memref<2x1x128xf32, #tpu.memory_space<vmem>>, vector<1x1x128xf32>
    %331 = vector.shape_cast %330 : vector<1x1x128xf32> to vector<1x128xf32>
    %c0_183 = arith.constant 0 : index
    %c0_184 = arith.constant 0 : index
    %332 = vector.load %arg24[%c0_183, %c0_184] : memref<32x1xf32, #tpu.memory_space<vmem>>, vector<32x1xf32>
    %c4_i32 = arith.constant 4 : i32
    %333 = tpu.dynamic_rotate %327 by %c4_i32 dim 0 : vector<32x32xf32>, i32 -> vector<32x32xf32>
    %cst_185 = arith.constant 4.000000e+00 : f32
    %334 = vector.broadcast %cst_185 : f32 to vector<32x1xf32>
    %335 = arith.cmpf oge, %332, %334 : vector<32x1xf32>
    %cst_186 = arith.constant 0.000000e+00 : f32
    %336 = vector.shape_cast %335 : vector<32x1xi1> to vector<32x1xi1>
    %337 = vector.broadcast %336 : vector<32x1xi1> to vector<32x32xi1>
    %338 = vector.broadcast %cst_186 : f32 to vector<32x32xf32>
    %339 = arith.select %337, %333, %338 : vector<32x32xi1>, vector<32x32xf32>
    %c3_i32 = arith.constant 3 : i32
    %340 = tpu.dynamic_rotate %327 by %c3_i32 dim 0 : vector<32x32xf32>, i32 -> vector<32x32xf32>
    %cst_187 = arith.constant 3.000000e+00 : f32
    %341 = vector.broadcast %cst_187 : f32 to vector<32x1xf32>
    %342 = arith.cmpf oge, %332, %341 : vector<32x1xf32>
    %cst_188 = arith.constant 0.000000e+00 : f32
    %343 = vector.shape_cast %342 : vector<32x1xi1> to vector<32x1xi1>
    %344 = vector.broadcast %343 : vector<32x1xi1> to vector<32x32xi1>
    %345 = vector.broadcast %cst_188 : f32 to vector<32x32xf32>
    %346 = arith.select %344, %340, %345 : vector<32x32xi1>, vector<32x32xf32>
    %c2_i32 = arith.constant 2 : i32
    %347 = tpu.dynamic_rotate %327 by %c2_i32 dim 0 : vector<32x32xf32>, i32 -> vector<32x32xf32>
    %cst_189 = arith.constant 2.000000e+00 : f32
    %348 = vector.broadcast %cst_189 : f32 to vector<32x1xf32>
    %349 = arith.cmpf oge, %332, %348 : vector<32x1xf32>
    %cst_190 = arith.constant 0.000000e+00 : f32
    %350 = vector.shape_cast %349 : vector<32x1xi1> to vector<32x1xi1>
    %351 = vector.broadcast %350 : vector<32x1xi1> to vector<32x32xi1>
    %352 = vector.broadcast %cst_190 : f32 to vector<32x32xf32>
    %353 = arith.select %351, %347, %352 : vector<32x32xi1>, vector<32x32xf32>
    %c1_i32_191 = arith.constant 1 : i32
    %354 = tpu.dynamic_rotate %327 by %c1_i32_191 dim 0 : vector<32x32xf32>, i32 -> vector<32x32xf32>
    %cst_192 = arith.constant 1.000000e+00 : f32
    %355 = vector.broadcast %cst_192 : f32 to vector<32x1xf32>
    %356 = arith.cmpf oge, %332, %355 : vector<32x1xf32>
    %cst_193 = arith.constant 0.000000e+00 : f32
    %357 = vector.shape_cast %356 : vector<32x1xi1> to vector<32x1xi1>
    %358 = vector.broadcast %357 : vector<32x1xi1> to vector<32x32xi1>
    %359 = vector.broadcast %cst_193 : f32 to vector<32x32xf32>
    %360 = arith.select %358, %354, %359 : vector<32x32xi1>, vector<32x32xf32>
    %c31_i32_194 = arith.constant 31 : i32
    %361 = tpu.dynamic_rotate %327 by %c31_i32_194 dim 0 : vector<32x32xf32>, i32 -> vector<32x32xf32>
    %cst_195 = arith.constant 1.400000e+01 : f32
    %362 = vector.broadcast %cst_195 : f32 to vector<32x1xf32>
    %363 = arith.cmpf ole, %332, %362 : vector<32x1xf32>
    %cst_196 = arith.constant 0.000000e+00 : f32
    %364 = vector.shape_cast %363 : vector<32x1xi1> to vector<32x1xi1>
    %365 = vector.broadcast %364 : vector<32x1xi1> to vector<32x32xi1>
    %366 = vector.broadcast %cst_196 : f32 to vector<32x32xf32>
    %367 = arith.select %365, %361, %366 : vector<32x32xi1>, vector<32x32xf32>
    %c30_i32 = arith.constant 30 : i32
    %368 = tpu.dynamic_rotate %327 by %c30_i32 dim 0 : vector<32x32xf32>, i32 -> vector<32x32xf32>
    %cst_197 = arith.constant 1.300000e+01 : f32
    %369 = vector.broadcast %cst_197 : f32 to vector<32x1xf32>
    %370 = arith.cmpf ole, %332, %369 : vector<32x1xf32>
    %cst_198 = arith.constant 0.000000e+00 : f32
    %371 = vector.shape_cast %370 : vector<32x1xi1> to vector<32x1xi1>
    %372 = vector.broadcast %371 : vector<32x1xi1> to vector<32x32xi1>
    %373 = vector.broadcast %cst_198 : f32 to vector<32x32xf32>
    %374 = arith.select %372, %368, %373 : vector<32x32xi1>, vector<32x32xf32>
    %c29_i32 = arith.constant 29 : i32
    %375 = tpu.dynamic_rotate %327 by %c29_i32 dim 0 : vector<32x32xf32>, i32 -> vector<32x32xf32>
    %cst_199 = arith.constant 1.200000e+01 : f32
    %376 = vector.broadcast %cst_199 : f32 to vector<32x1xf32>
    %377 = arith.cmpf ole, %332, %376 : vector<32x1xf32>
    %cst_200 = arith.constant 0.000000e+00 : f32
    %378 = vector.shape_cast %377 : vector<32x1xi1> to vector<32x1xi1>
    %379 = vector.broadcast %378 : vector<32x1xi1> to vector<32x32xi1>
    %380 = vector.broadcast %cst_200 : f32 to vector<32x32xf32>
    %381 = arith.select %379, %375, %380 : vector<32x32xi1>, vector<32x32xf32>
    %c28_i32 = arith.constant 28 : i32
    %382 = tpu.dynamic_rotate %327 by %c28_i32 dim 0 : vector<32x32xf32>, i32 -> vector<32x32xf32>
    %cst_201 = arith.constant 1.100000e+01 : f32
    %383 = vector.broadcast %cst_201 : f32 to vector<32x1xf32>
    %384 = arith.cmpf ole, %332, %383 : vector<32x1xf32>
    %cst_202 = arith.constant 0.000000e+00 : f32
    %385 = vector.shape_cast %384 : vector<32x1xi1> to vector<32x1xi1>
    %386 = vector.broadcast %385 : vector<32x1xi1> to vector<32x32xi1>
    %387 = vector.broadcast %cst_202 : f32 to vector<32x32xf32>
    %388 = arith.select %386, %382, %387 : vector<32x32xi1>, vector<32x32xf32>
    %389 = tpu.concatenate %339, %346, %353, %360, %327, %367, %374, %381, %388 in 1 : vector<32x32xf32>, vector<32x32xf32>, vector<32x32xf32>, vector<32x32xf32>, vector<32x32xf32>, vector<32x32xf32>, vector<32x32xf32>, vector<32x32xf32>, vector<32x32xf32> -> vector<32x288xf32>
    %cst_203 = arith.constant dense<0.000000e+00> : vector<32x128xf32>
    %390 = tpu.matmul %389, %329, %cst_203 {dimension_numbers = #tpu.dot_dimension_numbers<[1], [0], [0], [1], [0, 0, 1, 1], [], []>} : vector<32x288xf32>, vector<288x128xf32>, vector<32x128xf32> -> vector<32x128xf32>
    %391 = vector.broadcast %331 : vector<1x128xf32> to vector<32x128xf32>
    %392 = arith.addf %390, %391 : vector<32x128xf32>
    %cst_204 = arith.constant 0.000000e+00 : f32
    %393 = vector.broadcast %cst_204 : f32 to vector<32x128xf32>
    %394 = arith.maximumf %392, %393 : vector<32x128xf32>
    %c0_205 = arith.constant 0 : index
    %c0_206 = arith.constant 0 : index
    %c0_207 = arith.constant 0 : index
    %395 = vector.load %arg11[%c0_205, %c0_206, %c0_207] : memref<2x128x32xf32, #tpu.memory_space<vmem>>, vector<1x128x32xf32>
    %396 = vector.shape_cast %395 : vector<1x128x32xf32> to vector<128x32xf32>
    %cst_208 = arith.constant dense<0.000000e+00> : vector<32x32xf32>
    %397 = tpu.matmul %394, %396, %cst_208 {dimension_numbers = #tpu.dot_dimension_numbers<[1], [0], [0], [1], [0, 0, 1, 1], [], []>} : vector<32x128xf32>, vector<128x32xf32>, vector<32x32xf32> -> vector<32x32xf32>
    %c0_209 = arith.constant 0 : index
    %c0_210 = arith.constant 0 : index
    %c0_211 = arith.constant 0 : index
    %398 = vector.load %arg9[%c0_209, %c0_210, %c0_211] : memref<2x1x32xf32, #tpu.memory_space<vmem>>, vector<1x1x32xf32>
    %399 = vector.shape_cast %398 : vector<1x1x32xf32> to vector<1x32xf32>
    %400 = vector.broadcast %399 : vector<1x32xf32> to vector<32x32xf32>
    %401 = arith.addf %397, %400 : vector<32x32xf32>
    %402 = arith.addf %401, %327 : vector<32x32xf32>
    %c0_212 = arith.constant 0 : index
    %c0_213 = arith.constant 0 : index
    %c0_214 = arith.constant 0 : index
    %403 = vector.load %arg15[%c0_212, %c0_213, %c0_214] : memref<2x1x32xf32, #tpu.memory_space<vmem>>, vector<1x1x32xf32>
    %404 = vector.shape_cast %403 : vector<1x1x32xf32> to vector<1x32xf32>
    %c0_215 = arith.constant 0 : index
    %c0_216 = arith.constant 0 : index
    %c0_217 = arith.constant 0 : index
    %405 = vector.load %arg14[%c0_215, %c0_216, %c0_217] : memref<2x1x32xf32, #tpu.memory_space<vmem>>, vector<1x1x32xf32>
    %406 = vector.shape_cast %405 : vector<1x1x32xf32> to vector<1x32xf32>
    %cst_218 = arith.constant dense<0.000000e+00> : vector<32xf32>
    %407 = vector.multi_reduction <add>, %402, %cst_218 [1] : vector<32x32xf32> to vector<32xf32>
    %408 = vector.shape_cast %407 : vector<32xf32> to vector<32x1xf32>
    %cst_219 = arith.constant 3.200000e+01 : f32
    %409 = vector.broadcast %cst_219 : f32 to vector<32x1xf32>
    %410 = arith.divf %408, %409 : vector<32x1xf32>
    %411 = vector.broadcast %410 : vector<32x1xf32> to vector<32x32xf32>
    %412 = arith.subf %402, %411 : vector<32x32xf32>
    %413 = vector.broadcast %410 : vector<32x1xf32> to vector<32x32xf32>
    %414 = arith.subf %402, %413 : vector<32x32xf32>
    %415 = arith.mulf %412, %414 : vector<32x32xf32>
    %cst_220 = arith.constant dense<0.000000e+00> : vector<32xf32>
    %416 = vector.multi_reduction <add>, %415, %cst_220 [1] : vector<32x32xf32> to vector<32xf32>
    %417 = vector.shape_cast %416 : vector<32xf32> to vector<32x1xf32>
    %cst_221 = arith.constant 3.200000e+01 : f32
    %418 = vector.broadcast %cst_221 : f32 to vector<32x1xf32>
    %419 = arith.divf %417, %418 : vector<32x1xf32>
    %420 = vector.broadcast %410 : vector<32x1xf32> to vector<32x32xf32>
    %421 = arith.subf %402, %420 : vector<32x32xf32>
    %cst_222 = arith.constant 9.99999974E-6 : f32
    %422 = vector.broadcast %cst_222 : f32 to vector<32x1xf32>
    %423 = arith.addf %419, %422 : vector<32x1xf32>
    %424 = math.rsqrt %423 : vector<32x1xf32>
    %425 = vector.broadcast %424 : vector<32x1xf32> to vector<32x32xf32>
    %426 = arith.mulf %421, %425 : vector<32x32xf32>
    %427 = vector.broadcast %404 : vector<1x32xf32> to vector<32x32xf32>
    %428 = arith.mulf %426, %427 : vector<32x32xf32>
    %429 = vector.broadcast %406 : vector<1x32xf32> to vector<32x32xf32>
    %430 = arith.addf %428, %429 : vector<32x32xf32>
    %c1_223 = arith.constant 1 : index
    %c0_224 = arith.constant 0 : index
    %c0_225 = arith.constant 0 : index
    %431 = vector.load %arg16[%c1_223, %c0_224, %c0_225] : memref<3x32x16xf32, #tpu.memory_space<vmem>>, vector<1x32x16xf32>
    %432 = vector.shape_cast %431 : vector<1x32x16xf32> to vector<32x16xf32>
    %cst_226 = arith.constant dense<0.000000e+00> : vector<32x16xf32>
    %433 = tpu.matmul %430, %432, %cst_226 {dimension_numbers = #tpu.dot_dimension_numbers<[1], [0], [0], [1], [0, 0, 1, 1], [], []>} : vector<32x32xf32>, vector<32x16xf32>, vector<32x16xf32> -> vector<32x16xf32>
    %c1_227 = arith.constant 1 : index
    %c0_228 = arith.constant 0 : index
    %c0_229 = arith.constant 0 : index
    %434 = vector.load %arg18[%c1_227, %c0_228, %c0_229] : memref<2x32x96xf32, #tpu.memory_space<vmem>>, vector<1x32x96xf32>
    %435 = vector.shape_cast %434 : vector<1x32x96xf32> to vector<32x96xf32>
    %cst_230 = arith.constant dense<0.000000e+00> : vector<32x96xf32>
    %436 = tpu.matmul %430, %435, %cst_230 {dimension_numbers = #tpu.dot_dimension_numbers<[1], [0], [0], [1], [0, 0, 1, 1], [], []>} : vector<32x32xf32>, vector<32x96xf32>, vector<32x96xf32> -> vector<32x96xf32>
    %c1_231 = arith.constant 1 : index
    %c0_232 = arith.constant 0 : index
    %c0_233 = arith.constant 0 : index
    %437 = vector.load %arg17[%c1_231, %c0_232, %c0_233] : memref<2x1x96xf32, #tpu.memory_space<vmem>>, vector<1x1x96xf32>
    %438 = vector.shape_cast %437 : vector<1x1x96xf32> to vector<1x96xf32>
    %439 = vector.broadcast %438 : vector<1x96xf32> to vector<32x96xf32>
    %440 = arith.addf %436, %439 : vector<32x96xf32>
    %441 = vector.extract_strided_slice %440 {offsets = [0, 0], sizes = [32, 16], strides = [1, 1]} : vector<32x96xf32> to vector<32x16xf32>
    %442 = vector.extract_strided_slice %440 {offsets = [0, 32], sizes = [32, 16], strides = [1, 1]} : vector<32x96xf32> to vector<32x16xf32>
    %443 = vector.extract_strided_slice %440 {offsets = [0, 64], sizes = [32, 16], strides = [1, 1]} : vector<32x96xf32> to vector<32x16xf32>
    %cst_234 = arith.constant dense<0.000000e+00> : vector<32x32xf32>
    %444 = tpu.matmul %441, %442, %cst_234 {dimension_numbers = #tpu.dot_dimension_numbers<[1], [1], [0], [0], [0, 0, 1, 0], [], []>} : vector<32x16xf32>, vector<32x16xf32>, vector<32x32xf32> -> vector<32x32xf32>
    %445 = arith.addf %444, %21 : vector<32x32xf32>
    %cst_235 = arith.constant dense<0xFF800000> : vector<32xf32>
    %446 = vector.multi_reduction <maximumf>, %445, %cst_235 [1] : vector<32x32xf32> to vector<32xf32>
    %447 = vector.shape_cast %446 : vector<32xf32> to vector<32x1xf32>
    %448 = vector.broadcast %447 : vector<32x1xf32> to vector<32x32xf32>
    %449 = arith.subf %445, %448 : vector<32x32xf32>
    %450 = math.exp %449 : vector<32x32xf32>
    %cst_236 = arith.constant dense<0.000000e+00> : vector<32xf32>
    %451 = vector.multi_reduction <add>, %450, %cst_236 [1] : vector<32x32xf32> to vector<32xf32>
    %452 = vector.shape_cast %451 : vector<32xf32> to vector<32x1xf32>
    %453 = tpu.reciprocal %452 {approx = true} : vector<32x1xf32> -> vector<32x1xf32>
    %454 = vector.broadcast %453 : vector<32x1xf32> to vector<32x32xf32>
    %455 = arith.mulf %450, %454 : vector<32x32xf32>
    %cst_237 = arith.constant dense<0.000000e+00> : vector<32x16xf32>
    %456 = tpu.matmul %455, %443, %cst_237 {dimension_numbers = #tpu.dot_dimension_numbers<[1], [0], [0], [1], [0, 0, 1, 1], [], []>} : vector<32x32xf32>, vector<32x16xf32>, vector<32x16xf32> -> vector<32x16xf32>
    %457 = vector.extract_strided_slice %440 {offsets = [0, 16], sizes = [32, 16], strides = [1, 1]} : vector<32x96xf32> to vector<32x16xf32>
    %458 = vector.extract_strided_slice %440 {offsets = [0, 48], sizes = [32, 16], strides = [1, 1]} : vector<32x96xf32> to vector<32x16xf32>
    %459 = vector.extract_strided_slice %440 {offsets = [0, 80], sizes = [32, 16], strides = [1, 1]} : vector<32x96xf32> to vector<32x16xf32>
    %cst_238 = arith.constant dense<0.000000e+00> : vector<32x32xf32>
    %460 = tpu.matmul %457, %458, %cst_238 {dimension_numbers = #tpu.dot_dimension_numbers<[1], [1], [0], [0], [0, 0, 1, 0], [], []>} : vector<32x16xf32>, vector<32x16xf32>, vector<32x32xf32> -> vector<32x32xf32>
    %461 = arith.addf %460, %21 : vector<32x32xf32>
    %cst_239 = arith.constant dense<0xFF800000> : vector<32xf32>
    %462 = vector.multi_reduction <maximumf>, %461, %cst_239 [1] : vector<32x32xf32> to vector<32xf32>
    %463 = vector.shape_cast %462 : vector<32xf32> to vector<32x1xf32>
    %464 = vector.broadcast %463 : vector<32x1xf32> to vector<32x32xf32>
    %465 = arith.subf %461, %464 : vector<32x32xf32>
    %466 = math.exp %465 : vector<32x32xf32>
    %cst_240 = arith.constant dense<0.000000e+00> : vector<32xf32>
    %467 = vector.multi_reduction <add>, %466, %cst_240 [1] : vector<32x32xf32> to vector<32xf32>
    %468 = vector.shape_cast %467 : vector<32xf32> to vector<32x1xf32>
    %469 = tpu.reciprocal %468 {approx = true} : vector<32x1xf32> -> vector<32x1xf32>
    %470 = vector.broadcast %469 : vector<32x1xf32> to vector<32x32xf32>
    %471 = arith.mulf %466, %470 : vector<32x32xf32>
    %cst_241 = arith.constant dense<0.000000e+00> : vector<32x16xf32>
    %472 = tpu.matmul %471, %459, %cst_241 {dimension_numbers = #tpu.dot_dimension_numbers<[1], [0], [0], [1], [0, 0, 1, 1], [], []>} : vector<32x32xf32>, vector<32x16xf32>, vector<32x16xf32> -> vector<32x16xf32>
    %473 = tpu.concatenate %456, %472 in 1 : vector<32x16xf32>, vector<32x16xf32> -> vector<32x32xf32>
    %c1_242 = arith.constant 1 : index
    %c0_243 = arith.constant 0 : index
    %c0_244 = arith.constant 0 : index
    %474 = vector.load %arg19[%c1_242, %c0_243, %c0_244] : memref<2x32x32xf32, #tpu.memory_space<vmem>>, vector<1x32x32xf32>
    %475 = vector.shape_cast %474 : vector<1x32x32xf32> to vector<32x32xf32>
    %cst_245 = arith.constant dense<0.000000e+00> : vector<32x32xf32>
    %476 = tpu.matmul %473, %475, %cst_245 {dimension_numbers = #tpu.dot_dimension_numbers<[1], [0], [0], [1], [0, 0, 1, 1], [], []>} : vector<32x32xf32>, vector<32x32xf32>, vector<32x32xf32> -> vector<32x32xf32>
    %c1_246 = arith.constant 1 : index
    %c0_247 = arith.constant 0 : index
    %c0_248 = arith.constant 0 : index
    %477 = vector.load %arg2[%c1_246, %c0_247, %c0_248] : memref<2x1x32xf32, #tpu.memory_space<vmem>>, vector<1x1x32xf32>
    %478 = vector.shape_cast %477 : vector<1x1x32xf32> to vector<1x32xf32>
    %479 = vector.broadcast %478 : vector<1x32xf32> to vector<32x32xf32>
    %480 = arith.addf %476, %479 : vector<32x32xf32>
    %481 = arith.addf %480, %430 : vector<32x32xf32>
    %c1_249 = arith.constant 1 : index
    %c0_250 = arith.constant 0 : index
    %c0_251 = arith.constant 0 : index
    %482 = vector.load %arg13[%c1_249, %c0_250, %c0_251] : memref<2x1x32xf32, #tpu.memory_space<vmem>>, vector<1x1x32xf32>
    %483 = vector.shape_cast %482 : vector<1x1x32xf32> to vector<1x32xf32>
    %c1_252 = arith.constant 1 : index
    %c0_253 = arith.constant 0 : index
    %c0_254 = arith.constant 0 : index
    %484 = vector.load %arg12[%c1_252, %c0_253, %c0_254] : memref<2x1x32xf32, #tpu.memory_space<vmem>>, vector<1x1x32xf32>
    %485 = vector.shape_cast %484 : vector<1x1x32xf32> to vector<1x32xf32>
    %cst_255 = arith.constant dense<0.000000e+00> : vector<32xf32>
    %486 = vector.multi_reduction <add>, %481, %cst_255 [1] : vector<32x32xf32> to vector<32xf32>
    %487 = vector.shape_cast %486 : vector<32xf32> to vector<32x1xf32>
    %cst_256 = arith.constant 3.200000e+01 : f32
    %488 = vector.broadcast %cst_256 : f32 to vector<32x1xf32>
    %489 = arith.divf %487, %488 : vector<32x1xf32>
    %490 = vector.broadcast %489 : vector<32x1xf32> to vector<32x32xf32>
    %491 = arith.subf %481, %490 : vector<32x32xf32>
    %492 = vector.broadcast %489 : vector<32x1xf32> to vector<32x32xf32>
    %493 = arith.subf %481, %492 : vector<32x32xf32>
    %494 = arith.mulf %491, %493 : vector<32x32xf32>
    %cst_257 = arith.constant dense<0.000000e+00> : vector<32xf32>
    %495 = vector.multi_reduction <add>, %494, %cst_257 [1] : vector<32x32xf32> to vector<32xf32>
    %496 = vector.shape_cast %495 : vector<32xf32> to vector<32x1xf32>
    %cst_258 = arith.constant 3.200000e+01 : f32
    %497 = vector.broadcast %cst_258 : f32 to vector<32x1xf32>
    %498 = arith.divf %496, %497 : vector<32x1xf32>
    %499 = vector.broadcast %489 : vector<32x1xf32> to vector<32x32xf32>
    %500 = arith.subf %481, %499 : vector<32x32xf32>
    %cst_259 = arith.constant 9.99999974E-6 : f32
    %501 = vector.broadcast %cst_259 : f32 to vector<32x1xf32>
    %502 = arith.addf %498, %501 : vector<32x1xf32>
    %503 = math.rsqrt %502 : vector<32x1xf32>
    %504 = vector.broadcast %503 : vector<32x1xf32> to vector<32x32xf32>
    %505 = arith.mulf %500, %504 : vector<32x32xf32>
    %506 = vector.broadcast %483 : vector<1x32xf32> to vector<32x32xf32>
    %507 = arith.mulf %505, %506 : vector<32x32xf32>
    %508 = vector.broadcast %485 : vector<1x32xf32> to vector<32x32xf32>
    %509 = arith.addf %507, %508 : vector<32x32xf32>
    %c1_260 = arith.constant 1 : index
    %c0_261 = arith.constant 0 : index
    %c0_262 = arith.constant 0 : index
    %510 = vector.load %arg10[%c1_260, %c0_261, %c0_262] : memref<2x288x128xf32, #tpu.memory_space<vmem>>, vector<1x288x128xf32>
    %511 = vector.shape_cast %510 : vector<1x288x128xf32> to vector<288x128xf32>
    %c1_263 = arith.constant 1 : index
    %c0_264 = arith.constant 0 : index
    %c0_265 = arith.constant 0 : index
    %512 = vector.load %arg8[%c1_263, %c0_264, %c0_265] : memref<2x1x128xf32, #tpu.memory_space<vmem>>, vector<1x1x128xf32>
    %513 = vector.shape_cast %512 : vector<1x1x128xf32> to vector<1x128xf32>
    %c0_266 = arith.constant 0 : index
    %c0_267 = arith.constant 0 : index
    %514 = vector.load %arg24[%c0_266, %c0_267] : memref<32x1xf32, #tpu.memory_space<vmem>>, vector<32x1xf32>
    %c4_i32_268 = arith.constant 4 : i32
    %515 = tpu.dynamic_rotate %509 by %c4_i32_268 dim 0 : vector<32x32xf32>, i32 -> vector<32x32xf32>
    %cst_269 = arith.constant 4.000000e+00 : f32
    %516 = vector.broadcast %cst_269 : f32 to vector<32x1xf32>
    %517 = arith.cmpf oge, %514, %516 : vector<32x1xf32>
    %cst_270 = arith.constant 0.000000e+00 : f32
    %518 = vector.shape_cast %517 : vector<32x1xi1> to vector<32x1xi1>
    %519 = vector.broadcast %518 : vector<32x1xi1> to vector<32x32xi1>
    %520 = vector.broadcast %cst_270 : f32 to vector<32x32xf32>
    %521 = arith.select %519, %515, %520 : vector<32x32xi1>, vector<32x32xf32>
    %c3_i32_271 = arith.constant 3 : i32
    %522 = tpu.dynamic_rotate %509 by %c3_i32_271 dim 0 : vector<32x32xf32>, i32 -> vector<32x32xf32>
    %cst_272 = arith.constant 3.000000e+00 : f32
    %523 = vector.broadcast %cst_272 : f32 to vector<32x1xf32>
    %524 = arith.cmpf oge, %514, %523 : vector<32x1xf32>
    %cst_273 = arith.constant 0.000000e+00 : f32
    %525 = vector.shape_cast %524 : vector<32x1xi1> to vector<32x1xi1>
    %526 = vector.broadcast %525 : vector<32x1xi1> to vector<32x32xi1>
    %527 = vector.broadcast %cst_273 : f32 to vector<32x32xf32>
    %528 = arith.select %526, %522, %527 : vector<32x32xi1>, vector<32x32xf32>
    %c2_i32_274 = arith.constant 2 : i32
    %529 = tpu.dynamic_rotate %509 by %c2_i32_274 dim 0 : vector<32x32xf32>, i32 -> vector<32x32xf32>
    %cst_275 = arith.constant 2.000000e+00 : f32
    %530 = vector.broadcast %cst_275 : f32 to vector<32x1xf32>
    %531 = arith.cmpf oge, %514, %530 : vector<32x1xf32>
    %cst_276 = arith.constant 0.000000e+00 : f32
    %532 = vector.shape_cast %531 : vector<32x1xi1> to vector<32x1xi1>
    %533 = vector.broadcast %532 : vector<32x1xi1> to vector<32x32xi1>
    %534 = vector.broadcast %cst_276 : f32 to vector<32x32xf32>
    %535 = arith.select %533, %529, %534 : vector<32x32xi1>, vector<32x32xf32>
    %c1_i32_277 = arith.constant 1 : i32
    %536 = tpu.dynamic_rotate %509 by %c1_i32_277 dim 0 : vector<32x32xf32>, i32 -> vector<32x32xf32>
    %cst_278 = arith.constant 1.000000e+00 : f32
    %537 = vector.broadcast %cst_278 : f32 to vector<32x1xf32>
    %538 = arith.cmpf oge, %514, %537 : vector<32x1xf32>
    %cst_279 = arith.constant 0.000000e+00 : f32
    %539 = vector.shape_cast %538 : vector<32x1xi1> to vector<32x1xi1>
    %540 = vector.broadcast %539 : vector<32x1xi1> to vector<32x32xi1>
    %541 = vector.broadcast %cst_279 : f32 to vector<32x32xf32>
    %542 = arith.select %540, %536, %541 : vector<32x32xi1>, vector<32x32xf32>
    %c31_i32_280 = arith.constant 31 : i32
    %543 = tpu.dynamic_rotate %509 by %c31_i32_280 dim 0 : vector<32x32xf32>, i32 -> vector<32x32xf32>
    %cst_281 = arith.constant 1.400000e+01 : f32
    %544 = vector.broadcast %cst_281 : f32 to vector<32x1xf32>
    %545 = arith.cmpf ole, %514, %544 : vector<32x1xf32>
    %cst_282 = arith.constant 0.000000e+00 : f32
    %546 = vector.shape_cast %545 : vector<32x1xi1> to vector<32x1xi1>
    %547 = vector.broadcast %546 : vector<32x1xi1> to vector<32x32xi1>
    %548 = vector.broadcast %cst_282 : f32 to vector<32x32xf32>
    %549 = arith.select %547, %543, %548 : vector<32x32xi1>, vector<32x32xf32>
    %c30_i32_283 = arith.constant 30 : i32
    %550 = tpu.dynamic_rotate %509 by %c30_i32_283 dim 0 : vector<32x32xf32>, i32 -> vector<32x32xf32>
    %cst_284 = arith.constant 1.300000e+01 : f32
    %551 = vector.broadcast %cst_284 : f32 to vector<32x1xf32>
    %552 = arith.cmpf ole, %514, %551 : vector<32x1xf32>
    %cst_285 = arith.constant 0.000000e+00 : f32
    %553 = vector.shape_cast %552 : vector<32x1xi1> to vector<32x1xi1>
    %554 = vector.broadcast %553 : vector<32x1xi1> to vector<32x32xi1>
    %555 = vector.broadcast %cst_285 : f32 to vector<32x32xf32>
    %556 = arith.select %554, %550, %555 : vector<32x32xi1>, vector<32x32xf32>
    %c29_i32_286 = arith.constant 29 : i32
    %557 = tpu.dynamic_rotate %509 by %c29_i32_286 dim 0 : vector<32x32xf32>, i32 -> vector<32x32xf32>
    %cst_287 = arith.constant 1.200000e+01 : f32
    %558 = vector.broadcast %cst_287 : f32 to vector<32x1xf32>
    %559 = arith.cmpf ole, %514, %558 : vector<32x1xf32>
    %cst_288 = arith.constant 0.000000e+00 : f32
    %560 = vector.shape_cast %559 : vector<32x1xi1> to vector<32x1xi1>
    %561 = vector.broadcast %560 : vector<32x1xi1> to vector<32x32xi1>
    %562 = vector.broadcast %cst_288 : f32 to vector<32x32xf32>
    %563 = arith.select %561, %557, %562 : vector<32x32xi1>, vector<32x32xf32>
    %c28_i32_289 = arith.constant 28 : i32
    %564 = tpu.dynamic_rotate %509 by %c28_i32_289 dim 0 : vector<32x32xf32>, i32 -> vector<32x32xf32>
    %cst_290 = arith.constant 1.100000e+01 : f32
    %565 = vector.broadcast %cst_290 : f32 to vector<32x1xf32>
    %566 = arith.cmpf ole, %514, %565 : vector<32x1xf32>
    %cst_291 = arith.constant 0.000000e+00 : f32
    %567 = vector.shape_cast %566 : vector<32x1xi1> to vector<32x1xi1>
    %568 = vector.broadcast %567 : vector<32x1xi1> to vector<32x32xi1>
    %569 = vector.broadcast %cst_291 : f32 to vector<32x32xf32>
    %570 = arith.select %568, %564, %569 : vector<32x32xi1>, vector<32x32xf32>
    %571 = tpu.concatenate %521, %528, %535, %542, %509, %549, %556, %563, %570 in 1 : vector<32x32xf32>, vector<32x32xf32>, vector<32x32xf32>, vector<32x32xf32>, vector<32x32xf32>, vector<32x32xf32>, vector<32x32xf32>, vector<32x32xf32>, vector<32x32xf32> -> vector<32x288xf32>
    %cst_292 = arith.constant dense<0.000000e+00> : vector<32x128xf32>
    %572 = tpu.matmul %571, %511, %cst_292 {dimension_numbers = #tpu.dot_dimension_numbers<[1], [0], [0], [1], [0, 0, 1, 1], [], []>} : vector<32x288xf32>, vector<288x128xf32>, vector<32x128xf32> -> vector<32x128xf32>
    %573 = vector.broadcast %513 : vector<1x128xf32> to vector<32x128xf32>
    %574 = arith.addf %572, %573 : vector<32x128xf32>
    %cst_293 = arith.constant 0.000000e+00 : f32
    %575 = vector.broadcast %cst_293 : f32 to vector<32x128xf32>
    %576 = arith.maximumf %574, %575 : vector<32x128xf32>
    %c1_294 = arith.constant 1 : index
    %c0_295 = arith.constant 0 : index
    %c0_296 = arith.constant 0 : index
    %577 = vector.load %arg11[%c1_294, %c0_295, %c0_296] : memref<2x128x32xf32, #tpu.memory_space<vmem>>, vector<1x128x32xf32>
    %578 = vector.shape_cast %577 : vector<1x128x32xf32> to vector<128x32xf32>
    %cst_297 = arith.constant dense<0.000000e+00> : vector<32x32xf32>
    %579 = tpu.matmul %576, %578, %cst_297 {dimension_numbers = #tpu.dot_dimension_numbers<[1], [0], [0], [1], [0, 0, 1, 1], [], []>} : vector<32x128xf32>, vector<128x32xf32>, vector<32x32xf32> -> vector<32x32xf32>
    %c1_298 = arith.constant 1 : index
    %c0_299 = arith.constant 0 : index
    %c0_300 = arith.constant 0 : index
    %580 = vector.load %arg9[%c1_298, %c0_299, %c0_300] : memref<2x1x32xf32, #tpu.memory_space<vmem>>, vector<1x1x32xf32>
    %581 = vector.shape_cast %580 : vector<1x1x32xf32> to vector<1x32xf32>
    %582 = vector.broadcast %581 : vector<1x32xf32> to vector<32x32xf32>
    %583 = arith.addf %579, %582 : vector<32x32xf32>
    %584 = arith.addf %583, %509 : vector<32x32xf32>
    %c1_301 = arith.constant 1 : index
    %c0_302 = arith.constant 0 : index
    %c0_303 = arith.constant 0 : index
    %585 = vector.load %arg15[%c1_301, %c0_302, %c0_303] : memref<2x1x32xf32, #tpu.memory_space<vmem>>, vector<1x1x32xf32>
    %586 = vector.shape_cast %585 : vector<1x1x32xf32> to vector<1x32xf32>
    %c1_304 = arith.constant 1 : index
    %c0_305 = arith.constant 0 : index
    %c0_306 = arith.constant 0 : index
    %587 = vector.load %arg14[%c1_304, %c0_305, %c0_306] : memref<2x1x32xf32, #tpu.memory_space<vmem>>, vector<1x1x32xf32>
    %588 = vector.shape_cast %587 : vector<1x1x32xf32> to vector<1x32xf32>
    %cst_307 = arith.constant dense<0.000000e+00> : vector<32xf32>
    %589 = vector.multi_reduction <add>, %584, %cst_307 [1] : vector<32x32xf32> to vector<32xf32>
    %590 = vector.shape_cast %589 : vector<32xf32> to vector<32x1xf32>
    %cst_308 = arith.constant 3.200000e+01 : f32
    %591 = vector.broadcast %cst_308 : f32 to vector<32x1xf32>
    %592 = arith.divf %590, %591 : vector<32x1xf32>
    %593 = vector.broadcast %592 : vector<32x1xf32> to vector<32x32xf32>
    %594 = arith.subf %584, %593 : vector<32x32xf32>
    %595 = vector.broadcast %592 : vector<32x1xf32> to vector<32x32xf32>
    %596 = arith.subf %584, %595 : vector<32x32xf32>
    %597 = arith.mulf %594, %596 : vector<32x32xf32>
    %cst_309 = arith.constant dense<0.000000e+00> : vector<32xf32>
    %598 = vector.multi_reduction <add>, %597, %cst_309 [1] : vector<32x32xf32> to vector<32xf32>
    %599 = vector.shape_cast %598 : vector<32xf32> to vector<32x1xf32>
    %cst_310 = arith.constant 3.200000e+01 : f32
    %600 = vector.broadcast %cst_310 : f32 to vector<32x1xf32>
    %601 = arith.divf %599, %600 : vector<32x1xf32>
    %602 = vector.broadcast %592 : vector<32x1xf32> to vector<32x32xf32>
    %603 = arith.subf %584, %602 : vector<32x32xf32>
    %cst_311 = arith.constant 9.99999974E-6 : f32
    %604 = vector.broadcast %cst_311 : f32 to vector<32x1xf32>
    %605 = arith.addf %601, %604 : vector<32x1xf32>
    %606 = math.rsqrt %605 : vector<32x1xf32>
    %607 = vector.broadcast %606 : vector<32x1xf32> to vector<32x32xf32>
    %608 = arith.mulf %603, %607 : vector<32x32xf32>
    %609 = vector.broadcast %586 : vector<1x32xf32> to vector<32x32xf32>
    %610 = arith.mulf %608, %609 : vector<32x32xf32>
    %611 = vector.broadcast %588 : vector<1x32xf32> to vector<32x32xf32>
    %612 = arith.addf %610, %611 : vector<32x32xf32>
    %c2_312 = arith.constant 2 : index
    %c0_313 = arith.constant 0 : index
    %c0_314 = arith.constant 0 : index
    %613 = vector.load %arg16[%c2_312, %c0_313, %c0_314] : memref<3x32x16xf32, #tpu.memory_space<vmem>>, vector<1x32x16xf32>
    %614 = vector.shape_cast %613 : vector<1x32x16xf32> to vector<32x16xf32>
    %cst_315 = arith.constant dense<0.000000e+00> : vector<32x16xf32>
    %615 = tpu.matmul %612, %614, %cst_315 {dimension_numbers = #tpu.dot_dimension_numbers<[1], [0], [0], [1], [0, 0, 1, 1], [], []>} : vector<32x32xf32>, vector<32x16xf32>, vector<32x16xf32> -> vector<32x16xf32>
    %616 = tpu.concatenate %251, %433, %615 in 1 : vector<32x16xf32>, vector<32x16xf32>, vector<32x16xf32> -> vector<32x48xf32>
    %c0_316 = arith.constant 0 : index
    %c0_317 = arith.constant 0 : index
    %617 = vector.load %arg26[%c0_316, %c0_317] : memref<32x48xf32, #tpu.memory_space<vmem>>, vector<32x48xf32>
    tpu.vector_store %arg26[%c0_316, %c0_317], %616 {strides = array<i32>} : memref<32x48xf32, #tpu.memory_space<vmem>>, vector<32x48xf32>,
    return
  }
}

</mosaic_0001>

<llo_original>
// kernel: decoder_forward_impl.1
$region0: #{decoder_forward_impl.1}
  #allocation0 [shape = 'u32[]', space=smem, size = 0x4, offset = 0x4, fixed_abs, tag = 'smem constant byte address 0x4 - core index']
  #allocation1 [shape = 'u32[144,128]{1,0:T(1,128)}', space=vmem, size = 0x12000, scoped, tag = 'internal scratch']
  %s0 = inlined_call_operand.vmem [shape: s32[16,1], index: 0, kind: input, shape index: {}]
  %s1 = inlined_call_operand.vmem [shape: f32[2,16], index: 1, kind: input, shape index: {}]
  %s2 = inlined_call_operand.hbm [shape: f32[2,1,32], index: 2, kind: input, shape index: {}]
  %s3 = inlined_call_operand.vmem [shape: f32[1,256], index: 3, kind: input, shape index: {}]
  %s4 = inlined_call_operand.vmem [shape: f32[16,256], index: 4, kind: input, shape index: {}]
  %s5 = inlined_call_operand.hbm [shape: f32[8,1,32], index: 5, kind: input, shape index: {}]
  %s6 = inlined_call_operand.vmem [shape: f32[8,96,32], index: 6, kind: input, shape index: {}]
  %s7 = inlined_call_operand.vmem [shape: f32[50,32], index: 7, kind: input, shape index: {}]
  %s8 = inlined_call_operand.hbm [shape: f32[2,1,128], index: 8, kind: input, shape index: {}]
  %s9 = inlined_call_operand.hbm [shape: f32[2,1,32], index: 9, kind: input, shape index: {}]
  %s10 = inlined_call_operand.vmem [shape: f32[2,288,128], index: 10, kind: input, shape index: {}]
  %s11 = inlined_call_operand.vmem [shape: f32[2,128,32], index: 11, kind: input, shape index: {}]
  %s12 = inlined_call_operand.hbm [shape: f32[2,1,32], index: 12, kind: input, shape index: {}]
  %s13 = inlined_call_operand.vmem [shape: f32[2,1,32], index: 13, kind: input, shape index: {}]
  %s14 = inlined_call_operand.vmem [shape: f32[2,1,32], index: 14, kind: input, shape index: {}]
  %s15 = inlined_call_operand.vmem [shape: f32[2,1,32], index: 15, kind: input, shape index: {}]
  %s16 = inlined_call_operand.vmem [shape: f32[3,32,16], index: 16, kind: input, shape index: {}]
  %s17 = inlined_call_operand.vmem [shape: f32[2,1,96], index: 17, kind: input, shape index: {}]
  %s18 = inlined_call_operand.vmem [shape: f32[2,32,96], index: 18, kind: input, shape index: {}]
  %s19 = inlined_call_operand.vmem [shape: f32[2,32,32], index: 19, kind: input, shape index: {}]
  %s20 = inlined_call_operand.hbm [shape: f32[16,2], index: 20, kind: input, shape index: {}]
  %s21 = inlined_call_operand.vmem [shape: f32[1,32], index: 21, kind: input, shape index: {}]
  %s22 = inlined_call_operand.vmem [shape: f32[32,1], index: 22, kind: input, shape index: {}]
  %s23 = inlined_call_operand.vmem [shape: f32[16,1], index: 23, kind: input, shape index: {}]
  %s24 = inlined_call_operand.vmem [shape: f32[32,1], index: 24, kind: input, shape index: {}]
  %s25 = inlined_call_operand.vmem [shape: f32[32,16], index: 25, kind: input, shape index: {}]
  %s26 = inlined_call_operand.vmem [shape: f32[32,48], index: 26, kind: output, shape index: {}]
  %s27 = sld [smem:[#allocation0]]
  $region138: #{decoder_forward_impl.1} parent=0
    _
  %s29 = ssub.s32 1, %s27
  %s30 = scalar_select 0, %s29, %s27
  $region1: #{decoder_forward_impl.1} parent=0
    #allocation2 [shape = 'u8[1024]{0}', space=vmem, size = 0x400, scoped, tag = 'input window, operand 2, single buffered']
    #allocation3 [shape = 's32[1]{0}', space=sflag, size = 0x4, scoped, tag = 'scoped memory for decoder_forward_impl.1']
    #allocation4 [shape = 'u8[4096]{0}', space=vmem, size = 0x1000, scoped, tag = 'input window, operand 5, single buffered']
    #allocation5 [shape = 's32[1]{0}', space=sflag, size = 0x4, scoped, tag = 'scoped memory for decoder_forward_impl.1']
    #allocation6 [shape = 'u8[1024]{0}', space=vmem, size = 0x400, scoped, tag = 'input window, operand 8, single buffered']
    #allocation7 [shape = 'u8[1024]{0}', space=vmem, size = 0x400, scoped, tag = 'input window, operand 9, single buffered']
    #allocation8 [shape = 's32[1]{0}', space=sflag, size = 0x4, scoped, tag = 'scoped memory for decoder_forward_impl.1']
    #allocation9 [shape = 'u8[1024]{0}', space=vmem, size = 0x400, scoped, tag = 'input window, operand 12, single buffered']
    #allocation10 [shape = 'u8[8192]{0}', space=vmem, size = 0x2000, scoped, tag = 'input window, operand 20, single buffered']
    #allocation11 [shape = 's32[1]{0}', space=sflag, size = 0x4, scoped, tag = 'scoped memory for decoder_forward_impl.1']
    %31 = vsyncpa [#allocation3], 0
    %32 = vsyncpa [#allocation5], 0
    %33 = vsyncpa [#allocation8], 0
    %34 = vsyncpa [#allocation11], 0
    // Predicated region
    $region2: #{decoder_forward_impl.1} parent=1 // pred_check
      _
    $region3: #{decoder_forward_impl.1} parent=1 // pred_check_branch
      %36 = sbr.rel (0) target = $region5
    $region4: #{decoder_forward_impl.1} parent=1 // pred_region
      _
    $region5: #{decoder_forward_impl.1} parent=1 // pred_fallthru
      _
    // Predicated region
    $region6: #{decoder_forward_impl.1} parent=1 // pred_check
      _
    $region7: #{decoder_forward_impl.1} parent=1 // pred_check_branch
      %38 = sbr.rel (0) target = $region9
    $region8: #{decoder_forward_impl.1} parent=1 // pred_region
      _
    $region9: #{decoder_forward_impl.1} parent=1 // pred_fallthru
      _
    // Predicated region
    $region10: #{decoder_forward_impl.1} parent=1 // pred_check
      _
    $region11: #{decoder_forward_impl.1} parent=1 // pred_check_branch
      %40 = sbr.rel (0) target = $region13
    $region12: #{decoder_forward_impl.1} parent=1 // pred_region
      %s42 = ssub.s32 32, 32
      %43 = vsyncadd [#allocation3], %s42
      %s44 = sshll.u32 [#allocation2], 4
      %s45 = int_to_ptr.vmem [resolvable:$true] %s44
      %50 = dma.hbm_to_vmem [thread:$0]  %s2, 32, %s45, [#allocation3], 16, 16, 1
    $region13: #{decoder_forward_impl.1} parent=1 // pred_fallthru
      _
    // Predicated region
    $region14: #{decoder_forward_impl.1} parent=1 // pred_check
      _
    $region15: #{decoder_forward_impl.1} parent=1 // pred_check_branch
      %52 = sbr.rel (0) target = $region17
    $region16: #{decoder_forward_impl.1} parent=1 // pred_region
      _
    $region17: #{decoder_forward_impl.1} parent=1 // pred_fallthru
      _
    // Predicated region
    $region18: #{decoder_forward_impl.1} parent=1 // pred_check
      _
    $region19: #{decoder_forward_impl.1} parent=1 // pred_check_branch
      %54 = sbr.rel (0) target = $region21
    $region20: #{decoder_forward_impl.1} parent=1 // pred_region
      _
    $region21: #{decoder_forward_impl.1} parent=1 // pred_fallthru
      _
    // Predicated region
    $region22: #{decoder_forward_impl.1} parent=1 // pred_check
      _
    $region23: #{decoder_forward_impl.1} parent=1 // pred_check_branch
      %56 = sbr.rel (0) target = $region25
    $region24: #{decoder_forward_impl.1} parent=1 // pred_region
      %s58 = ssub.s32 128, 128
      %59 = vsyncadd [#allocation5], %s58
      %s60 = sshll.u32 [#allocation4], 4
      %s61 = int_to_ptr.vmem [resolvable:$true] %s60
      %66 = dma.hbm_to_vmem [thread:$0]  %s5, 128, %s61, [#allocation5], 16, 16, 1
    $region25: #{decoder_forward_impl.1} parent=1 // pred_fallthru
      _
    // Predicated region
    $region26: #{decoder_forward_impl.1} parent=1 // pred_check
      _
    $region27: #{decoder_forward_impl.1} parent=1 // pred_check_branch
      %68 = sbr.rel (0) target = $region29
    $region28: #{decoder_forward_impl.1} parent=1 // pred_region
      _
    $region29: #{decoder_forward_impl.1} parent=1 // pred_fallthru
      _
    // Predicated region
    $region30: #{decoder_forward_impl.1} parent=1 // pred_check
      _
    $region31: #{decoder_forward_impl.1} parent=1 // pred_check_branch
      %70 = sbr.rel (0) target = $region33
    $region32: #{decoder_forward_impl.1} parent=1 // pred_region
      _
    $region33: #{decoder_forward_impl.1} parent=1 // pred_fallthru
      _
    // Predicated region
    $region34: #{decoder_forward_impl.1} parent=1 // pred_check
      _
    $region35: #{decoder_forward_impl.1} parent=1 // pred_check_branch
      %72 = sbr.rel (0) target = $region37
    $region36: #{decoder_forward_impl.1} parent=1 // pred_region
      %s74 = ssub.s32 32, 32
      %75 = vsyncadd [#allocation5], %s74
      %s76 = sshll.u32 [#allocation6], 4
      %s77 = int_to_ptr.vmem [resolvable:$true] %s76
      %82 = dma.hbm_to_vmem [thread:$0]  %s8, 32, %s77, [#allocation5], 16, 16, 1
    $region37: #{decoder_forward_impl.1} parent=1 // pred_fallthru
      _
    // Predicated region
    $region38: #{decoder_forward_impl.1} parent=1 // pred_check
      _
    $region39: #{decoder_forward_impl.1} parent=1 // pred_check_branch
      %84 = sbr.rel (0) target = $region41
    $region40: #{decoder_forward_impl.1} parent=1 // pred_region
      %s86 = ssub.s32 32, 32
      %87 = vsyncadd [#allocation8], %s86
      %s88 = sshll.u32 [#allocation7], 4
      %s89 = int_to_ptr.vmem [resolvable:$true] %s88
      %94 = dma.hbm_to_vmem [thread:$0]  %s9, 32, %s89, [#allocation8], 16, 16, 1
    $region41: #{decoder_forward_impl.1} parent=1 // pred_fallthru
      _
    // Predicated region
    $region42: #{decoder_forward_impl.1} parent=1 // pred_check
      _
    $region43: #{decoder_forward_impl.1} parent=1 // pred_check_branch
      %96 = sbr.rel (0) target = $region45
    $region44: #{decoder_forward_impl.1} parent=1 // pred_region
      _
    $region45: #{decoder_forward_impl.1} parent=1 // pred_fallthru
      _
    // Predicated region
    $region46: #{decoder_forward_impl.1} parent=1 // pred_check
      _
    $region47: #{decoder_forward_impl.1} parent=1 // pred_check_branch
      %98 = sbr.rel (0) target = $region49
    $region48: #{decoder_forward_impl.1} parent=1 // pred_region
      _
    $region49: #{decoder_forward_impl.1} parent=1 // pred_fallthru
      _
    // Predicated region
    $region50: #{decoder_forward_impl.1} parent=1 // pred_check
      _
    $region51: #{decoder_forward_impl.1} parent=1 // pred_check_branch
      %100 = sbr.rel (0) target = $region53
    $region52: #{decoder_forward_impl.1} parent=1 // pred_region
      %s102 = ssub.s32 32, 32
      %103 = vsyncadd [#allocation8], %s102
      %s104 = sshll.u32 [#allocation9], 4
      %s105 = int_to_ptr.vmem [resolvable:$true] %s104
      %110 = dma.hbm_to_vmem [thread:$0]  %s12, 32, %s105, [#allocation8], 16, 16, 1
    $region53: #{decoder_forward_impl.1} parent=1 // pred_fallthru
      _
    // Predicated region
    $region54: #{decoder_forward_impl.1} parent=1 // pred_check
      _
    $region55: #{decoder_forward_impl.1} parent=1 // pred_check_branch
      %112 = sbr.rel (0) target = $region57
    $region56: #{decoder_forward_impl.1} parent=1 // pred_region
      _
    $region57: #{decoder_forward_impl.1} parent=1 // pred_fallthru
      _
    // Predicated region
    $region58: #{decoder_forward_impl.1} parent=1 // pred_check
      _
    $region59: #{decoder_forward_impl.1} parent=1 // pred_check_branch
      %114 = sbr.rel (0) target = $region61
    $region60: #{decoder_forward_impl.1} parent=1 // pred_region
      _
    $region61: #{decoder_forward_impl.1} parent=1 // pred_fallthru
      _
    // Predicated region
    $region62: #{decoder_forward_impl.1} parent=1 // pred_check
      _
    $region63: #{decoder_forward_impl.1} parent=1 // pred_check_branch
      %116 = sbr.rel (0) target = $region65
    $region64: #{decoder_forward_impl.1} parent=1 // pred_region
      _
    $region65: #{decoder_forward_impl.1} parent=1 // pred_fallthru
      _
    // Predicated region
    $region66: #{decoder_forward_impl.1} parent=1 // pred_check
      _
    $region67: #{decoder_forward_impl.1} parent=1 // pred_check_branch
      %118 = sbr.rel (0) target = $region69
    $region68: #{decoder_forward_impl.1} parent=1 // pred_region
      _
    $region69: #{decoder_forward_impl.1} parent=1 // pred_fallthru
      _
    // Predicated region
    $region70: #{decoder_forward_impl.1} parent=1 // pred_check
      _
    $region71: #{decoder_forward_impl.1} parent=1 // pred_check_branch
      %120 = sbr.rel (0) target = $region73
    $region72: #{decoder_forward_impl.1} parent=1 // pred_region
      _
    $region73: #{decoder_forward_impl.1} parent=1 // pred_fallthru
      _
    // Predicated region
    $region74: #{decoder_forward_impl.1} parent=1 // pred_check
      _
    $region75: #{decoder_forward_impl.1} parent=1 // pred_check_branch
      %122 = sbr.rel (0) target = $region77
    $region76: #{decoder_forward_impl.1} parent=1 // pred_region
      _
    $region77: #{decoder_forward_impl.1} parent=1 // pred_fallthru
      _
    // Predicated region
    $region78: #{decoder_forward_impl.1} parent=1 // pred_check
      _
    $region79: #{decoder_forward_impl.1} parent=1 // pred_check_branch
      %124 = sbr.rel (0) target = $region81
    $region80: #{decoder_forward_impl.1} parent=1 // pred_region
      _
    $region81: #{decoder_forward_impl.1} parent=1 // pred_fallthru
      _
    // Predicated region
    $region82: #{decoder_forward_impl.1} parent=1 // pred_check
      _
    $region83: #{decoder_forward_impl.1} parent=1 // pred_check_branch
      %126 = sbr.rel (0) target = $region85
    $region84: #{decoder_forward_impl.1} parent=1 // pred_region
      %s128 = ssub.s32 256, 256
      %129 = vsyncadd [#allocation11], %s128
      %s130 = sshll.u32 [#allocation10], 4
      %s131 = int_to_ptr.vmem [resolvable:$true] %s130
      %136 = dma.hbm_to_vmem [thread:$0]  %s20, 256, %s131, [#allocation11], 128, 128, 8
    $region85: #{decoder_forward_impl.1} parent=1 // pred_fallthru
      _
    // Predicated region
    $region86: #{decoder_forward_impl.1} parent=1 // pred_check
      _
    $region87: #{decoder_forward_impl.1} parent=1 // pred_check_branch
      %138 = sbr.rel (0) target = $region89
    $region88: #{decoder_forward_impl.1} parent=1 // pred_region
      _
    $region89: #{decoder_forward_impl.1} parent=1 // pred_fallthru
      _
    // Predicated region
    $region90: #{decoder_forward_impl.1} parent=1 // pred_check
      _
    $region91: #{decoder_forward_impl.1} parent=1 // pred_check_branch
      %140 = sbr.rel (0) target = $region93
    $region92: #{decoder_forward_impl.1} parent=1 // pred_region
      _
    $region93: #{decoder_forward_impl.1} parent=1 // pred_fallthru
      _
    // Predicated region
    $region94: #{decoder_forward_impl.1} parent=1 // pred_check
      _
    $region95: #{decoder_forward_impl.1} parent=1 // pred_check_branch
      %142 = sbr.rel (0) target = $region97
    $region96: #{decoder_forward_impl.1} parent=1 // pred_region
      _
    $region97: #{decoder_forward_impl.1} parent=1 // pred_fallthru
      _
    // Predicated region
    $region98: #{decoder_forward_impl.1} parent=1 // pred_check
      _
    $region99: #{decoder_forward_impl.1} parent=1 // pred_check_branch
      %144 = sbr.rel (0) target = $region101
    $region100: #{decoder_forward_impl.1} parent=1 // pred_region
      _
    $region101: #{decoder_forward_impl.1} parent=1 // pred_fallthru
      _
    // Predicated region
    $region102: #{decoder_forward_impl.1} parent=1 // pred_check
      _
    $region103: #{decoder_forward_impl.1} parent=1 // pred_check_branch
      %146 = sbr.rel (0) target = $region105
    $region104: #{decoder_forward_impl.1} parent=1 // pred_region
      _
    $region105: #{decoder_forward_impl.1} parent=1 // pred_fallthru
      _
    // Predicated region
    $region106: #{decoder_forward_impl.1} parent=1 // pred_check
      _
    $region107: #{decoder_forward_impl.1} parent=1 // pred_check_branch
      %148 = sbr.rel (0) target = $region109
    $region108: #{decoder_forward_impl.1} parent=1 // pred_region
      %149 = dma.done [#allocation3], 32
    $region109: #{decoder_forward_impl.1} parent=1 // pred_fallthru
      _
    // Predicated region
    $region110: #{decoder_forward_impl.1} parent=1 // pred_check
      _
    $region111: #{decoder_forward_impl.1} parent=1 // pred_check_branch
      %151 = sbr.rel (0) target = $region113
    $region112: #{decoder_forward_impl.1} parent=1 // pred_region
      %152 = dma.done [#allocation5], 128
    $region113: #{decoder_forward_impl.1} parent=1 // pred_fallthru
      _
    // Predicated region
    $region114: #{decoder_forward_impl.1} parent=1 // pred_check
      _
    $region115: #{decoder_forward_impl.1} parent=1 // pred_check_branch
      %154 = sbr.rel (0) target = $region117
    $region116: #{decoder_forward_impl.1} parent=1 // pred_region
      %155 = dma.done [#allocation5], 32
    $region117: #{decoder_forward_impl.1} parent=1 // pred_fallthru
      _
    // Predicated region
    $region118: #{decoder_forward_impl.1} parent=1 // pred_check
      _
    $region119: #{decoder_forward_impl.1} parent=1 // pred_check_branch
      %157 = sbr.rel (0) target = $region121
    $region120: #{decoder_forward_impl.1} parent=1 // pred_region
      %158 = dma.done [#allocation8], 32
    $region121: #{decoder_forward_impl.1} parent=1 // pred_fallthru
      _
    // Predicated region
    $region122: #{decoder_forward_impl.1} parent=1 // pred_check
      _
    $region123: #{decoder_forward_impl.1} parent=1 // pred_check_branch
      %160 = sbr.rel (0) target = $region125
    $region124: #{decoder_forward_impl.1} parent=1 // pred_region
      %161 = dma.done [#allocation8], 32
    $region125: #{decoder_forward_impl.1} parent=1 // pred_fallthru
      _
    // Predicated region
    $region126: #{decoder_forward_impl.1} parent=1 // pred_check
      _
    $region127: #{decoder_forward_impl.1} parent=1 // pred_check_branch
      %163 = sbr.rel (0) target = $region129
    $region128: #{decoder_forward_impl.1} parent=1 // pred_region
      %164 = dma.done [#allocation11], 256
    $region129: #{decoder_forward_impl.1} parent=1 // pred_fallthru
      _
    %v165 = vld [vmem:[%s0] sm:$0xff]
    %v166 = vld [vmem:[%s0 + $0x8] sm:$0xff]
    %v167 = vlaneseq
    %v168 = vand.u32 %v167, 127
    %169 = vset.pattern.permute.xlu0 0
    %170 = vperm.xlu0 %169, %v165
    %v171 = vpop.permute.xlu0 %170
    %172 = vset.pattern.permute.xlu0 0
    %173 = vperm.xlu0 %172, %v166
    %v174 = vpop.permute.xlu0 %173
    %vm175 = vcmp.eq.s32.totalorder %v171, %v168
    %vm176 = vcmp.eq.s32.totalorder %v174, %v168
    %v177 = vsel %vm175, 1, 0
    %v178 = vsel %vm176, 1, 0
    %v179 = vcvt.s32.f32 %v177
    %v180 = vcvt.s32.f32 %v178
    %v181 = vld [vmem:[%s7] sm:$0xff]
    %v182 = vld [vmem:[%s7 + $0x8] sm:$0xff]
    %v183 = vld [vmem:[%s7 + $0x10] sm:$0xff]
    %v184 = vld [vmem:[%s7 + $0x18] sm:$0xff]
    %v185 = vld [vmem:[%s7 + $0x20] sm:$0xff]
    %v186 = vld [vmem:[%s7 + $0x28] sm:$0xff]
    %v187 = vld [vmem:[%s7 + $0x30] sm:$0x3]
    %vm188 = vcmask 408576
    %v190 = vsel %vm188, %v179, 0
    %v193 = vsel %vm188, %v180, 0
    %vm195 = vcmask 1041408
    %v197 = vsel %vm195, %v187, 0
    %199 = vmatprep.subr.mxu0 0.0
    %200 = vmatpush1.msra.mxu0 %v181
    %201 = vmatprep.subr.mxu0 0.0
    %202 = vmatpush1.msra.mxu0 %v182
    %203 = vmatprep.subr.mxu0 0.0
    %204 = vmatpush1.msra.mxu0 %v183
    %205 = vmatprep.subr.mxu0 0.0
    %206 = vmatpush1.msra.mxu0 %v184
    %207 = vmatprep.subr.mxu0 0.0
    %208 = vmatpush1.msra.mxu0 %v185
    %209 = vmatprep.subr.mxu0 0.0
    %210 = vmatpush1.msra.mxu0 %v186
    %211 = vmatprep.subr.mxu0 0.0
    %212 = vmatpush1.msra.mxu0 %v197
    %213 = vmatprep.subr.mxu0 0.0
    %214 = vmatpush1.msra.mxu0 0.0
    %215 = vmatprep.subr.mxu0 0.0
    %216 = vmatpush1.msra.mxu0 0.0
    %217 = vmatprep.subr.mxu0 0.0
    %218 = vmatpush1.msra.mxu0 0.0
    %219 = vmatprep.subr.mxu0 0.0
    %220 = vmatpush1.msra.mxu0 0.0
    %221 = vmatprep.subr.mxu0 0.0
    %222 = vmatpush1.msra.mxu0 0.0
    %223 = vmatprep.subr.mxu0 0.0
    %224 = vmatpush1.msra.mxu0 0.0
    %225 = vmatprep.subr.mxu0 0.0
    %226 = vmatpush1.msra.mxu0 0.0
    %227 = vmatprep.subr.mxu0 0.0
    %228 = vmatpush1.msra.mxu0 0.0
    %229 = vmatprep.subr.mxu0 0.0
    %230 = vmatpush1.msra.mxu0 0.0
    %231 = vmatprep.subr.mxu0 0.0
    %232 = vmatpush1.msra.mxu0 0.0
    %233 = vmatprep.subr.mxu0 0.0
    %234 = vmatpush1.msra.mxu0 0.0
    %235 = vmatprep.subr.mxu0 0.0
    %236 = vmatpush1.msra.mxu0 0.0
    %237 = vmatprep.subr.mxu0 0.0
    %238 = vmatpush1.msra.mxu0 0.0
    %239 = vmatprep.subr.mxu0 0.0
    %240 = vmatpush1.msra.mxu0 0.0
    %241 = vmatprep.subr.mxu0 0.0
    %242 = vmatpush1.msra.mxu0 0.0
    %243 = vmatprep.subr.mxu0 0.0
    %244 = vmatpush1.msra.mxu0 0.0
    %245 = vmatprep.subr.mxu0 0.0
    %246 = vmatpush1.msra.mxu0 0.0
    %247 = vmatprep.subr.mxu0 0.0
    %248 = vmatpush1.msra.mxu0 0.0
    %249 = vmatprep.subr.mxu0 0.0
    %250 = vmatpush1.msra.mxu0 0.0
    %251 = vmatprep.subr.mxu0 0.0
    %252 = vmatpush1.msra.mxu0 0.0
    %253 = vmatprep.subr.mxu0 0.0
    %254 = vmatpush1.msra.mxu0 0.0
    %255 = vmatprep.subr.mxu0 0.0
    %256 = vmatpush1.msra.mxu0 0.0
    %257 = vmatprep.subr.mxu0 0.0
    %258 = vmatpush1.msra.mxu0 0.0
    %259 = vmatprep.subr.mxu0 0.0
    %260 = vmatpush1.msra.mxu0 0.0
    %261 = vmatprep.subr.mxu0 0.0
    %262 = vmatpush1.msra.mxu0 0.0
    %263 = vmatprep.mubr.f32.mxu0 0.0
    %264 = vmatmul.mubr.f32.gmra.mrb[0].mxu0 %v190
    %v265 = vpop.f32.mrb[0].mxu0
    %v266 = vadd.f32 0.0, %v265
    %v267 = vpop.f32.mrb[0].mxu0
    %268 = vmatprep.mubr.f32.mxu0 0.0
    %269 = vmatmul.mubr.f32.gmra.mrb[0].mxu0 %v193
    %v270 = vpop.f32.mrb[0].mxu0
    %v271 = vadd.f32 0.0, %v270
    %v272 = vpop.f32.mrb[0].mxu0
    %273 = vdwg.mxu0
    %v274 = vld [vmem:[%s1] sm:$0x3]
    %v275 = vld [vmem:[%s4] sm:$0xff]
    %v276 = vld [vmem:[%s4 + $0x8] sm:$0xff]
    %v277 = vld [vmem:[%s4 + $0x10] sm:$0xff]
    %v278 = vld [vmem:[%s4 + $0x18] sm:$0xff]
    %v279 = vld [vmem:[%s3] sm:$0x3]
    %v281 = vlaneseq
    %v282 = vshrl.u32 %v281, 7
    %v283 = vsub.s32 0, %v282
    %v284 = vrot.slane %v279, %v283
    %v285 = vlaneseq
    %v286 = vshrl.u32 %v285, 7
    %v287 = vsub.s32 1, %v286
    %v288 = vrot.slane %v279, %v287
    %vm291 = vcmask 130048
    %v293 = vsel %vm291, %v274, 0
    %295 = vmatprep.subr.mxu0 %v276
    %296 = vmatpush1.msra.mxu0 %v275
    %297 = vmatprep.subr.mxu0 %v278
    %298 = vmatpush1.msra.mxu0 %v277
    %299 = vmatprep.subr.mxu0 0.0
    %300 = vmatpush1.msra.mxu0 0.0
    %301 = vmatprep.subr.mxu0 0.0
    %302 = vmatpush1.msra.mxu0 0.0
    %303 = vmatprep.subr.mxu0 0.0
    %304 = vmatpush1.msra.mxu0 0.0
    %305 = vmatprep.subr.mxu0 0.0
    %306 = vmatpush1.msra.mxu0 0.0
    %307 = vmatprep.subr.mxu0 0.0
    %308 = vmatpush1.msra.mxu0 0.0
    %309 = vmatprep.subr.mxu0 0.0
    %310 = vmatpush1.msra.mxu0 0.0
    %311 = vmatprep.subr.mxu0 0.0
    %312 = vmatpush1.msra.mxu0 0.0
    %313 = vmatprep.subr.mxu0 0.0
    %314 = vmatpush1.msra.mxu0 0.0
    %315 = vmatprep.subr.mxu0 0.0
    %316 = vmatpush1.msra.mxu0 0.0
    %317 = vmatprep.subr.mxu0 0.0
    %318 = vmatpush1.msra.mxu0 0.0
    %319 = vmatprep.subr.mxu0 0.0
    %320 = vmatpush1.msra.mxu0 0.0
    %321 = vmatprep.subr.mxu0 0.0
    %322 = vmatpush1.msra.mxu0 0.0
    %323 = vmatprep.subr.mxu0 0.0
    %324 = vmatpush1.msra.mxu0 0.0
    %325 = vmatprep.subr.mxu0 0.0
    %326 = vmatpush1.msra.mxu0 0.0
    %327 = vmatprep.subr.mxu0 0.0
    %328 = vmatpush1.msra.mxu0 0.0
    %329 = vmatprep.subr.mxu0 0.0
    %330 = vmatpush1.msra.mxu0 0.0
    %331 = vmatprep.subr.mxu0 0.0
    %332 = vmatpush1.msra.mxu0 0.0
    %333 = vmatprep.subr.mxu0 0.0
    %334 = vmatpush1.msra.mxu0 0.0
    %335 = vmatprep.subr.mxu0 0.0
    %336 = vmatpush1.msra.mxu0 0.0
    %337 = vmatprep.subr.mxu0 0.0
    %338 = vmatpush1.msra.mxu0 0.0
    %339 = vmatprep.subr.mxu0 0.0
    %340 = vmatpush1.msra.mxu0 0.0
    %341 = vmatprep.subr.mxu0 0.0
    %342 = vmatpush1.msra.mxu0 0.0
    %343 = vmatprep.subr.mxu0 0.0
    %344 = vmatpush1.msra.mxu0 0.0
    %345 = vmatprep.subr.mxu0 0.0
    %346 = vmatpush1.msra.mxu0 0.0
    %347 = vmatprep.subr.mxu0 0.0
    %348 = vmatpush1.msra.mxu0 0.0
    %349 = vmatprep.subr.mxu0 0.0
    %350 = vmatpush1.msra.mxu0 0.0
    %351 = vmatprep.subr.mxu0 0.0
    %352 = vmatpush1.msra.mxu0 0.0
    %353 = vmatprep.subr.mxu0 0.0
    %354 = vmatpush1.msra.mxu0 0.0
    %355 = vmatprep.subr.mxu0 0.0
    %356 = vmatpush1.msra.mxu0 0.0
    %357 = vmatprep.subr.mxu0 0.0
    %358 = vmatpush1.msra.mxu0 0.0
    %359 = vmatprep.mubr.f32.mxu0 0.0
    %360 = vmatmul.mubr.f32.gmra.mrb[0].mxu0 %v293
    %v361 = vpop.f32.mrb[0].mxu0
    %v362 = vadd.f32 %v284, %v361
    %v363 = vpop.f32.mrb[0].mxu0
    %v364 = vadd.f32 %v288, %v363
    %365 = vdwg.mxu0
    %v366 = vld [vmem:[%s22] sm:$0xff]
    %v367 = vld [vmem:[%s22 + $0x8] sm:$0xff]
    %v368 = vld [vmem:[%s22 + $0x10] sm:$0xff]
    %v369 = vld [vmem:[%s22 + $0x18] sm:$0xff]
    %v370 = vld [vmem:[%s21] sm:$0x1]
    %372 = vset.pattern.permute.xlu0 0
    %373 = vperm.xlu0 %372, %v366
    %v374 = vpop.permute.xlu0 %373
    %377 = vset.pattern.permute.xlu0 0
    %378 = vperm.xlu0 %377, %v367
    %v379 = vpop.permute.xlu0 %378
    %382 = vset.pattern.permute.xlu0 0
    %383 = vperm.xlu0 %382, %v368
    %v384 = vpop.permute.xlu0 %383
    %387 = vset.pattern.permute.xlu0 0
    %388 = vperm.xlu0 %387, %v369
    %v389 = vpop.permute.xlu0 %388
    %v392 = vlaneseq
    %v393 = vshrl.u32 %v392, 7
    %v394 = vsub.s32 0, %v393
    %v395 = vrot.slane %v370, %v394
    %vm397 = vcmp.eq.f32.partialorder %v374, %v395
    %vm398 = vcmp.eq.f32.partialorder %v379, %v395
    %vm399 = vcmp.eq.f32.partialorder %v384, %v395
    %vm400 = vcmp.eq.f32.partialorder %v389, %v395
    %v401 = vsel %vm397, 0.0, -1e+09
    %v402 = vsel %vm398, 0.0, -1e+09
    %v403 = vsel %vm399, 0.0, -1e+09
    %v404 = vsel %vm400, 0.0, -1e+09
    %v405 = vld [vmem:[#allocation10] sm:$0xff]
    %v406 = vld [vmem:[#allocation10 + $0x8] sm:$0xff]
    %vm407 = vcmask 15360
    %v409 = vsel %vm407, %v405, 0
    %v412 = vsel %vm407, %v406, 0
    %v415 = vsel %vm195, %v362, 0
    %v418 = vsel %vm195, %v364, 0
    %420 = vmatprep.subr.mxu0 %v418
    %421 = vmatpush1.msra.mxu0 %v415
    %422 = vmatprep.subr.mxu0 0.0
    %423 = vmatpush1.msra.mxu0 0.0
    %424 = vmatprep.subr.mxu0 0.0
    %425 = vmatpush1.msra.mxu0 0.0
    %426 = vmatprep.subr.mxu0 0.0
    %427 = vmatpush1.msra.mxu0 0.0
    %428 = vmatprep.subr.mxu0 0.0
    %429 = vmatpush1.msra.mxu0 0.0
    %430 = vmatprep.subr.mxu0 0.0
    %431 = vmatpush1.msra.mxu0 0.0
    %432 = vmatprep.subr.mxu0 0.0
    %433 = vmatpush1.msra.mxu0 0.0
    %434 = vmatprep.subr.mxu0 0.0
    %435 = vmatpush1.msra.mxu0 0.0
    %436 = vmatprep.subr.mxu0 0.0
    %437 = vmatpush1.msra.mxu0 0.0
    %438 = vmatprep.subr.mxu0 0.0
    %439 = vmatpush1.msra.mxu0 0.0
    %440 = vmatprep.subr.mxu0 0.0
    %441 = vmatpush1.msra.mxu0 0.0
    %442 = vmatprep.subr.mxu0 0.0
    %443 = vmatpush1.msra.mxu0 0.0
    %444 = vmatprep.subr.mxu0 0.0
    %445 = vmatpush1.msra.mxu0 0.0
    %446 = vmatprep.subr.mxu0 0.0
    %447 = vmatpush1.msra.mxu0 0.0
    %448 = vmatprep.subr.mxu0 0.0
    %449 = vmatpush1.msra.mxu0 0.0
    %450 = vmatprep.subr.mxu0 0.0
    %451 = vmatpush1.msra.mxu0 0.0
    %452 = vmatprep.subr.mxu0 0.0
    %453 = vmatpush1.msra.mxu0 0.0
    %454 = vmatprep.subr.mxu0 0.0
    %455 = vmatpush1.msra.mxu0 0.0
    %456 = vmatprep.subr.mxu0 0.0
    %457 = vmatpush1.msra.mxu0 0.0
    %458 = vmatprep.subr.mxu0 0.0
    %459 = vmatpush1.msra.mxu0 0.0
    %460 = vmatprep.subr.mxu0 0.0
    %461 = vmatpush1.msra.mxu0 0.0
    %462 = vmatprep.subr.mxu0 0.0
    %463 = vmatpush1.msra.mxu0 0.0
    %464 = vmatprep.subr.mxu0 0.0
    %465 = vmatpush1.msra.mxu0 0.0
    %466 = vmatprep.subr.mxu0 0.0
    %467 = vmatpush1.msra.mxu0 0.0
    %468 = vmatprep.subr.mxu0 0.0
    %469 = vmatpush1.msra.mxu0 0.0
    %470 = vmatprep.subr.mxu0 0.0
    %471 = vmatpush1.msra.mxu0 0.0
    %472 = vmatprep.subr.mxu0 0.0
    %473 = vmatpush1.msra.mxu0 0.0
    %474 = vmatprep.subr.mxu0 0.0
    %475 = vmatpush1.msra.mxu0 0.0
    %476 = vmatprep.subr.mxu0 0.0
    %477 = vmatpush1.msra.mxu0 0.0
    %478 = vmatprep.subr.mxu0 0.0
    %479 = vmatpush1.msra.mxu0 0.0
    %480 = vmatprep.subr.mxu0 0.0
    %481 = vmatpush1.msra.mxu0 0.0
    %482 = vmatprep.subr.mxu0 0.0
    %483 = vmatpush1.msra.mxu0 0.0
    %484 = vmatprep.mubr.f32.mxu0 0.0
    %485 = vmatmul.mubr.f32.gmra.mrb[0].mxu0 %v409
    %v486 = vpop.f32.mrb[0].mxu0
    %v487 = vadd.f32 0.0, %v486
    %v488 = vpop.f32.mrb[0].mxu0
    %v489 = vadd.f32 0.0, %v488
    %490 = vmatprep.mubr.f32.mxu0 0.0
    %491 = vmatmul.mubr.f32.gmra.mrb[0].mxu0 %v412
    %v492 = vpop.f32.mrb[0].mxu0
    %v493 = vadd.f32 0.0, %v492
    %v494 = vpop.f32.mrb[0].mxu0
    %v495 = vadd.f32 0.0, %v494
    %496 = vdwg.mxu0
    %v497 = vadd.f32 %v266, %v487
    %v498 = vadd.f32 %v271, %v493
    %v499 = vld [vmem:[%s6] sm:$0xff]
    %v500 = vld [vmem:[%s6 + $0x8] sm:$0xff]
    %v501 = vld [vmem:[%s6 + $0x10] sm:$0xff]
    %v502 = vld [vmem:[%s6 + $0x18] sm:$0xff]
    %v503 = vld [vmem:[%s6 + $0x20] sm:$0xff]
    %v504 = vld [vmem:[%s6 + $0x28] sm:$0xff]
    %v505 = vld [vmem:[%s6 + $0x30] sm:$0xff]
    %v506 = vld [vmem:[%s6 + $0x38] sm:$0xff]
    %v507 = vld [vmem:[%s6 + $0x40] sm:$0xff]
    %v508 = vld [vmem:[%s6 + $0x48] sm:$0xff]
    %v509 = vld [vmem:[%s6 + $0x50] sm:$0xff]
    %v510 = vld [vmem:[%s6 + $0x58] sm:$0xff]
    %v511 = vld [vmem:[#allocation4] sm:$0x1]
    %v512 = vld [vmem:[%s23] sm:$0xff]
    %v513 = vld [vmem:[%s23 + $0x8] sm:$0xff]
    %v514 = vrot.slane %v497, 7
    %v515 = vrot.slane %v498, 7
    %v516 = vlaneseq
    %v517 = vshrl.u32 %v516, 7
    %vm518 = vcmp.lt.s32.totalorder %v517, 1
    %v519 = vsel %vm518, %v514, %v515
    %v520 = vsel %vm518, %v515, %v514
    %vm521 = vcmp.ge.f32.partialorder %v512, 1.0
    %vm522 = vcmp.ge.f32.partialorder %v513, 1.0
    %v523 = vsel %vm521, 1, 0
    %v524 = vsel %vm522, 1, 0
    %525 = vset.pattern.permute.xlu0 0
    %526 = vperm.xlu0 %525, %v523
    %v527 = vpop.permute.xlu0 %526
    %528 = vset.pattern.permute.xlu0 0
    %529 = vperm.xlu0 %528, %v524
    %v530 = vpop.permute.xlu0 %529
    %vm531 = vcmp.eq.s32.totalorder %v527, 1
    %vm532 = vcmp.eq.s32.totalorder %v530, 1
    %v533 = vsel %vm531, %v520, 0.0
    %v534 = vsel %vm532, %v519, 0.0
    %v535 = vrot.slane %v497, 1
    %v536 = vrot.slane %v498, 1
    %vm537 = vcmp.lt.s32.totalorder %v517, 7
    %v538 = vsel %vm537, %v535, %v536
    %v539 = vsel %vm537, %v536, %v535
    %vm540 = vcmp.le.f32.partialorder %v512, 6.0
    %vm541 = vcmp.le.f32.partialorder %v513, 6.0
    %v542 = vsel %vm540, 1, 0
    %v543 = vsel %vm541, 1, 0
    %544 = vset.pattern.permute.xlu0 0
    %545 = vperm.xlu0 %544, %v542
    %v546 = vpop.permute.xlu0 %545
    %547 = vset.pattern.permute.xlu0 0
    %548 = vperm.xlu0 %547, %v543
    %v549 = vpop.permute.xlu0 %548
    %vm550 = vcmp.eq.s32.totalorder %v546, 1
    %vm551 = vcmp.eq.s32.totalorder %v549, 1
    %v552 = vsel %vm550, %v538, 0.0
    %v553 = vsel %vm551, %v539, 0.0
    %556 = vrot.lane.b32.xlu0 %v497, 32
    %v557 = vpop.permute.xlu0 %556
    %558 = vrot.lane.b32.xlu0 %v498, 32
    %v559 = vpop.permute.xlu0 %558
    %564 = vrot.lane.b32.xlu0 %v552, 64
    %v565 = vpop.permute.xlu0 %564
    %566 = vrot.lane.b32.xlu0 %v553, 64
    %v567 = vpop.permute.xlu0 %566
    %vm570 = vcmask 261120
    %v571 = vsel %vm570, %v533, %v557
    %v572 = vsel %vm570, %v534, %v559
    %vm573 = vcmask 523264
    %v574 = vsel %vm573, %v571, %v565
    %v575 = vsel %vm573, %v572, %v567
    %v577 = vlaneseq
    %v578 = vshrl.u32 %v577, 7
    %v579 = vsub.s32 0, %v578
    %v580 = vrot.slane %v511, %v579
    %vm582 = vcmask 785408
    %v584 = vsel %vm582, %v574, 0
    %v587 = vsel %vm582, %v575, 0
    %589 = vmatprep.subr.mxu0 0.0
    %590 = vmatpush1.msra.mxu0 %v499
    %591 = vmatprep.subr.mxu0 0.0
    %592 = vmatpush1.msra.mxu0 %v500
    %593 = vmatprep.subr.mxu0 0.0
    %594 = vmatpush1.msra.mxu0 %v501
    %595 = vmatprep.subr.mxu0 0.0
    %596 = vmatpush1.msra.mxu0 %v502
    %597 = vmatprep.subr.mxu0 0.0
    %598 = vmatpush1.msra.mxu0 %v503
    %599 = vmatprep.subr.mxu0 0.0
    %600 = vmatpush1.msra.mxu0 %v504
    %601 = vmatprep.subr.mxu0 0.0
    %602 = vmatpush1.msra.mxu0 %v505
    %603 = vmatprep.subr.mxu0 0.0
    %604 = vmatpush1.msra.mxu0 %v506
    %605 = vmatprep.subr.mxu0 0.0
    %606 = vmatpush1.msra.mxu0 %v507
    %607 = vmatprep.subr.mxu0 0.0
    %608 = vmatpush1.msra.mxu0 %v508
    %609 = vmatprep.subr.mxu0 0.0
    %610 = vmatpush1.msra.mxu0 %v509
    %611 = vmatprep.subr.mxu0 0.0
    %612 = vmatpush1.msra.mxu0 %v510
    %613 = vmatprep.subr.mxu0 0.0
    %614 = vmatpush1.msra.mxu0 0.0
    %615 = vmatprep.subr.mxu0 0.0
    %616 = vmatpush1.msra.mxu0 0.0
    %617 = vmatprep.subr.mxu0 0.0
    %618 = vmatpush1.msra.mxu0 0.0
    %619 = vmatprep.subr.mxu0 0.0
    %620 = vmatpush1.msra.mxu0 0.0
    %621 = vmatprep.subr.mxu0 0.0
    %622 = vmatpush1.msra.mxu0 0.0
    %623 = vmatprep.subr.mxu0 0.0
    %624 = vmatpush1.msra.mxu0 0.0
    %625 = vmatprep.subr.mxu0 0.0
    %626 = vmatpush1.msra.mxu0 0.0
    %627 = vmatprep.subr.mxu0 0.0
    %628 = vmatpush1.msra.mxu0 0.0
    %629 = vmatprep.subr.mxu0 0.0
    %630 = vmatpush1.msra.mxu0 0.0
    %631 = vmatprep.subr.mxu0 0.0
    %632 = vmatpush1.msra.mxu0 0.0
    %633 = vmatprep.subr.mxu0 0.0
    %634 = vmatpush1.msra.mxu0 0.0
    %635 = vmatprep.subr.mxu0 0.0
    %636 = vmatpush1.msra.mxu0 0.0
    %637 = vmatprep.subr.mxu0 0.0
    %638 = vmatpush1.msra.mxu0 0.0
    %639 = vmatprep.subr.mxu0 0.0
    %640 = vmatpush1.msra.mxu0 0.0
    %641 = vmatprep.subr.mxu0 0.0
    %642 = vmatpush1.msra.mxu0 0.0
    %643 = vmatprep.subr.mxu0 0.0
    %644 = vmatpush1.msra.mxu0 0.0
    %645 = vmatprep.subr.mxu0 0.0
    %646 = vmatpush1.msra.mxu0 0.0
    %647 = vmatprep.subr.mxu0 0.0
    %648 = vmatpush1.msra.mxu0 0.0
    %649 = vmatprep.subr.mxu0 0.0
    %650 = vmatpush1.msra.mxu0 0.0
    %651 = vmatprep.subr.mxu0 0.0
    %652 = vmatpush1.msra.mxu0 0.0
    %653 = vmatprep.mubr.f32.mxu0 0.0
    %654 = vmatmul.mubr.f32.gmra.mrb[0].mxu0 %v584
    %v655 = vpop.f32.mrb[0].mxu0
    %v656 = vadd.f32 %v580, %v655
    %v657 = vpop.f32.mrb[0].mxu0
    %658 = vmatprep.mubr.f32.mxu0 0.0
    %659 = vmatmul.mubr.f32.gmra.mrb[0].mxu0 %v587
    %v660 = vpop.f32.mrb[0].mxu0
    %v661 = vadd.f32 %v580, %v660
    %v662 = vpop.f32.mrb[0].mxu0
    %663 = vdwg.mxu0
    %v664 = vmax.f32 %v656, 0.0
    %v665 = vmax.f32 %v661, 0.0
    %668 = vrot.lane.b32.xlu0 %v487, 96
    %v669 = vpop.permute.xlu0 %668
    %670 = vrot.lane.b32.xlu0 %v493, 96
    %v671 = vpop.permute.xlu0 %670
    %v674 = vadd.f32 %v664, %v669
    %v675 = vadd.f32 %v665, %v671
    %s676 = scalar_lea.vmem %s6, 96
    %v677 = vld [vmem:[%s676] sm:$0xff]
    %v678 = vld [vmem:[%s676 + $0x8] sm:$0xff]
    %v679 = vld [vmem:[%s676 + $0x10] sm:$0xff]
    %v680 = vld [vmem:[%s676 + $0x18] sm:$0xff]
    %v681 = vld [vmem:[%s676 + $0x20] sm:$0xff]
    %v682 = vld [vmem:[%s676 + $0x28] sm:$0xff]
    %v683 = vld [vmem:[%s676 + $0x30] sm:$0xff]
    %v684 = vld [vmem:[%s676 + $0x38] sm:$0xff]
    %v685 = vld [vmem:[%s676 + $0x40] sm:$0xff]
    %v686 = vld [vmem:[%s676 + $0x48] sm:$0xff]
    %v687 = vld [vmem:[%s676 + $0x50] sm:$0xff]
    %v688 = vld [vmem:[%s676 + $0x58] sm:$0xff]
    %s689 = scalar_lea.vmem [#allocation4], 1
    %v690 = vld [vmem:[%s689] sm:$0x1]
    %v691 = vrot.slane %v674, 7
    %v692 = vrot.slane %v675, 7
    %v693 = vsel %vm518, %v691, %v692
    %v694 = vsel %vm518, %v692, %v691
    %v695 = vsel %vm531, %v694, 0.0
    %v696 = vsel %vm532, %v693, 0.0
    %v697 = vrot.slane %v674, 1
    %v698 = vrot.slane %v675, 1
    %v699 = vsel %vm537, %v697, %v698
    %v700 = vsel %vm537, %v698, %v697
    %v701 = vsel %vm550, %v699, 0.0
    %v702 = vsel %vm551, %v700, 0.0
    %705 = vrot.lane.b32.xlu0 %v674, 32
    %v706 = vpop.permute.xlu0 %705
    %707 = vrot.lane.b32.xlu0 %v675, 32
    %v708 = vpop.permute.xlu0 %707
    %713 = vrot.lane.b32.xlu0 %v701, 64
    %v714 = vpop.permute.xlu0 %713
    %715 = vrot.lane.b32.xlu0 %v702, 64
    %v716 = vpop.permute.xlu0 %715
    %v719 = vsel %vm570, %v695, %v706
    %v720 = vsel %vm570, %v696, %v708
    %v721 = vsel %vm573, %v719, %v714
    %v722 = vsel %vm573, %v720, %v716
    %v724 = vlaneseq
    %v725 = vshrl.u32 %v724, 7
    %v726 = vsub.s32 0, %v725
    %v727 = vrot.slane %v690, %v726
    %v730 = vsel %vm582, %v721, 0
    %v733 = vsel %vm582, %v722, 0
    %735 = vmatprep.subr.mxu0 0.0
    %736 = vmatpush1.msra.mxu0 %v677
    %737 = vmatprep.subr.mxu0 0.0
    %738 = vmatpush1.msra.mxu0 %v678
    %739 = vmatprep.subr.mxu0 0.0
    %740 = vmatpush1.msra.mxu0 %v679
    %741 = vmatprep.subr.mxu0 0.0
    %742 = vmatpush1.msra.mxu0 %v680
    %743 = vmatprep.subr.mxu0 0.0
    %744 = vmatpush1.msra.mxu0 %v681
    %745 = vmatprep.subr.mxu0 0.0
    %746 = vmatpush1.msra.mxu0 %v682
    %747 = vmatprep.subr.mxu0 0.0
    %748 = vmatpush1.msra.mxu0 %v683
    %749 = vmatprep.subr.mxu0 0.0
    %750 = vmatpush1.msra.mxu0 %v684
    %751 = vmatprep.subr.mxu0 0.0
    %752 = vmatpush1.msra.mxu0 %v685
    %753 = vmatprep.subr.mxu0 0.0
    %754 = vmatpush1.msra.mxu0 %v686
    %755 = vmatprep.subr.mxu0 0.0
    %756 = vmatpush1.msra.mxu0 %v687
    %757 = vmatprep.subr.mxu0 0.0
    %758 = vmatpush1.msra.mxu0 %v688
    %759 = vmatprep.subr.mxu0 0.0
    %760 = vmatpush1.msra.mxu0 0.0
    %761 = vmatprep.subr.mxu0 0.0
    %762 = vmatpush1.msra.mxu0 0.0
    %763 = vmatprep.subr.mxu0 0.0
    %764 = vmatpush1.msra.mxu0 0.0
    %765 = vmatprep.subr.mxu0 0.0
    %766 = vmatpush1.msra.mxu0 0.0
    %767 = vmatprep.subr.mxu0 0.0
    %768 = vmatpush1.msra.mxu0 0.0
    %769 = vmatprep.subr.mxu0 0.0
    %770 = vmatpush1.msra.mxu0 0.0
    %771 = vmatprep.subr.mxu0 0.0
    %772 = vmatpush1.msra.mxu0 0.0
    %773 = vmatprep.subr.mxu0 0.0
    %774 = vmatpush1.msra.mxu0 0.0
    %775 = vmatprep.subr.mxu0 0.0
    %776 = vmatpush1.msra.mxu0 0.0
    %777 = vmatprep.subr.mxu0 0.0
    %778 = vmatpush1.msra.mxu0 0.0
    %779 = vmatprep.subr.mxu0 0.0
    %780 = vmatpush1.msra.mxu0 0.0
    %781 = vmatprep.subr.mxu0 0.0
    %782 = vmatpush1.msra.mxu0 0.0
    %783 = vmatprep.subr.mxu0 0.0
    %784 = vmatpush1.msra.mxu0 0.0
    %785 = vmatprep.subr.mxu0 0.0
    %786 = vmatpush1.msra.mxu0 0.0
    %787 = vmatprep.subr.mxu0 0.0
    %788 = vmatpush1.msra.mxu0 0.0
    %789 = vmatprep.subr.mxu0 0.0
    %790 = vmatpush1.msra.mxu0 0.0
    %791 = vmatprep.subr.mxu0 0.0
    %792 = vmatpush1.msra.mxu0 0.0
    %793 = vmatprep.subr.mxu0 0.0
    %794 = vmatpush1.msra.mxu0 0.0
    %795 = vmatprep.subr.mxu0 0.0
    %796 = vmatpush1.msra.mxu0 0.0
    %797 = vmatprep.subr.mxu0 0.0
    %798 = vmatpush1.msra.mxu0 0.0
    %799 = vmatprep.mubr.f32.mxu0 0.0
    %800 = vmatmul.mubr.f32.gmra.mrb[0].mxu0 %v730
    %v801 = vpop.f32.mrb[0].mxu0
    %v802 = vadd.f32 %v727, %v801
    %v803 = vpop.f32.mrb[0].mxu0
    %804 = vmatprep.mubr.f32.mxu0 0.0
    %805 = vmatmul.mubr.f32.gmra.mrb[0].mxu0 %v733
    %v806 = vpop.f32.mrb[0].mxu0
    %v807 = vadd.f32 %v727, %v806
    %v808 = vpop.f32.mrb[0].mxu0
    %809 = vdwg.mxu0
    %v810 = vmax.f32 %v802, 0.0
    %v811 = vmax.f32 %v807, 0.0
    %v812 = vadd.f32 %v266, %v810
    %v813 = vadd.f32 %v271, %v811
    %814 = vrot.lane.b32.xlu0 %v487, 64
    %v815 = vpop.permute.xlu0 %814
    %816 = vrot.lane.b32.xlu0 %v493, 64
    %v817 = vpop.permute.xlu0 %816
    %v820 = vadd.f32 %v812, %v815
    %v821 = vadd.f32 %v813, %v817
    %s822 = scalar_lea.vmem %s6, 192
    %v823 = vld [vmem:[%s822] sm:$0xff]
    %v824 = vld [vmem:[%s822 + $0x8] sm:$0xff]
    %v825 = vld [vmem:[%s822 + $0x10] sm:$0xff]
    %v826 = vld [vmem:[%s822 + $0x18] sm:$0xff]
    %v827 = vld [vmem:[%s822 + $0x20] sm:$0xff]
    %v828 = vld [vmem:[%s822 + $0x28] sm:$0xff]
    %v829 = vld [vmem:[%s822 + $0x30] sm:$0xff]
    %v830 = vld [vmem:[%s822 + $0x38] sm:$0xff]
    %v831 = vld [vmem:[%s822 + $0x40] sm:$0xff]
    %v832 = vld [vmem:[%s822 + $0x48] sm:$0xff]
    %v833 = vld [vmem:[%s822 + $0x50] sm:$0xff]
    %v834 = vld [vmem:[%s822 + $0x58] sm:$0xff]
    %s835 = scalar_lea.vmem [#allocation4], 2
    %v836 = vld [vmem:[%s835] sm:$0x1]
    %v837 = vrot.slane %v820, 7
    %v838 = vrot.slane %v821, 7
    %v839 = vsel %vm518, %v837, %v838
    %v840 = vsel %vm518, %v838, %v837
    %v841 = vsel %vm531, %v840, 0.0
    %v842 = vsel %vm532, %v839, 0.0
    %v843 = vrot.slane %v820, 1
    %v844 = vrot.slane %v821, 1
    %v845 = vsel %vm537, %v843, %v844
    %v846 = vsel %vm537, %v844, %v843
    %v847 = vsel %vm550, %v845, 0.0
    %v848 = vsel %vm551, %v846, 0.0
    %851 = vrot.lane.b32.xlu0 %v820, 32
    %v852 = vpop.permute.xlu0 %851
    %853 = vrot.lane.b32.xlu0 %v821, 32
    %v854 = vpop.permute.xlu0 %853
    %859 = vrot.lane.b32.xlu0 %v847, 64
    %v860 = vpop.permute.xlu0 %859
    %861 = vrot.lane.b32.xlu0 %v848, 64
    %v862 = vpop.permute.xlu0 %861
    %v865 = vsel %vm570, %v841, %v852
    %v866 = vsel %vm570, %v842, %v854
    %v867 = vsel %vm573, %v865, %v860
    %v868 = vsel %vm573, %v866, %v862
    %v870 = vlaneseq
    %v871 = vshrl.u32 %v870, 7
    %v872 = vsub.s32 0, %v871
    %v873 = vrot.slane %v836, %v872
    %v876 = vsel %vm582, %v867, 0
    %v879 = vsel %vm582, %v868, 0
    %881 = vmatprep.subr.mxu0 0.0
    %882 = vmatpush1.msra.mxu0 %v823
    %883 = vmatprep.subr.mxu0 0.0
    %884 = vmatpush1.msra.mxu0 %v824
    %885 = vmatprep.subr.mxu0 0.0
    %886 = vmatpush1.msra.mxu0 %v825
    %887 = vmatprep.subr.mxu0 0.0
    %888 = vmatpush1.msra.mxu0 %v826
    %889 = vmatprep.subr.mxu0 0.0
    %890 = vmatpush1.msra.mxu0 %v827
    %891 = vmatprep.subr.mxu0 0.0
    %892 = vmatpush1.msra.mxu0 %v828
    %893 = vmatprep.subr.mxu0 0.0
    %894 = vmatpush1.msra.mxu0 %v829
    %895 = vmatprep.subr.mxu0 0.0
    %896 = vmatpush1.msra.mxu0 %v830
    %897 = vmatprep.subr.mxu0 0.0
    %898 = vmatpush1.msra.mxu0 %v831
    %899 = vmatprep.subr.mxu0 0.0
    %900 = vmatpush1.msra.mxu0 %v832
    %901 = vmatprep.subr.mxu0 0.0
    %902 = vmatpush1.msra.mxu0 %v833
    %903 = vmatprep.subr.mxu0 0.0
    %904 = vmatpush1.msra.mxu0 %v834
    %905 = vmatprep.subr.mxu0 0.0
    %906 = vmatpush1.msra.mxu0 0.0
    %907 = vmatprep.subr.mxu0 0.0
    %908 = vmatpush1.msra.mxu0 0.0
    %909 = vmatprep.subr.mxu0 0.0
    %910 = vmatpush1.msra.mxu0 0.0
    %911 = vmatprep.subr.mxu0 0.0
    %912 = vmatpush1.msra.mxu0 0.0
    %913 = vmatprep.subr.mxu0 0.0
    %914 = vmatpush1.msra.mxu0 0.0
    %915 = vmatprep.subr.mxu0 0.0
    %916 = vmatpush1.msra.mxu0 0.0
    %917 = vmatprep.subr.mxu0 0.0
    %918 = vmatpush1.msra.mxu0 0.0
    %919 = vmatprep.subr.mxu0 0.0
    %920 = vmatpush1.msra.mxu0 0.0
    %921 = vmatprep.subr.mxu0 0.0
    %922 = vmatpush1.msra.mxu0 0.0
    %923 = vmatprep.subr.mxu0 0.0
    %924 = vmatpush1.msra.mxu0 0.0
    %925 = vmatprep.subr.mxu0 0.0
    %926 = vmatpush1.msra.mxu0 0.0
    %927 = vmatprep.subr.mxu0 0.0
    %928 = vmatpush1.msra.mxu0 0.0
    %929 = vmatprep.subr.mxu0 0.0
    %930 = vmatpush1.msra.mxu0 0.0
    %931 = vmatprep.subr.mxu0 0.0
    %932 = vmatpush1.msra.mxu0 0.0
    %933 = vmatprep.subr.mxu0 0.0
    %934 = vmatpush1.msra.mxu0 0.0
    %935 = vmatprep.subr.mxu0 0.0
    %936 = vmatpush1.msra.mxu0 0.0
    %937 = vmatprep.subr.mxu0 0.0
    %938 = vmatpush1.msra.mxu0 0.0
    %939 = vmatprep.subr.mxu0 0.0
    %940 = vmatpush1.msra.mxu0 0.0
    %941 = vmatprep.subr.mxu0 0.0
    %942 = vmatpush1.msra.mxu0 0.0
    %943 = vmatprep.subr.mxu0 0.0
    %944 = vmatpush1.msra.mxu0 0.0
    %945 = vmatprep.mubr.f32.mxu0 0.0
    %946 = vmatmul.mubr.f32.gmra.mrb[0].mxu0 %v876
    %v947 = vpop.f32.mrb[0].mxu0
    %v948 = vadd.f32 %v873, %v947
    %v949 = vpop.f32.mrb[0].mxu0
    %950 = vmatprep.mubr.f32.mxu0 0.0
    %951 = vmatmul.mubr.f32.gmra.mrb[0].mxu0 %v879
    %v952 = vpop.f32.mrb[0].mxu0
    %v953 = vadd.f32 %v873, %v952
    %v954 = vpop.f32.mrb[0].mxu0
    %955 = vdwg.mxu0
    %v956 = vmax.f32 %v948, 0.0
    %v957 = vmax.f32 %v953, 0.0
    %958 = vrot.lane.b32.xlu0 %v487, 32
    %v959 = vpop.permute.xlu0 %958
    %960 = vrot.lane.b32.xlu0 %v493, 32
    %v961 = vpop.permute.xlu0 %960
    %v964 = vadd.f32 %v956, %v959
    %v965 = vadd.f32 %v957, %v961
    %s966 = scalar_lea.vmem %s6, 288
    %v967 = vld [vmem:[%s966] sm:$0xff]
    %v968 = vld [vmem:[%s966 + $0x8] sm:$0xff]
    %v969 = vld [vmem:[%s966 + $0x10] sm:$0xff]
    %v970 = vld [vmem:[%s966 + $0x18] sm:$0xff]
    %v971 = vld [vmem:[%s966 + $0x20] sm:$0xff]
    %v972 = vld [vmem:[%s966 + $0x28] sm:$0xff]
    %v973 = vld [vmem:[%s966 + $0x30] sm:$0xff]
    %v974 = vld [vmem:[%s966 + $0x38] sm:$0xff]
    %v975 = vld [vmem:[%s966 + $0x40] sm:$0xff]
    %v976 = vld [vmem:[%s966 + $0x48] sm:$0xff]
    %v977 = vld [vmem:[%s966 + $0x50] sm:$0xff]
    %v978 = vld [vmem:[%s966 + $0x58] sm:$0xff]
    %s979 = scalar_lea.vmem [#allocation4], 3
    %v980 = vld [vmem:[%s979] sm:$0x1]
    %v981 = vrot.slane %v964, 7
    %v982 = vrot.slane %v965, 7
    %v983 = vsel %vm518, %v981, %v982
    %v984 = vsel %vm518, %v982, %v981
    %v985 = vsel %vm531, %v984, 0.0
    %v986 = vsel %vm532, %v983, 0.0
    %v987 = vrot.slane %v964, 1
    %v988 = vrot.slane %v965, 1
    %v989 = vsel %vm537, %v987, %v988
    %v990 = vsel %vm537, %v988, %v987
    %v991 = vsel %vm550, %v989, 0.0
    %v992 = vsel %vm551, %v990, 0.0
    %995 = vrot.lane.b32.xlu0 %v964, 32
    %v996 = vpop.permute.xlu0 %995
    %997 = vrot.lane.b32.xlu0 %v965, 32
    %v998 = vpop.permute.xlu0 %997
    %1003 = vrot.lane.b32.xlu0 %v991, 64
    %v1004 = vpop.permute.xlu0 %1003
    %1005 = vrot.lane.b32.xlu0 %v992, 64
    %v1006 = vpop.permute.xlu0 %1005
    %v1009 = vsel %vm570, %v985, %v996
    %v1010 = vsel %vm570, %v986, %v998
    %v1011 = vsel %vm573, %v1009, %v1004
    %v1012 = vsel %vm573, %v1010, %v1006
    %v1014 = vlaneseq
    %v1015 = vshrl.u32 %v1014, 7
    %v1016 = vsub.s32 0, %v1015
    %v1017 = vrot.slane %v980, %v1016
    %v1020 = vsel %vm582, %v1011, 0
    %v1023 = vsel %vm582, %v1012, 0
    %1025 = vmatprep.subr.mxu0 0.0
    %1026 = vmatpush1.msra.mxu0 %v967
    %1027 = vmatprep.subr.mxu0 0.0
    %1028 = vmatpush1.msra.mxu0 %v968
    %1029 = vmatprep.subr.mxu0 0.0
    %1030 = vmatpush1.msra.mxu0 %v969
    %1031 = vmatprep.subr.mxu0 0.0
    %1032 = vmatpush1.msra.mxu0 %v970
    %1033 = vmatprep.subr.mxu0 0.0
    %1034 = vmatpush1.msra.mxu0 %v971
    %1035 = vmatprep.subr.mxu0 0.0
    %1036 = vmatpush1.msra.mxu0 %v972
    %1037 = vmatprep.subr.mxu0 0.0
    %1038 = vmatpush1.msra.mxu0 %v973
    %1039 = vmatprep.subr.mxu0 0.0
    %1040 = vmatpush1.msra.mxu0 %v974
    %1041 = vmatprep.subr.mxu0 0.0
    %1042 = vmatpush1.msra.mxu0 %v975
    %1043 = vmatprep.subr.mxu0 0.0
    %1044 = vmatpush1.msra.mxu0 %v976
    %1045 = vmatprep.subr.mxu0 0.0
    %1046 = vmatpush1.msra.mxu0 %v977
    %1047 = vmatprep.subr.mxu0 0.0
    %1048 = vmatpush1.msra.mxu0 %v978
    %1049 = vmatprep.subr.mxu0 0.0
    %1050 = vmatpush1.msra.mxu0 0.0
    %1051 = vmatprep.subr.mxu0 0.0
    %1052 = vmatpush1.msra.mxu0 0.0
    %1053 = vmatprep.subr.mxu0 0.0
    %1054 = vmatpush1.msra.mxu0 0.0
    %1055 = vmatprep.subr.mxu0 0.0
    %1056 = vmatpush1.msra.mxu0 0.0
    %1057 = vmatprep.subr.mxu0 0.0
    %1058 = vmatpush1.msra.mxu0 0.0
    %1059 = vmatprep.subr.mxu0 0.0
    %1060 = vmatpush1.msra.mxu0 0.0
    %1061 = vmatprep.subr.mxu0 0.0
    %1062 = vmatpush1.msra.mxu0 0.0
    %1063 = vmatprep.subr.mxu0 0.0
    %1064 = vmatpush1.msra.mxu0 0.0
    %1065 = vmatprep.subr.mxu0 0.0
    %1066 = vmatpush1.msra.mxu0 0.0
    %1067 = vmatprep.subr.mxu0 0.0
    %1068 = vmatpush1.msra.mxu0 0.0
    %1069 = vmatprep.subr.mxu0 0.0
    %1070 = vmatpush1.msra.mxu0 0.0
    %1071 = vmatprep.subr.mxu0 0.0
    %1072 = vmatpush1.msra.mxu0 0.0
    %1073 = vmatprep.subr.mxu0 0.0
    %1074 = vmatpush1.msra.mxu0 0.0
    %1075 = vmatprep.subr.mxu0 0.0
    %1076 = vmatpush1.msra.mxu0 0.0
    %1077 = vmatprep.subr.mxu0 0.0
    %1078 = vmatpush1.msra.mxu0 0.0
    %1079 = vmatprep.subr.mxu0 0.0
    %1080 = vmatpush1.msra.mxu0 0.0
    %1081 = vmatprep.subr.mxu0 0.0
    %1082 = vmatpush1.msra.mxu0 0.0
    %1083 = vmatprep.subr.mxu0 0.0
    %1084 = vmatpush1.msra.mxu0 0.0
    %1085 = vmatprep.subr.mxu0 0.0
    %1086 = vmatpush1.msra.mxu0 0.0
    %1087 = vmatprep.subr.mxu0 0.0
    %1088 = vmatpush1.msra.mxu0 0.0
    %1089 = vmatprep.mubr.f32.mxu0 0.0
    %1090 = vmatmul.mubr.f32.gmra.mrb[0].mxu0 %v1020
    %v1091 = vpop.f32.mrb[0].mxu0
    %v1092 = vadd.f32 %v1017, %v1091
    %v1093 = vpop.f32.mrb[0].mxu0
    %1094 = vmatprep.mubr.f32.mxu0 0.0
    %1095 = vmatmul.mubr.f32.gmra.mrb[0].mxu0 %v1023
    %v1096 = vpop.f32.mrb[0].mxu0
    %v1097 = vadd.f32 %v1017, %v1096
    %v1098 = vpop.f32.mrb[0].mxu0
    %1099 = vdwg.mxu0
    %v1100 = vmax.f32 %v1092, 0.0
    %v1101 = vmax.f32 %v1097, 0.0
    %v1102 = vadd.f32 %v1100, %v812
    %v1103 = vadd.f32 %v1101, %v813
    %v1104 = vadd.f32 %v1102, %v489
    %v1105 = vadd.f32 %v1103, %v495
    %s1106 = scalar_lea.vmem %s6, 384
    %v1107 = vld [vmem:[%s1106] sm:$0xff]
    %v1108 = vld [vmem:[%s1106 + $0x8] sm:$0xff]
    %v1109 = vld [vmem:[%s1106 + $0x10] sm:$0xff]
    %v1110 = vld [vmem:[%s1106 + $0x18] sm:$0xff]
    %v1111 = vld [vmem:[%s1106 + $0x20] sm:$0xff]
    %v1112 = vld [vmem:[%s1106 + $0x28] sm:$0xff]
    %v1113 = vld [vmem:[%s1106 + $0x30] sm:$0xff]
    %v1114 = vld [vmem:[%s1106 + $0x38] sm:$0xff]
    %v1115 = vld [vmem:[%s1106 + $0x40] sm:$0xff]
    %v1116 = vld [vmem:[%s1106 + $0x48] sm:$0xff]
    %v1117 = vld [vmem:[%s1106 + $0x50] sm:$0xff]
    %v1118 = vld [vmem:[%s1106 + $0x58] sm:$0xff]
    %s1119 = scalar_lea.vmem [#allocation4], 4
    %v1120 = vld [vmem:[%s1119] sm:$0x1]
    %v1121 = vrot.slane %v1104, 7
    %v1122 = vrot.slane %v1105, 7
    %v1123 = vsel %vm518, %v1121, %v1122
    %v1124 = vsel %vm518, %v1122, %v1121
    %v1125 = vsel %vm531, %v1124, 0.0
    %v1126 = vsel %vm532, %v1123, 0.0
    %v1127 = vrot.slane %v1104, 1
    %v1128 = vrot.slane %v1105, 1
    %v1129 = vsel %vm537, %v1127, %v1128
    %v1130 = vsel %vm537, %v1128, %v1127
    %v1131 = vsel %vm550, %v1129, 0.0
    %v1132 = vsel %vm551, %v1130, 0.0
    %1135 = vrot.lane.b32.xlu0 %v1104, 32
    %v1136 = vpop.permute.xlu0 %1135
    %1137 = vrot.lane.b32.xlu0 %v1105, 32
    %v1138 = vpop.permute.xlu0 %1137
    %1143 = vrot.lane.b32.xlu0 %v1131, 64
    %v1144 = vpop.permute.xlu0 %1143
    %1145 = vrot.lane.b32.xlu0 %v1132, 64
    %v1146 = vpop.permute.xlu0 %1145
    %v1149 = vsel %vm570, %v1125, %v1136
    %v1150 = vsel %vm570, %v1126, %v1138
    %v1151 = vsel %vm573, %v1149, %v1144
    %v1152 = vsel %vm573, %v1150, %v1146
    %v1154 = vlaneseq
    %v1155 = vshrl.u32 %v1154, 7
    %v1156 = vsub.s32 0, %v1155
    %v1157 = vrot.slane %v1120, %v1156
    %v1160 = vsel %vm582, %v1151, 0
    %v1163 = vsel %vm582, %v1152, 0
    %1165 = vmatprep.subr.mxu0 0.0
    %1166 = vmatpush1.msra.mxu0 %v1107
    %1167 = vmatprep.subr.mxu0 0.0
    %1168 = vmatpush1.msra.mxu0 %v1108
    %1169 = vmatprep.subr.mxu0 0.0
    %1170 = vmatpush1.msra.mxu0 %v1109
    %1171 = vmatprep.subr.mxu0 0.0
    %1172 = vmatpush1.msra.mxu0 %v1110
    %1173 = vmatprep.subr.mxu0 0.0
    %1174 = vmatpush1.msra.mxu0 %v1111
    %1175 = vmatprep.subr.mxu0 0.0
    %1176 = vmatpush1.msra.mxu0 %v1112
    %1177 = vmatprep.subr.mxu0 0.0
    %1178 = vmatpush1.msra.mxu0 %v1113
    %1179 = vmatprep.subr.mxu0 0.0
    %1180 = vmatpush1.msra.mxu0 %v1114
    %1181 = vmatprep.subr.mxu0 0.0
    %1182 = vmatpush1.msra.mxu0 %v1115
    %1183 = vmatprep.subr.mxu0 0.0
    %1184 = vmatpush1.msra.mxu0 %v1116
    %1185 = vmatprep.subr.mxu0 0.0
    %1186 = vmatpush1.msra.mxu0 %v1117
    %1187 = vmatprep.subr.mxu0 0.0
    %1188 = vmatpush1.msra.mxu0 %v1118
    %1189 = vmatprep.subr.mxu0 0.0
    %1190 = vmatpush1.msra.mxu0 0.0
    %1191 = vmatprep.subr.mxu0 0.0
    %1192 = vmatpush1.msra.mxu0 0.0
    %1193 = vmatprep.subr.mxu0 0.0
    %1194 = vmatpush1.msra.mxu0 0.0
    %1195 = vmatprep.subr.mxu0 0.0
    %1196 = vmatpush1.msra.mxu0 0.0
    %1197 = vmatprep.subr.mxu0 0.0
    %1198 = vmatpush1.msra.mxu0 0.0
    %1199 = vmatprep.subr.mxu0 0.0
    %1200 = vmatpush1.msra.mxu0 0.0
    %1201 = vmatprep.subr.mxu0 0.0
    %1202 = vmatpush1.msra.mxu0 0.0
    %1203 = vmatprep.subr.mxu0 0.0
    %1204 = vmatpush1.msra.mxu0 0.0
    %1205 = vmatprep.subr.mxu0 0.0
    %1206 = vmatpush1.msra.mxu0 0.0
    %1207 = vmatprep.subr.mxu0 0.0
    %1208 = vmatpush1.msra.mxu0 0.0
    %1209 = vmatprep.subr.mxu0 0.0
    %1210 = vmatpush1.msra.mxu0 0.0
    %1211 = vmatprep.subr.mxu0 0.0
    %1212 = vmatpush1.msra.mxu0 0.0
    %1213 = vmatprep.subr.mxu0 0.0
    %1214 = vmatpush1.msra.mxu0 0.0
    %1215 = vmatprep.subr.mxu0 0.0
    %1216 = vmatpush1.msra.mxu0 0.0
    %1217 = vmatprep.subr.mxu0 0.0
    %1218 = vmatpush1.msra.mxu0 0.0
    %1219 = vmatprep.subr.mxu0 0.0
    %1220 = vmatpush1.msra.mxu0 0.0
    %1221 = vmatprep.subr.mxu0 0.0
    %1222 = vmatpush1.msra.mxu0 0.0
    %1223 = vmatprep.subr.mxu0 0.0
    %1224 = vmatpush1.msra.mxu0 0.0
    %1225 = vmatprep.subr.mxu0 0.0
    %1226 = vmatpush1.msra.mxu0 0.0
    %1227 = vmatprep.subr.mxu0 0.0
    %1228 = vmatpush1.msra.mxu0 0.0
    %1229 = vmatprep.mubr.f32.mxu0 0.0
    %1230 = vmatmul.mubr.f32.gmra.mrb[0].mxu0 %v1160
    %v1231 = vpop.f32.mrb[0].mxu0
    %v1232 = vadd.f32 %v1157, %v1231
    %v1233 = vpop.f32.mrb[0].mxu0
    %1234 = vmatprep.mubr.f32.mxu0 0.0
    %1235 = vmatmul.mubr.f32.gmra.mrb[0].mxu0 %v1163
    %v1236 = vpop.f32.mrb[0].mxu0
    %v1237 = vadd.f32 %v1157, %v1236
    %v1238 = vpop.f32.mrb[0].mxu0
    %1239 = vdwg.mxu0
    %v1240 = vmax.f32 %v1232, 0.0
    %v1241 = vmax.f32 %v1237, 0.0
    %1244 = vrot.lane.b32.xlu0 %v489, 96
    %v1245 = vpop.permute.xlu0 %1244
    %1246 = vrot.lane.b32.xlu0 %v495, 96
    %v1247 = vpop.permute.xlu0 %1246
    %v1250 = vadd.f32 %v1240, %v1245
    %v1251 = vadd.f32 %v1241, %v1247
    %s1252 = scalar_lea.vmem %s6, 480
    %v1253 = vld [vmem:[%s1252] sm:$0xff]
    %v1254 = vld [vmem:[%s1252 + $0x8] sm:$0xff]
    %v1255 = vld [vmem:[%s1252 + $0x10] sm:$0xff]
    %v1256 = vld [vmem:[%s1252 + $0x18] sm:$0xff]
    %v1257 = vld [vmem:[%s1252 + $0x20] sm:$0xff]
    %v1258 = vld [vmem:[%s1252 + $0x28] sm:$0xff]
    %v1259 = vld [vmem:[%s1252 + $0x30] sm:$0xff]
    %v1260 = vld [vmem:[%s1252 + $0x38] sm:$0xff]
    %v1261 = vld [vmem:[%s1252 + $0x40] sm:$0xff]
    %v1262 = vld [vmem:[%s1252 + $0x48] sm:$0xff]
    %v1263 = vld [vmem:[%s1252 + $0x50] sm:$0xff]
    %v1264 = vld [vmem:[%s1252 + $0x58] sm:$0xff]
    %s1265 = scalar_lea.vmem [#allocation4], 5
    %v1266 = vld [vmem:[%s1265] sm:$0x1]
    %v1267 = vrot.slane %v1250, 7
    %v1268 = vrot.slane %v1251, 7
    %v1269 = vsel %vm518, %v1267, %v1268
    %v1270 = vsel %vm518, %v1268, %v1267
    %v1271 = vsel %vm531, %v1270, 0.0
    %v1272 = vsel %vm532, %v1269, 0.0
    %v1273 = vrot.slane %v1250, 1
    %v1274 = vrot.slane %v1251, 1
    %v1275 = vsel %vm537, %v1273, %v1274
    %v1276 = vsel %vm537, %v1274, %v1273
    %v1277 = vsel %vm550, %v1275, 0.0
    %v1278 = vsel %vm551, %v1276, 0.0
    %1281 = vrot.lane.b32.xlu0 %v1250, 32
    %v1282 = vpop.permute.xlu0 %1281
    %1283 = vrot.lane.b32.xlu0 %v1251, 32
    %v1284 = vpop.permute.xlu0 %1283
    %1289 = vrot.lane.b32.xlu0 %v1277, 64
    %v1290 = vpop.permute.xlu0 %1289
    %1291 = vrot.lane.b32.xlu0 %v1278, 64
    %v1292 = vpop.permute.xlu0 %1291
    %v1295 = vsel %vm570, %v1271, %v1282
    %v1296 = vsel %vm570, %v1272, %v1284
    %v1297 = vsel %vm573, %v1295, %v1290
    %v1298 = vsel %vm573, %v1296, %v1292
    %v1300 = vlaneseq
    %v1301 = vshrl.u32 %v1300, 7
    %v1302 = vsub.s32 0, %v1301
    %v1303 = vrot.slane %v1266, %v1302
    %v1306 = vsel %vm582, %v1297, 0
    %v1309 = vsel %vm582, %v1298, 0
    %1311 = vmatprep.subr.mxu0 0.0
    %1312 = vmatpush1.msra.mxu0 %v1253
    %1313 = vmatprep.subr.mxu0 0.0
    %1314 = vmatpush1.msra.mxu0 %v1254
    %1315 = vmatprep.subr.mxu0 0.0
    %1316 = vmatpush1.msra.mxu0 %v1255
    %1317 = vmatprep.subr.mxu0 0.0
    %1318 = vmatpush1.msra.mxu0 %v1256
    %1319 = vmatprep.subr.mxu0 0.0
    %1320 = vmatpush1.msra.mxu0 %v1257
    %1321 = vmatprep.subr.mxu0 0.0
    %1322 = vmatpush1.msra.mxu0 %v1258
    %1323 = vmatprep.subr.mxu0 0.0
    %1324 = vmatpush1.msra.mxu0 %v1259
    %1325 = vmatprep.subr.mxu0 0.0
    %1326 = vmatpush1.msra.mxu0 %v1260
    %1327 = vmatprep.subr.mxu0 0.0
    %1328 = vmatpush1.msra.mxu0 %v1261
    %1329 = vmatprep.subr.mxu0 0.0
    %1330 = vmatpush1.msra.mxu0 %v1262
    %1331 = vmatprep.subr.mxu0 0.0
    %1332 = vmatpush1.msra.mxu0 %v1263
    %1333 = vmatprep.subr.mxu0 0.0
    %1334 = vmatpush1.msra.mxu0 %v1264
    %1335 = vmatprep.subr.mxu0 0.0
    %1336 = vmatpush1.msra.mxu0 0.0
    %1337 = vmatprep.subr.mxu0 0.0
    %1338 = vmatpush1.msra.mxu0 0.0
    %1339 = vmatprep.subr.mxu0 0.0
    %1340 = vmatpush1.msra.mxu0 0.0
    %1341 = vmatprep.subr.mxu0 0.0
    %1342 = vmatpush1.msra.mxu0 0.0
    %1343 = vmatprep.subr.mxu0 0.0
    %1344 = vmatpush1.msra.mxu0 0.0
    %1345 = vmatprep.subr.mxu0 0.0
    %1346 = vmatpush1.msra.mxu0 0.0
    %1347 = vmatprep.subr.mxu0 0.0
    %1348 = vmatpush1.msra.mxu0 0.0
    %1349 = vmatprep.subr.mxu0 0.0
    %1350 = vmatpush1.msra.mxu0 0.0
    %1351 = vmatprep.subr.mxu0 0.0
    %1352 = vmatpush1.msra.mxu0 0.0
    %1353 = vmatprep.subr.mxu0 0.0
    %1354 = vmatpush1.msra.mxu0 0.0
    %1355 = vmatprep.subr.mxu0 0.0
    %1356 = vmatpush1.msra.mxu0 0.0
    %1357 = vmatprep.subr.mxu0 0.0
    %1358 = vmatpush1.msra.mxu0 0.0
    %1359 = vmatprep.subr.mxu0 0.0
    %1360 = vmatpush1.msra.mxu0 0.0
    %1361 = vmatprep.subr.mxu0 0.0
    %1362 = vmatpush1.msra.mxu0 0.0
    %1363 = vmatprep.subr.mxu0 0.0
    %1364 = vmatpush1.msra.mxu0 0.0
    %1365 = vmatprep.subr.mxu0 0.0
    %1366 = vmatpush1.msra.mxu0 0.0
    %1367 = vmatprep.subr.mxu0 0.0
    %1368 = vmatpush1.msra.mxu0 0.0
    %1369 = vmatprep.subr.mxu0 0.0
    %1370 = vmatpush1.msra.mxu0 0.0
    %1371 = vmatprep.subr.mxu0 0.0
    %1372 = vmatpush1.msra.mxu0 0.0
    %1373 = vmatprep.subr.mxu0 0.0
    %1374 = vmatpush1.msra.mxu0 0.0
    %1375 = vmatprep.mubr.f32.mxu0 0.0
    %1376 = vmatmul.mubr.f32.gmra.mrb[0].mxu0 %v1306
    %v1377 = vpop.f32.mrb[0].mxu0
    %v1378 = vadd.f32 %v1303, %v1377
    %v1379 = vpop.f32.mrb[0].mxu0
    %1380 = vmatprep.mubr.f32.mxu0 0.0
    %1381 = vmatmul.mubr.f32.gmra.mrb[0].mxu0 %v1309
    %v1382 = vpop.f32.mrb[0].mxu0
    %v1383 = vadd.f32 %v1303, %v1382
    %v1384 = vpop.f32.mrb[0].mxu0
    %1385 = vdwg.mxu0
    %v1386 = vmax.f32 %v1378, 0.0
    %v1387 = vmax.f32 %v1383, 0.0
    %v1388 = vadd.f32 %v1102, %v1386
    %v1389 = vadd.f32 %v1103, %v1387
    %1390 = vrot.lane.b32.xlu0 %v489, 64
    %v1391 = vpop.permute.xlu0 %1390
    %1392 = vrot.lane.b32.xlu0 %v495, 64
    %v1393 = vpop.permute.xlu0 %1392
    %v1396 = vadd.f32 %v1388, %v1391
    %v1397 = vadd.f32 %v1389, %v1393
    %s1398 = scalar_lea.vmem %s6, 576
    %v1399 = vld [vmem:[%s1398] sm:$0xff]
    %v1400 = vld [vmem:[%s1398 + $0x8] sm:$0xff]
    %v1401 = vld [vmem:[%s1398 + $0x10] sm:$0xff]
    %v1402 = vld [vmem:[%s1398 + $0x18] sm:$0xff]
    %v1403 = vld [vmem:[%s1398 + $0x20] sm:$0xff]
    %v1404 = vld [vmem:[%s1398 + $0x28] sm:$0xff]
    %v1405 = vld [vmem:[%s1398 + $0x30] sm:$0xff]
    %v1406 = vld [vmem:[%s1398 + $0x38] sm:$0xff]
    %v1407 = vld [vmem:[%s1398 + $0x40] sm:$0xff]
    %v1408 = vld [vmem:[%s1398 + $0x48] sm:$0xff]
    %v1409 = vld [vmem:[%s1398 + $0x50] sm:$0xff]
    %v1410 = vld [vmem:[%s1398 + $0x58] sm:$0xff]
    %s1411 = scalar_lea.vmem [#allocation4], 6
    %v1412 = vld [vmem:[%s1411] sm:$0x1]
    %v1413 = vrot.slane %v1396, 7
    %v1414 = vrot.slane %v1397, 7
    %v1415 = vsel %vm518, %v1413, %v1414
    %v1416 = vsel %vm518, %v1414, %v1413
    %v1417 = vsel %vm531, %v1416, 0.0
    %v1418 = vsel %vm532, %v1415, 0.0
    %v1419 = vrot.slane %v1396, 1
    %v1420 = vrot.slane %v1397, 1
    %v1421 = vsel %vm537, %v1419, %v1420
    %v1422 = vsel %vm537, %v1420, %v1419
    %v1423 = vsel %vm550, %v1421, 0.0
    %v1424 = vsel %vm551, %v1422, 0.0
    %1427 = vrot.lane.b32.xlu0 %v1396, 32
    %v1428 = vpop.permute.xlu0 %1427
    %1429 = vrot.lane.b32.xlu0 %v1397, 32
    %v1430 = vpop.permute.xlu0 %1429
    %1435 = vrot.lane.b32.xlu0 %v1423, 64
    %v1436 = vpop.permute.xlu0 %1435
    %1437 = vrot.lane.b32.xlu0 %v1424, 64
    %v1438 = vpop.permute.xlu0 %1437
    %v1441 = vsel %vm570, %v1417, %v1428
    %v1442 = vsel %vm570, %v1418, %v1430
    %v1443 = vsel %vm573, %v1441, %v1436
    %v1444 = vsel %vm573, %v1442, %v1438
    %v1446 = vlaneseq
    %v1447 = vshrl.u32 %v1446, 7
    %v1448 = vsub.s32 0, %v1447
    %v1449 = vrot.slane %v1412, %v1448
    %v1452 = vsel %vm582, %v1443, 0
    %v1455 = vsel %vm582, %v1444, 0
    %1457 = vmatprep.subr.mxu0 0.0
    %1458 = vmatpush1.msra.mxu0 %v1399
    %1459 = vmatprep.subr.mxu0 0.0
    %1460 = vmatpush1.msra.mxu0 %v1400
    %1461 = vmatprep.subr.mxu0 0.0
    %1462 = vmatpush1.msra.mxu0 %v1401
    %1463 = vmatprep.subr.mxu0 0.0
    %1464 = vmatpush1.msra.mxu0 %v1402
    %1465 = vmatprep.subr.mxu0 0.0
    %1466 = vmatpush1.msra.mxu0 %v1403
    %1467 = vmatprep.subr.mxu0 0.0
    %1468 = vmatpush1.msra.mxu0 %v1404
    %1469 = vmatprep.subr.mxu0 0.0
    %1470 = vmatpush1.msra.mxu0 %v1405
    %1471 = vmatprep.subr.mxu0 0.0
    %1472 = vmatpush1.msra.mxu0 %v1406
    %1473 = vmatprep.subr.mxu0 0.0
    %1474 = vmatpush1.msra.mxu0 %v1407
    %1475 = vmatprep.subr.mxu0 0.0
    %1476 = vmatpush1.msra.mxu0 %v1408
    %1477 = vmatprep.subr.mxu0 0.0
    %1478 = vmatpush1.msra.mxu0 %v1409
    %1479 = vmatprep.subr.mxu0 0.0
    %1480 = vmatpush1.msra.mxu0 %v1410
    %1481 = vmatprep.subr.mxu0 0.0
    %1482 = vmatpush1.msra.mxu0 0.0
    %1483 = vmatprep.subr.mxu0 0.0
    %1484 = vmatpush1.msra.mxu0 0.0
    %1485 = vmatprep.subr.mxu0 0.0
    %1486 = vmatpush1.msra.mxu0 0.0
    %1487 = vmatprep.subr.mxu0 0.0
    %1488 = vmatpush1.msra.mxu0 0.0
    %1489 = vmatprep.subr.mxu0 0.0
    %1490 = vmatpush1.msra.mxu0 0.0
    %1491 = vmatprep.subr.mxu0 0.0
    %1492 = vmatpush1.msra.mxu0 0.0
    %1493 = vmatprep.subr.mxu0 0.0
    %1494 = vmatpush1.msra.mxu0 0.0
    %1495 = vmatprep.subr.mxu0 0.0
    %1496 = vmatpush1.msra.mxu0 0.0
    %1497 = vmatprep.subr.mxu0 0.0
    %1498 = vmatpush1.msra.mxu0 0.0
    %1499 = vmatprep.subr.mxu0 0.0
    %1500 = vmatpush1.msra.mxu0 0.0
    %1501 = vmatprep.subr.mxu0 0.0
    %1502 = vmatpush1.msra.mxu0 0.0
    %1503 = vmatprep.subr.mxu0 0.0
    %1504 = vmatpush1.msra.mxu0 0.0
    %1505 = vmatprep.subr.mxu0 0.0
    %1506 = vmatpush1.msra.mxu0 0.0
    %1507 = vmatprep.subr.mxu0 0.0
    %1508 = vmatpush1.msra.mxu0 0.0
    %1509 = vmatprep.subr.mxu0 0.0
    %1510 = vmatpush1.msra.mxu0 0.0
    %1511 = vmatprep.subr.mxu0 0.0
    %1512 = vmatpush1.msra.mxu0 0.0
    %1513 = vmatprep.subr.mxu0 0.0
    %1514 = vmatpush1.msra.mxu0 0.0
    %1515 = vmatprep.subr.mxu0 0.0
    %1516 = vmatpush1.msra.mxu0 0.0
    %1517 = vmatprep.subr.mxu0 0.0
    %1518 = vmatpush1.msra.mxu0 0.0
    %1519 = vmatprep.subr.mxu0 0.0
    %1520 = vmatpush1.msra.mxu0 0.0
    %1521 = vmatprep.mubr.f32.mxu0 0.0
    %1522 = vmatmul.mubr.f32.gmra.mrb[0].mxu0 %v1452
    %v1523 = vpop.f32.mrb[0].mxu0
    %v1524 = vadd.f32 %v1449, %v1523
    %v1525 = vpop.f32.mrb[0].mxu0
    %1526 = vmatprep.mubr.f32.mxu0 0.0
    %1527 = vmatmul.mubr.f32.gmra.mrb[0].mxu0 %v1455
    %v1528 = vpop.f32.mrb[0].mxu0
    %v1529 = vadd.f32 %v1449, %v1528
    %v1530 = vpop.f32.mrb[0].mxu0
    %1531 = vdwg.mxu0
    %v1532 = vmax.f32 %v1524, 0.0
    %v1533 = vmax.f32 %v1529, 0.0
    %1534 = vrot.lane.b32.xlu0 %v489, 32
    %v1535 = vpop.permute.xlu0 %1534
    %1536 = vrot.lane.b32.xlu0 %v495, 32
    %v1537 = vpop.permute.xlu0 %1536
    %v1540 = vadd.f32 %v1532, %v1535
    %v1541 = vadd.f32 %v1533, %v1537
    %v1542 = vld [vmem:[%s25] sm:$0xff]
    %v1543 = vld [vmem:[%s25 + $0x8] sm:$0xff]
    %v1544 = vld [vmem:[%s25 + $0x10] sm:$0xff]
    %v1545 = vld [vmem:[%s25 + $0x18] sm:$0xff]
    %1548 = vrot.lane.b32.xlu0 %v1388, 32
    %v1549 = vpop.permute.xlu0 %1548
    %1550 = vrot.lane.b32.xlu0 %v1389, 32
    %v1551 = vpop.permute.xlu0 %1550
    %v1554 = vsel %vm570, %v1540, %v1549
    %v1555 = vsel %vm570, %v1541, %v1551
    %v1557 = vsel %vm291, %v1542, 0
    %v1560 = vsel %vm291, %v1543, 0
    %v1563 = vsel %vm291, %v1544, 0
    %v1566 = vsel %vm291, %v1545, 0
    %1568 = vmatprep.subr.mxu0 0.0
    %1569 = vmatpush1.msra.mxu0 %v1554
    %1570 = vmatprep.subr.mxu0 0.0
    %1571 = vmatpush1.msra.mxu0 %v1555
    %1572 = vmatprep.subr.mxu0 0.0
    %1573 = vmatpush1.msra.mxu0 0.0
    %1574 = vmatprep.subr.mxu0 0.0
    %1575 = vmatpush1.msra.mxu0 0.0
    %1576 = vmatprep.subr.mxu0 0.0
    %1577 = vmatpush1.msra.mxu0 0.0
    %1578 = vmatprep.subr.mxu0 0.0
    %1579 = vmatpush1.msra.mxu0 0.0
    %1580 = vmatprep.subr.mxu0 0.0
    %1581 = vmatpush1.msra.mxu0 0.0
    %1582 = vmatprep.subr.mxu0 0.0
    %1583 = vmatpush1.msra.mxu0 0.0
    %1584 = vmatprep.subr.mxu0 0.0
    %1585 = vmatpush1.msra.mxu0 0.0
    %1586 = vmatprep.subr.mxu0 0.0
    %1587 = vmatpush1.msra.mxu0 0.0
    %1588 = vmatprep.subr.mxu0 0.0
    %1589 = vmatpush1.msra.mxu0 0.0
    %1590 = vmatprep.subr.mxu0 0.0
    %1591 = vmatpush1.msra.mxu0 0.0
    %1592 = vmatprep.subr.mxu0 0.0
    %1593 = vmatpush1.msra.mxu0 0.0
    %1594 = vmatprep.subr.mxu0 0.0
    %1595 = vmatpush1.msra.mxu0 0.0
    %1596 = vmatprep.subr.mxu0 0.0
    %1597 = vmatpush1.msra.mxu0 0.0
    %1598 = vmatprep.subr.mxu0 0.0
    %1599 = vmatpush1.msra.mxu0 0.0
    %1600 = vmatprep.subr.mxu0 0.0
    %1601 = vmatpush1.msra.mxu0 0.0
    %1602 = vmatprep.subr.mxu0 0.0
    %1603 = vmatpush1.msra.mxu0 0.0
    %1604 = vmatprep.subr.mxu0 0.0
    %1605 = vmatpush1.msra.mxu0 0.0
    %1606 = vmatprep.subr.mxu0 0.0
    %1607 = vmatpush1.msra.mxu0 0.0
    %1608 = vmatprep.subr.mxu0 0.0
    %1609 = vmatpush1.msra.mxu0 0.0
    %1610 = vmatprep.subr.mxu0 0.0
    %1611 = vmatpush1.msra.mxu0 0.0
    %1612 = vmatprep.subr.mxu0 0.0
    %1613 = vmatpush1.msra.mxu0 0.0
    %1614 = vmatprep.subr.mxu0 0.0
    %1615 = vmatpush1.msra.mxu0 0.0
    %1616 = vmatprep.subr.mxu0 0.0
    %1617 = vmatpush1.msra.mxu0 0.0
    %1618 = vmatprep.subr.mxu0 0.0
    %1619 = vmatpush1.msra.mxu0 0.0
    %1620 = vmatprep.subr.mxu0 0.0
    %1621 = vmatpush1.msra.mxu0 0.0
    %1622 = vmatprep.subr.mxu0 0.0
    %1623 = vmatpush1.msra.mxu0 0.0
    %1624 = vmatprep.subr.mxu0 0.0
    %1625 = vmatpush1.msra.mxu0 0.0
    %1626 = vmatprep.subr.mxu0 0.0
    %1627 = vmatpush1.msra.mxu0 0.0
    %1628 = vmatprep.subr.mxu0 0.0
    %1629 = vmatpush1.msra.mxu0 0.0
    %1630 = vmatprep.subr.mxu0 0.0
    %1631 = vmatpush1.msra.mxu0 0.0
    %1632 = vmatprep.mubr.f32.mxu0 0.0
    %1633 = vmatmul.mubr.f32.gmra.mrb[0].mxu0 %v1557
    %v1634 = vpop.f32.mrb[0].mxu0
    %v1635 = vadd.f32 0.0, %v1634
    %v1636 = vpop.f32.mrb[0].mxu0
    %1637 = vmatprep.mubr.f32.mxu0 0.0
    %1638 = vmatmul.mubr.f32.gmra.mrb[0].mxu0 %v1560
    %v1639 = vpop.f32.mrb[0].mxu0
    %v1640 = vadd.f32 0.0, %v1639
    %v1641 = vpop.f32.mrb[0].mxu0
    %1642 = vmatprep.mubr.f32.mxu0 0.0
    %1643 = vmatmul.mubr.f32.gmra.mrb[0].mxu0 %v1563
    %v1644 = vpop.f32.mrb[0].mxu0
    %v1645 = vadd.f32 0.0, %v1644
    %v1646 = vpop.f32.mrb[0].mxu0
    %1647 = vmatprep.mubr.f32.mxu0 0.0
    %1648 = vmatmul.mubr.f32.gmra.mrb[0].mxu0 %v1566
    %v1649 = vpop.f32.mrb[0].mxu0
    %v1650 = vadd.f32 0.0, %v1649
    %v1651 = vpop.f32.mrb[0].mxu0
    %1652 = vdwg.mxu0
    %s1653 = scalar_lea.vmem %s6, 672
    %v1654 = vld [vmem:[%s1653] sm:$0xff]
    %v1655 = vld [vmem:[%s1653 + $0x8] sm:$0xff]
    %v1656 = vld [vmem:[%s1653 + $0x10] sm:$0xff]
    %v1657 = vld [vmem:[%s1653 + $0x18] sm:$0xff]
    %v1658 = vld [vmem:[%s1653 + $0x20] sm:$0xff]
    %v1659 = vld [vmem:[%s1653 + $0x28] sm:$0xff]
    %v1660 = vld [vmem:[%s1653 + $0x30] sm:$0xff]
    %v1661 = vld [vmem:[%s1653 + $0x38] sm:$0xff]
    %v1662 = vld [vmem:[%s1653 + $0x40] sm:$0xff]
    %v1663 = vld [vmem:[%s1653 + $0x48] sm:$0xff]
    %v1664 = vld [vmem:[%s1653 + $0x50] sm:$0xff]
    %v1665 = vld [vmem:[%s1653 + $0x58] sm:$0xff]
    %s1666 = scalar_lea.vmem [#allocation4], 7
    %v1667 = vld [vmem:[%s1666] sm:$0x1]
    %v1668 = vld [vmem:[%s24] sm:$0xff]
    %v1669 = vld [vmem:[%s24 + $0x8] sm:$0xff]
    %v1670 = vld [vmem:[%s24 + $0x10] sm:$0xff]
    %v1671 = vld [vmem:[%s24 + $0x18] sm:$0xff]
    %v1672 = vrot.slane %v1635, 7
    %v1673 = vrot.slane %v1640, 7
    %v1674 = vrot.slane %v1645, 7
    %v1675 = vrot.slane %v1650, 7
    %v1676 = vsel %vm518, %v1674, %v1675
    %v1677 = vsel %vm518, %v1673, %v1674
    %v1678 = vsel %vm518, %v1672, %v1673
    %v1679 = vsel %vm518, %v1675, %v1672
    %vm1680 = vcmp.ge.f32.partialorder %v1668, 1.0
    %vm1681 = vcmp.ge.f32.partialorder %v1669, 1.0
    %vm1682 = vcmp.ge.f32.partialorder %v1670, 1.0
    %vm1683 = vcmp.ge.f32.partialorder %v1671, 1.0
    %v1684 = vsel %vm1680, 1, 0
    %v1685 = vsel %vm1681, 1, 0
    %v1686 = vsel %vm1682, 1, 0
    %v1687 = vsel %vm1683, 1, 0
    %1688 = vset.pattern.permute.xlu0 0
    %1689 = vperm.xlu0 %1688, %v1684
    %v1690 = vpop.permute.xlu0 %1689
    %1691 = vset.pattern.permute.xlu0 0
    %1692 = vperm.xlu0 %1691, %v1685
    %v1693 = vpop.permute.xlu0 %1692
    %1694 = vset.pattern.permute.xlu0 0
    %1695 = vperm.xlu0 %1694, %v1686
    %v1696 = vpop.permute.xlu0 %1695
    %1697 = vset.pattern.permute.xlu0 0
    %1698 = vperm.xlu0 %1697, %v1687
    %v1699 = vpop.permute.xlu0 %1698
    %vm1700 = vcmp.eq.s32.totalorder %v1690, 1
    %vm1701 = vcmp.eq.s32.totalorder %v1693, 1
    %vm1702 = vcmp.eq.s32.totalorder %v1696, 1
    %vm1703 = vcmp.eq.s32.totalorder %v1699, 1
    %v1704 = vsel %vm1700, %v1679, 0.0
    %v1705 = vsel %vm1701, %v1678, 0.0
    %v1706 = vsel %vm1702, %v1677, 0.0
    %v1707 = vsel %vm1703, %v1676, 0.0
    %v1708 = vrot.slane %v1635, 1
    %v1709 = vrot.slane %v1640, 1
    %v1710 = vrot.slane %v1645, 1
    %v1711 = vrot.slane %v1650, 1
    %v1712 = vsel %vm537, %v1710, %v1711
    %v1713 = vsel %vm537, %v1709, %v1710
    %v1714 = vsel %vm537, %v1708, %v1709
    %v1715 = vsel %vm537, %v1711, %v1708
    %vm1716 = vcmp.le.f32.partialorder %v1668, 14.0
    %vm1717 = vcmp.le.f32.partialorder %v1669, 14.0
    %vm1718 = vcmp.le.f32.partialorder %v1670, 14.0
    %vm1719 = vcmp.le.f32.partialorder %v1671, 14.0
    %v1720 = vsel %vm1716, 1, 0
    %v1721 = vsel %vm1717, 1, 0
    %v1722 = vsel %vm1718, 1, 0
    %v1723 = vsel %vm1719, 1, 0
    %1724 = vset.pattern.permute.xlu0 0
    %1725 = vperm.xlu0 %1724, %v1720
    %v1726 = vpop.permute.xlu0 %1725
    %1727 = vset.pattern.permute.xlu0 0
    %1728 = vperm.xlu0 %1727, %v1721
    %v1729 = vpop.permute.xlu0 %1728
    %1730 = vset.pattern.permute.xlu0 0
    %1731 = vperm.xlu0 %1730, %v1722
    %v1732 = vpop.permute.xlu0 %1731
    %1733 = vset.pattern.permute.xlu0 0
    %1734 = vperm.xlu0 %1733, %v1723
    %v1735 = vpop.permute.xlu0 %1734
    %vm1736 = vcmp.eq.s32.totalorder %v1726, 1
    %vm1737 = vcmp.eq.s32.totalorder %v1729, 1
    %vm1738 = vcmp.eq.s32.totalorder %v1732, 1
    %vm1739 = vcmp.eq.s32.totalorder %v1735, 1
    %v1740 = vsel %vm1736, %v1714, 0.0
    %v1741 = vsel %vm1737, %v1713, 0.0
    %v1742 = vsel %vm1738, %v1712, 0.0
    %v1743 = vsel %vm1739, %v1715, 0.0
    %1748 = vrot.lane.b32.xlu0 %v1635, 32
    %v1749 = vpop.permute.xlu0 %1748
    %1750 = vrot.lane.b32.xlu0 %v1640, 32
    %v1751 = vpop.permute.xlu0 %1750
    %1752 = vrot.lane.b32.xlu0 %v1645, 32
    %v1753 = vpop.permute.xlu0 %1752
    %1754 = vrot.lane.b32.xlu0 %v1650, 32
    %v1755 = vpop.permute.xlu0 %1754
    %1764 = vrot.lane.b32.xlu0 %v1740, 64
    %v1765 = vpop.permute.xlu0 %1764
    %1766 = vrot.lane.b32.xlu0 %v1741, 64
    %v1767 = vpop.permute.xlu0 %1766
    %1768 = vrot.lane.b32.xlu0 %v1742, 64
    %v1769 = vpop.permute.xlu0 %1768
    %1770 = vrot.lane.b32.xlu0 %v1743, 64
    %v1771 = vpop.permute.xlu0 %1770
    %v1776 = vsel %vm570, %v1704, %v1749
    %v1777 = vsel %vm570, %v1705, %v1751
    %v1778 = vsel %vm570, %v1706, %v1753
    %v1779 = vsel %vm570, %v1707, %v1755
    %v1780 = vsel %vm573, %v1776, %v1765
    %v1781 = vsel %vm573, %v1777, %v1767
    %v1782 = vsel %vm573, %v1778, %v1769
    %v1783 = vsel %vm573, %v1779, %v1771
    %v1785 = vlaneseq
    %v1786 = vshrl.u32 %v1785, 7
    %v1787 = vsub.s32 0, %v1786
    %v1788 = vrot.slane %v1667, %v1787
    %v1791 = vsel %vm582, %v1780, 0
    %v1794 = vsel %vm582, %v1781, 0
    %v1797 = vsel %vm582, %v1782, 0
    %v1800 = vsel %vm582, %v1783, 0
    %1802 = vmatprep.subr.mxu0 0.0
    %1803 = vmatpush1.msra.mxu0 %v1654
    %1804 = vmatprep.subr.mxu0 0.0
    %1805 = vmatpush1.msra.mxu0 %v1655
    %1806 = vmatprep.subr.mxu0 0.0
    %1807 = vmatpush1.msra.mxu0 %v1656
    %1808 = vmatprep.subr.mxu0 0.0
    %1809 = vmatpush1.msra.mxu0 %v1657
    %1810 = vmatprep.subr.mxu0 0.0
    %1811 = vmatpush1.msra.mxu0 %v1658
    %1812 = vmatprep.subr.mxu0 0.0
    %1813 = vmatpush1.msra.mxu0 %v1659
    %1814 = vmatprep.subr.mxu0 0.0
    %1815 = vmatpush1.msra.mxu0 %v1660
    %1816 = vmatprep.subr.mxu0 0.0
    %1817 = vmatpush1.msra.mxu0 %v1661
    %1818 = vmatprep.subr.mxu0 0.0
    %1819 = vmatpush1.msra.mxu0 %v1662
    %1820 = vmatprep.subr.mxu0 0.0
    %1821 = vmatpush1.msra.mxu0 %v1663
    %1822 = vmatprep.subr.mxu0 0.0
    %1823 = vmatpush1.msra.mxu0 %v1664
    %1824 = vmatprep.subr.mxu0 0.0
    %1825 = vmatpush1.msra.mxu0 %v1665
    %1826 = vmatprep.subr.mxu0 0.0
    %1827 = vmatpush1.msra.mxu0 0.0
    %1828 = vmatprep.subr.mxu0 0.0
    %1829 = vmatpush1.msra.mxu0 0.0
    %1830 = vmatprep.subr.mxu0 0.0
    %1831 = vmatpush1.msra.mxu0 0.0
    %1832 = vmatprep.subr.mxu0 0.0
    %1833 = vmatpush1.msra.mxu0 0.0
    %1834 = vmatprep.subr.mxu0 0.0
    %1835 = vmatpush1.msra.mxu0 0.0
    %1836 = vmatprep.subr.mxu0 0.0
    %1837 = vmatpush1.msra.mxu0 0.0
    %1838 = vmatprep.subr.mxu0 0.0
    %1839 = vmatpush1.msra.mxu0 0.0
    %1840 = vmatprep.subr.mxu0 0.0
    %1841 = vmatpush1.msra.mxu0 0.0
    %1842 = vmatprep.subr.mxu0 0.0
    %1843 = vmatpush1.msra.mxu0 0.0
    %1844 = vmatprep.subr.mxu0 0.0
    %1845 = vmatpush1.msra.mxu0 0.0
    %1846 = vmatprep.subr.mxu0 0.0
    %1847 = vmatpush1.msra.mxu0 0.0
    %1848 = vmatprep.subr.mxu0 0.0
    %1849 = vmatpush1.msra.mxu0 0.0
    %1850 = vmatprep.subr.mxu0 0.0
    %1851 = vmatpush1.msra.mxu0 0.0
    %1852 = vmatprep.subr.mxu0 0.0
    %1853 = vmatpush1.msra.mxu0 0.0
    %1854 = vmatprep.subr.mxu0 0.0
    %1855 = vmatpush1.msra.mxu0 0.0
    %1856 = vmatprep.subr.mxu0 0.0
    %1857 = vmatpush1.msra.mxu0 0.0
    %1858 = vmatprep.subr.mxu0 0.0
    %1859 = vmatpush1.msra.mxu0 0.0
    %1860 = vmatprep.subr.mxu0 0.0
    %1861 = vmatpush1.msra.mxu0 0.0
    %1862 = vmatprep.subr.mxu0 0.0
    %1863 = vmatpush1.msra.mxu0 0.0
    %1864 = vmatprep.subr.mxu0 0.0
    %1865 = vmatpush1.msra.mxu0 0.0
    %1866 = vmatprep.mubr.f32.mxu0 0.0
    %1867 = vmatmul.mubr.f32.gmra.mrb[0].mxu0 %v1791
    %v1868 = vpop.f32.mrb[0].mxu0
    %v1869 = vadd.f32 %v1788, %v1868
    %v1870 = vpop.f32.mrb[0].mxu0
    %1871 = vmatprep.mubr.f32.mxu0 0.0
    %1872 = vmatmul.mubr.f32.gmra.mrb[0].mxu0 %v1794
    %v1873 = vpop.f32.mrb[0].mxu0
    %v1874 = vadd.f32 %v1788, %v1873
    %v1875 = vpop.f32.mrb[0].mxu0
    %1876 = vmatprep.mubr.f32.mxu0 0.0
    %1877 = vmatmul.mubr.f32.gmra.mrb[0].mxu0 %v1797
    %v1878 = vpop.f32.mrb[0].mxu0
    %v1879 = vadd.f32 %v1788, %v1878
    %v1880 = vpop.f32.mrb[0].mxu0
    %1881 = vmatprep.mubr.f32.mxu0 0.0
    %1882 = vmatmul.mubr.f32.gmra.mrb[0].mxu0 %v1800
    %v1883 = vpop.f32.mrb[0].mxu0
    %v1884 = vadd.f32 %v1788, %v1883
    %v1885 = vpop.f32.mrb[0].mxu0
    %1886 = vdwg.mxu0
    %v1887 = vmax.f32 %v1869, 0.0
    %v1888 = vmax.f32 %v1874, 0.0
    %v1889 = vmax.f32 %v1879, 0.0
    %v1890 = vmax.f32 %v1884, 0.0
    %1891 = vrot.lane.b32.xlu0 %v1635, 96
    %v1892 = vpop.permute.xlu0 %1891
    %1893 = vrot.lane.b32.xlu0 %v1640, 96
    %v1894 = vpop.permute.xlu0 %1893
    %1895 = vrot.lane.b32.xlu0 %v1645, 96
    %v1896 = vpop.permute.xlu0 %1895
    %1897 = vrot.lane.b32.xlu0 %v1650, 96
    %v1898 = vpop.permute.xlu0 %1897
    %v1903 = vadd.f32 %v1887, %v1892
    %v1904 = vadd.f32 %v1888, %v1894
    %v1905 = vadd.f32 %v1889, %v1896
    %v1906 = vadd.f32 %v1890, %v1898
    %v1907 = vld [vmem:[%s16] sm:$0xff]
    %v1908 = vld [vmem:[%s16 + $0x8] sm:$0xff]
    %v1909 = vld [vmem:[%s16 + $0x10] sm:$0xff]
    %v1910 = vld [vmem:[%s16 + $0x18] sm:$0xff]
    %v1912 = vsel %vm570, %v1903, 0
    %v1915 = vsel %vm570, %v1904, 0
    %v1918 = vsel %vm570, %v1905, 0
    %v1921 = vsel %vm570, %v1906, 0
    %1923 = vmatprep.subr.mxu0 0.0
    %1924 = vmatpush1.msra.mxu0 %v1907
    %1925 = vmatprep.subr.mxu0 0.0
    %1926 = vmatpush1.msra.mxu0 %v1908
    %1927 = vmatprep.subr.mxu0 0.0
    %1928 = vmatpush1.msra.mxu0 %v1909
    %1929 = vmatprep.subr.mxu0 0.0
    %1930 = vmatpush1.msra.mxu0 %v1910
    %1931 = vmatprep.subr.mxu0 0.0
    %1932 = vmatpush1.msra.mxu0 0.0
    %1933 = vmatprep.subr.mxu0 0.0
    %1934 = vmatpush1.msra.mxu0 0.0
    %1935 = vmatprep.subr.mxu0 0.0
    %1936 = vmatpush1.msra.mxu0 0.0
    %1937 = vmatprep.subr.mxu0 0.0
    %1938 = vmatpush1.msra.mxu0 0.0
    %1939 = vmatprep.subr.mxu0 0.0
    %1940 = vmatpush1.msra.mxu0 0.0
    %1941 = vmatprep.subr.mxu0 0.0
    %1942 = vmatpush1.msra.mxu0 0.0
    %1943 = vmatprep.subr.mxu0 0.0
    %1944 = vmatpush1.msra.mxu0 0.0
    %1945 = vmatprep.subr.mxu0 0.0
    %1946 = vmatpush1.msra.mxu0 0.0
    %1947 = vmatprep.subr.mxu0 0.0
    %1948 = vmatpush1.msra.mxu0 0.0
    %1949 = vmatprep.subr.mxu0 0.0
    %1950 = vmatpush1.msra.mxu0 0.0
    %1951 = vmatprep.subr.mxu0 0.0
    %1952 = vmatpush1.msra.mxu0 0.0
    %1953 = vmatprep.subr.mxu0 0.0
    %1954 = vmatpush1.msra.mxu0 0.0
    %1955 = vmatprep.subr.mxu0 0.0
    %1956 = vmatpush1.msra.mxu0 0.0
    %1957 = vmatprep.subr.mxu0 0.0
    %1958 = vmatpush1.msra.mxu0 0.0
    %1959 = vmatprep.subr.mxu0 0.0
    %1960 = vmatpush1.msra.mxu0 0.0
    %1961 = vmatprep.subr.mxu0 0.0
    %1962 = vmatpush1.msra.mxu0 0.0
    %1963 = vmatprep.subr.mxu0 0.0
    %1964 = vmatpush1.msra.mxu0 0.0
    %1965 = vmatprep.subr.mxu0 0.0
    %1966 = vmatpush1.msra.mxu0 0.0
    %1967 = vmatprep.subr.mxu0 0.0
    %1968 = vmatpush1.msra.mxu0 0.0
    %1969 = vmatprep.subr.mxu0 0.0
    %1970 = vmatpush1.msra.mxu0 0.0
    %1971 = vmatprep.subr.mxu0 0.0
    %1972 = vmatpush1.msra.mxu0 0.0
    %1973 = vmatprep.subr.mxu0 0.0
    %1974 = vmatpush1.msra.mxu0 0.0
    %1975 = vmatprep.subr.mxu0 0.0
    %1976 = vmatpush1.msra.mxu0 0.0
    %1977 = vmatprep.subr.mxu0 0.0
    %1978 = vmatpush1.msra.mxu0 0.0
    %1979 = vmatprep.subr.mxu0 0.0
    %1980 = vmatpush1.msra.mxu0 0.0
    %1981 = vmatprep.subr.mxu0 0.0
    %1982 = vmatpush1.msra.mxu0 0.0
    %1983 = vmatprep.subr.mxu0 0.0
    %1984 = vmatpush1.msra.mxu0 0.0
    %1985 = vmatprep.subr.mxu0 0.0
    %1986 = vmatpush1.msra.mxu0 0.0
    %1987 = vmatprep.mubr.f32.mxu0 0.0
    %1988 = vmatmul.mubr.f32.gmra.mrb[0].mxu0 %v1912
    %v1989 = vpop.f32.mrb[0].mxu0
    %v1990 = vadd.f32 0.0, %v1989
    %v1991 = vpop.f32.mrb[0].mxu0
    %1992 = vmatprep.mubr.f32.mxu0 0.0
    %1993 = vmatmul.mubr.f32.gmra.mrb[0].mxu0 %v1915
    %v1994 = vpop.f32.mrb[0].mxu0
    %v1995 = vadd.f32 0.0, %v1994
    %v1996 = vpop.f32.mrb[0].mxu0
    %1997 = vmatprep.mubr.f32.mxu0 0.0
    %1998 = vmatmul.mubr.f32.gmra.mrb[0].mxu0 %v1918
    %v1999 = vpop.f32.mrb[0].mxu0
    %v2000 = vadd.f32 0.0, %v1999
    %v2001 = vpop.f32.mrb[0].mxu0
    %2002 = vmatprep.mubr.f32.mxu0 0.0
    %2003 = vmatmul.mubr.f32.gmra.mrb[0].mxu0 %v1921
    %v2004 = vpop.f32.mrb[0].mxu0
    %v2005 = vadd.f32 0.0, %v2004
    %v2006 = vpop.f32.mrb[0].mxu0
    %2007 = vdwg.mxu0
    %v2008 = vld [vmem:[%s18] sm:$0xff]
    %v2009 = vld [vmem:[%s18 + $0x8] sm:$0xff]
    %v2010 = vld [vmem:[%s18 + $0x10] sm:$0xff]
    %v2011 = vld [vmem:[%s18 + $0x18] sm:$0xff]
    %v2012 = vld [vmem:[%s17] sm:$0x1]
    %v2014 = vlaneseq
    %v2015 = vshrl.u32 %v2014, 7
    %v2016 = vsub.s32 0, %v2015
    %v2017 = vrot.slane %v2012, %v2016
    %2019 = vmatprep.subr.mxu0 0.0
    %2020 = vmatpush1.msra.mxu0 %v2008
    %2021 = vmatprep.subr.mxu0 0.0
    %2022 = vmatpush1.msra.mxu0 %v2009
    %2023 = vmatprep.subr.mxu0 0.0
    %2024 = vmatpush1.msra.mxu0 %v2010
    %2025 = vmatprep.subr.mxu0 0.0
    %2026 = vmatpush1.msra.mxu0 %v2011
    %2027 = vmatprep.subr.mxu0 0.0
    %2028 = vmatpush1.msra.mxu0 0.0
    %2029 = vmatprep.subr.mxu0 0.0
    %2030 = vmatpush1.msra.mxu0 0.0
    %2031 = vmatprep.subr.mxu0 0.0
    %2032 = vmatpush1.msra.mxu0 0.0
    %2033 = vmatprep.subr.mxu0 0.0
    %2034 = vmatpush1.msra.mxu0 0.0
    %2035 = vmatprep.subr.mxu0 0.0
    %2036 = vmatpush1.msra.mxu0 0.0
    %2037 = vmatprep.subr.mxu0 0.0
    %2038 = vmatpush1.msra.mxu0 0.0
    %2039 = vmatprep.subr.mxu0 0.0
    %2040 = vmatpush1.msra.mxu0 0.0
    %2041 = vmatprep.subr.mxu0 0.0
    %2042 = vmatpush1.msra.mxu0 0.0
    %2043 = vmatprep.subr.mxu0 0.0
    %2044 = vmatpush1.msra.mxu0 0.0
    %2045 = vmatprep.subr.mxu0 0.0
    %2046 = vmatpush1.msra.mxu0 0.0
    %2047 = vmatprep.subr.mxu0 0.0
    %2048 = vmatpush1.msra.mxu0 0.0
    %2049 = vmatprep.subr.mxu0 0.0
    %2050 = vmatpush1.msra.mxu0 0.0
    %2051 = vmatprep.subr.mxu0 0.0
    %2052 = vmatpush1.msra.mxu0 0.0
    %2053 = vmatprep.subr.mxu0 0.0
    %2054 = vmatpush1.msra.mxu0 0.0
    %2055 = vmatprep.subr.mxu0 0.0
    %2056 = vmatpush1.msra.mxu0 0.0
    %2057 = vmatprep.subr.mxu0 0.0
    %2058 = vmatpush1.msra.mxu0 0.0
    %2059 = vmatprep.subr.mxu0 0.0
    %2060 = vmatpush1.msra.mxu0 0.0
    %2061 = vmatprep.subr.mxu0 0.0
    %2062 = vmatpush1.msra.mxu0 0.0
    %2063 = vmatprep.subr.mxu0 0.0
    %2064 = vmatpush1.msra.mxu0 0.0
    %2065 = vmatprep.subr.mxu0 0.0
    %2066 = vmatpush1.msra.mxu0 0.0
    %2067 = vmatprep.subr.mxu0 0.0
    %2068 = vmatpush1.msra.mxu0 0.0
    %2069 = vmatprep.subr.mxu0 0.0
    %2070 = vmatpush1.msra.mxu0 0.0
    %2071 = vmatprep.subr.mxu0 0.0
    %2072 = vmatpush1.msra.mxu0 0.0
    %2073 = vmatprep.subr.mxu0 0.0
    %2074 = vmatpush1.msra.mxu0 0.0
    %2075 = vmatprep.subr.mxu0 0.0
    %2076 = vmatpush1.msra.mxu0 0.0
    %2077 = vmatprep.subr.mxu0 0.0
    %2078 = vmatpush1.msra.mxu0 0.0
    %2079 = vmatprep.subr.mxu0 0.0
    %2080 = vmatpush1.msra.mxu0 0.0
    %2081 = vmatprep.subr.mxu0 0.0
    %2082 = vmatpush1.msra.mxu0 0.0
    %2083 = vmatprep.mubr.f32.mxu0 0.0
    %2084 = vmatmul.mubr.f32.gmra.mrb[0].mxu0 %v1912
    %v2085 = vpop.f32.mrb[0].mxu0
    %v2086 = vadd.f32 %v2017, %v2085
    %v2087 = vpop.f32.mrb[0].mxu0
    %2088 = vmatprep.mubr.f32.mxu0 0.0
    %2089 = vmatmul.mubr.f32.gmra.mrb[0].mxu0 %v1915
    %v2090 = vpop.f32.mrb[0].mxu0
    %v2091 = vadd.f32 %v2017, %v2090
    %v2092 = vpop.f32.mrb[0].mxu0
    %2093 = vmatprep.mubr.f32.mxu0 0.0
    %2094 = vmatmul.mubr.f32.gmra.mrb[0].mxu0 %v1918
    %v2095 = vpop.f32.mrb[0].mxu0
    %v2096 = vadd.f32 %v2017, %v2095
    %v2097 = vpop.f32.mrb[0].mxu0
    %2098 = vmatprep.mubr.f32.mxu0 0.0
    %2099 = vmatmul.mubr.f32.gmra.mrb[0].mxu0 %v1921
    %v2100 = vpop.f32.mrb[0].mxu0
    %v2101 = vadd.f32 %v2017, %v2100
    %v2102 = vpop.f32.mrb[0].mxu0
    %2103 = vdwg.mxu0
    %2108 = vrot.lane.b32.xlu0 %v2086, 96
    %v2109 = vpop.permute.xlu0 %2108
    %2110 = vrot.lane.b32.xlu0 %v2091, 96
    %v2111 = vpop.permute.xlu0 %2110
    %2112 = vrot.lane.b32.xlu0 %v2096, 96
    %v2113 = vpop.permute.xlu0 %2112
    %2114 = vrot.lane.b32.xlu0 %v2101, 96
    %v2115 = vpop.permute.xlu0 %2114
    %v2116 = vsel %vm291, %v2086, 0
    %v2118 = vsel %vm291, %v2091, 0
    %v2120 = vsel %vm291, %v2096, 0
    %v2122 = vsel %vm291, %v2101, 0
    %v2124 = vsel %vm291, %v2109, 0
    %v2126 = vsel %vm291, %v2111, 0
    %v2128 = vsel %vm291, %v2113, 0
    %v2130 = vsel %vm291, %v2115, 0
    %2132 = vmatprep.subr.mxu0 0.0
    %2133 = vmatpush1.xpose.msra.mxu0 %v2124
    %2134 = vmatprep.subr.mxu0 0.0
    %2135 = vmatpush1.xpose.msra.mxu0 %v2126
    %2136 = vmatprep.subr.mxu0 0.0
    %2137 = vmatpush1.xpose.msra.mxu0 %v2128
    %2138 = vmatprep.subr.mxu0 0.0
    %2139 = vmatpush1.xpose.msra.mxu0 %v2130
    %2140 = vmatprep.subr.mxu0 0.0
    %2141 = vmatpush1.xpose.msra.mxu0 0.0
    %2142 = vmatprep.subr.mxu0 0.0
    %2143 = vmatpush1.xpose.msra.mxu0 0.0
    %2144 = vmatprep.subr.mxu0 0.0
    %2145 = vmatpush1.xpose.msra.mxu0 0.0
    %2146 = vmatprep.subr.mxu0 0.0
    %2147 = vmatpush1.xpose.msra.mxu0 0.0
    %2148 = vmatprep.subr.mxu0 0.0
    %2149 = vmatpush1.xpose.msra.mxu0 0.0
    %2150 = vmatprep.subr.mxu0 0.0
    %2151 = vmatpush1.xpose.msra.mxu0 0.0
    %2152 = vmatprep.subr.mxu0 0.0
    %2153 = vmatpush1.xpose.msra.mxu0 0.0
    %2154 = vmatprep.subr.mxu0 0.0
    %2155 = vmatpush1.xpose.msra.mxu0 0.0
    %2156 = vmatprep.subr.mxu0 0.0
    %2157 = vmatpush1.xpose.msra.mxu0 0.0
    %2158 = vmatprep.subr.mxu0 0.0
    %2159 = vmatpush1.xpose.msra.mxu0 0.0
    %2160 = vmatprep.subr.mxu0 0.0
    %2161 = vmatpush1.xpose.msra.mxu0 0.0
    %2162 = vmatprep.subr.mxu0 0.0
    %2163 = vmatpush1.xpose.msra.mxu0 0.0
    %2164 = vmatprep.subr.mxu0 0.0
    %2165 = vmatpush1.xpose.msra.mxu0 0.0
    %2166 = vmatprep.subr.mxu0 0.0
    %2167 = vmatpush1.xpose.msra.mxu0 0.0
    %2168 = vmatprep.subr.mxu0 0.0
    %2169 = vmatpush1.xpose.msra.mxu0 0.0
    %2170 = vmatprep.subr.mxu0 0.0
    %2171 = vmatpush1.xpose.msra.mxu0 0.0
    %2172 = vmatprep.subr.mxu0 0.0
    %2173 = vmatpush1.xpose.msra.mxu0 0.0
    %2174 = vmatprep.subr.mxu0 0.0
    %2175 = vmatpush1.xpose.msra.mxu0 0.0
    %2176 = vmatprep.subr.mxu0 0.0
    %2177 = vmatpush1.xpose.msra.mxu0 0.0
    %2178 = vmatprep.subr.mxu0 0.0
    %2179 = vmatpush1.xpose.msra.mxu0 0.0
    %2180 = vmatprep.subr.mxu0 0.0
    %2181 = vmatpush1.xpose.msra.mxu0 0.0
    %2182 = vmatprep.subr.mxu0 0.0
    %2183 = vmatpush1.xpose.msra.mxu0 0.0
    %2184 = vmatprep.subr.mxu0 0.0
    %2185 = vmatpush1.xpose.msra.mxu0 0.0
    %2186 = vmatprep.subr.mxu0 0.0
    %2187 = vmatpush1.xpose.msra.mxu0 0.0
    %2188 = vmatprep.subr.mxu0 0.0
    %2189 = vmatpush1.xpose.msra.mxu0 0.0
    %2190 = vmatprep.subr.mxu0 0.0
    %2191 = vmatpush1.xpose.msra.mxu0 0.0
    %2192 = vmatprep.subr.mxu0 0.0
    %2193 = vmatpush1.xpose.msra.mxu0 0.0
    %2194 = vmatprep.subr.mxu0 0.0
    %2195 = vmatpush1.xpose.msra.mxu0 0.0
    %2196 = vmatprep.mubr.f32.mxu0 0.0
    %2197 = vmatmul.mubr.f32.gmra.mrb[0].mxu0 %v2116
    %v2198 = vpop.f32.mrb[0].mxu0
    %v2199 = vadd.f32 %v401, %v2198
    %v2200 = vpop.f32.mrb[0].mxu0
    %2201 = vmatprep.mubr.f32.mxu0 0.0
    %2202 = vmatmul.mubr.f32.gmra.mrb[0].mxu0 %v2118
    %v2203 = vpop.f32.mrb[0].mxu0
    %v2204 = vadd.f32 %v402, %v2203
    %v2205 = vpop.f32.mrb[0].mxu0
    %2206 = vmatprep.mubr.f32.mxu0 0.0
    %2207 = vmatmul.mubr.f32.gmra.mrb[0].mxu0 %v2120
    %v2208 = vpop.f32.mrb[0].mxu0
    %v2209 = vadd.f32 %v403, %v2208
    %v2210 = vpop.f32.mrb[0].mxu0
    %2211 = vmatprep.mubr.f32.mxu0 0.0
    %2212 = vmatmul.mubr.f32.gmra.mrb[0].mxu0 %v2122
    %v2213 = vpop.f32.mrb[0].mxu0
    %v2214 = vadd.f32 %v404, %v2213
    %v2215 = vpop.f32.mrb[0].mxu0
    %2216 = vdwg.mxu0
    %v2217 = vsel %vm570, %v2199, -inf
    %2218 = vmax.xlane.f32.xlu0 %v2217
    %v2219 = vpop.xlane.xlu0 %2218
    %v2220 = vsel %vm570, %v2204, -inf
    %2221 = vmax.xlane.f32.xlu0 %v2220
    %v2222 = vpop.xlane.xlu0 %2221
    %v2223 = vsel %vm570, %v2209, -inf
    %2224 = vmax.xlane.f32.xlu0 %v2223
    %v2225 = vpop.xlane.xlu0 %2224
    %v2226 = vsel %vm570, %v2214, -inf
    %2227 = vmax.xlane.f32.xlu0 %v2226
    %v2228 = vpop.xlane.xlu0 %2227
    %v2229 = vsub.f32 %v2199, %v2219
    %v2230 = vsub.f32 %v2204, %v2222
    %v2231 = vsub.f32 %v2209, %v2225
    %v2232 = vsub.f32 %v2214, %v2228
    %v2233 = vmul.f32 %v2229, 1.442695
    %v2234 = vpow.pop %v2233
    %v2235 = vmul.f32 %v2230, 1.442695
    %v2236 = vpow.pop %v2235
    %v2237 = vmul.f32 %v2231, 1.442695
    %v2238 = vpow.pop %v2237
    %v2239 = vmul.f32 %v2232, 1.442695
    %v2240 = vpow.pop %v2239
    %v2241 = vsel %vm570, %v2234, 0.0
    %2242 = vadd.xlane.f32.xlu0 %v2241
    %v2243 = vpop.xlane.xlu0 %2242
    %v2244 = vsel %vm570, %v2236, 0.0
    %2245 = vadd.xlane.f32.xlu0 %v2244
    %v2246 = vpop.xlane.xlu0 %2245
    %v2247 = vsel %vm570, %v2238, 0.0
    %2248 = vadd.xlane.f32.xlu0 %v2247
    %v2249 = vpop.xlane.xlu0 %2248
    %v2250 = vsel %vm570, %v2240, 0.0
    %2251 = vadd.xlane.f32.xlu0 %v2250
    %v2252 = vpop.xlane.xlu0 %2251
    %v2253 = vrcp.pop %v2243
    %v2254 = vrcp.pop %v2246
    %v2255 = vrcp.pop %v2249
    %v2256 = vrcp.pop %v2252
    %v2257 = vmul.f32 %v2234, %v2253
    %v2258 = vmul.f32 %v2236, %v2254
    %v2259 = vmul.f32 %v2238, %v2255
    %v2260 = vmul.f32 %v2240, %v2256
    %2261 = vrot.lane.b32.xlu0 %v2086, 64
    %v2262 = vpop.permute.xlu0 %2261
    %2263 = vrot.lane.b32.xlu0 %v2091, 64
    %v2264 = vpop.permute.xlu0 %2263
    %2265 = vrot.lane.b32.xlu0 %v2096, 64
    %v2266 = vpop.permute.xlu0 %2265
    %2267 = vrot.lane.b32.xlu0 %v2101, 64
    %v2268 = vpop.permute.xlu0 %2267
    %v2274 = vsel %vm570, %v2257, 0
    %v2277 = vsel %vm570, %v2258, 0
    %v2280 = vsel %vm570, %v2259, 0
    %v2283 = vsel %vm570, %v2260, 0
    %2285 = vmatprep.subr.mxu0 0.0
    %2286 = vmatpush1.msra.mxu0 %v2262
    %2287 = vmatprep.subr.mxu0 0.0
    %2288 = vmatpush1.msra.mxu0 %v2264
    %2289 = vmatprep.subr.mxu0 0.0
    %2290 = vmatpush1.msra.mxu0 %v2266
    %2291 = vmatprep.subr.mxu0 0.0
    %2292 = vmatpush1.msra.mxu0 %v2268
    %2293 = vmatprep.subr.mxu0 0.0
    %2294 = vmatpush1.msra.mxu0 0.0
    %2295 = vmatprep.subr.mxu0 0.0
    %2296 = vmatpush1.msra.mxu0 0.0
    %2297 = vmatprep.subr.mxu0 0.0
    %2298 = vmatpush1.msra.mxu0 0.0
    %2299 = vmatprep.subr.mxu0 0.0
    %2300 = vmatpush1.msra.mxu0 0.0
    %2301 = vmatprep.subr.mxu0 0.0
    %2302 = vmatpush1.msra.mxu0 0.0
    %2303 = vmatprep.subr.mxu0 0.0
    %2304 = vmatpush1.msra.mxu0 0.0
    %2305 = vmatprep.subr.mxu0 0.0
    %2306 = vmatpush1.msra.mxu0 0.0
    %2307 = vmatprep.subr.mxu0 0.0
    %2308 = vmatpush1.msra.mxu0 0.0
    %2309 = vmatprep.subr.mxu0 0.0
    %2310 = vmatpush1.msra.mxu0 0.0
    %2311 = vmatprep.subr.mxu0 0.0
    %2312 = vmatpush1.msra.mxu0 0.0
    %2313 = vmatprep.subr.mxu0 0.0
    %2314 = vmatpush1.msra.mxu0 0.0
    %2315 = vmatprep.subr.mxu0 0.0
    %2316 = vmatpush1.msra.mxu0 0.0
    %2317 = vmatprep.subr.mxu0 0.0
    %2318 = vmatpush1.msra.mxu0 0.0
    %2319 = vmatprep.subr.mxu0 0.0
    %2320 = vmatpush1.msra.mxu0 0.0
    %2321 = vmatprep.subr.mxu0 0.0
    %2322 = vmatpush1.msra.mxu0 0.0
    %2323 = vmatprep.subr.mxu0 0.0
    %2324 = vmatpush1.msra.mxu0 0.0
    %2325 = vmatprep.subr.mxu0 0.0
    %2326 = vmatpush1.msra.mxu0 0.0
    %2327 = vmatprep.subr.mxu0 0.0
    %2328 = vmatpush1.msra.mxu0 0.0
    %2329 = vmatprep.subr.mxu0 0.0
    %2330 = vmatpush1.msra.mxu0 0.0
    %2331 = vmatprep.subr.mxu0 0.0
    %2332 = vmatpush1.msra.mxu0 0.0
    %2333 = vmatprep.subr.mxu0 0.0
    %2334 = vmatpush1.msra.mxu0 0.0
    %2335 = vmatprep.subr.mxu0 0.0
    %2336 = vmatpush1.msra.mxu0 0.0
    %2337 = vmatprep.subr.mxu0 0.0
    %2338 = vmatpush1.msra.mxu0 0.0
    %2339 = vmatprep.subr.mxu0 0.0
    %2340 = vmatpush1.msra.mxu0 0.0
    %2341 = vmatprep.subr.mxu0 0.0
    %2342 = vmatpush1.msra.mxu0 0.0
    %2343 = vmatprep.subr.mxu0 0.0
    %2344 = vmatpush1.msra.mxu0 0.0
    %2345 = vmatprep.subr.mxu0 0.0
    %2346 = vmatpush1.msra.mxu0 0.0
    %2347 = vmatprep.subr.mxu0 0.0
    %2348 = vmatpush1.msra.mxu0 0.0
    %2349 = vmatprep.mubr.f32.mxu0 0.0
    %2350 = vmatmul.mubr.f32.gmra.mrb[0].mxu0 %v2274
    %v2351 = vpop.f32.mrb[0].mxu0
    %v2352 = vadd.f32 0.0, %v2351
    %v2353 = vpop.f32.mrb[0].mxu0
    %2354 = vmatprep.mubr.f32.mxu0 0.0
    %2355 = vmatmul.mubr.f32.gmra.mrb[0].mxu0 %v2277
    %v2356 = vpop.f32.mrb[0].mxu0
    %v2357 = vadd.f32 0.0, %v2356
    %v2358 = vpop.f32.mrb[0].mxu0
    %2359 = vmatprep.mubr.f32.mxu0 0.0
    %2360 = vmatmul.mubr.f32.gmra.mrb[0].mxu0 %v2280
    %v2361 = vpop.f32.mrb[0].mxu0
    %v2362 = vadd.f32 0.0, %v2361
    %v2363 = vpop.f32.mrb[0].mxu0
    %2364 = vmatprep.mubr.f32.mxu0 0.0
    %2365 = vmatmul.mubr.f32.gmra.mrb[0].mxu0 %v2283
    %v2366 = vpop.f32.mrb[0].mxu0
    %v2367 = vadd.f32 0.0, %v2366
    %v2368 = vpop.f32.mrb[0].mxu0
    %2369 = vdwg.mxu0
    %2370 = vrot.lane.b32.xlu0 %v2086, 112
    %v2371 = vpop.permute.xlu0 %2370
    %2372 = vrot.lane.b32.xlu0 %v2091, 112
    %v2373 = vpop.permute.xlu0 %2372
    %2374 = vrot.lane.b32.xlu0 %v2096, 112
    %v2375 = vpop.permute.xlu0 %2374
    %2376 = vrot.lane.b32.xlu0 %v2101, 112
    %v2377 = vpop.permute.xlu0 %2376
    %2378 = vrot.lane.b32.xlu0 %v2086, 80
    %v2379 = vpop.permute.xlu0 %2378
    %2380 = vrot.lane.b32.xlu0 %v2091, 80
    %v2381 = vpop.permute.xlu0 %2380
    %2382 = vrot.lane.b32.xlu0 %v2096, 80
    %v2383 = vpop.permute.xlu0 %2382
    %2384 = vrot.lane.b32.xlu0 %v2101, 80
    %v2385 = vpop.permute.xlu0 %2384
    %v2386 = vsel %vm291, %v2371, 0
    %v2388 = vsel %vm291, %v2373, 0
    %v2390 = vsel %vm291, %v2375, 0
    %v2392 = vsel %vm291, %v2377, 0
    %v2394 = vsel %vm291, %v2379, 0
    %v2396 = vsel %vm291, %v2381, 0
    %v2398 = vsel %vm291, %v2383, 0
    %v2400 = vsel %vm291, %v2385, 0
    %2402 = vmatprep.subr.mxu0 0.0
    %2403 = vmatpush1.xpose.msra.mxu0 %v2394
    %2404 = vmatprep.subr.mxu0 0.0
    %2405 = vmatpush1.xpose.msra.mxu0 %v2396
    %2406 = vmatprep.subr.mxu0 0.0
    %2407 = vmatpush1.xpose.msra.mxu0 %v2398
    %2408 = vmatprep.subr.mxu0 0.0
    %2409 = vmatpush1.xpose.msra.mxu0 %v2400
    %2410 = vmatprep.subr.mxu0 0.0
    %2411 = vmatpush1.xpose.msra.mxu0 0.0
    %2412 = vmatprep.subr.mxu0 0.0
    %2413 = vmatpush1.xpose.msra.mxu0 0.0
    %2414 = vmatprep.subr.mxu0 0.0
    %2415 = vmatpush1.xpose.msra.mxu0 0.0
    %2416 = vmatprep.subr.mxu0 0.0
    %2417 = vmatpush1.xpose.msra.mxu0 0.0
    %2418 = vmatprep.subr.mxu0 0.0
    %2419 = vmatpush1.xpose.msra.mxu0 0.0
    %2420 = vmatprep.subr.mxu0 0.0
    %2421 = vmatpush1.xpose.msra.mxu0 0.0
    %2422 = vmatprep.subr.mxu0 0.0
    %2423 = vmatpush1.xpose.msra.mxu0 0.0
    %2424 = vmatprep.subr.mxu0 0.0
    %2425 = vmatpush1.xpose.msra.mxu0 0.0
    %2426 = vmatprep.subr.mxu0 0.0
    %2427 = vmatpush1.xpose.msra.mxu0 0.0
    %2428 = vmatprep.subr.mxu0 0.0
    %2429 = vmatpush1.xpose.msra.mxu0 0.0
    %2430 = vmatprep.subr.mxu0 0.0
    %2431 = vmatpush1.xpose.msra.mxu0 0.0
    %2432 = vmatprep.subr.mxu0 0.0
    %2433 = vmatpush1.xpose.msra.mxu0 0.0
    %2434 = vmatprep.subr.mxu0 0.0
    %2435 = vmatpush1.xpose.msra.mxu0 0.0
    %2436 = vmatprep.subr.mxu0 0.0
    %2437 = vmatpush1.xpose.msra.mxu0 0.0
    %2438 = vmatprep.subr.mxu0 0.0
    %2439 = vmatpush1.xpose.msra.mxu0 0.0
    %2440 = vmatprep.subr.mxu0 0.0
    %2441 = vmatpush1.xpose.msra.mxu0 0.0
    %2442 = vmatprep.subr.mxu0 0.0
    %2443 = vmatpush1.xpose.msra.mxu0 0.0
    %2444 = vmatprep.subr.mxu0 0.0
    %2445 = vmatpush1.xpose.msra.mxu0 0.0
    %2446 = vmatprep.subr.mxu0 0.0
    %2447 = vmatpush1.xpose.msra.mxu0 0.0
    %2448 = vmatprep.subr.mxu0 0.0
    %2449 = vmatpush1.xpose.msra.mxu0 0.0
    %2450 = vmatprep.subr.mxu0 0.0
    %2451 = vmatpush1.xpose.msra.mxu0 0.0
    %2452 = vmatprep.subr.mxu0 0.0
    %2453 = vmatpush1.xpose.msra.mxu0 0.0
    %2454 = vmatprep.subr.mxu0 0.0
    %2455 = vmatpush1.xpose.msra.mxu0 0.0
    %2456 = vmatprep.subr.mxu0 0.0
    %2457 = vmatpush1.xpose.msra.mxu0 0.0
    %2458 = vmatprep.subr.mxu0 0.0
    %2459 = vmatpush1.xpose.msra.mxu0 0.0
    %2460 = vmatprep.subr.mxu0 0.0
    %2461 = vmatpush1.xpose.msra.mxu0 0.0
    %2462 = vmatprep.subr.mxu0 0.0
    %2463 = vmatpush1.xpose.msra.mxu0 0.0
    %2464 = vmatprep.subr.mxu0 0.0
    %2465 = vmatpush1.xpose.msra.mxu0 0.0
    %2466 = vmatprep.mubr.f32.mxu0 0.0
    %2467 = vmatmul.mubr.f32.gmra.mrb[0].mxu0 %v2386
    %v2468 = vpop.f32.mrb[0].mxu0
    %v2469 = vadd.f32 %v401, %v2468
    %v2470 = vpop.f32.mrb[0].mxu0
    %2471 = vmatprep.mubr.f32.mxu0 0.0
    %2472 = vmatmul.mubr.f32.gmra.mrb[0].mxu0 %v2388
    %v2473 = vpop.f32.mrb[0].mxu0
    %v2474 = vadd.f32 %v402, %v2473
    %v2475 = vpop.f32.mrb[0].mxu0
    %2476 = vmatprep.mubr.f32.mxu0 0.0
    %2477 = vmatmul.mubr.f32.gmra.mrb[0].mxu0 %v2390
    %v2478 = vpop.f32.mrb[0].mxu0
    %v2479 = vadd.f32 %v403, %v2478
    %v2480 = vpop.f32.mrb[0].mxu0
    %2481 = vmatprep.mubr.f32.mxu0 0.0
    %2482 = vmatmul.mubr.f32.gmra.mrb[0].mxu0 %v2392
    %v2483 = vpop.f32.mrb[0].mxu0
    %v2484 = vadd.f32 %v404, %v2483
    %v2485 = vpop.f32.mrb[0].mxu0
    %2486 = vdwg.mxu0
    %v2487 = vsel %vm570, %v2469, -inf
    %2488 = vmax.xlane.f32.xlu0 %v2487
    %v2489 = vpop.xlane.xlu0 %2488
    %v2490 = vsel %vm570, %v2474, -inf
    %2491 = vmax.xlane.f32.xlu0 %v2490
    %v2492 = vpop.xlane.xlu0 %2491
    %v2493 = vsel %vm570, %v2479, -inf
    %2494 = vmax.xlane.f32.xlu0 %v2493
    %v2495 = vpop.xlane.xlu0 %2494
    %v2496 = vsel %vm570, %v2484, -inf
    %2497 = vmax.xlane.f32.xlu0 %v2496
    %v2498 = vpop.xlane.xlu0 %2497
    %v2499 = vsub.f32 %v2469, %v2489
    %v2500 = vsub.f32 %v2474, %v2492
    %v2501 = vsub.f32 %v2479, %v2495
    %v2502 = vsub.f32 %v2484, %v2498
    %v2503 = vmul.f32 %v2499, 1.442695
    %v2504 = vpow.pop %v2503
    %v2505 = vmul.f32 %v2500, 1.442695
    %v2506 = vpow.pop %v2505
    %v2507 = vmul.f32 %v2501, 1.442695
    %v2508 = vpow.pop %v2507
    %v2509 = vmul.f32 %v2502, 1.442695
    %v2510 = vpow.pop %v2509
    %v2511 = vsel %vm570, %v2504, 0.0
    %2512 = vadd.xlane.f32.xlu0 %v2511
    %v2513 = vpop.xlane.xlu0 %2512
    %v2514 = vsel %vm570, %v2506, 0.0
    %2515 = vadd.xlane.f32.xlu0 %v2514
    %v2516 = vpop.xlane.xlu0 %2515
    %v2517 = vsel %vm570, %v2508, 0.0
    %2518 = vadd.xlane.f32.xlu0 %v2517
    %v2519 = vpop.xlane.xlu0 %2518
    %v2520 = vsel %vm570, %v2510, 0.0
    %2521 = vadd.xlane.f32.xlu0 %v2520
    %v2522 = vpop.xlane.xlu0 %2521
    %v2523 = vrcp.pop %v2513
    %v2524 = vrcp.pop %v2516
    %v2525 = vrcp.pop %v2519
    %v2526 = vrcp.pop %v2522
    %v2527 = vmul.f32 %v2504, %v2523
    %v2528 = vmul.f32 %v2506, %v2524
    %v2529 = vmul.f32 %v2508, %v2525
    %v2530 = vmul.f32 %v2510, %v2526
    %2531 = vrot.lane.b32.xlu0 %v2086, 48
    %v2532 = vpop.permute.xlu0 %2531
    %2533 = vrot.lane.b32.xlu0 %v2091, 48
    %v2534 = vpop.permute.xlu0 %2533
    %2535 = vrot.lane.b32.xlu0 %v2096, 48
    %v2536 = vpop.permute.xlu0 %2535
    %2537 = vrot.lane.b32.xlu0 %v2101, 48
    %v2538 = vpop.permute.xlu0 %2537
    %v2544 = vsel %vm570, %v2527, 0
    %v2547 = vsel %vm570, %v2528, 0
    %v2550 = vsel %vm570, %v2529, 0
    %v2553 = vsel %vm570, %v2530, 0
    %2555 = vmatprep.subr.mxu0 0.0
    %2556 = vmatpush1.msra.mxu0 %v2532
    %2557 = vmatprep.subr.mxu0 0.0
    %2558 = vmatpush1.msra.mxu0 %v2534
    %2559 = vmatprep.subr.mxu0 0.0
    %2560 = vmatpush1.msra.mxu0 %v2536
    %2561 = vmatprep.subr.mxu0 0.0
    %2562 = vmatpush1.msra.mxu0 %v2538
    %2563 = vmatprep.subr.mxu0 0.0
    %2564 = vmatpush1.msra.mxu0 0.0
    %2565 = vmatprep.subr.mxu0 0.0
    %2566 = vmatpush1.msra.mxu0 0.0
    %2567 = vmatprep.subr.mxu0 0.0
    %2568 = vmatpush1.msra.mxu0 0.0
    %2569 = vmatprep.subr.mxu0 0.0
    %2570 = vmatpush1.msra.mxu0 0.0
    %2571 = vmatprep.subr.mxu0 0.0
    %2572 = vmatpush1.msra.mxu0 0.0
    %2573 = vmatprep.subr.mxu0 0.0
    %2574 = vmatpush1.msra.mxu0 0.0
    %2575 = vmatprep.subr.mxu0 0.0
    %2576 = vmatpush1.msra.mxu0 0.0
    %2577 = vmatprep.subr.mxu0 0.0
    %2578 = vmatpush1.msra.mxu0 0.0
    %2579 = vmatprep.subr.mxu0 0.0
    %2580 = vmatpush1.msra.mxu0 0.0
    %2581 = vmatprep.subr.mxu0 0.0
    %2582 = vmatpush1.msra.mxu0 0.0
    %2583 = vmatprep.subr.mxu0 0.0
    %2584 = vmatpush1.msra.mxu0 0.0
    %2585 = vmatprep.subr.mxu0 0.0
    %2586 = vmatpush1.msra.mxu0 0.0
    %2587 = vmatprep.subr.mxu0 0.0
    %2588 = vmatpush1.msra.mxu0 0.0
    %2589 = vmatprep.subr.mxu0 0.0
    %2590 = vmatpush1.msra.mxu0 0.0
    %2591 = vmatprep.subr.mxu0 0.0
    %2592 = vmatpush1.msra.mxu0 0.0
    %2593 = vmatprep.subr.mxu0 0.0
    %2594 = vmatpush1.msra.mxu0 0.0
    %2595 = vmatprep.subr.mxu0 0.0
    %2596 = vmatpush1.msra.mxu0 0.0
    %2597 = vmatprep.subr.mxu0 0.0
    %2598 = vmatpush1.msra.mxu0 0.0
    %2599 = vmatprep.subr.mxu0 0.0
    %2600 = vmatpush1.msra.mxu0 0.0
    %2601 = vmatprep.subr.mxu0 0.0
    %2602 = vmatpush1.msra.mxu0 0.0
    %2603 = vmatprep.subr.mxu0 0.0
    %2604 = vmatpush1.msra.mxu0 0.0
    %2605 = vmatprep.subr.mxu0 0.0
    %2606 = vmatpush1.msra.mxu0 0.0
    %2607 = vmatprep.subr.mxu0 0.0
    %2608 = vmatpush1.msra.mxu0 0.0
    %2609 = vmatprep.subr.mxu0 0.0
    %2610 = vmatpush1.msra.mxu0 0.0
    %2611 = vmatprep.subr.mxu0 0.0
    %2612 = vmatpush1.msra.mxu0 0.0
    %2613 = vmatprep.subr.mxu0 0.0
    %2614 = vmatpush1.msra.mxu0 0.0
    %2615 = vmatprep.subr.mxu0 0.0
    %2616 = vmatpush1.msra.mxu0 0.0
    %2617 = vmatprep.subr.mxu0 0.0
    %2618 = vmatpush1.msra.mxu0 0.0
    %2619 = vmatprep.mubr.f32.mxu0 0.0
    %2620 = vmatmul.mubr.f32.gmra.mrb[0].mxu0 %v2544
    %v2621 = vpop.f32.mrb[0].mxu0
    %v2622 = vadd.f32 0.0, %v2621
    %v2623 = vpop.f32.mrb[0].mxu0
    %2624 = vmatprep.mubr.f32.mxu0 0.0
    %2625 = vmatmul.mubr.f32.gmra.mrb[0].mxu0 %v2547
    %v2626 = vpop.f32.mrb[0].mxu0
    %v2627 = vadd.f32 0.0, %v2626
    %v2628 = vpop.f32.mrb[0].mxu0
    %2629 = vmatprep.mubr.f32.mxu0 0.0
    %2630 = vmatmul.mubr.f32.gmra.mrb[0].mxu0 %v2550
    %v2631 = vpop.f32.mrb[0].mxu0
    %v2632 = vadd.f32 0.0, %v2631
    %v2633 = vpop.f32.mrb[0].mxu0
    %2634 = vmatprep.mubr.f32.mxu0 0.0
    %2635 = vmatmul.mubr.f32.gmra.mrb[0].mxu0 %v2553
    %v2636 = vpop.f32.mrb[0].mxu0
    %v2637 = vadd.f32 0.0, %v2636
    %v2638 = vpop.f32.mrb[0].mxu0
    %2639 = vdwg.mxu0
    %2644 = vrot.lane.b32.xlu0 %v2622, 16
    %v2645 = vpop.permute.xlu0 %2644
    %2646 = vrot.lane.b32.xlu0 %v2627, 16
    %v2647 = vpop.permute.xlu0 %2646
    %2648 = vrot.lane.b32.xlu0 %v2632, 16
    %v2649 = vpop.permute.xlu0 %2648
    %2650 = vrot.lane.b32.xlu0 %v2637, 16
    %v2651 = vpop.permute.xlu0 %2650
    %v2656 = vsel %vm291, %v2352, %v2645
    %v2657 = vsel %vm291, %v2357, %v2647
    %v2658 = vsel %vm291, %v2362, %v2649
    %v2659 = vsel %vm291, %v2367, %v2651
    %v2660 = vld [vmem:[%s19] sm:$0xff]
    %v2661 = vld [vmem:[%s19 + $0x8] sm:$0xff]
    %v2662 = vld [vmem:[%s19 + $0x10] sm:$0xff]
    %v2663 = vld [vmem:[%s19 + $0x18] sm:$0xff]
    %v2664 = vld [vmem:[#allocation2] sm:$0x1]
    %v2666 = vlaneseq
    %v2667 = vshrl.u32 %v2666, 7
    %v2668 = vsub.s32 0, %v2667
    %v2669 = vrot.slane %v2664, %v2668
    %v2672 = vsel %vm570, %v2656, 0
    %v2675 = vsel %vm570, %v2657, 0
    %v2678 = vsel %vm570, %v2658, 0
    %v2681 = vsel %vm570, %v2659, 0
    %2683 = vmatprep.subr.mxu0 0.0
    %2684 = vmatpush1.msra.mxu0 %v2660
    %2685 = vmatprep.subr.mxu0 0.0
    %2686 = vmatpush1.msra.mxu0 %v2661
    %2687 = vmatprep.subr.mxu0 0.0
    %2688 = vmatpush1.msra.mxu0 %v2662
    %2689 = vmatprep.subr.mxu0 0.0
    %2690 = vmatpush1.msra.mxu0 %v2663
    %2691 = vmatprep.subr.mxu0 0.0
    %2692 = vmatpush1.msra.mxu0 0.0
    %2693 = vmatprep.subr.mxu0 0.0
    %2694 = vmatpush1.msra.mxu0 0.0
    %2695 = vmatprep.subr.mxu0 0.0
    %2696 = vmatpush1.msra.mxu0 0.0
    %2697 = vmatprep.subr.mxu0 0.0
    %2698 = vmatpush1.msra.mxu0 0.0
    %2699 = vmatprep.subr.mxu0 0.0
    %2700 = vmatpush1.msra.mxu0 0.0
    %2701 = vmatprep.subr.mxu0 0.0
    %2702 = vmatpush1.msra.mxu0 0.0
    %2703 = vmatprep.subr.mxu0 0.0
    %2704 = vmatpush1.msra.mxu0 0.0
    %2705 = vmatprep.subr.mxu0 0.0
    %2706 = vmatpush1.msra.mxu0 0.0
    %2707 = vmatprep.subr.mxu0 0.0
    %2708 = vmatpush1.msra.mxu0 0.0
    %2709 = vmatprep.subr.mxu0 0.0
    %2710 = vmatpush1.msra.mxu0 0.0
    %2711 = vmatprep.subr.mxu0 0.0
    %2712 = vmatpush1.msra.mxu0 0.0
    %2713 = vmatprep.subr.mxu0 0.0
    %2714 = vmatpush1.msra.mxu0 0.0
    %2715 = vmatprep.subr.mxu0 0.0
    %2716 = vmatpush1.msra.mxu0 0.0
    %2717 = vmatprep.subr.mxu0 0.0
    %2718 = vmatpush1.msra.mxu0 0.0
    %2719 = vmatprep.subr.mxu0 0.0
    %2720 = vmatpush1.msra.mxu0 0.0
    %2721 = vmatprep.subr.mxu0 0.0
    %2722 = vmatpush1.msra.mxu0 0.0
    %2723 = vmatprep.subr.mxu0 0.0
    %2724 = vmatpush1.msra.mxu0 0.0
    %2725 = vmatprep.subr.mxu0 0.0
    %2726 = vmatpush1.msra.mxu0 0.0
    %2727 = vmatprep.subr.mxu0 0.0
    %2728 = vmatpush1.msra.mxu0 0.0
    %2729 = vmatprep.subr.mxu0 0.0
    %2730 = vmatpush1.msra.mxu0 0.0
    %2731 = vmatprep.subr.mxu0 0.0
    %2732 = vmatpush1.msra.mxu0 0.0
    %2733 = vmatprep.subr.mxu0 0.0
    %2734 = vmatpush1.msra.mxu0 0.0
    %2735 = vmatprep.subr.mxu0 0.0
    %2736 = vmatpush1.msra.mxu0 0.0
    %2737 = vmatprep.subr.mxu0 0.0
    %2738 = vmatpush1.msra.mxu0 0.0
    %2739 = vmatprep.subr.mxu0 0.0
    %2740 = vmatpush1.msra.mxu0 0.0
    %2741 = vmatprep.subr.mxu0 0.0
    %2742 = vmatpush1.msra.mxu0 0.0
    %2743 = vmatprep.subr.mxu0 0.0
    %2744 = vmatpush1.msra.mxu0 0.0
    %2745 = vmatprep.subr.mxu0 0.0
    %2746 = vmatpush1.msra.mxu0 0.0
    %2747 = vmatprep.mubr.f32.mxu0 0.0
    %2748 = vmatmul.mubr.f32.gmra.mrb[0].mxu0 %v2672
    %v2749 = vpop.f32.mrb[0].mxu0
    %v2750 = vadd.f32 %v2669, %v2749
    %v2751 = vpop.f32.mrb[0].mxu0
    %2752 = vmatprep.mubr.f32.mxu0 0.0
    %2753 = vmatmul.mubr.f32.gmra.mrb[0].mxu0 %v2675
    %v2754 = vpop.f32.mrb[0].mxu0
    %v2755 = vadd.f32 %v2669, %v2754
    %v2756 = vpop.f32.mrb[0].mxu0
    %2757 = vmatprep.mubr.f32.mxu0 0.0
    %2758 = vmatmul.mubr.f32.gmra.mrb[0].mxu0 %v2678
    %v2759 = vpop.f32.mrb[0].mxu0
    %v2760 = vadd.f32 %v2669, %v2759
    %v2761 = vpop.f32.mrb[0].mxu0
    %2762 = vmatprep.mubr.f32.mxu0 0.0
    %2763 = vmatmul.mubr.f32.gmra.mrb[0].mxu0 %v2681
    %v2764 = vpop.f32.mrb[0].mxu0
    %v2765 = vadd.f32 %v2669, %v2764
    %v2766 = vpop.f32.mrb[0].mxu0
    %2767 = vdwg.mxu0
    %v2768 = vadd.f32 %v2750, %v1903
    %v2769 = vadd.f32 %v2755, %v1904
    %v2770 = vadd.f32 %v2760, %v1905
    %v2771 = vadd.f32 %v2765, %v1906
    %v2772 = vld [vmem:[%s13] sm:$0x1]
    %v2773 = vld [vmem:[#allocation9] sm:$0x1]
    %v2774 = vsel %vm570, %v2768, 0.0
    %2775 = vadd.xlane.f32.xlu0 %v2774
    %v2776 = vpop.xlane.xlu0 %2775
    %v2777 = vsel %vm570, %v2769, 0.0
    %2778 = vadd.xlane.f32.xlu0 %v2777
    %v2779 = vpop.xlane.xlu0 %2778
    %v2780 = vsel %vm570, %v2770, 0.0
    %2781 = vadd.xlane.f32.xlu0 %v2780
    %v2782 = vpop.xlane.xlu0 %2781
    %v2783 = vsel %vm570, %v2771, 0.0
    %2784 = vadd.xlane.f32.xlu0 %v2783
    %v2785 = vpop.xlane.xlu0 %2784
    %v2786 = vrcp.pop 32.0
    %v2787 = vmul.f32 %v2776, %v2786
    %v2788 = vmul.f32 %v2779, %v2786
    %v2789 = vmul.f32 %v2782, %v2786
    %v2790 = vmul.f32 %v2785, %v2786
    %v2791 = vsub.f32 %v2768, %v2787
    %v2792 = vsub.f32 %v2769, %v2788
    %v2793 = vsub.f32 %v2770, %v2789
    %v2794 = vsub.f32 %v2771, %v2790
    %v2795 = vmul.f32 %v2791, %v2791
    %v2796 = vmul.f32 %v2792, %v2792
    %v2797 = vmul.f32 %v2793, %v2793
    %v2798 = vmul.f32 %v2794, %v2794
    %v2799 = vsel %vm570, %v2795, 0.0
    %2800 = vadd.xlane.f32.xlu0 %v2799
    %v2801 = vpop.xlane.xlu0 %2800
    %v2802 = vsel %vm570, %v2796, 0.0
    %2803 = vadd.xlane.f32.xlu0 %v2802
    %v2804 = vpop.xlane.xlu0 %2803
    %v2805 = vsel %vm570, %v2797, 0.0
    %2806 = vadd.xlane.f32.xlu0 %v2805
    %v2807 = vpop.xlane.xlu0 %2806
    %v2808 = vsel %vm570, %v2798, 0.0
    %2809 = vadd.xlane.f32.xlu0 %v2808
    %v2810 = vpop.xlane.xlu0 %2809
    %v2811 = vmul.f32 %v2801, %v2786
    %v2812 = vmul.f32 %v2804, %v2786
    %v2813 = vmul.f32 %v2807, %v2786
    %v2814 = vmul.f32 %v2810, %v2786
    %v2815 = vadd.f32 %v2811, 1e-05
    %v2816 = vadd.f32 %v2812, 1e-05
    %v2817 = vadd.f32 %v2813, 1e-05
    %v2818 = vadd.f32 %v2814, 1e-05
    %v2819 = vrsqrt.pop %v2815
    %v2820 = vrsqrt.pop %v2816
    %v2821 = vrsqrt.pop %v2817
    %v2822 = vrsqrt.pop %v2818
    %v2823 = vmul.f32 %v2791, %v2819
    %v2824 = vmul.f32 %v2792, %v2820
    %v2825 = vmul.f32 %v2793, %v2821
    %v2826 = vmul.f32 %v2794, %v2822
    %v2828 = vlaneseq
    %v2829 = vshrl.u32 %v2828, 7
    %v2830 = vsub.s32 0, %v2829
    %v2831 = vrot.slane %v2772, %v2830
    %v2833 = vmul.f32 %v2823, %v2831
    %v2834 = vmul.f32 %v2824, %v2831
    %v2835 = vmul.f32 %v2825, %v2831
    %v2836 = vmul.f32 %v2826, %v2831
    %v2838 = vlaneseq
    %v2839 = vshrl.u32 %v2838, 7
    %v2840 = vsub.s32 0, %v2839
    %v2841 = vrot.slane %v2773, %v2840
    %v2843 = vadd.f32 %v2833, %v2841
    %v2844 = vadd.f32 %v2834, %v2841
    %v2845 = vadd.f32 %v2835, %v2841
    %v2846 = vadd.f32 %v2836, %v2841
    %v2847 = vld [vmem:[%s10] sm:$0xff]
    %v2848 = vld [vmem:[%s10 + $0x8] sm:$0xff]
    %v2849 = vld [vmem:[%s10 + $0x10] sm:$0xff]
    %v2850 = vld [vmem:[%s10 + $0x18] sm:$0xff]
    %v2851 = vld [vmem:[%s10 + $0x20] sm:$0xff]
    %v2852 = vld [vmem:[%s10 + $0x28] sm:$0xff]
    %v2853 = vld [vmem:[%s10 + $0x30] sm:$0xff]
    %v2854 = vld [vmem:[%s10 + $0x38] sm:$0xff]
    %v2855 = vld [vmem:[%s10 + $0x40] sm:$0xff]
    %v2856 = vld [vmem:[%s10 + $0x48] sm:$0xff]
    %v2857 = vld [vmem:[%s10 + $0x50] sm:$0xff]
    %v2858 = vld [vmem:[%s10 + $0x58] sm:$0xff]
    %v2859 = vld [vmem:[%s10 + $0x60] sm:$0xff]
    %v2860 = vld [vmem:[%s10 + $0x68] sm:$0xff]
    %v2861 = vld [vmem:[%s10 + $0x70] sm:$0xff]
    %v2862 = vld [vmem:[%s10 + $0x78] sm:$0xff]
    %v2863 = vld [vmem:[%s10 + $0x80] sm:$0xff]
    %v2864 = vld [vmem:[%s10 + $0x88] sm:$0xff]
    %v2865 = vld [vmem:[%s10 + $0x90] sm:$0xff]
    %v2866 = vld [vmem:[%s10 + $0x98] sm:$0xff]
    %v2867 = vld [vmem:[%s10 + $0xa0] sm:$0xff]
    %v2868 = vld [vmem:[%s10 + $0xa8] sm:$0xff]
    %v2869 = vld [vmem:[%s10 + $0xb0] sm:$0xff]
    %v2870 = vld [vmem:[%s10 + $0xb8] sm:$0xff]
    %v2871 = vld [vmem:[%s10 + $0xc0] sm:$0xff]
    %v2872 = vld [vmem:[%s10 + $0xc8] sm:$0xff]
    %v2873 = vld [vmem:[%s10 + $0xd0] sm:$0xff]
    %v2874 = vld [vmem:[%s10 + $0xd8] sm:$0xff]
    %v2875 = vld [vmem:[%s10 + $0xe0] sm:$0xff]
    %v2876 = vld [vmem:[%s10 + $0xe8] sm:$0xff]
    %v2877 = vld [vmem:[%s10 + $0xf0] sm:$0xff]
    %v2878 = vld [vmem:[%s10 + $0xf8] sm:$0xff]
    %v2879 = vld [vmem:[%s10 + $0x100] sm:$0xff]
    %v2880 = vld [vmem:[%s10 + $0x108] sm:$0xff]
    %v2881 = vld [vmem:[%s10 + $0x110] sm:$0xff]
    %v2882 = vld [vmem:[%s10 + $0x118] sm:$0xff]
    %v2883 = vld [vmem:[#allocation6] sm:$0x1]
    %v2884 = vrot.slane %v2843, 4
    %v2885 = vrot.slane %v2844, 4
    %v2886 = vrot.slane %v2845, 4
    %v2887 = vrot.slane %v2846, 4
    %vm2888 = vcmp.lt.s32.totalorder %v517, 4
    %v2889 = vsel %vm2888, %v2886, %v2887
    %v2890 = vsel %vm2888, %v2885, %v2886
    %v2891 = vsel %vm2888, %v2884, %v2885
    %v2892 = vsel %vm2888, %v2887, %v2884
    %vm2893 = vcmp.ge.f32.partialorder %v1668, 4.0
    %vm2894 = vcmp.ge.f32.partialorder %v1669, 4.0
    %vm2895 = vcmp.ge.f32.partialorder %v1670, 4.0
    %vm2896 = vcmp.ge.f32.partialorder %v1671, 4.0
    %v2897 = vsel %vm2893, 1, 0
    %v2898 = vsel %vm2894, 1, 0
    %v2899 = vsel %vm2895, 1, 0
    %v2900 = vsel %vm2896, 1, 0
    %2901 = vset.pattern.permute.xlu0 0
    %2902 = vperm.xlu0 %2901, %v2897
    %v2903 = vpop.permute.xlu0 %2902
    %2904 = vset.pattern.permute.xlu0 0
    %2905 = vperm.xlu0 %2904, %v2898
    %v2906 = vpop.permute.xlu0 %2905
    %2907 = vset.pattern.permute.xlu0 0
    %2908 = vperm.xlu0 %2907, %v2899
    %v2909 = vpop.permute.xlu0 %2908
    %2910 = vset.pattern.permute.xlu0 0
    %2911 = vperm.xlu0 %2910, %v2900
    %v2912 = vpop.permute.xlu0 %2911
    %vm2913 = vcmp.eq.s32.totalorder %v2903, 1
    %vm2914 = vcmp.eq.s32.totalorder %v2906, 1
    %vm2915 = vcmp.eq.s32.totalorder %v2909, 1
    %vm2916 = vcmp.eq.s32.totalorder %v2912, 1
    %v2917 = vsel %vm2913, %v2892, 0.0
    %v2918 = vsel %vm2914, %v2891, 0.0
    %v2919 = vsel %vm2915, %v2890, 0.0
    %v2920 = vsel %vm2916, %v2889, 0.0
    %v2921 = vrot.slane %v2843, 5
    %v2922 = vrot.slane %v2844, 5
    %v2923 = vrot.slane %v2845, 5
    %v2924 = vrot.slane %v2846, 5
    %vm2925 = vcmp.lt.s32.totalorder %v517, 3
    %v2926 = vsel %vm2925, %v2923, %v2924
    %v2927 = vsel %vm2925, %v2922, %v2923
    %v2928 = vsel %vm2925, %v2921, %v2922
    %v2929 = vsel %vm2925, %v2924, %v2921
    %vm2930 = vcmp.ge.f32.partialorder %v1668, 3.0
    %vm2931 = vcmp.ge.f32.partialorder %v1669, 3.0
    %vm2932 = vcmp.ge.f32.partialorder %v1670, 3.0
    %vm2933 = vcmp.ge.f32.partialorder %v1671, 3.0
    %v2934 = vsel %vm2930, 1, 0
    %v2935 = vsel %vm2931, 1, 0
    %v2936 = vsel %vm2932, 1, 0
    %v2937 = vsel %vm2933, 1, 0
    %2938 = vset.pattern.permute.xlu0 0
    %2939 = vperm.xlu0 %2938, %v2934
    %v2940 = vpop.permute.xlu0 %2939
    %2941 = vset.pattern.permute.xlu0 0
    %2942 = vperm.xlu0 %2941, %v2935
    %v2943 = vpop.permute.xlu0 %2942
    %2944 = vset.pattern.permute.xlu0 0
    %2945 = vperm.xlu0 %2944, %v2936
    %v2946 = vpop.permute.xlu0 %2945
    %2947 = vset.pattern.permute.xlu0 0
    %2948 = vperm.xlu0 %2947, %v2937
    %v2949 = vpop.permute.xlu0 %2948
    %vm2950 = vcmp.eq.s32.totalorder %v2940, 1
    %vm2951 = vcmp.eq.s32.totalorder %v2943, 1
    %vm2952 = vcmp.eq.s32.totalorder %v2946, 1
    %vm2953 = vcmp.eq.s32.totalorder %v2949, 1
    %v2954 = vsel %vm2950, %v2929, 0.0
    %v2955 = vsel %vm2951, %v2928, 0.0
    %v2956 = vsel %vm2952, %v2927, 0.0
    %v2957 = vsel %vm2953, %v2926, 0.0
    %v2958 = vrot.slane %v2843, 6
    %v2959 = vrot.slane %v2844, 6
    %v2960 = vrot.slane %v2845, 6
    %v2961 = vrot.slane %v2846, 6
    %vm2962 = vcmp.lt.s32.totalorder %v517, 2
    %v2963 = vsel %vm2962, %v2960, %v2961
    %v2964 = vsel %vm2962, %v2959, %v2960
    %v2965 = vsel %vm2962, %v2958, %v2959
    %v2966 = vsel %vm2962, %v2961, %v2958
    %vm2967 = vcmp.ge.f32.partialorder %v1668, 2.0
    %vm2968 = vcmp.ge.f32.partialorder %v1669, 2.0
    %vm2969 = vcmp.ge.f32.partialorder %v1670, 2.0
    %vm2970 = vcmp.ge.f32.partialorder %v1671, 2.0
    %v2971 = vsel %vm2967, 1, 0
    %v2972 = vsel %vm2968, 1, 0
    %v2973 = vsel %vm2969, 1, 0
    %v2974 = vsel %vm2970, 1, 0
    %2975 = vset.pattern.permute.xlu0 0
    %2976 = vperm.xlu0 %2975, %v2971
    %v2977 = vpop.permute.xlu0 %2976
    %2978 = vset.pattern.permute.xlu0 0
    %2979 = vperm.xlu0 %2978, %v2972
    %v2980 = vpop.permute.xlu0 %2979
    %2981 = vset.pattern.permute.xlu0 0
    %2982 = vperm.xlu0 %2981, %v2973
    %v2983 = vpop.permute.xlu0 %2982
    %2984 = vset.pattern.permute.xlu0 0
    %2985 = vperm.xlu0 %2984, %v2974
    %v2986 = vpop.permute.xlu0 %2985
    %vm2987 = vcmp.eq.s32.totalorder %v2977, 1
    %vm2988 = vcmp.eq.s32.totalorder %v2980, 1
    %vm2989 = vcmp.eq.s32.totalorder %v2983, 1
    %vm2990 = vcmp.eq.s32.totalorder %v2986, 1
    %v2991 = vsel %vm2987, %v2966, 0.0
    %v2992 = vsel %vm2988, %v2965, 0.0
    %v2993 = vsel %vm2989, %v2964, 0.0
    %v2994 = vsel %vm2990, %v2963, 0.0
    %v2995 = vrot.slane %v2843, 7
    %v2996 = vrot.slane %v2844, 7
    %v2997 = vrot.slane %v2845, 7
    %v2998 = vrot.slane %v2846, 7
    %v2999 = vsel %vm518, %v2997, %v2998
    %v3000 = vsel %vm518, %v2996, %v2997
    %v3001 = vsel %vm518, %v2995, %v2996
    %v3002 = vsel %vm518, %v2998, %v2995
    %v3003 = vsel %vm1700, %v3002, 0.0
    %v3004 = vsel %vm1701, %v3001, 0.0
    %v3005 = vsel %vm1702, %v3000, 0.0
    %v3006 = vsel %vm1703, %v2999, 0.0
    %v3007 = vrot.slane %v2843, 1
    %v3008 = vrot.slane %v2844, 1
    %v3009 = vrot.slane %v2845, 1
    %v3010 = vrot.slane %v2846, 1
    %v3011 = vsel %vm537, %v3009, %v3010
    %v3012 = vsel %vm537, %v3008, %v3009
    %v3013 = vsel %vm537, %v3007, %v3008
    %v3014 = vsel %vm537, %v3010, %v3007
    %v3015 = vsel %vm1736, %v3013, 0.0
    %v3016 = vsel %vm1737, %v3012, 0.0
    %v3017 = vsel %vm1738, %v3011, 0.0
    %v3018 = vsel %vm1739, %v3014, 0.0
    %v3019 = vrot.slane %v2843, 2
    %v3020 = vrot.slane %v2844, 2
    %v3021 = vrot.slane %v2845, 2
    %v3022 = vrot.slane %v2846, 2
    %vm3023 = vcmp.lt.s32.totalorder %v517, 6
    %v3024 = vsel %vm3023, %v3021, %v3022
    %v3025 = vsel %vm3023, %v3020, %v3021
    %v3026 = vsel %vm3023, %v3019, %v3020
    %v3027 = vsel %vm3023, %v3022, %v3019
    %vm3028 = vcmp.le.f32.partialorder %v1668, 13.0
    %vm3029 = vcmp.le.f32.partialorder %v1669, 13.0
    %vm3030 = vcmp.le.f32.partialorder %v1670, 13.0
    %vm3031 = vcmp.le.f32.partialorder %v1671, 13.0
    %v3032 = vsel %vm3028, 1, 0
    %v3033 = vsel %vm3029, 1, 0
    %v3034 = vsel %vm3030, 1, 0
    %v3035 = vsel %vm3031, 1, 0
    %3036 = vset.pattern.permute.xlu0 0
    %3037 = vperm.xlu0 %3036, %v3032
    %v3038 = vpop.permute.xlu0 %3037
    %3039 = vset.pattern.permute.xlu0 0
    %3040 = vperm.xlu0 %3039, %v3033
    %v3041 = vpop.permute.xlu0 %3040
    %3042 = vset.pattern.permute.xlu0 0
    %3043 = vperm.xlu0 %3042, %v3034
    %v3044 = vpop.permute.xlu0 %3043
    %3045 = vset.pattern.permute.xlu0 0
    %3046 = vperm.xlu0 %3045, %v3035
    %v3047 = vpop.permute.xlu0 %3046
    %vm3048 = vcmp.eq.s32.totalorder %v3038, 1
    %vm3049 = vcmp.eq.s32.totalorder %v3041, 1
    %vm3050 = vcmp.eq.s32.totalorder %v3044, 1
    %vm3051 = vcmp.eq.s32.totalorder %v3047, 1
    %v3052 = vsel %vm3048, %v3026, 0.0
    %v3053 = vsel %vm3049, %v3025, 0.0
    %v3054 = vsel %vm3050, %v3024, 0.0
    %v3055 = vsel %vm3051, %v3027, 0.0
    %v3056 = vrot.slane %v2843, 3
    %v3057 = vrot.slane %v2844, 3
    %v3058 = vrot.slane %v2845, 3
    %v3059 = vrot.slane %v2846, 3
    %vm3060 = vcmp.lt.s32.totalorder %v517, 5
    %v3061 = vsel %vm3060, %v3058, %v3059
    %v3062 = vsel %vm3060, %v3057, %v3058
    %v3063 = vsel %vm3060, %v3056, %v3057
    %v3064 = vsel %vm3060, %v3059, %v3056
    %vm3065 = vcmp.le.f32.partialorder %v1668, 12.0
    %vm3066 = vcmp.le.f32.partialorder %v1669, 12.0
    %vm3067 = vcmp.le.f32.partialorder %v1670, 12.0
    %vm3068 = vcmp.le.f32.partialorder %v1671, 12.0
    %v3069 = vsel %vm3065, 1, 0
    %v3070 = vsel %vm3066, 1, 0
    %v3071 = vsel %vm3067, 1, 0
    %v3072 = vsel %vm3068, 1, 0
    %3073 = vset.pattern.permute.xlu0 0
    %3074 = vperm.xlu0 %3073, %v3069
    %v3075 = vpop.permute.xlu0 %3074
    %3076 = vset.pattern.permute.xlu0 0
    %3077 = vperm.xlu0 %3076, %v3070
    %v3078 = vpop.permute.xlu0 %3077
    %3079 = vset.pattern.permute.xlu0 0
    %3080 = vperm.xlu0 %3079, %v3071
    %v3081 = vpop.permute.xlu0 %3080
    %3082 = vset.pattern.permute.xlu0 0
    %3083 = vperm.xlu0 %3082, %v3072
    %v3084 = vpop.permute.xlu0 %3083
    %vm3085 = vcmp.eq.s32.totalorder %v3075, 1
    %vm3086 = vcmp.eq.s32.totalorder %v3078, 1
    %vm3087 = vcmp.eq.s32.totalorder %v3081, 1
    %vm3088 = vcmp.eq.s32.totalorder %v3084, 1
    %v3089 = vsel %vm3085, %v3063, 0.0
    %v3090 = vsel %vm3086, %v3062, 0.0
    %v3091 = vsel %vm3087, %v3061, 0.0
    %v3092 = vsel %vm3088, %v3064, 0.0
    %vm3093 = vcmp.le.f32.partialorder %v1668, 11.0
    %vm3094 = vcmp.le.f32.partialorder %v1669, 11.0
    %vm3095 = vcmp.le.f32.partialorder %v1670, 11.0
    %vm3096 = vcmp.le.f32.partialorder %v1671, 11.0
    %v3097 = vsel %vm3093, 1, 0
    %v3098 = vsel %vm3094, 1, 0
    %v3099 = vsel %vm3095, 1, 0
    %v3100 = vsel %vm3096, 1, 0
    %3101 = vset.pattern.permute.xlu0 0
    %3102 = vperm.xlu0 %3101, %v3097
    %v3103 = vpop.permute.xlu0 %3102
    %3104 = vset.pattern.permute.xlu0 0
    %3105 = vperm.xlu0 %3104, %v3098
    %v3106 = vpop.permute.xlu0 %3105
    %3107 = vset.pattern.permute.xlu0 0
    %3108 = vperm.xlu0 %3107, %v3099
    %v3109 = vpop.permute.xlu0 %3108
    %3110 = vset.pattern.permute.xlu0 0
    %3111 = vperm.xlu0 %3110, %v3100
    %v3112 = vpop.permute.xlu0 %3111
    %vm3113 = vcmp.eq.s32.totalorder %v3103, 1
    %vm3114 = vcmp.eq.s32.totalorder %v3106, 1
    %vm3115 = vcmp.eq.s32.totalorder %v3109, 1
    %vm3116 = vcmp.eq.s32.totalorder %v3112, 1
    %v3117 = vsel %vm3113, %v2891, 0.0
    %v3118 = vsel %vm3114, %v2890, 0.0
    %v3119 = vsel %vm3115, %v2889, 0.0
    %v3120 = vsel %vm3116, %v2892, 0.0
    %3125 = vrot.lane.b32.xlu0 %v2954, 32
    %v3126 = vpop.permute.xlu0 %3125
    %3127 = vrot.lane.b32.xlu0 %v2955, 32
    %v3128 = vpop.permute.xlu0 %3127
    %3129 = vrot.lane.b32.xlu0 %v2956, 32
    %v3130 = vpop.permute.xlu0 %3129
    %3131 = vrot.lane.b32.xlu0 %v2957, 32
    %v3132 = vpop.permute.xlu0 %3131
    %3141 = vrot.lane.b32.xlu0 %v2991, 64
    %v3142 = vpop.permute.xlu0 %3141
    %3143 = vrot.lane.b32.xlu0 %v2992, 64
    %v3144 = vpop.permute.xlu0 %3143
    %3145 = vrot.lane.b32.xlu0 %v2993, 64
    %v3146 = vpop.permute.xlu0 %3145
    %3147 = vrot.lane.b32.xlu0 %v2994, 64
    %v3148 = vpop.permute.xlu0 %3147
    %3157 = vrot.lane.b32.xlu0 %v3003, 96
    %v3158 = vpop.permute.xlu0 %3157
    %3159 = vrot.lane.b32.xlu0 %v3004, 96
    %v3160 = vpop.permute.xlu0 %3159
    %3161 = vrot.lane.b32.xlu0 %v3005, 96
    %v3162 = vpop.permute.xlu0 %3161
    %3163 = vrot.lane.b32.xlu0 %v3006, 96
    %v3164 = vpop.permute.xlu0 %3163
    %3173 = vrot.lane.b32.xlu0 %v3015, 32
    %v3174 = vpop.permute.xlu0 %3173
    %3175 = vrot.lane.b32.xlu0 %v3016, 32
    %v3176 = vpop.permute.xlu0 %3175
    %3177 = vrot.lane.b32.xlu0 %v3017, 32
    %v3178 = vpop.permute.xlu0 %3177
    %3179 = vrot.lane.b32.xlu0 %v3018, 32
    %v3180 = vpop.permute.xlu0 %3179
    %3189 = vrot.lane.b32.xlu0 %v3052, 64
    %v3190 = vpop.permute.xlu0 %3189
    %3191 = vrot.lane.b32.xlu0 %v3053, 64
    %v3192 = vpop.permute.xlu0 %3191
    %3193 = vrot.lane.b32.xlu0 %v3054, 64
    %v3194 = vpop.permute.xlu0 %3193
    %3195 = vrot.lane.b32.xlu0 %v3055, 64
    %v3196 = vpop.permute.xlu0 %3195
    %3205 = vrot.lane.b32.xlu0 %v3089, 96
    %v3206 = vpop.permute.xlu0 %3205
    %3207 = vrot.lane.b32.xlu0 %v3090, 96
    %v3208 = vpop.permute.xlu0 %3207
    %3209 = vrot.lane.b32.xlu0 %v3091, 96
    %v3210 = vpop.permute.xlu0 %3209
    %3211 = vrot.lane.b32.xlu0 %v3092, 96
    %v3212 = vpop.permute.xlu0 %3211
    %v3217 = vsel %vm570, %v2917, %v3126
    %v3218 = vsel %vm570, %v2918, %v3128
    %v3219 = vsel %vm570, %v2919, %v3130
    %v3220 = vsel %vm570, %v2920, %v3132
    %v3221 = vsel %vm573, %v3217, %v3142
    %v3222 = vsel %vm573, %v3218, %v3144
    %v3223 = vsel %vm573, %v3219, %v3146
    %v3224 = vsel %vm573, %v3220, %v3148
    %v3225 = vsel %vm582, %v3221, %v3158
    %v3226 = vsel %vm582, %v3222, %v3160
    %v3227 = vsel %vm582, %v3223, %v3162
    %v3228 = vsel %vm582, %v3224, %v3164
    %v3229 = vsel %vm570, %v2843, %v3174
    %v3230 = vsel %vm570, %v2844, %v3176
    %v3231 = vsel %vm570, %v2845, %v3178
    %v3232 = vsel %vm570, %v2846, %v3180
    %v3233 = vsel %vm573, %v3229, %v3190
    %v3234 = vsel %vm573, %v3230, %v3192
    %v3235 = vsel %vm573, %v3231, %v3194
    %v3236 = vsel %vm573, %v3232, %v3196
    %v3237 = vsel %vm582, %v3233, %v3206
    %v3238 = vsel %vm582, %v3234, %v3208
    %v3239 = vsel %vm582, %v3235, %v3210
    %v3240 = vsel %vm582, %v3236, %v3212
    %v3242 = vlaneseq
    %v3243 = vshrl.u32 %v3242, 7
    %v3244 = vsub.s32 0, %v3243
    %v3245 = vrot.slane %v2883, %v3244
    %v3248 = vsel %vm570, %v3117, 0
    %v3251 = vsel %vm570, %v3118, 0
    %v3254 = vsel %vm570, %v3119, 0
    %v3257 = vsel %vm570, %v3120, 0
    %3259 = vmatprep.subr.mxu0 0.0
    %3260 = vmatpush1.msra.mxu0 %v2847
    %3261 = vmatprep.subr.mxu0 0.0
    %3262 = vmatpush1.msra.mxu0 %v2848
    %3263 = vmatprep.subr.mxu0 0.0
    %3264 = vmatpush1.msra.mxu0 %v2849
    %3265 = vmatprep.subr.mxu0 0.0
    %3266 = vmatpush1.msra.mxu0 %v2850
    %3267 = vmatprep.subr.mxu0 0.0
    %3268 = vmatpush1.msra.mxu0 %v2851
    %3269 = vmatprep.subr.mxu0 0.0
    %3270 = vmatpush1.msra.mxu0 %v2852
    %3271 = vmatprep.subr.mxu0 0.0
    %3272 = vmatpush1.msra.mxu0 %v2853
    %3273 = vmatprep.subr.mxu0 0.0
    %3274 = vmatpush1.msra.mxu0 %v2854
    %3275 = vmatprep.subr.mxu0 0.0
    %3276 = vmatpush1.msra.mxu0 %v2855
    %3277 = vmatprep.subr.mxu0 0.0
    %3278 = vmatpush1.msra.mxu0 %v2856
    %3279 = vmatprep.subr.mxu0 0.0
    %3280 = vmatpush1.msra.mxu0 %v2857
    %3281 = vmatprep.subr.mxu0 0.0
    %3282 = vmatpush1.msra.mxu0 %v2858
    %3283 = vmatprep.subr.mxu0 0.0
    %3284 = vmatpush1.msra.mxu0 %v2859
    %3285 = vmatprep.subr.mxu0 0.0
    %3286 = vmatpush1.msra.mxu0 %v2860
    %3287 = vmatprep.subr.mxu0 0.0
    %3288 = vmatpush1.msra.mxu0 %v2861
    %3289 = vmatprep.subr.mxu0 0.0
    %3290 = vmatpush1.msra.mxu0 %v2862
    %3291 = vmatprep.subr.mxu0 0.0
    %3292 = vmatpush1.msra.mxu0 %v2863
    %3293 = vmatprep.subr.mxu0 0.0
    %3294 = vmatpush1.msra.mxu0 %v2864
    %3295 = vmatprep.subr.mxu0 0.0
    %3296 = vmatpush1.msra.mxu0 %v2865
    %3297 = vmatprep.subr.mxu0 0.0
    %3298 = vmatpush1.msra.mxu0 %v2866
    %3299 = vmatprep.subr.mxu0 0.0
    %3300 = vmatpush1.msra.mxu0 %v2867
    %3301 = vmatprep.subr.mxu0 0.0
    %3302 = vmatpush1.msra.mxu0 %v2868
    %3303 = vmatprep.subr.mxu0 0.0
    %3304 = vmatpush1.msra.mxu0 %v2869
    %3305 = vmatprep.subr.mxu0 0.0
    %3306 = vmatpush1.msra.mxu0 %v2870
    %3307 = vmatprep.subr.mxu0 0.0
    %3308 = vmatpush1.msra.mxu0 %v2871
    %3309 = vmatprep.subr.mxu0 0.0
    %3310 = vmatpush1.msra.mxu0 %v2872
    %3311 = vmatprep.subr.mxu0 0.0
    %3312 = vmatpush1.msra.mxu0 %v2873
    %3313 = vmatprep.subr.mxu0 0.0
    %3314 = vmatpush1.msra.mxu0 %v2874
    %3315 = vmatprep.subr.mxu0 0.0
    %3316 = vmatpush1.msra.mxu0 %v2875
    %3317 = vmatprep.subr.mxu0 0.0
    %3318 = vmatpush1.msra.mxu0 %v2876
    %3319 = vmatprep.subr.mxu0 0.0
    %3320 = vmatpush1.msra.mxu0 %v2877
    %3321 = vmatprep.subr.mxu0 0.0
    %3322 = vmatpush1.msra.mxu0 %v2878
    %3323 = vmatprep.mubr.f32.mxu0 %v3237
    %3324 = vmatmul.mubr.f32.gmra.mrb[0].mxu0 %v3225
    %v3325 = vpop.f32.mrb[0].mxu0
    %v3326 = vadd.f32 %v3245, %v3325
    %v3327 = vpop.f32.mrb[0].mxu0
    %3328 = vmatprep.mubr.f32.mxu0 %v3238
    %3329 = vmatmul.mubr.f32.gmra.mrb[0].mxu0 %v3226
    %v3330 = vpop.f32.mrb[0].mxu0
    %v3331 = vadd.f32 %v3245, %v3330
    %v3332 = vpop.f32.mrb[0].mxu0
    %3333 = vmatprep.mubr.f32.mxu0 %v3239
    %3334 = vmatmul.mubr.f32.gmra.mrb[0].mxu0 %v3227
    %v3335 = vpop.f32.mrb[0].mxu0
    %v3336 = vadd.f32 %v3245, %v3335
    %v3337 = vpop.f32.mrb[0].mxu0
    %3338 = vmatprep.mubr.f32.mxu0 %v3240
    %3339 = vmatmul.mubr.f32.gmra.mrb[0].mxu0 %v3228
    %v3340 = vpop.f32.mrb[0].mxu0
    %v3341 = vadd.f32 %v3245, %v3340
    %v3342 = vpop.f32.mrb[0].mxu0
    %3343 = vdwg.mxu0
    %3344 = vmatprep.subr.mxu0 0.0
    %3345 = vmatpush1.msra.mxu0 %v2879
    %3346 = vmatprep.subr.mxu0 0.0
    %3347 = vmatpush1.msra.mxu0 %v2880
    %3348 = vmatprep.subr.mxu0 0.0
    %3349 = vmatpush1.msra.mxu0 %v2881
    %3350 = vmatprep.subr.mxu0 0.0
    %3351 = vmatpush1.msra.mxu0 %v2882
    %3352 = vmatprep.subr.mxu0 0.0
    %3353 = vmatpush1.msra.mxu0 0.0
    %3354 = vmatprep.subr.mxu0 0.0
    %3355 = vmatpush1.msra.mxu0 0.0
    %3356 = vmatprep.subr.mxu0 0.0
    %3357 = vmatpush1.msra.mxu0 0.0
    %3358 = vmatprep.subr.mxu0 0.0
    %3359 = vmatpush1.msra.mxu0 0.0
    %3360 = vmatprep.subr.mxu0 0.0
    %3361 = vmatpush1.msra.mxu0 0.0
    %3362 = vmatprep.subr.mxu0 0.0
    %3363 = vmatpush1.msra.mxu0 0.0
    %3364 = vmatprep.subr.mxu0 0.0
    %3365 = vmatpush1.msra.mxu0 0.0
    %3366 = vmatprep.subr.mxu0 0.0
    %3367 = vmatpush1.msra.mxu0 0.0
    %3368 = vmatprep.subr.mxu0 0.0
    %3369 = vmatpush1.msra.mxu0 0.0
    %3370 = vmatprep.subr.mxu0 0.0
    %3371 = vmatpush1.msra.mxu0 0.0
    %3372 = vmatprep.subr.mxu0 0.0
    %3373 = vmatpush1.msra.mxu0 0.0
    %3374 = vmatprep.subr.mxu0 0.0
    %3375 = vmatpush1.msra.mxu0 0.0
    %3376 = vmatprep.subr.mxu0 0.0
    %3377 = vmatpush1.msra.mxu0 0.0
    %3378 = vmatprep.subr.mxu0 0.0
    %3379 = vmatpush1.msra.mxu0 0.0
    %3380 = vmatprep.subr.mxu0 0.0
    %3381 = vmatpush1.msra.mxu0 0.0
    %3382 = vmatprep.subr.mxu0 0.0
    %3383 = vmatpush1.msra.mxu0 0.0
    %3384 = vmatprep.subr.mxu0 0.0
    %3385 = vmatpush1.msra.mxu0 0.0
    %3386 = vmatprep.subr.mxu0 0.0
    %3387 = vmatpush1.msra.mxu0 0.0
    %3388 = vmatprep.subr.mxu0 0.0
    %3389 = vmatpush1.msra.mxu0 0.0
    %3390 = vmatprep.subr.mxu0 0.0
    %3391 = vmatpush1.msra.mxu0 0.0
    %3392 = vmatprep.subr.mxu0 0.0
    %3393 = vmatpush1.msra.mxu0 0.0
    %3394 = vmatprep.subr.mxu0 0.0
    %3395 = vmatpush1.msra.mxu0 0.0
    %3396 = vmatprep.subr.mxu0 0.0
    %3397 = vmatpush1.msra.mxu0 0.0
    %3398 = vmatprep.subr.mxu0 0.0
    %3399 = vmatpush1.msra.mxu0 0.0
    %3400 = vmatprep.subr.mxu0 0.0
    %3401 = vmatpush1.msra.mxu0 0.0
    %3402 = vmatprep.subr.mxu0 0.0
    %3403 = vmatpush1.msra.mxu0 0.0
    %3404 = vmatprep.subr.mxu0 0.0
    %3405 = vmatpush1.msra.mxu0 0.0
    %3406 = vmatprep.subr.mxu0 0.0
    %3407 = vmatpush1.msra.mxu0 0.0
    %3408 = vmatprep.mubr.f32.mxu0 0.0
    %3409 = vmatmul.mubr.f32.gmra.mrb[0].mxu0 %v3248
    %v3410 = vpop.f32.mrb[0].mxu0
    %v3411 = vadd.f32 %v3326, %v3410
    %v3412 = vpop.f32.mrb[0].mxu0
    %3413 = vmatprep.mubr.f32.mxu0 0.0
    %3414 = vmatmul.mubr.f32.gmra.mrb[0].mxu0 %v3251
    %v3415 = vpop.f32.mrb[0].mxu0
    %v3416 = vadd.f32 %v3331, %v3415
    %v3417 = vpop.f32.mrb[0].mxu0
    %3418 = vmatprep.mubr.f32.mxu0 0.0
    %3419 = vmatmul.mubr.f32.gmra.mrb[0].mxu0 %v3254
    %v3420 = vpop.f32.mrb[0].mxu0
    %v3421 = vadd.f32 %v3336, %v3420
    %v3422 = vpop.f32.mrb[0].mxu0
    %3423 = vmatprep.mubr.f32.mxu0 0.0
    %3424 = vmatmul.mubr.f32.gmra.mrb[0].mxu0 %v3257
    %v3425 = vpop.f32.mrb[0].mxu0
    %v3426 = vadd.f32 %v3341, %v3425
    %v3427 = vpop.f32.mrb[0].mxu0
    %3428 = vdwg.mxu0
    %v3429 = vmax.f32 %v3411, 0.0
    %v3430 = vmax.f32 %v3416, 0.0
    %v3431 = vmax.f32 %v3421, 0.0
    %v3432 = vmax.f32 %v3426, 0.0
    %v3433 = vld [vmem:[%s11] sm:$0xff]
    %v3434 = vld [vmem:[%s11 + $0x8] sm:$0xff]
    %v3435 = vld [vmem:[%s11 + $0x10] sm:$0xff]
    %v3436 = vld [vmem:[%s11 + $0x18] sm:$0xff]
    %v3437 = vld [vmem:[%s11 + $0x20] sm:$0xff]
    %v3438 = vld [vmem:[%s11 + $0x28] sm:$0xff]
    %v3439 = vld [vmem:[%s11 + $0x30] sm:$0xff]
    %v3440 = vld [vmem:[%s11 + $0x38] sm:$0xff]
    %v3441 = vld [vmem:[%s11 + $0x40] sm:$0xff]
    %v3442 = vld [vmem:[%s11 + $0x48] sm:$0xff]
    %v3443 = vld [vmem:[%s11 + $0x50] sm:$0xff]
    %v3444 = vld [vmem:[%s11 + $0x58] sm:$0xff]
    %v3445 = vld [vmem:[%s11 + $0x60] sm:$0xff]
    %v3446 = vld [vmem:[%s11 + $0x68] sm:$0xff]
    %v3447 = vld [vmem:[%s11 + $0x70] sm:$0xff]
    %v3448 = vld [vmem:[%s11 + $0x78] sm:$0xff]
    %v3449 = vld [vmem:[#allocation7] sm:$0x1]
    %v3451 = vlaneseq
    %v3452 = vshrl.u32 %v3451, 7
    %v3453 = vsub.s32 0, %v3452
    %v3454 = vrot.slane %v3449, %v3453
    %3456 = vmatprep.subr.mxu0 0.0
    %3457 = vmatpush1.msra.mxu0 %v3433
    %3458 = vmatprep.subr.mxu0 0.0
    %3459 = vmatpush1.msra.mxu0 %v3434
    %3460 = vmatprep.subr.mxu0 0.0
    %3461 = vmatpush1.msra.mxu0 %v3435
    %3462 = vmatprep.subr.mxu0 0.0
    %3463 = vmatpush1.msra.mxu0 %v3436
    %3464 = vmatprep.subr.mxu0 0.0
    %3465 = vmatpush1.msra.mxu0 %v3437
    %3466 = vmatprep.subr.mxu0 0.0
    %3467 = vmatpush1.msra.mxu0 %v3438
    %3468 = vmatprep.subr.mxu0 0.0
    %3469 = vmatpush1.msra.mxu0 %v3439
    %3470 = vmatprep.subr.mxu0 0.0
    %3471 = vmatpush1.msra.mxu0 %v3440
    %3472 = vmatprep.subr.mxu0 0.0
    %3473 = vmatpush1.msra.mxu0 %v3441
    %3474 = vmatprep.subr.mxu0 0.0
    %3475 = vmatpush1.msra.mxu0 %v3442
    %3476 = vmatprep.subr.mxu0 0.0
    %3477 = vmatpush1.msra.mxu0 %v3443
    %3478 = vmatprep.subr.mxu0 0.0
    %3479 = vmatpush1.msra.mxu0 %v3444
    %3480 = vmatprep.subr.mxu0 0.0
    %3481 = vmatpush1.msra.mxu0 %v3445
    %3482 = vmatprep.subr.mxu0 0.0
    %3483 = vmatpush1.msra.mxu0 %v3446
    %3484 = vmatprep.subr.mxu0 0.0
    %3485 = vmatpush1.msra.mxu0 %v3447
    %3486 = vmatprep.subr.mxu0 0.0
    %3487 = vmatpush1.msra.mxu0 %v3448
    %3488 = vmatprep.subr.mxu0 0.0
    %3489 = vmatpush1.msra.mxu0 0.0
    %3490 = vmatprep.subr.mxu0 0.0
    %3491 = vmatpush1.msra.mxu0 0.0
    %3492 = vmatprep.subr.mxu0 0.0
    %3493 = vmatpush1.msra.mxu0 0.0
    %3494 = vmatprep.subr.mxu0 0.0
    %3495 = vmatpush1.msra.mxu0 0.0
    %3496 = vmatprep.subr.mxu0 0.0
    %3497 = vmatpush1.msra.mxu0 0.0
    %3498 = vmatprep.subr.mxu0 0.0
    %3499 = vmatpush1.msra.mxu0 0.0
    %3500 = vmatprep.subr.mxu0 0.0
    %3501 = vmatpush1.msra.mxu0 0.0
    %3502 = vmatprep.subr.mxu0 0.0
    %3503 = vmatpush1.msra.mxu0 0.0
    %3504 = vmatprep.subr.mxu0 0.0
    %3505 = vmatpush1.msra.mxu0 0.0
    %3506 = vmatprep.subr.mxu0 0.0
    %3507 = vmatpush1.msra.mxu0 0.0
    %3508 = vmatprep.subr.mxu0 0.0
    %3509 = vmatpush1.msra.mxu0 0.0
    %3510 = vmatprep.subr.mxu0 0.0
    %3511 = vmatpush1.msra.mxu0 0.0
    %3512 = vmatprep.subr.mxu0 0.0
    %3513 = vmatpush1.msra.mxu0 0.0
    %3514 = vmatprep.subr.mxu0 0.0
    %3515 = vmatpush1.msra.mxu0 0.0
    %3516 = vmatprep.subr.mxu0 0.0
    %3517 = vmatpush1.msra.mxu0 0.0
    %3518 = vmatprep.subr.mxu0 0.0
    %3519 = vmatpush1.msra.mxu0 0.0
    %3520 = vmatprep.mubr.f32.mxu0 0.0
    %3521 = vmatmul.mubr.f32.gmra.mrb[0].mxu0 %v3429
    %v3522 = vpop.f32.mrb[0].mxu0
    %v3523 = vadd.f32 %v3454, %v3522
    %v3524 = vpop.f32.mrb[0].mxu0
    %3525 = vmatprep.mubr.f32.mxu0 0.0
    %3526 = vmatmul.mubr.f32.gmra.mrb[0].mxu0 %v3430
    %v3527 = vpop.f32.mrb[0].mxu0
    %v3528 = vadd.f32 %v3454, %v3527
    %v3529 = vpop.f32.mrb[0].mxu0
    %3530 = vmatprep.mubr.f32.mxu0 0.0
    %3531 = vmatmul.mubr.f32.gmra.mrb[0].mxu0 %v3431
    %v3532 = vpop.f32.mrb[0].mxu0
    %v3533 = vadd.f32 %v3454, %v3532
    %v3534 = vpop.f32.mrb[0].mxu0
    %3535 = vmatprep.mubr.f32.mxu0 0.0
    %3536 = vmatmul.mubr.f32.gmra.mrb[0].mxu0 %v3432
    %v3537 = vpop.f32.mrb[0].mxu0
    %v3538 = vadd.f32 %v3454, %v3537
    %v3539 = vpop.f32.mrb[0].mxu0
    %3540 = vdwg.mxu0
    %v3541 = vadd.f32 %v3523, %v2843
    %v3542 = vadd.f32 %v3528, %v2844
    %v3543 = vadd.f32 %v3533, %v2845
    %v3544 = vadd.f32 %v3538, %v2846
    %v3545 = vld [vmem:[%s15] sm:$0x1]
    %v3546 = vld [vmem:[%s14] sm:$0x1]
    %v3547 = vsel %vm570, %v3541, 0.0
    %3548 = vadd.xlane.f32.xlu0 %v3547
    %v3549 = vpop.xlane.xlu0 %3548
    %v3550 = vsel %vm570, %v3542, 0.0
    %3551 = vadd.xlane.f32.xlu0 %v3550
    %v3552 = vpop.xlane.xlu0 %3551
    %v3553 = vsel %vm570, %v3543, 0.0
    %3554 = vadd.xlane.f32.xlu0 %v3553
    %v3555 = vpop.xlane.xlu0 %3554
    %v3556 = vsel %vm570, %v3544, 0.0
    %3557 = vadd.xlane.f32.xlu0 %v3556
    %v3558 = vpop.xlane.xlu0 %3557
    %v3559 = vmul.f32 %v3549, %v2786
    %v3560 = vmul.f32 %v3552, %v2786
    %v3561 = vmul.f32 %v3555, %v2786
    %v3562 = vmul.f32 %v3558, %v2786
    %v3563 = vsub.f32 %v3541, %v3559
    %v3564 = vsub.f32 %v3542, %v3560
    %v3565 = vsub.f32 %v3543, %v3561
    %v3566 = vsub.f32 %v3544, %v3562
    %v3567 = vmul.f32 %v3563, %v3563
    %v3568 = vmul.f32 %v3564, %v3564
    %v3569 = vmul.f32 %v3565, %v3565
    %v3570 = vmul.f32 %v3566, %v3566
    %v3571 = vsel %vm570, %v3567, 0.0
    %3572 = vadd.xlane.f32.xlu0 %v3571
    %v3573 = vpop.xlane.xlu0 %3572
    %v3574 = vsel %vm570, %v3568, 0.0
    %3575 = vadd.xlane.f32.xlu0 %v3574
    %v3576 = vpop.xlane.xlu0 %3575
    %v3577 = vsel %vm570, %v3569, 0.0
    %3578 = vadd.xlane.f32.xlu0 %v3577
    %v3579 = vpop.xlane.xlu0 %3578
    %v3580 = vsel %vm570, %v3570, 0.0
    %3581 = vadd.xlane.f32.xlu0 %v3580
    %v3582 = vpop.xlane.xlu0 %3581
    %v3583 = vmul.f32 %v3573, %v2786
    %v3584 = vmul.f32 %v3576, %v2786
    %v3585 = vmul.f32 %v3579, %v2786
    %v3586 = vmul.f32 %v3582, %v2786
    %v3587 = vadd.f32 %v3583, 1e-05
    %v3588 = vadd.f32 %v3584, 1e-05
    %v3589 = vadd.f32 %v3585, 1e-05
    %v3590 = vadd.f32 %v3586, 1e-05
    %v3591 = vrsqrt.pop %v3587
    %v3592 = vrsqrt.pop %v3588
    %v3593 = vrsqrt.pop %v3589
    %v3594 = vrsqrt.pop %v3590
    %v3595 = vmul.f32 %v3563, %v3591
    %v3596 = vmul.f32 %v3564, %v3592
    %v3597 = vmul.f32 %v3565, %v3593
    %v3598 = vmul.f32 %v3566, %v3594
    %v3600 = vlaneseq
    %v3601 = vshrl.u32 %v3600, 7
    %v3602 = vsub.s32 0, %v3601
    %v3603 = vrot.slane %v3545, %v3602
    %v3605 = vmul.f32 %v3595, %v3603
    %v3606 = vmul.f32 %v3596, %v3603
    %v3607 = vmul.f32 %v3597, %v3603
    %v3608 = vmul.f32 %v3598, %v3603
    %v3610 = vlaneseq
    %v3611 = vshrl.u32 %v3610, 7
    %v3612 = vsub.s32 0, %v3611
    %v3613 = vrot.slane %v3546, %v3612
    %v3615 = vadd.f32 %v3605, %v3613
    %v3616 = vadd.f32 %v3606, %v3613
    %v3617 = vadd.f32 %v3607, %v3613
    %v3618 = vadd.f32 %v3608, %v3613
    %s3619 = scalar_lea.vmem %s16, 32
    %v3620 = vld [vmem:[%s3619] sm:$0xff]
    %v3621 = vld [vmem:[%s3619 + $0x8] sm:$0xff]
    %v3622 = vld [vmem:[%s3619 + $0x10] sm:$0xff]
    %v3623 = vld [vmem:[%s3619 + $0x18] sm:$0xff]
    %v3625 = vsel %vm570, %v3615, 0
    %v3628 = vsel %vm570, %v3616, 0
    %v3631 = vsel %vm570, %v3617, 0
    %v3634 = vsel %vm570, %v3618, 0
    %3636 = vmatprep.subr.mxu0 0.0
    %3637 = vmatpush1.msra.mxu0 %v3620
    %3638 = vmatprep.subr.mxu0 0.0
    %3639 = vmatpush1.msra.mxu0 %v3621
    %3640 = vmatprep.subr.mxu0 0.0
    %3641 = vmatpush1.msra.mxu0 %v3622
    %3642 = vmatprep.subr.mxu0 0.0
    %3643 = vmatpush1.msra.mxu0 %v3623
    %3644 = vmatprep.subr.mxu0 0.0
    %3645 = vmatpush1.msra.mxu0 0.0
    %3646 = vmatprep.subr.mxu0 0.0
    %3647 = vmatpush1.msra.mxu0 0.0
    %3648 = vmatprep.subr.mxu0 0.0
    %3649 = vmatpush1.msra.mxu0 0.0
    %3650 = vmatprep.subr.mxu0 0.0
    %3651 = vmatpush1.msra.mxu0 0.0
    %3652 = vmatprep.subr.mxu0 0.0
    %3653 = vmatpush1.msra.mxu0 0.0
    %3654 = vmatprep.subr.mxu0 0.0
    %3655 = vmatpush1.msra.mxu0 0.0
    %3656 = vmatprep.subr.mxu0 0.0
    %3657 = vmatpush1.msra.mxu0 0.0
    %3658 = vmatprep.subr.mxu0 0.0
    %3659 = vmatpush1.msra.mxu0 0.0
    %3660 = vmatprep.subr.mxu0 0.0
    %3661 = vmatpush1.msra.mxu0 0.0
    %3662 = vmatprep.subr.mxu0 0.0
    %3663 = vmatpush1.msra.mxu0 0.0
    %3664 = vmatprep.subr.mxu0 0.0
    %3665 = vmatpush1.msra.mxu0 0.0
    %3666 = vmatprep.subr.mxu0 0.0
    %3667 = vmatpush1.msra.mxu0 0.0
    %3668 = vmatprep.subr.mxu0 0.0
    %3669 = vmatpush1.msra.mxu0 0.0
    %3670 = vmatprep.subr.mxu0 0.0
    %3671 = vmatpush1.msra.mxu0 0.0
    %3672 = vmatprep.subr.mxu0 0.0
    %3673 = vmatpush1.msra.mxu0 0.0
    %3674 = vmatprep.subr.mxu0 0.0
    %3675 = vmatpush1.msra.mxu0 0.0
    %3676 = vmatprep.subr.mxu0 0.0
    %3677 = vmatpush1.msra.mxu0 0.0
    %3678 = vmatprep.subr.mxu0 0.0
    %3679 = vmatpush1.msra.mxu0 0.0
    %3680 = vmatprep.subr.mxu0 0.0
    %3681 = vmatpush1.msra.mxu0 0.0
    %3682 = vmatprep.subr.mxu0 0.0
    %3683 = vmatpush1.msra.mxu0 0.0
    %3684 = vmatprep.subr.mxu0 0.0
    %3685 = vmatpush1.msra.mxu0 0.0
    %3686 = vmatprep.subr.mxu0 0.0
    %3687 = vmatpush1.msra.mxu0 0.0
    %3688 = vmatprep.subr.mxu0 0.0
    %3689 = vmatpush1.msra.mxu0 0.0
    %3690 = vmatprep.subr.mxu0 0.0
    %3691 = vmatpush1.msra.mxu0 0.0
    %3692 = vmatprep.subr.mxu0 0.0
    %3693 = vmatpush1.msra.mxu0 0.0
    %3694 = vmatprep.subr.mxu0 0.0
    %3695 = vmatpush1.msra.mxu0 0.0
    %3696 = vmatprep.subr.mxu0 0.0
    %3697 = vmatpush1.msra.mxu0 0.0
    %3698 = vmatprep.subr.mxu0 0.0
    %3699 = vmatpush1.msra.mxu0 0.0
    %3700 = vmatprep.mubr.f32.mxu0 0.0
    %3701 = vmatmul.mubr.f32.gmra.mrb[0].mxu0 %v3625
    %v3702 = vpop.f32.mrb[0].mxu0
    %v3703 = vadd.f32 0.0, %v3702
    %v3704 = vpop.f32.mrb[0].mxu0
    %3705 = vmatprep.mubr.f32.mxu0 0.0
    %3706 = vmatmul.mubr.f32.gmra.mrb[0].mxu0 %v3628
    %v3707 = vpop.f32.mrb[0].mxu0
    %v3708 = vadd.f32 0.0, %v3707
    %v3709 = vpop.f32.mrb[0].mxu0
    %3710 = vmatprep.mubr.f32.mxu0 0.0
    %3711 = vmatmul.mubr.f32.gmra.mrb[0].mxu0 %v3631
    %v3712 = vpop.f32.mrb[0].mxu0
    %v3713 = vadd.f32 0.0, %v3712
    %v3714 = vpop.f32.mrb[0].mxu0
    %3715 = vmatprep.mubr.f32.mxu0 0.0
    %3716 = vmatmul.mubr.f32.gmra.mrb[0].mxu0 %v3634
    %v3717 = vpop.f32.mrb[0].mxu0
    %v3718 = vadd.f32 0.0, %v3717
    %v3719 = vpop.f32.mrb[0].mxu0
    %3720 = vdwg.mxu0
    %s3721 = scalar_lea.vmem %s18, 32
    %v3722 = vld [vmem:[%s3721] sm:$0xff]
    %v3723 = vld [vmem:[%s3721 + $0x8] sm:$0xff]
    %v3724 = vld [vmem:[%s3721 + $0x10] sm:$0xff]
    %v3725 = vld [vmem:[%s3721 + $0x18] sm:$0xff]
    %s3726 = scalar_lea.vmem %s17, 1
    %v3727 = vld [vmem:[%s3726] sm:$0x1]
    %v3729 = vlaneseq
    %v3730 = vshrl.u32 %v3729, 7
    %v3731 = vsub.s32 0, %v3730
    %v3732 = vrot.slane %v3727, %v3731
    %3734 = vmatprep.subr.mxu0 0.0
    %3735 = vmatpush1.msra.mxu0 %v3722
    %3736 = vmatprep.subr.mxu0 0.0
    %3737 = vmatpush1.msra.mxu0 %v3723
    %3738 = vmatprep.subr.mxu0 0.0
    %3739 = vmatpush1.msra.mxu0 %v3724
    %3740 = vmatprep.subr.mxu0 0.0
    %3741 = vmatpush1.msra.mxu0 %v3725
    %3742 = vmatprep.subr.mxu0 0.0
    %3743 = vmatpush1.msra.mxu0 0.0
    %3744 = vmatprep.subr.mxu0 0.0
    %3745 = vmatpush1.msra.mxu0 0.0
    %3746 = vmatprep.subr.mxu0 0.0
    %3747 = vmatpush1.msra.mxu0 0.0
    %3748 = vmatprep.subr.mxu0 0.0
    %3749 = vmatpush1.msra.mxu0 0.0
    %3750 = vmatprep.subr.mxu0 0.0
    %3751 = vmatpush1.msra.mxu0 0.0
    %3752 = vmatprep.subr.mxu0 0.0
    %3753 = vmatpush1.msra.mxu0 0.0
    %3754 = vmatprep.subr.mxu0 0.0
    %3755 = vmatpush1.msra.mxu0 0.0
    %3756 = vmatprep.subr.mxu0 0.0
    %3757 = vmatpush1.msra.mxu0 0.0
    %3758 = vmatprep.subr.mxu0 0.0
    %3759 = vmatpush1.msra.mxu0 0.0
    %3760 = vmatprep.subr.mxu0 0.0
    %3761 = vmatpush1.msra.mxu0 0.0
    %3762 = vmatprep.subr.mxu0 0.0
    %3763 = vmatpush1.msra.mxu0 0.0
    %3764 = vmatprep.subr.mxu0 0.0
    %3765 = vmatpush1.msra.mxu0 0.0
    %3766 = vmatprep.subr.mxu0 0.0
    %3767 = vmatpush1.msra.mxu0 0.0
    %3768 = vmatprep.subr.mxu0 0.0
    %3769 = vmatpush1.msra.mxu0 0.0
    %3770 = vmatprep.subr.mxu0 0.0
    %3771 = vmatpush1.msra.mxu0 0.0
    %3772 = vmatprep.subr.mxu0 0.0
    %3773 = vmatpush1.msra.mxu0 0.0
    %3774 = vmatprep.subr.mxu0 0.0
    %3775 = vmatpush1.msra.mxu0 0.0
    %3776 = vmatprep.subr.mxu0 0.0
    %3777 = vmatpush1.msra.mxu0 0.0
    %3778 = vmatprep.subr.mxu0 0.0
    %3779 = vmatpush1.msra.mxu0 0.0
    %3780 = vmatprep.subr.mxu0 0.0
    %3781 = vmatpush1.msra.mxu0 0.0
    %3782 = vmatprep.subr.mxu0 0.0
    %3783 = vmatpush1.msra.mxu0 0.0
    %3784 = vmatprep.subr.mxu0 0.0
    %3785 = vmatpush1.msra.mxu0 0.0
    %3786 = vmatprep.subr.mxu0 0.0
    %3787 = vmatpush1.msra.mxu0 0.0
    %3788 = vmatprep.subr.mxu0 0.0
    %3789 = vmatpush1.msra.mxu0 0.0
    %3790 = vmatprep.subr.mxu0 0.0
    %3791 = vmatpush1.msra.mxu0 0.0
    %3792 = vmatprep.subr.mxu0 0.0
    %3793 = vmatpush1.msra.mxu0 0.0
    %3794 = vmatprep.subr.mxu0 0.0
    %3795 = vmatpush1.msra.mxu0 0.0
    %3796 = vmatprep.subr.mxu0 0.0
    %3797 = vmatpush1.msra.mxu0 0.0
    %3798 = vmatprep.mubr.f32.mxu0 0.0
    %3799 = vmatmul.mubr.f32.gmra.mrb[0].mxu0 %v3625
    %v3800 = vpop.f32.mrb[0].mxu0
    %v3801 = vadd.f32 %v3732, %v3800
    %v3802 = vpop.f32.mrb[0].mxu0
    %3803 = vmatprep.mubr.f32.mxu0 0.0
    %3804 = vmatmul.mubr.f32.gmra.mrb[0].mxu0 %v3628
    %v3805 = vpop.f32.mrb[0].mxu0
    %v3806 = vadd.f32 %v3732, %v3805
    %v3807 = vpop.f32.mrb[0].mxu0
    %3808 = vmatprep.mubr.f32.mxu0 0.0
    %3809 = vmatmul.mubr.f32.gmra.mrb[0].mxu0 %v3631
    %v3810 = vpop.f32.mrb[0].mxu0
    %v3811 = vadd.f32 %v3732, %v3810
    %v3812 = vpop.f32.mrb[0].mxu0
    %3813 = vmatprep.mubr.f32.mxu0 0.0
    %3814 = vmatmul.mubr.f32.gmra.mrb[0].mxu0 %v3634
    %v3815 = vpop.f32.mrb[0].mxu0
    %v3816 = vadd.f32 %v3732, %v3815
    %v3817 = vpop.f32.mrb[0].mxu0
    %3818 = vdwg.mxu0
    %3823 = vrot.lane.b32.xlu0 %v3801, 96
    %v3824 = vpop.permute.xlu0 %3823
    %3825 = vrot.lane.b32.xlu0 %v3806, 96
    %v3826 = vpop.permute.xlu0 %3825
    %3827 = vrot.lane.b32.xlu0 %v3811, 96
    %v3828 = vpop.permute.xlu0 %3827
    %3829 = vrot.lane.b32.xlu0 %v3816, 96
    %v3830 = vpop.permute.xlu0 %3829
    %v3831 = vsel %vm291, %v3801, 0
    %v3833 = vsel %vm291, %v3806, 0
    %v3835 = vsel %vm291, %v3811, 0
    %v3837 = vsel %vm291, %v3816, 0
    %v3839 = vsel %vm291, %v3824, 0
    %v3841 = vsel %vm291, %v3826, 0
    %v3843 = vsel %vm291, %v3828, 0
    %v3845 = vsel %vm291, %v3830, 0
    %3847 = vmatprep.subr.mxu0 0.0
    %3848 = vmatpush1.xpose.msra.mxu0 %v3839
    %3849 = vmatprep.subr.mxu0 0.0
    %3850 = vmatpush1.xpose.msra.mxu0 %v3841
    %3851 = vmatprep.subr.mxu0 0.0
    %3852 = vmatpush1.xpose.msra.mxu0 %v3843
    %3853 = vmatprep.subr.mxu0 0.0
    %3854 = vmatpush1.xpose.msra.mxu0 %v3845
    %3855 = vmatprep.subr.mxu0 0.0
    %3856 = vmatpush1.xpose.msra.mxu0 0.0
    %3857 = vmatprep.subr.mxu0 0.0
    %3858 = vmatpush1.xpose.msra.mxu0 0.0
    %3859 = vmatprep.subr.mxu0 0.0
    %3860 = vmatpush1.xpose.msra.mxu0 0.0
    %3861 = vmatprep.subr.mxu0 0.0
    %3862 = vmatpush1.xpose.msra.mxu0 0.0
    %3863 = vmatprep.subr.mxu0 0.0
    %3864 = vmatpush1.xpose.msra.mxu0 0.0
    %3865 = vmatprep.subr.mxu0 0.0
    %3866 = vmatpush1.xpose.msra.mxu0 0.0
    %3867 = vmatprep.subr.mxu0 0.0
    %3868 = vmatpush1.xpose.msra.mxu0 0.0
    %3869 = vmatprep.subr.mxu0 0.0
    %3870 = vmatpush1.xpose.msra.mxu0 0.0
    %3871 = vmatprep.subr.mxu0 0.0
    %3872 = vmatpush1.xpose.msra.mxu0 0.0
    %3873 = vmatprep.subr.mxu0 0.0
    %3874 = vmatpush1.xpose.msra.mxu0 0.0
    %3875 = vmatprep.subr.mxu0 0.0
    %3876 = vmatpush1.xpose.msra.mxu0 0.0
    %3877 = vmatprep.subr.mxu0 0.0
    %3878 = vmatpush1.xpose.msra.mxu0 0.0
    %3879 = vmatprep.subr.mxu0 0.0
    %3880 = vmatpush1.xpose.msra.mxu0 0.0
    %3881 = vmatprep.subr.mxu0 0.0
    %3882 = vmatpush1.xpose.msra.mxu0 0.0
    %3883 = vmatprep.subr.mxu0 0.0
    %3884 = vmatpush1.xpose.msra.mxu0 0.0
    %3885 = vmatprep.subr.mxu0 0.0
    %3886 = vmatpush1.xpose.msra.mxu0 0.0
    %3887 = vmatprep.subr.mxu0 0.0
    %3888 = vmatpush1.xpose.msra.mxu0 0.0
    %3889 = vmatprep.subr.mxu0 0.0
    %3890 = vmatpush1.xpose.msra.mxu0 0.0
    %3891 = vmatprep.subr.mxu0 0.0
    %3892 = vmatpush1.xpose.msra.mxu0 0.0
    %3893 = vmatprep.subr.mxu0 0.0
    %3894 = vmatpush1.xpose.msra.mxu0 0.0
    %3895 = vmatprep.subr.mxu0 0.0
    %3896 = vmatpush1.xpose.msra.mxu0 0.0
    %3897 = vmatprep.subr.mxu0 0.0
    %3898 = vmatpush1.xpose.msra.mxu0 0.0
    %3899 = vmatprep.subr.mxu0 0.0
    %3900 = vmatpush1.xpose.msra.mxu0 0.0
    %3901 = vmatprep.subr.mxu0 0.0
    %3902 = vmatpush1.xpose.msra.mxu0 0.0
    %3903 = vmatprep.subr.mxu0 0.0
    %3904 = vmatpush1.xpose.msra.mxu0 0.0
    %3905 = vmatprep.subr.mxu0 0.0
    %3906 = vmatpush1.xpose.msra.mxu0 0.0
    %3907 = vmatprep.subr.mxu0 0.0
    %3908 = vmatpush1.xpose.msra.mxu0 0.0
    %3909 = vmatprep.subr.mxu0 0.0
    %3910 = vmatpush1.xpose.msra.mxu0 0.0
    %3911 = vmatprep.mubr.f32.mxu0 0.0
    %3912 = vmatmul.mubr.f32.gmra.mrb[0].mxu0 %v3831
    %v3913 = vpop.f32.mrb[0].mxu0
    %v3914 = vadd.f32 %v401, %v3913
    %v3915 = vpop.f32.mrb[0].mxu0
    %3916 = vmatprep.mubr.f32.mxu0 0.0
    %3917 = vmatmul.mubr.f32.gmra.mrb[0].mxu0 %v3833
    %v3918 = vpop.f32.mrb[0].mxu0
    %v3919 = vadd.f32 %v402, %v3918
    %v3920 = vpop.f32.mrb[0].mxu0
    %3921 = vmatprep.mubr.f32.mxu0 0.0
    %3922 = vmatmul.mubr.f32.gmra.mrb[0].mxu0 %v3835
    %v3923 = vpop.f32.mrb[0].mxu0
    %v3924 = vadd.f32 %v403, %v3923
    %v3925 = vpop.f32.mrb[0].mxu0
    %3926 = vmatprep.mubr.f32.mxu0 0.0
    %3927 = vmatmul.mubr.f32.gmra.mrb[0].mxu0 %v3837
    %v3928 = vpop.f32.mrb[0].mxu0
    %v3929 = vadd.f32 %v404, %v3928
    %v3930 = vpop.f32.mrb[0].mxu0
    %3931 = vdwg.mxu0
    %v3932 = vsel %vm570, %v3914, -inf
    %3933 = vmax.xlane.f32.xlu0 %v3932
    %v3934 = vpop.xlane.xlu0 %3933
    %v3935 = vsel %vm570, %v3919, -inf
    %3936 = vmax.xlane.f32.xlu0 %v3935
    %v3937 = vpop.xlane.xlu0 %3936
    %v3938 = vsel %vm570, %v3924, -inf
    %3939 = vmax.xlane.f32.xlu0 %v3938
    %v3940 = vpop.xlane.xlu0 %3939
    %v3941 = vsel %vm570, %v3929, -inf
    %3942 = vmax.xlane.f32.xlu0 %v3941
    %v3943 = vpop.xlane.xlu0 %3942
    %v3944 = vsub.f32 %v3914, %v3934
    %v3945 = vsub.f32 %v3919, %v3937
    %v3946 = vsub.f32 %v3924, %v3940
    %v3947 = vsub.f32 %v3929, %v3943
    %v3948 = vmul.f32 %v3944, 1.442695
    %v3949 = vpow.pop %v3948
    %v3950 = vmul.f32 %v3945, 1.442695
    %v3951 = vpow.pop %v3950
    %v3952 = vmul.f32 %v3946, 1.442695
    %v3953 = vpow.pop %v3952
    %v3954 = vmul.f32 %v3947, 1.442695
    %v3955 = vpow.pop %v3954
    %v3956 = vsel %vm570, %v3949, 0.0
    %3957 = vadd.xlane.f32.xlu0 %v3956
    %v3958 = vpop.xlane.xlu0 %3957
    %v3959 = vsel %vm570, %v3951, 0.0
    %3960 = vadd.xlane.f32.xlu0 %v3959
    %v3961 = vpop.xlane.xlu0 %3960
    %v3962 = vsel %vm570, %v3953, 0.0
    %3963 = vadd.xlane.f32.xlu0 %v3962
    %v3964 = vpop.xlane.xlu0 %3963
    %v3965 = vsel %vm570, %v3955, 0.0
    %3966 = vadd.xlane.f32.xlu0 %v3965
    %v3967 = vpop.xlane.xlu0 %3966
    %v3968 = vrcp.pop %v3958
    %v3969 = vrcp.pop %v3961
    %v3970 = vrcp.pop %v3964
    %v3971 = vrcp.pop %v3967
    %v3972 = vmul.f32 %v3949, %v3968
    %v3973 = vmul.f32 %v3951, %v3969
    %v3974 = vmul.f32 %v3953, %v3970
    %v3975 = vmul.f32 %v3955, %v3971
    %3976 = vrot.lane.b32.xlu0 %v3801, 64
    %v3977 = vpop.permute.xlu0 %3976
    %3978 = vrot.lane.b32.xlu0 %v3806, 64
    %v3979 = vpop.permute.xlu0 %3978
    %3980 = vrot.lane.b32.xlu0 %v3811, 64
    %v3981 = vpop.permute.xlu0 %3980
    %3982 = vrot.lane.b32.xlu0 %v3816, 64
    %v3983 = vpop.permute.xlu0 %3982
    %v3989 = vsel %vm570, %v3972, 0
    %v3992 = vsel %vm570, %v3973, 0
    %v3995 = vsel %vm570, %v3974, 0
    %v3998 = vsel %vm570, %v3975, 0
    %4000 = vmatprep.subr.mxu0 0.0
    %4001 = vmatpush1.msra.mxu0 %v3977
    %4002 = vmatprep.subr.mxu0 0.0
    %4003 = vmatpush1.msra.mxu0 %v3979
    %4004 = vmatprep.subr.mxu0 0.0
    %4005 = vmatpush1.msra.mxu0 %v3981
    %4006 = vmatprep.subr.mxu0 0.0
    %4007 = vmatpush1.msra.mxu0 %v3983
    %4008 = vmatprep.subr.mxu0 0.0
    %4009 = vmatpush1.msra.mxu0 0.0
    %4010 = vmatprep.subr.mxu0 0.0
    %4011 = vmatpush1.msra.mxu0 0.0
    %4012 = vmatprep.subr.mxu0 0.0
    %4013 = vmatpush1.msra.mxu0 0.0
    %4014 = vmatprep.subr.mxu0 0.0
    %4015 = vmatpush1.msra.mxu0 0.0
    %4016 = vmatprep.subr.mxu0 0.0
    %4017 = vmatpush1.msra.mxu0 0.0
    %4018 = vmatprep.subr.mxu0 0.0
    %4019 = vmatpush1.msra.mxu0 0.0
    %4020 = vmatprep.subr.mxu0 0.0
    %4021 = vmatpush1.msra.mxu0 0.0
    %4022 = vmatprep.subr.mxu0 0.0
    %4023 = vmatpush1.msra.mxu0 0.0
    %4024 = vmatprep.subr.mxu0 0.0
    %4025 = vmatpush1.msra.mxu0 0.0
    %4026 = vmatprep.subr.mxu0 0.0
    %4027 = vmatpush1.msra.mxu0 0.0
    %4028 = vmatprep.subr.mxu0 0.0
    %4029 = vmatpush1.msra.mxu0 0.0
    %4030 = vmatprep.subr.mxu0 0.0
    %4031 = vmatpush1.msra.mxu0 0.0
    %4032 = vmatprep.subr.mxu0 0.0
    %4033 = vmatpush1.msra.mxu0 0.0
    %4034 = vmatprep.subr.mxu0 0.0
    %4035 = vmatpush1.msra.mxu0 0.0
    %4036 = vmatprep.subr.mxu0 0.0
    %4037 = vmatpush1.msra.mxu0 0.0
    %4038 = vmatprep.subr.mxu0 0.0
    %4039 = vmatpush1.msra.mxu0 0.0
    %4040 = vmatprep.subr.mxu0 0.0
    %4041 = vmatpush1.msra.mxu0 0.0
    %4042 = vmatprep.subr.mxu0 0.0
    %4043 = vmatpush1.msra.mxu0 0.0
    %4044 = vmatprep.subr.mxu0 0.0
    %4045 = vmatpush1.msra.mxu0 0.0
    %4046 = vmatprep.subr.mxu0 0.0
    %4047 = vmatpush1.msra.mxu0 0.0
    %4048 = vmatprep.subr.mxu0 0.0
    %4049 = vmatpush1.msra.mxu0 0.0
    %4050 = vmatprep.subr.mxu0 0.0
    %4051 = vmatpush1.msra.mxu0 0.0
    %4052 = vmatprep.subr.mxu0 0.0
    %4053 = vmatpush1.msra.mxu0 0.0
    %4054 = vmatprep.subr.mxu0 0.0
    %4055 = vmatpush1.msra.mxu0 0.0
    %4056 = vmatprep.subr.mxu0 0.0
    %4057 = vmatpush1.msra.mxu0 0.0
    %4058 = vmatprep.subr.mxu0 0.0
    %4059 = vmatpush1.msra.mxu0 0.0
    %4060 = vmatprep.subr.mxu0 0.0
    %4061 = vmatpush1.msra.mxu0 0.0
    %4062 = vmatprep.subr.mxu0 0.0
    %4063 = vmatpush1.msra.mxu0 0.0
    %4064 = vmatprep.mubr.f32.mxu0 0.0
    %4065 = vmatmul.mubr.f32.gmra.mrb[0].mxu0 %v3989
    %v4066 = vpop.f32.mrb[0].mxu0
    %v4067 = vadd.f32 0.0, %v4066
    %v4068 = vpop.f32.mrb[0].mxu0
    %4069 = vmatprep.mubr.f32.mxu0 0.0
    %4070 = vmatmul.mubr.f32.gmra.mrb[0].mxu0 %v3992
    %v4071 = vpop.f32.mrb[0].mxu0
    %v4072 = vadd.f32 0.0, %v4071
    %v4073 = vpop.f32.mrb[0].mxu0
    %4074 = vmatprep.mubr.f32.mxu0 0.0
    %4075 = vmatmul.mubr.f32.gmra.mrb[0].mxu0 %v3995
    %v4076 = vpop.f32.mrb[0].mxu0
    %v4077 = vadd.f32 0.0, %v4076
    %v4078 = vpop.f32.mrb[0].mxu0
    %4079 = vmatprep.mubr.f32.mxu0 0.0
    %4080 = vmatmul.mubr.f32.gmra.mrb[0].mxu0 %v3998
    %v4081 = vpop.f32.mrb[0].mxu0
    %v4082 = vadd.f32 0.0, %v4081
    %v4083 = vpop.f32.mrb[0].mxu0
    %4084 = vdwg.mxu0
    %4085 = vrot.lane.b32.xlu0 %v3801, 112
    %v4086 = vpop.permute.xlu0 %4085
    %4087 = vrot.lane.b32.xlu0 %v3806, 112
    %v4088 = vpop.permute.xlu0 %4087
    %4089 = vrot.lane.b32.xlu0 %v3811, 112
    %v4090 = vpop.permute.xlu0 %4089
    %4091 = vrot.lane.b32.xlu0 %v3816, 112
    %v4092 = vpop.permute.xlu0 %4091
    %4093 = vrot.lane.b32.xlu0 %v3801, 80
    %v4094 = vpop.permute.xlu0 %4093
    %4095 = vrot.lane.b32.xlu0 %v3806, 80
    %v4096 = vpop.permute.xlu0 %4095
    %4097 = vrot.lane.b32.xlu0 %v3811, 80
    %v4098 = vpop.permute.xlu0 %4097
    %4099 = vrot.lane.b32.xlu0 %v3816, 80
    %v4100 = vpop.permute.xlu0 %4099
    %v4101 = vsel %vm291, %v4086, 0
    %v4103 = vsel %vm291, %v4088, 0
    %v4105 = vsel %vm291, %v4090, 0
    %v4107 = vsel %vm291, %v4092, 0
    %v4109 = vsel %vm291, %v4094, 0
    %v4111 = vsel %vm291, %v4096, 0
    %v4113 = vsel %vm291, %v4098, 0
    %v4115 = vsel %vm291, %v4100, 0
    %4117 = vmatprep.subr.mxu0 0.0
    %4118 = vmatpush1.xpose.msra.mxu0 %v4109
    %4119 = vmatprep.subr.mxu0 0.0
    %4120 = vmatpush1.xpose.msra.mxu0 %v4111
    %4121 = vmatprep.subr.mxu0 0.0
    %4122 = vmatpush1.xpose.msra.mxu0 %v4113
    %4123 = vmatprep.subr.mxu0 0.0
    %4124 = vmatpush1.xpose.msra.mxu0 %v4115
    %4125 = vmatprep.subr.mxu0 0.0
    %4126 = vmatpush1.xpose.msra.mxu0 0.0
    %4127 = vmatprep.subr.mxu0 0.0
    %4128 = vmatpush1.xpose.msra.mxu0 0.0
    %4129 = vmatprep.subr.mxu0 0.0
    %4130 = vmatpush1.xpose.msra.mxu0 0.0
    %4131 = vmatprep.subr.mxu0 0.0
    %4132 = vmatpush1.xpose.msra.mxu0 0.0
    %4133 = vmatprep.subr.mxu0 0.0
    %4134 = vmatpush1.xpose.msra.mxu0 0.0
    %4135 = vmatprep.subr.mxu0 0.0
    %4136 = vmatpush1.xpose.msra.mxu0 0.0
    %4137 = vmatprep.subr.mxu0 0.0
    %4138 = vmatpush1.xpose.msra.mxu0 0.0
    %4139 = vmatprep.subr.mxu0 0.0
    %4140 = vmatpush1.xpose.msra.mxu0 0.0
    %4141 = vmatprep.subr.mxu0 0.0
    %4142 = vmatpush1.xpose.msra.mxu0 0.0
    %4143 = vmatprep.subr.mxu0 0.0
    %4144 = vmatpush1.xpose.msra.mxu0 0.0
    %4145 = vmatprep.subr.mxu0 0.0
    %4146 = vmatpush1.xpose.msra.mxu0 0.0
    %4147 = vmatprep.subr.mxu0 0.0
    %4148 = vmatpush1.xpose.msra.mxu0 0.0
    %4149 = vmatprep.subr.mxu0 0.0
    %4150 = vmatpush1.xpose.msra.mxu0 0.0
    %4151 = vmatprep.subr.mxu0 0.0
    %4152 = vmatpush1.xpose.msra.mxu0 0.0
    %4153 = vmatprep.subr.mxu0 0.0
    %4154 = vmatpush1.xpose.msra.mxu0 0.0
    %4155 = vmatprep.subr.mxu0 0.0
    %4156 = vmatpush1.xpose.msra.mxu0 0.0
    %4157 = vmatprep.subr.mxu0 0.0
    %4158 = vmatpush1.xpose.msra.mxu0 0.0
    %4159 = vmatprep.subr.mxu0 0.0
    %4160 = vmatpush1.xpose.msra.mxu0 0.0
    %4161 = vmatprep.subr.mxu0 0.0
    %4162 = vmatpush1.xpose.msra.mxu0 0.0
    %4163 = vmatprep.subr.mxu0 0.0
    %4164 = vmatpush1.xpose.msra.mxu0 0.0
    %4165 = vmatprep.subr.mxu0 0.0
    %4166 = vmatpush1.xpose.msra.mxu0 0.0
    %4167 = vmatprep.subr.mxu0 0.0
    %4168 = vmatpush1.xpose.msra.mxu0 0.0
    %4169 = vmatprep.subr.mxu0 0.0
    %4170 = vmatpush1.xpose.msra.mxu0 0.0
    %4171 = vmatprep.subr.mxu0 0.0
    %4172 = vmatpush1.xpose.msra.mxu0 0.0
    %4173 = vmatprep.subr.mxu0 0.0
    %4174 = vmatpush1.xpose.msra.mxu0 0.0
    %4175 = vmatprep.subr.mxu0 0.0
    %4176 = vmatpush1.xpose.msra.mxu0 0.0
    %4177 = vmatprep.subr.mxu0 0.0
    %4178 = vmatpush1.xpose.msra.mxu0 0.0
    %4179 = vmatprep.subr.mxu0 0.0
    %4180 = vmatpush1.xpose.msra.mxu0 0.0
    %4181 = vmatprep.mubr.f32.mxu0 0.0
    %4182 = vmatmul.mubr.f32.gmra.mrb[0].mxu0 %v4101
    %v4183 = vpop.f32.mrb[0].mxu0
    %v4184 = vadd.f32 %v401, %v4183
    %v4185 = vpop.f32.mrb[0].mxu0
    %4186 = vmatprep.mubr.f32.mxu0 0.0
    %4187 = vmatmul.mubr.f32.gmra.mrb[0].mxu0 %v4103
    %v4188 = vpop.f32.mrb[0].mxu0
    %v4189 = vadd.f32 %v402, %v4188
    %v4190 = vpop.f32.mrb[0].mxu0
    %4191 = vmatprep.mubr.f32.mxu0 0.0
    %4192 = vmatmul.mubr.f32.gmra.mrb[0].mxu0 %v4105
    %v4193 = vpop.f32.mrb[0].mxu0
    %v4194 = vadd.f32 %v403, %v4193
    %v4195 = vpop.f32.mrb[0].mxu0
    %4196 = vmatprep.mubr.f32.mxu0 0.0
    %4197 = vmatmul.mubr.f32.gmra.mrb[0].mxu0 %v4107
    %v4198 = vpop.f32.mrb[0].mxu0
    %v4199 = vadd.f32 %v404, %v4198
    %v4200 = vpop.f32.mrb[0].mxu0
    %4201 = vdwg.mxu0
    %v4202 = vsel %vm570, %v4184, -inf
    %4203 = vmax.xlane.f32.xlu0 %v4202
    %v4204 = vpop.xlane.xlu0 %4203
    %v4205 = vsel %vm570, %v4189, -inf
    %4206 = vmax.xlane.f32.xlu0 %v4205
    %v4207 = vpop.xlane.xlu0 %4206
    %v4208 = vsel %vm570, %v4194, -inf
    %4209 = vmax.xlane.f32.xlu0 %v4208
    %v4210 = vpop.xlane.xlu0 %4209
    %v4211 = vsel %vm570, %v4199, -inf
    %4212 = vmax.xlane.f32.xlu0 %v4211
    %v4213 = vpop.xlane.xlu0 %4212
    %v4214 = vsub.f32 %v4184, %v4204
    %v4215 = vsub.f32 %v4189, %v4207
    %v4216 = vsub.f32 %v4194, %v4210
    %v4217 = vsub.f32 %v4199, %v4213
    %v4218 = vmul.f32 %v4214, 1.442695
    %v4219 = vpow.pop %v4218
    %v4220 = vmul.f32 %v4215, 1.442695
    %v4221 = vpow.pop %v4220
    %v4222 = vmul.f32 %v4216, 1.442695
    %v4223 = vpow.pop %v4222
    %v4224 = vmul.f32 %v4217, 1.442695
    %v4225 = vpow.pop %v4224
    %v4226 = vsel %vm570, %v4219, 0.0
    %4227 = vadd.xlane.f32.xlu0 %v4226
    %v4228 = vpop.xlane.xlu0 %4227
    %v4229 = vsel %vm570, %v4221, 0.0
    %4230 = vadd.xlane.f32.xlu0 %v4229
    %v4231 = vpop.xlane.xlu0 %4230
    %v4232 = vsel %vm570, %v4223, 0.0
    %4233 = vadd.xlane.f32.xlu0 %v4232
    %v4234 = vpop.xlane.xlu0 %4233
    %v4235 = vsel %vm570, %v4225, 0.0
    %4236 = vadd.xlane.f32.xlu0 %v4235
    %v4237 = vpop.xlane.xlu0 %4236
    %v4238 = vrcp.pop %v4228
    %v4239 = vrcp.pop %v4231
    %v4240 = vrcp.pop %v4234
    %v4241 = vrcp.pop %v4237
    %v4242 = vmul.f32 %v4219, %v4238
    %v4243 = vmul.f32 %v4221, %v4239
    %v4244 = vmul.f32 %v4223, %v4240
    %v4245 = vmul.f32 %v4225, %v4241
    %4246 = vrot.lane.b32.xlu0 %v3801, 48
    %v4247 = vpop.permute.xlu0 %4246
    %4248 = vrot.lane.b32.xlu0 %v3806, 48
    %v4249 = vpop.permute.xlu0 %4248
    %4250 = vrot.lane.b32.xlu0 %v3811, 48
    %v4251 = vpop.permute.xlu0 %4250
    %4252 = vrot.lane.b32.xlu0 %v3816, 48
    %v4253 = vpop.permute.xlu0 %4252
    %v4259 = vsel %vm570, %v4242, 0
    %v4262 = vsel %vm570, %v4243, 0
    %v4265 = vsel %vm570, %v4244, 0
    %v4268 = vsel %vm570, %v4245, 0
    %4270 = vmatprep.subr.mxu0 0.0
    %4271 = vmatpush1.msra.mxu0 %v4247
    %4272 = vmatprep.subr.mxu0 0.0
    %4273 = vmatpush1.msra.mxu0 %v4249
    %4274 = vmatprep.subr.mxu0 0.0
    %4275 = vmatpush1.msra.mxu0 %v4251
    %4276 = vmatprep.subr.mxu0 0.0
    %4277 = vmatpush1.msra.mxu0 %v4253
    %4278 = vmatprep.subr.mxu0 0.0
    %4279 = vmatpush1.msra.mxu0 0.0
    %4280 = vmatprep.subr.mxu0 0.0
    %4281 = vmatpush1.msra.mxu0 0.0
    %4282 = vmatprep.subr.mxu0 0.0
    %4283 = vmatpush1.msra.mxu0 0.0
    %4284 = vmatprep.subr.mxu0 0.0
    %4285 = vmatpush1.msra.mxu0 0.0
    %4286 = vmatprep.subr.mxu0 0.0
    %4287 = vmatpush1.msra.mxu0 0.0
    %4288 = vmatprep.subr.mxu0 0.0
    %4289 = vmatpush1.msra.mxu0 0.0
    %4290 = vmatprep.subr.mxu0 0.0
    %4291 = vmatpush1.msra.mxu0 0.0
    %4292 = vmatprep.subr.mxu0 0.0
    %4293 = vmatpush1.msra.mxu0 0.0
    %4294 = vmatprep.subr.mxu0 0.0
    %4295 = vmatpush1.msra.mxu0 0.0
    %4296 = vmatprep.subr.mxu0 0.0
    %4297 = vmatpush1.msra.mxu0 0.0
    %4298 = vmatprep.subr.mxu0 0.0
    %4299 = vmatpush1.msra.mxu0 0.0
    %4300 = vmatprep.subr.mxu0 0.0
    %4301 = vmatpush1.msra.mxu0 0.0
    %4302 = vmatprep.subr.mxu0 0.0
    %4303 = vmatpush1.msra.mxu0 0.0
    %4304 = vmatprep.subr.mxu0 0.0
    %4305 = vmatpush1.msra.mxu0 0.0
    %4306 = vmatprep.subr.mxu0 0.0
    %4307 = vmatpush1.msra.mxu0 0.0
    %4308 = vmatprep.subr.mxu0 0.0
    %4309 = vmatpush1.msra.mxu0 0.0
    %4310 = vmatprep.subr.mxu0 0.0
    %4311 = vmatpush1.msra.mxu0 0.0
    %4312 = vmatprep.subr.mxu0 0.0
    %4313 = vmatpush1.msra.mxu0 0.0
    %4314 = vmatprep.subr.mxu0 0.0
    %4315 = vmatpush1.msra.mxu0 0.0
    %4316 = vmatprep.subr.mxu0 0.0
    %4317 = vmatpush1.msra.mxu0 0.0
    %4318 = vmatprep.subr.mxu0 0.0
    %4319 = vmatpush1.msra.mxu0 0.0
    %4320 = vmatprep.subr.mxu0 0.0
    %4321 = vmatpush1.msra.mxu0 0.0
    %4322 = vmatprep.subr.mxu0 0.0
    %4323 = vmatpush1.msra.mxu0 0.0
    %4324 = vmatprep.subr.mxu0 0.0
    %4325 = vmatpush1.msra.mxu0 0.0
    %4326 = vmatprep.subr.mxu0 0.0
    %4327 = vmatpush1.msra.mxu0 0.0
    %4328 = vmatprep.subr.mxu0 0.0
    %4329 = vmatpush1.msra.mxu0 0.0
    %4330 = vmatprep.subr.mxu0 0.0
    %4331 = vmatpush1.msra.mxu0 0.0
    %4332 = vmatprep.subr.mxu0 0.0
    %4333 = vmatpush1.msra.mxu0 0.0
    %4334 = vmatprep.mubr.f32.mxu0 0.0
    %4335 = vmatmul.mubr.f32.gmra.mrb[0].mxu0 %v4259
    %v4336 = vpop.f32.mrb[0].mxu0
    %v4337 = vadd.f32 0.0, %v4336
    %v4338 = vpop.f32.mrb[0].mxu0
    %4339 = vmatprep.mubr.f32.mxu0 0.0
    %4340 = vmatmul.mubr.f32.gmra.mrb[0].mxu0 %v4262
    %v4341 = vpop.f32.mrb[0].mxu0
    %v4342 = vadd.f32 0.0, %v4341
    %v4343 = vpop.f32.mrb[0].mxu0
    %4344 = vmatprep.mubr.f32.mxu0 0.0
    %4345 = vmatmul.mubr.f32.gmra.mrb[0].mxu0 %v4265
    %v4346 = vpop.f32.mrb[0].mxu0
    %v4347 = vadd.f32 0.0, %v4346
    %v4348 = vpop.f32.mrb[0].mxu0
    %4349 = vmatprep.mubr.f32.mxu0 0.0
    %4350 = vmatmul.mubr.f32.gmra.mrb[0].mxu0 %v4268
    %v4351 = vpop.f32.mrb[0].mxu0
    %v4352 = vadd.f32 0.0, %v4351
    %v4353 = vpop.f32.mrb[0].mxu0
    %4354 = vdwg.mxu0
    %4359 = vrot.lane.b32.xlu0 %v4337, 16
    %v4360 = vpop.permute.xlu0 %4359
    %4361 = vrot.lane.b32.xlu0 %v4342, 16
    %v4362 = vpop.permute.xlu0 %4361
    %4363 = vrot.lane.b32.xlu0 %v4347, 16
    %v4364 = vpop.permute.xlu0 %4363
    %4365 = vrot.lane.b32.xlu0 %v4352, 16
    %v4366 = vpop.permute.xlu0 %4365
    %v4371 = vsel %vm291, %v4067, %v4360
    %v4372 = vsel %vm291, %v4072, %v4362
    %v4373 = vsel %vm291, %v4077, %v4364
    %v4374 = vsel %vm291, %v4082, %v4366
    %s4375 = scalar_lea.vmem %s19, 32
    %v4376 = vld [vmem:[%s4375] sm:$0xff]
    %v4377 = vld [vmem:[%s4375 + $0x8] sm:$0xff]
    %v4378 = vld [vmem:[%s4375 + $0x10] sm:$0xff]
    %v4379 = vld [vmem:[%s4375 + $0x18] sm:$0xff]
    %s4380 = scalar_lea.vmem [#allocation2], 1
    %v4381 = vld [vmem:[%s4380] sm:$0x1]
    %v4383 = vlaneseq
    %v4384 = vshrl.u32 %v4383, 7
    %v4385 = vsub.s32 0, %v4384
    %v4386 = vrot.slane %v4381, %v4385
    %v4389 = vsel %vm570, %v4371, 0
    %v4392 = vsel %vm570, %v4372, 0
    %v4395 = vsel %vm570, %v4373, 0
    %v4398 = vsel %vm570, %v4374, 0
    %4400 = vmatprep.subr.mxu0 0.0
    %4401 = vmatpush1.msra.mxu0 %v4376
    %4402 = vmatprep.subr.mxu0 0.0
    %4403 = vmatpush1.msra.mxu0 %v4377
    %4404 = vmatprep.subr.mxu0 0.0
    %4405 = vmatpush1.msra.mxu0 %v4378
    %4406 = vmatprep.subr.mxu0 0.0
    %4407 = vmatpush1.msra.mxu0 %v4379
    %4408 = vmatprep.subr.mxu0 0.0
    %4409 = vmatpush1.msra.mxu0 0.0
    %4410 = vmatprep.subr.mxu0 0.0
    %4411 = vmatpush1.msra.mxu0 0.0
    %4412 = vmatprep.subr.mxu0 0.0
    %4413 = vmatpush1.msra.mxu0 0.0
    %4414 = vmatprep.subr.mxu0 0.0
    %4415 = vmatpush1.msra.mxu0 0.0
    %4416 = vmatprep.subr.mxu0 0.0
    %4417 = vmatpush1.msra.mxu0 0.0
    %4418 = vmatprep.subr.mxu0 0.0
    %4419 = vmatpush1.msra.mxu0 0.0
    %4420 = vmatprep.subr.mxu0 0.0
    %4421 = vmatpush1.msra.mxu0 0.0
    %4422 = vmatprep.subr.mxu0 0.0
    %4423 = vmatpush1.msra.mxu0 0.0
    %4424 = vmatprep.subr.mxu0 0.0
    %4425 = vmatpush1.msra.mxu0 0.0
    %4426 = vmatprep.subr.mxu0 0.0
    %4427 = vmatpush1.msra.mxu0 0.0
    %4428 = vmatprep.subr.mxu0 0.0
    %4429 = vmatpush1.msra.mxu0 0.0
    %4430 = vmatprep.subr.mxu0 0.0
    %4431 = vmatpush1.msra.mxu0 0.0
    %4432 = vmatprep.subr.mxu0 0.0
    %4433 = vmatpush1.msra.mxu0 0.0
    %4434 = vmatprep.subr.mxu0 0.0
    %4435 = vmatpush1.msra.mxu0 0.0
    %4436 = vmatprep.subr.mxu0 0.0
    %4437 = vmatpush1.msra.mxu0 0.0
    %4438 = vmatprep.subr.mxu0 0.0
    %4439 = vmatpush1.msra.mxu0 0.0
    %4440 = vmatprep.subr.mxu0 0.0
    %4441 = vmatpush1.msra.mxu0 0.0
    %4442 = vmatprep.subr.mxu0 0.0
    %4443 = vmatpush1.msra.mxu0 0.0
    %4444 = vmatprep.subr.mxu0 0.0
    %4445 = vmatpush1.msra.mxu0 0.0
    %4446 = vmatprep.subr.mxu0 0.0
    %4447 = vmatpush1.msra.mxu0 0.0
    %4448 = vmatprep.subr.mxu0 0.0
    %4449 = vmatpush1.msra.mxu0 0.0
    %4450 = vmatprep.subr.mxu0 0.0
    %4451 = vmatpush1.msra.mxu0 0.0
    %4452 = vmatprep.subr.mxu0 0.0
    %4453 = vmatpush1.msra.mxu0 0.0
    %4454 = vmatprep.subr.mxu0 0.0
    %4455 = vmatpush1.msra.mxu0 0.0
    %4456 = vmatprep.subr.mxu0 0.0
    %4457 = vmatpush1.msra.mxu0 0.0
    %4458 = vmatprep.subr.mxu0 0.0
    %4459 = vmatpush1.msra.mxu0 0.0
    %4460 = vmatprep.subr.mxu0 0.0
    %4461 = vmatpush1.msra.mxu0 0.0
    %4462 = vmatprep.subr.mxu0 0.0
    %4463 = vmatpush1.msra.mxu0 0.0
    %4464 = vmatprep.mubr.f32.mxu0 0.0
    %4465 = vmatmul.mubr.f32.gmra.mrb[0].mxu0 %v4389
    %v4466 = vpop.f32.mrb[0].mxu0
    %v4467 = vadd.f32 %v4386, %v4466
    %v4468 = vpop.f32.mrb[0].mxu0
    %4469 = vmatprep.mubr.f32.mxu0 0.0
    %4470 = vmatmul.mubr.f32.gmra.mrb[0].mxu0 %v4392
    %v4471 = vpop.f32.mrb[0].mxu0
    %v4472 = vadd.f32 %v4386, %v4471
    %v4473 = vpop.f32.mrb[0].mxu0
    %4474 = vmatprep.mubr.f32.mxu0 0.0
    %4475 = vmatmul.mubr.f32.gmra.mrb[0].mxu0 %v4395
    %v4476 = vpop.f32.mrb[0].mxu0
    %v4477 = vadd.f32 %v4386, %v4476
    %v4478 = vpop.f32.mrb[0].mxu0
    %4479 = vmatprep.mubr.f32.mxu0 0.0
    %4480 = vmatmul.mubr.f32.gmra.mrb[0].mxu0 %v4398
    %v4481 = vpop.f32.mrb[0].mxu0
    %v4482 = vadd.f32 %v4386, %v4481
    %v4483 = vpop.f32.mrb[0].mxu0
    %4484 = vdwg.mxu0
    %v4485 = vadd.f32 %v4467, %v3615
    %v4486 = vadd.f32 %v4472, %v3616
    %v4487 = vadd.f32 %v4477, %v3617
    %v4488 = vadd.f32 %v4482, %v3618
    %s4489 = scalar_lea.vmem %s13, 1
    %v4490 = vld [vmem:[%s4489] sm:$0x1]
    %s4491 = scalar_lea.vmem [#allocation9], 1
    %v4492 = vld [vmem:[%s4491] sm:$0x1]
    %v4493 = vsel %vm570, %v4485, 0.0
    %4494 = vadd.xlane.f32.xlu0 %v4493
    %v4495 = vpop.xlane.xlu0 %4494
    %v4496 = vsel %vm570, %v4486, 0.0
    %4497 = vadd.xlane.f32.xlu0 %v4496
    %v4498 = vpop.xlane.xlu0 %4497
    %v4499 = vsel %vm570, %v4487, 0.0
    %4500 = vadd.xlane.f32.xlu0 %v4499
    %v4501 = vpop.xlane.xlu0 %4500
    %v4502 = vsel %vm570, %v4488, 0.0
    %4503 = vadd.xlane.f32.xlu0 %v4502
    %v4504 = vpop.xlane.xlu0 %4503
    %v4505 = vmul.f32 %v4495, %v2786
    %v4506 = vmul.f32 %v4498, %v2786
    %v4507 = vmul.f32 %v4501, %v2786
    %v4508 = vmul.f32 %v4504, %v2786
    %v4509 = vsub.f32 %v4485, %v4505
    %v4510 = vsub.f32 %v4486, %v4506
    %v4511 = vsub.f32 %v4487, %v4507
    %v4512 = vsub.f32 %v4488, %v4508
    %v4513 = vmul.f32 %v4509, %v4509
    %v4514 = vmul.f32 %v4510, %v4510
    %v4515 = vmul.f32 %v4511, %v4511
    %v4516 = vmul.f32 %v4512, %v4512
    %v4517 = vsel %vm570, %v4513, 0.0
    %4518 = vadd.xlane.f32.xlu0 %v4517
    %v4519 = vpop.xlane.xlu0 %4518
    %v4520 = vsel %vm570, %v4514, 0.0
    %4521 = vadd.xlane.f32.xlu0 %v4520
    %v4522 = vpop.xlane.xlu0 %4521
    %v4523 = vsel %vm570, %v4515, 0.0
    %4524 = vadd.xlane.f32.xlu0 %v4523
    %v4525 = vpop.xlane.xlu0 %4524
    %v4526 = vsel %vm570, %v4516, 0.0
    %4527 = vadd.xlane.f32.xlu0 %v4526
    %v4528 = vpop.xlane.xlu0 %4527
    %v4529 = vmul.f32 %v4519, %v2786
    %v4530 = vmul.f32 %v4522, %v2786
    %v4531 = vmul.f32 %v4525, %v2786
    %v4532 = vmul.f32 %v4528, %v2786
    %v4533 = vadd.f32 %v4529, 1e-05
    %v4534 = vadd.f32 %v4530, 1e-05
    %v4535 = vadd.f32 %v4531, 1e-05
    %v4536 = vadd.f32 %v4532, 1e-05
    %v4537 = vrsqrt.pop %v4533
    %v4538 = vrsqrt.pop %v4534
    %v4539 = vrsqrt.pop %v4535
    %v4540 = vrsqrt.pop %v4536
    %v4541 = vmul.f32 %v4509, %v4537
    %v4542 = vmul.f32 %v4510, %v4538
    %v4543 = vmul.f32 %v4511, %v4539
    %v4544 = vmul.f32 %v4512, %v4540
    %v4546 = vlaneseq
    %v4547 = vshrl.u32 %v4546, 7
    %v4548 = vsub.s32 0, %v4547
    %v4549 = vrot.slane %v4490, %v4548
    %v4551 = vmul.f32 %v4541, %v4549
    %v4552 = vmul.f32 %v4542, %v4549
    %v4553 = vmul.f32 %v4543, %v4549
    %v4554 = vmul.f32 %v4544, %v4549
    %v4556 = vlaneseq
    %v4557 = vshrl.u32 %v4556, 7
    %v4558 = vsub.s32 0, %v4557
    %v4559 = vrot.slane %v4492, %v4558
    %v4561 = vadd.f32 %v4551, %v4559
    %v4562 = vadd.f32 %v4552, %v4559
    %v4563 = vadd.f32 %v4553, %v4559
    %v4564 = vadd.f32 %v4554, %v4559
    %s4565 = scalar_lea.vmem %s10, 288
    %v4566 = vld [vmem:[%s4565] sm:$0xff]
    %v4567 = vld [vmem:[%s4565 + $0x8] sm:$0xff]
    %v4568 = vld [vmem:[%s4565 + $0x10] sm:$0xff]
    %v4569 = vld [vmem:[%s4565 + $0x18] sm:$0xff]
    %v4570 = vld [vmem:[%s4565 + $0x20] sm:$0xff]
    %v4571 = vld [vmem:[%s4565 + $0x28] sm:$0xff]
    %v4572 = vld [vmem:[%s4565 + $0x30] sm:$0xff]
    %v4573 = vld [vmem:[%s4565 + $0x38] sm:$0xff]
    %v4574 = vld [vmem:[%s4565 + $0x40] sm:$0xff]
    %v4575 = vld [vmem:[%s4565 + $0x48] sm:$0xff]
    %v4576 = vld [vmem:[%s4565 + $0x50] sm:$0xff]
    %v4577 = vld [vmem:[%s4565 + $0x58] sm:$0xff]
    %v4578 = vld [vmem:[%s4565 + $0x60] sm:$0xff]
    %v4579 = vld [vmem:[%s4565 + $0x68] sm:$0xff]
    %v4580 = vld [vmem:[%s4565 + $0x70] sm:$0xff]
    %v4581 = vld [vmem:[%s4565 + $0x78] sm:$0xff]
    %v4582 = vld [vmem:[%s4565 + $0x80] sm:$0xff]
    %v4583 = vld [vmem:[%s4565 + $0x88] sm:$0xff]
    %v4584 = vld [vmem:[%s4565 + $0x90] sm:$0xff]
    %v4585 = vld [vmem:[%s4565 + $0x98] sm:$0xff]
    %v4586 = vld [vmem:[%s4565 + $0xa0] sm:$0xff]
    %v4587 = vld [vmem:[%s4565 + $0xa8] sm:$0xff]
    %v4588 = vld [vmem:[%s4565 + $0xb0] sm:$0xff]
    %v4589 = vld [vmem:[%s4565 + $0xb8] sm:$0xff]
    %v4590 = vld [vmem:[%s4565 + $0xc0] sm:$0xff]
    %v4591 = vld [vmem:[%s4565 + $0xc8] sm:$0xff]
    %v4592 = vld [vmem:[%s4565 + $0xd0] sm:$0xff]
    %v4593 = vld [vmem:[%s4565 + $0xd8] sm:$0xff]
    %v4594 = vld [vmem:[%s4565 + $0xe0] sm:$0xff]
    %v4595 = vld [vmem:[%s4565 + $0xe8] sm:$0xff]
    %v4596 = vld [vmem:[%s4565 + $0xf0] sm:$0xff]
    %v4597 = vld [vmem:[%s4565 + $0xf8] sm:$0xff]
    %v4598 = vld [vmem:[%s4565 + $0x100] sm:$0xff]
    %v4599 = vld [vmem:[%s4565 + $0x108] sm:$0xff]
    %v4600 = vld [vmem:[%s4565 + $0x110] sm:$0xff]
    %v4601 = vld [vmem:[%s4565 + $0x118] sm:$0xff]
    %s4602 = scalar_lea.vmem [#allocation6], 1
    %v4603 = vld [vmem:[%s4602] sm:$0x1]
    %v4604 = vrot.slane %v4561, 4
    %v4605 = vrot.slane %v4562, 4
    %v4606 = vrot.slane %v4563, 4
    %v4607 = vrot.slane %v4564, 4
    %v4608 = vsel %vm2888, %v4606, %v4607
    %v4609 = vsel %vm2888, %v4605, %v4606
    %v4610 = vsel %vm2888, %v4604, %v4605
    %v4611 = vsel %vm2888, %v4607, %v4604
    %v4612 = vsel %vm2913, %v4611, 0.0
    %v4613 = vsel %vm2914, %v4610, 0.0
    %v4614 = vsel %vm2915, %v4609, 0.0
    %v4615 = vsel %vm2916, %v4608, 0.0
    %v4616 = vrot.slane %v4561, 5
    %v4617 = vrot.slane %v4562, 5
    %v4618 = vrot.slane %v4563, 5
    %v4619 = vrot.slane %v4564, 5
    %v4620 = vsel %vm2925, %v4618, %v4619
    %v4621 = vsel %vm2925, %v4617, %v4618
    %v4622 = vsel %vm2925, %v4616, %v4617
    %v4623 = vsel %vm2925, %v4619, %v4616
    %v4624 = vsel %vm2950, %v4623, 0.0
    %v4625 = vsel %vm2951, %v4622, 0.0
    %v4626 = vsel %vm2952, %v4621, 0.0
    %v4627 = vsel %vm2953, %v4620, 0.0
    %v4628 = vrot.slane %v4561, 6
    %v4629 = vrot.slane %v4562, 6
    %v4630 = vrot.slane %v4563, 6
    %v4631 = vrot.slane %v4564, 6
    %v4632 = vsel %vm2962, %v4630, %v4631
    %v4633 = vsel %vm2962, %v4629, %v4630
    %v4634 = vsel %vm2962, %v4628, %v4629
    %v4635 = vsel %vm2962, %v4631, %v4628
    %v4636 = vsel %vm2987, %v4635, 0.0
    %v4637 = vsel %vm2988, %v4634, 0.0
    %v4638 = vsel %vm2989, %v4633, 0.0
    %v4639 = vsel %vm2990, %v4632, 0.0
    %v4640 = vrot.slane %v4561, 7
    %v4641 = vrot.slane %v4562, 7
    %v4642 = vrot.slane %v4563, 7
    %v4643 = vrot.slane %v4564, 7
    %v4644 = vsel %vm518, %v4642, %v4643
    %v4645 = vsel %vm518, %v4641, %v4642
    %v4646 = vsel %vm518, %v4640, %v4641
    %v4647 = vsel %vm518, %v4643, %v4640
    %v4648 = vsel %vm1700, %v4647, 0.0
    %v4649 = vsel %vm1701, %v4646, 0.0
    %v4650 = vsel %vm1702, %v4645, 0.0
    %v4651 = vsel %vm1703, %v4644, 0.0
    %v4652 = vrot.slane %v4561, 1
    %v4653 = vrot.slane %v4562, 1
    %v4654 = vrot.slane %v4563, 1
    %v4655 = vrot.slane %v4564, 1
    %v4656 = vsel %vm537, %v4654, %v4655
    %v4657 = vsel %vm537, %v4653, %v4654
    %v4658 = vsel %vm537, %v4652, %v4653
    %v4659 = vsel %vm537, %v4655, %v4652
    %v4660 = vsel %vm1736, %v4658, 0.0
    %v4661 = vsel %vm1737, %v4657, 0.0
    %v4662 = vsel %vm1738, %v4656, 0.0
    %v4663 = vsel %vm1739, %v4659, 0.0
    %v4664 = vrot.slane %v4561, 2
    %v4665 = vrot.slane %v4562, 2
    %v4666 = vrot.slane %v4563, 2
    %v4667 = vrot.slane %v4564, 2
    %v4668 = vsel %vm3023, %v4666, %v4667
    %v4669 = vsel %vm3023, %v4665, %v4666
    %v4670 = vsel %vm3023, %v4664, %v4665
    %v4671 = vsel %vm3023, %v4667, %v4664
    %v4672 = vsel %vm3048, %v4670, 0.0
    %v4673 = vsel %vm3049, %v4669, 0.0
    %v4674 = vsel %vm3050, %v4668, 0.0
    %v4675 = vsel %vm3051, %v4671, 0.0
    %v4676 = vrot.slane %v4561, 3
    %v4677 = vrot.slane %v4562, 3
    %v4678 = vrot.slane %v4563, 3
    %v4679 = vrot.slane %v4564, 3
    %v4680 = vsel %vm3060, %v4678, %v4679
    %v4681 = vsel %vm3060, %v4677, %v4678
    %v4682 = vsel %vm3060, %v4676, %v4677
    %v4683 = vsel %vm3060, %v4679, %v4676
    %v4684 = vsel %vm3085, %v4682, 0.0
    %v4685 = vsel %vm3086, %v4681, 0.0
    %v4686 = vsel %vm3087, %v4680, 0.0
    %v4687 = vsel %vm3088, %v4683, 0.0
    %v4688 = vsel %vm3113, %v4610, 0.0
    %v4689 = vsel %vm3114, %v4609, 0.0
    %v4690 = vsel %vm3115, %v4608, 0.0
    %v4691 = vsel %vm3116, %v4611, 0.0
    %4696 = vrot.lane.b32.xlu0 %v4624, 32
    %v4697 = vpop.permute.xlu0 %4696
    %4698 = vrot.lane.b32.xlu0 %v4625, 32
    %v4699 = vpop.permute.xlu0 %4698
    %4700 = vrot.lane.b32.xlu0 %v4626, 32
    %v4701 = vpop.permute.xlu0 %4700
    %4702 = vrot.lane.b32.xlu0 %v4627, 32
    %v4703 = vpop.permute.xlu0 %4702
    %4712 = vrot.lane.b32.xlu0 %v4636, 64
    %v4713 = vpop.permute.xlu0 %4712
    %4714 = vrot.lane.b32.xlu0 %v4637, 64
    %v4715 = vpop.permute.xlu0 %4714
    %4716 = vrot.lane.b32.xlu0 %v4638, 64
    %v4717 = vpop.permute.xlu0 %4716
    %4718 = vrot.lane.b32.xlu0 %v4639, 64
    %v4719 = vpop.permute.xlu0 %4718
    %4728 = vrot.lane.b32.xlu0 %v4648, 96
    %v4729 = vpop.permute.xlu0 %4728
    %4730 = vrot.lane.b32.xlu0 %v4649, 96
    %v4731 = vpop.permute.xlu0 %4730
    %4732 = vrot.lane.b32.xlu0 %v4650, 96
    %v4733 = vpop.permute.xlu0 %4732
    %4734 = vrot.lane.b32.xlu0 %v4651, 96
    %v4735 = vpop.permute.xlu0 %4734
    %4744 = vrot.lane.b32.xlu0 %v4660, 32
    %v4745 = vpop.permute.xlu0 %4744
    %4746 = vrot.lane.b32.xlu0 %v4661, 32
    %v4747 = vpop.permute.xlu0 %4746
    %4748 = vrot.lane.b32.xlu0 %v4662, 32
    %v4749 = vpop.permute.xlu0 %4748
    %4750 = vrot.lane.b32.xlu0 %v4663, 32
    %v4751 = vpop.permute.xlu0 %4750
    %4760 = vrot.lane.b32.xlu0 %v4672, 64
    %v4761 = vpop.permute.xlu0 %4760
    %4762 = vrot.lane.b32.xlu0 %v4673, 64
    %v4763 = vpop.permute.xlu0 %4762
    %4764 = vrot.lane.b32.xlu0 %v4674, 64
    %v4765 = vpop.permute.xlu0 %4764
    %4766 = vrot.lane.b32.xlu0 %v4675, 64
    %v4767 = vpop.permute.xlu0 %4766
    %4776 = vrot.lane.b32.xlu0 %v4684, 96
    %v4777 = vpop.permute.xlu0 %4776
    %4778 = vrot.lane.b32.xlu0 %v4685, 96
    %v4779 = vpop.permute.xlu0 %4778
    %4780 = vrot.lane.b32.xlu0 %v4686, 96
    %v4781 = vpop.permute.xlu0 %4780
    %4782 = vrot.lane.b32.xlu0 %v4687, 96
    %v4783 = vpop.permute.xlu0 %4782
    %v4788 = vsel %vm570, %v4612, %v4697
    %v4789 = vsel %vm570, %v4613, %v4699
    %v4790 = vsel %vm570, %v4614, %v4701
    %v4791 = vsel %vm570, %v4615, %v4703
    %v4792 = vsel %vm573, %v4788, %v4713
    %v4793 = vsel %vm573, %v4789, %v4715
    %v4794 = vsel %vm573, %v4790, %v4717
    %v4795 = vsel %vm573, %v4791, %v4719
    %v4796 = vsel %vm582, %v4792, %v4729
    %v4797 = vsel %vm582, %v4793, %v4731
    %v4798 = vsel %vm582, %v4794, %v4733
    %v4799 = vsel %vm582, %v4795, %v4735
    %v4800 = vsel %vm570, %v4561, %v4745
    %v4801 = vsel %vm570, %v4562, %v4747
    %v4802 = vsel %vm570, %v4563, %v4749
    %v4803 = vsel %vm570, %v4564, %v4751
    %v4804 = vsel %vm573, %v4800, %v4761
    %v4805 = vsel %vm573, %v4801, %v4763
    %v4806 = vsel %vm573, %v4802, %v4765
    %v4807 = vsel %vm573, %v4803, %v4767
    %v4808 = vsel %vm582, %v4804, %v4777
    %v4809 = vsel %vm582, %v4805, %v4779
    %v4810 = vsel %vm582, %v4806, %v4781
    %v4811 = vsel %vm582, %v4807, %v4783
    %v4813 = vlaneseq
    %v4814 = vshrl.u32 %v4813, 7
    %v4815 = vsub.s32 0, %v4814
    %v4816 = vrot.slane %v4603, %v4815
    %v4819 = vsel %vm570, %v4688, 0
    %v4822 = vsel %vm570, %v4689, 0
    %v4825 = vsel %vm570, %v4690, 0
    %v4828 = vsel %vm570, %v4691, 0
    %4830 = vmatprep.subr.mxu0 0.0
    %4831 = vmatpush1.msra.mxu0 %v4566
    %4832 = vmatprep.subr.mxu0 0.0
    %4833 = vmatpush1.msra.mxu0 %v4567
    %4834 = vmatprep.subr.mxu0 0.0
    %4835 = vmatpush1.msra.mxu0 %v4568
    %4836 = vmatprep.subr.mxu0 0.0
    %4837 = vmatpush1.msra.mxu0 %v4569
    %4838 = vmatprep.subr.mxu0 0.0
    %4839 = vmatpush1.msra.mxu0 %v4570
    %4840 = vmatprep.subr.mxu0 0.0
    %4841 = vmatpush1.msra.mxu0 %v4571
    %4842 = vmatprep.subr.mxu0 0.0
    %4843 = vmatpush1.msra.mxu0 %v4572
    %4844 = vmatprep.subr.mxu0 0.0
    %4845 = vmatpush1.msra.mxu0 %v4573
    %4846 = vmatprep.subr.mxu0 0.0
    %4847 = vmatpush1.msra.mxu0 %v4574
    %4848 = vmatprep.subr.mxu0 0.0
    %4849 = vmatpush1.msra.mxu0 %v4575
    %4850 = vmatprep.subr.mxu0 0.0
    %4851 = vmatpush1.msra.mxu0 %v4576
    %4852 = vmatprep.subr.mxu0 0.0
    %4853 = vmatpush1.msra.mxu0 %v4577
    %4854 = vmatprep.subr.mxu0 0.0
    %4855 = vmatpush1.msra.mxu0 %v4578
    %4856 = vmatprep.subr.mxu0 0.0
    %4857 = vmatpush1.msra.mxu0 %v4579
    %4858 = vmatprep.subr.mxu0 0.0
    %4859 = vmatpush1.msra.mxu0 %v4580
    %4860 = vmatprep.subr.mxu0 0.0
    %4861 = vmatpush1.msra.mxu0 %v4581
    %4862 = vmatprep.subr.mxu0 0.0
    %4863 = vmatpush1.msra.mxu0 %v4582
    %4864 = vmatprep.subr.mxu0 0.0
    %4865 = vmatpush1.msra.mxu0 %v4583
    %4866 = vmatprep.subr.mxu0 0.0
    %4867 = vmatpush1.msra.mxu0 %v4584
    %4868 = vmatprep.subr.mxu0 0.0
    %4869 = vmatpush1.msra.mxu0 %v4585
    %4870 = vmatprep.subr.mxu0 0.0
    %4871 = vmatpush1.msra.mxu0 %v4586
    %4872 = vmatprep.subr.mxu0 0.0
    %4873 = vmatpush1.msra.mxu0 %v4587
    %4874 = vmatprep.subr.mxu0 0.0
    %4875 = vmatpush1.msra.mxu0 %v4588
    %4876 = vmatprep.subr.mxu0 0.0
    %4877 = vmatpush1.msra.mxu0 %v4589
    %4878 = vmatprep.subr.mxu0 0.0
    %4879 = vmatpush1.msra.mxu0 %v4590
    %4880 = vmatprep.subr.mxu0 0.0
    %4881 = vmatpush1.msra.mxu0 %v4591
    %4882 = vmatprep.subr.mxu0 0.0
    %4883 = vmatpush1.msra.mxu0 %v4592
    %4884 = vmatprep.subr.mxu0 0.0
    %4885 = vmatpush1.msra.mxu0 %v4593
    %4886 = vmatprep.subr.mxu0 0.0
    %4887 = vmatpush1.msra.mxu0 %v4594
    %4888 = vmatprep.subr.mxu0 0.0
    %4889 = vmatpush1.msra.mxu0 %v4595
    %4890 = vmatprep.subr.mxu0 0.0
    %4891 = vmatpush1.msra.mxu0 %v4596
    %4892 = vmatprep.subr.mxu0 0.0
    %4893 = vmatpush1.msra.mxu0 %v4597
    %4894 = vmatprep.mubr.f32.mxu0 %v4808
    %4895 = vmatmul.mubr.f32.gmra.mrb[0].mxu0 %v4796
    %v4896 = vpop.f32.mrb[0].mxu0
    %v4897 = vadd.f32 %v4816, %v4896
    %v4898 = vpop.f32.mrb[0].mxu0
    %4899 = vmatprep.mubr.f32.mxu0 %v4809
    %4900 = vmatmul.mubr.f32.gmra.mrb[0].mxu0 %v4797
    %v4901 = vpop.f32.mrb[0].mxu0
    %v4902 = vadd.f32 %v4816, %v4901
    %v4903 = vpop.f32.mrb[0].mxu0
    %4904 = vmatprep.mubr.f32.mxu0 %v4810
    %4905 = vmatmul.mubr.f32.gmra.mrb[0].mxu0 %v4798
    %v4906 = vpop.f32.mrb[0].mxu0
    %v4907 = vadd.f32 %v4816, %v4906
    %v4908 = vpop.f32.mrb[0].mxu0
    %4909 = vmatprep.mubr.f32.mxu0 %v4811
    %4910 = vmatmul.mubr.f32.gmra.mrb[0].mxu0 %v4799
    %v4911 = vpop.f32.mrb[0].mxu0
    %v4912 = vadd.f32 %v4816, %v4911
    %v4913 = vpop.f32.mrb[0].mxu0
    %4914 = vdwg.mxu0
    %4915 = vmatprep.subr.mxu0 0.0
    %4916 = vmatpush1.msra.mxu0 %v4598
    %4917 = vmatprep.subr.mxu0 0.0
    %4918 = vmatpush1.msra.mxu0 %v4599
    %4919 = vmatprep.subr.mxu0 0.0
    %4920 = vmatpush1.msra.mxu0 %v4600
    %4921 = vmatprep.subr.mxu0 0.0
    %4922 = vmatpush1.msra.mxu0 %v4601
    %4923 = vmatprep.subr.mxu0 0.0
    %4924 = vmatpush1.msra.mxu0 0.0
    %4925 = vmatprep.subr.mxu0 0.0
    %4926 = vmatpush1.msra.mxu0 0.0
    %4927 = vmatprep.subr.mxu0 0.0
    %4928 = vmatpush1.msra.mxu0 0.0
    %4929 = vmatprep.subr.mxu0 0.0
    %4930 = vmatpush1.msra.mxu0 0.0
    %4931 = vmatprep.subr.mxu0 0.0
    %4932 = vmatpush1.msra.mxu0 0.0
    %4933 = vmatprep.subr.mxu0 0.0
    %4934 = vmatpush1.msra.mxu0 0.0
    %4935 = vmatprep.subr.mxu0 0.0
    %4936 = vmatpush1.msra.mxu0 0.0
    %4937 = vmatprep.subr.mxu0 0.0
    %4938 = vmatpush1.msra.mxu0 0.0
    %4939 = vmatprep.subr.mxu0 0.0
    %4940 = vmatpush1.msra.mxu0 0.0
    %4941 = vmatprep.subr.mxu0 0.0
    %4942 = vmatpush1.msra.mxu0 0.0
    %4943 = vmatprep.subr.mxu0 0.0
    %4944 = vmatpush1.msra.mxu0 0.0
    %4945 = vmatprep.subr.mxu0 0.0
    %4946 = vmatpush1.msra.mxu0 0.0
    %4947 = vmatprep.subr.mxu0 0.0
    %4948 = vmatpush1.msra.mxu0 0.0
    %4949 = vmatprep.subr.mxu0 0.0
    %4950 = vmatpush1.msra.mxu0 0.0
    %4951 = vmatprep.subr.mxu0 0.0
    %4952 = vmatpush1.msra.mxu0 0.0
    %4953 = vmatprep.subr.mxu0 0.0
    %4954 = vmatpush1.msra.mxu0 0.0
    %4955 = vmatprep.subr.mxu0 0.0
    %4956 = vmatpush1.msra.mxu0 0.0
    %4957 = vmatprep.subr.mxu0 0.0
    %4958 = vmatpush1.msra.mxu0 0.0
    %4959 = vmatprep.subr.mxu0 0.0
    %4960 = vmatpush1.msra.mxu0 0.0
    %4961 = vmatprep.subr.mxu0 0.0
    %4962 = vmatpush1.msra.mxu0 0.0
    %4963 = vmatprep.subr.mxu0 0.0
    %4964 = vmatpush1.msra.mxu0 0.0
    %4965 = vmatprep.subr.mxu0 0.0
    %4966 = vmatpush1.msra.mxu0 0.0
    %4967 = vmatprep.subr.mxu0 0.0
    %4968 = vmatpush1.msra.mxu0 0.0
    %4969 = vmatprep.subr.mxu0 0.0
    %4970 = vmatpush1.msra.mxu0 0.0
    %4971 = vmatprep.subr.mxu0 0.0
    %4972 = vmatpush1.msra.mxu0 0.0
    %4973 = vmatprep.subr.mxu0 0.0
    %4974 = vmatpush1.msra.mxu0 0.0
    %4975 = vmatprep.subr.mxu0 0.0
    %4976 = vmatpush1.msra.mxu0 0.0
    %4977 = vmatprep.subr.mxu0 0.0
    %4978 = vmatpush1.msra.mxu0 0.0
    %4979 = vmatprep.mubr.f32.mxu0 0.0
    %4980 = vmatmul.mubr.f32.gmra.mrb[0].mxu0 %v4819
    %v4981 = vpop.f32.mrb[0].mxu0
    %v4982 = vadd.f32 %v4897, %v4981
    %v4983 = vpop.f32.mrb[0].mxu0
    %4984 = vmatprep.mubr.f32.mxu0 0.0
    %4985 = vmatmul.mubr.f32.gmra.mrb[0].mxu0 %v4822
    %v4986 = vpop.f32.mrb[0].mxu0
    %v4987 = vadd.f32 %v4902, %v4986
    %v4988 = vpop.f32.mrb[0].mxu0
    %4989 = vmatprep.mubr.f32.mxu0 0.0
    %4990 = vmatmul.mubr.f32.gmra.mrb[0].mxu0 %v4825
    %v4991 = vpop.f32.mrb[0].mxu0
    %v4992 = vadd.f32 %v4907, %v4991
    %v4993 = vpop.f32.mrb[0].mxu0
    %4994 = vmatprep.mubr.f32.mxu0 0.0
    %4995 = vmatmul.mubr.f32.gmra.mrb[0].mxu0 %v4828
    %v4996 = vpop.f32.mrb[0].mxu0
    %v4997 = vadd.f32 %v4912, %v4996
    %v4998 = vpop.f32.mrb[0].mxu0
    %4999 = vdwg.mxu0
    %v5000 = vmax.f32 %v4982, 0.0
    %v5001 = vmax.f32 %v4987, 0.0
    %v5002 = vmax.f32 %v4992, 0.0
    %v5003 = vmax.f32 %v4997, 0.0
    %s5004 = scalar_lea.vmem %s11, 128
    %v5005 = vld [vmem:[%s5004] sm:$0xff]
    %v5006 = vld [vmem:[%s5004 + $0x8] sm:$0xff]
    %v5007 = vld [vmem:[%s5004 + $0x10] sm:$0xff]
    %v5008 = vld [vmem:[%s5004 + $0x18] sm:$0xff]
    %v5009 = vld [vmem:[%s5004 + $0x20] sm:$0xff]
    %v5010 = vld [vmem:[%s5004 + $0x28] sm:$0xff]
    %v5011 = vld [vmem:[%s5004 + $0x30] sm:$0xff]
    %v5012 = vld [vmem:[%s5004 + $0x38] sm:$0xff]
    %v5013 = vld [vmem:[%s5004 + $0x40] sm:$0xff]
    %v5014 = vld [vmem:[%s5004 + $0x48] sm:$0xff]
    %v5015 = vld [vmem:[%s5004 + $0x50] sm:$0xff]
    %v5016 = vld [vmem:[%s5004 + $0x58] sm:$0xff]
    %v5017 = vld [vmem:[%s5004 + $0x60] sm:$0xff]
    %v5018 = vld [vmem:[%s5004 + $0x68] sm:$0xff]
    %v5019 = vld [vmem:[%s5004 + $0x70] sm:$0xff]
    %v5020 = vld [vmem:[%s5004 + $0x78] sm:$0xff]
    %s5021 = scalar_lea.vmem [#allocation7], 1
    %v5022 = vld [vmem:[%s5021] sm:$0x1]
    %v5024 = vlaneseq
    %v5025 = vshrl.u32 %v5024, 7
    %v5026 = vsub.s32 0, %v5025
    %v5027 = vrot.slane %v5022, %v5026
    %5029 = vmatprep.subr.mxu0 0.0
    %5030 = vmatpush1.msra.mxu0 %v5005
    %5031 = vmatprep.subr.mxu0 0.0
    %5032 = vmatpush1.msra.mxu0 %v5006
    %5033 = vmatprep.subr.mxu0 0.0
    %5034 = vmatpush1.msra.mxu0 %v5007
    %5035 = vmatprep.subr.mxu0 0.0
    %5036 = vmatpush1.msra.mxu0 %v5008
    %5037 = vmatprep.subr.mxu0 0.0
    %5038 = vmatpush1.msra.mxu0 %v5009
    %5039 = vmatprep.subr.mxu0 0.0
    %5040 = vmatpush1.msra.mxu0 %v5010
    %5041 = vmatprep.subr.mxu0 0.0
    %5042 = vmatpush1.msra.mxu0 %v5011
    %5043 = vmatprep.subr.mxu0 0.0
    %5044 = vmatpush1.msra.mxu0 %v5012
    %5045 = vmatprep.subr.mxu0 0.0
    %5046 = vmatpush1.msra.mxu0 %v5013
    %5047 = vmatprep.subr.mxu0 0.0
    %5048 = vmatpush1.msra.mxu0 %v5014
    %5049 = vmatprep.subr.mxu0 0.0
    %5050 = vmatpush1.msra.mxu0 %v5015
    %5051 = vmatprep.subr.mxu0 0.0
    %5052 = vmatpush1.msra.mxu0 %v5016
    %5053 = vmatprep.subr.mxu0 0.0
    %5054 = vmatpush1.msra.mxu0 %v5017
    %5055 = vmatprep.subr.mxu0 0.0
    %5056 = vmatpush1.msra.mxu0 %v5018
    %5057 = vmatprep.subr.mxu0 0.0
    %5058 = vmatpush1.msra.mxu0 %v5019
    %5059 = vmatprep.subr.mxu0 0.0
    %5060 = vmatpush1.msra.mxu0 %v5020
    %5061 = vmatprep.subr.mxu0 0.0
    %5062 = vmatpush1.msra.mxu0 0.0
    %5063 = vmatprep.subr.mxu0 0.0
    %5064 = vmatpush1.msra.mxu0 0.0
    %5065 = vmatprep.subr.mxu0 0.0
    %5066 = vmatpush1.msra.mxu0 0.0
    %5067 = vmatprep.subr.mxu0 0.0
    %5068 = vmatpush1.msra.mxu0 0.0
    %5069 = vmatprep.subr.mxu0 0.0
    %5070 = vmatpush1.msra.mxu0 0.0
    %5071 = vmatprep.subr.mxu0 0.0
    %5072 = vmatpush1.msra.mxu0 0.0
    %5073 = vmatprep.subr.mxu0 0.0
    %5074 = vmatpush1.msra.mxu0 0.0
    %5075 = vmatprep.subr.mxu0 0.0
    %5076 = vmatpush1.msra.mxu0 0.0
    %5077 = vmatprep.subr.mxu0 0.0
    %5078 = vmatpush1.msra.mxu0 0.0
    %5079 = vmatprep.subr.mxu0 0.0
    %5080 = vmatpush1.msra.mxu0 0.0
    %5081 = vmatprep.subr.mxu0 0.0
    %5082 = vmatpush1.msra.mxu0 0.0
    %5083 = vmatprep.subr.mxu0 0.0
    %5084 = vmatpush1.msra.mxu0 0.0
    %5085 = vmatprep.subr.mxu0 0.0
    %5086 = vmatpush1.msra.mxu0 0.0
    %5087 = vmatprep.subr.mxu0 0.0
    %5088 = vmatpush1.msra.mxu0 0.0
    %5089 = vmatprep.subr.mxu0 0.0
    %5090 = vmatpush1.msra.mxu0 0.0
    %5091 = vmatprep.subr.mxu0 0.0
    %5092 = vmatpush1.msra.mxu0 0.0
    %5093 = vmatprep.mubr.f32.mxu0 0.0
    %5094 = vmatmul.mubr.f32.gmra.mrb[0].mxu0 %v5000
    %v5095 = vpop.f32.mrb[0].mxu0
    %v5096 = vadd.f32 %v5027, %v5095
    %v5097 = vpop.f32.mrb[0].mxu0
    %5098 = vmatprep.mubr.f32.mxu0 0.0
    %5099 = vmatmul.mubr.f32.gmra.mrb[0].mxu0 %v5001
    %v5100 = vpop.f32.mrb[0].mxu0
    %v5101 = vadd.f32 %v5027, %v5100
    %v5102 = vpop.f32.mrb[0].mxu0
    %5103 = vmatprep.mubr.f32.mxu0 0.0
    %5104 = vmatmul.mubr.f32.gmra.mrb[0].mxu0 %v5002
    %v5105 = vpop.f32.mrb[0].mxu0
    %v5106 = vadd.f32 %v5027, %v5105
    %v5107 = vpop.f32.mrb[0].mxu0
    %5108 = vmatprep.mubr.f32.mxu0 0.0
    %5109 = vmatmul.mubr.f32.gmra.mrb[0].mxu0 %v5003
    %v5110 = vpop.f32.mrb[0].mxu0
    %v5111 = vadd.f32 %v5027, %v5110
    %v5112 = vpop.f32.mrb[0].mxu0
    %5113 = vdwg.mxu0
    %v5114 = vadd.f32 %v5096, %v4561
    %v5115 = vadd.f32 %v5101, %v4562
    %v5116 = vadd.f32 %v5106, %v4563
    %v5117 = vadd.f32 %v5111, %v4564
    %s5118 = scalar_lea.vmem %s15, 1
    %v5119 = vld [vmem:[%s5118] sm:$0x1]
    %s5120 = scalar_lea.vmem %s14, 1
    %v5121 = vld [vmem:[%s5120] sm:$0x1]
    %v5122 = vsel %vm570, %v5114, 0.0
    %5123 = vadd.xlane.f32.xlu0 %v5122
    %v5124 = vpop.xlane.xlu0 %5123
    %v5125 = vsel %vm570, %v5115, 0.0
    %5126 = vadd.xlane.f32.xlu0 %v5125
    %v5127 = vpop.xlane.xlu0 %5126
    %v5128 = vsel %vm570, %v5116, 0.0
    %5129 = vadd.xlane.f32.xlu0 %v5128
    %v5130 = vpop.xlane.xlu0 %5129
    %v5131 = vsel %vm570, %v5117, 0.0
    %5132 = vadd.xlane.f32.xlu0 %v5131
    %v5133 = vpop.xlane.xlu0 %5132
    %v5134 = vmul.f32 %v5124, %v2786
    %v5135 = vmul.f32 %v5127, %v2786
    %v5136 = vmul.f32 %v5130, %v2786
    %v5137 = vmul.f32 %v5133, %v2786
    %v5138 = vsub.f32 %v5114, %v5134
    %v5139 = vsub.f32 %v5115, %v5135
    %v5140 = vsub.f32 %v5116, %v5136
    %v5141 = vsub.f32 %v5117, %v5137
    %v5142 = vmul.f32 %v5138, %v5138
    %v5143 = vmul.f32 %v5139, %v5139
    %v5144 = vmul.f32 %v5140, %v5140
    %v5145 = vmul.f32 %v5141, %v5141
    %v5146 = vsel %vm570, %v5142, 0.0
    %5147 = vadd.xlane.f32.xlu0 %v5146
    %v5148 = vpop.xlane.xlu0 %5147
    %v5149 = vsel %vm570, %v5143, 0.0
    %5150 = vadd.xlane.f32.xlu0 %v5149
    %v5151 = vpop.xlane.xlu0 %5150
    %v5152 = vsel %vm570, %v5144, 0.0
    %5153 = vadd.xlane.f32.xlu0 %v5152
    %v5154 = vpop.xlane.xlu0 %5153
    %v5155 = vsel %vm570, %v5145, 0.0
    %5156 = vadd.xlane.f32.xlu0 %v5155
    %v5157 = vpop.xlane.xlu0 %5156
    %v5158 = vmul.f32 %v5148, %v2786
    %v5159 = vmul.f32 %v5151, %v2786
    %v5160 = vmul.f32 %v5154, %v2786
    %v5161 = vmul.f32 %v5157, %v2786
    %v5162 = vadd.f32 %v5158, 1e-05
    %v5163 = vadd.f32 %v5159, 1e-05
    %v5164 = vadd.f32 %v5160, 1e-05
    %v5165 = vadd.f32 %v5161, 1e-05
    %v5166 = vrsqrt.pop %v5162
    %v5167 = vrsqrt.pop %v5163
    %v5168 = vrsqrt.pop %v5164
    %v5169 = vrsqrt.pop %v5165
    %v5170 = vmul.f32 %v5138, %v5166
    %v5171 = vmul.f32 %v5139, %v5167
    %v5172 = vmul.f32 %v5140, %v5168
    %v5173 = vmul.f32 %v5141, %v5169
    %v5175 = vlaneseq
    %v5176 = vshrl.u32 %v5175, 7
    %v5177 = vsub.s32 0, %v5176
    %v5178 = vrot.slane %v5119, %v5177
    %v5180 = vmul.f32 %v5170, %v5178
    %v5181 = vmul.f32 %v5171, %v5178
    %v5182 = vmul.f32 %v5172, %v5178
    %v5183 = vmul.f32 %v5173, %v5178
    %v5185 = vlaneseq
    %v5186 = vshrl.u32 %v5185, 7
    %v5187 = vsub.s32 0, %v5186
    %v5188 = vrot.slane %v5121, %v5187
    %v5190 = vadd.f32 %v5180, %v5188
    %v5191 = vadd.f32 %v5181, %v5188
    %v5192 = vadd.f32 %v5182, %v5188
    %v5193 = vadd.f32 %v5183, %v5188
    %s5194 = scalar_lea.vmem %s16, 64
    %v5195 = vld [vmem:[%s5194] sm:$0xff]
    %v5196 = vld [vmem:[%s5194 + $0x8] sm:$0xff]
    %v5197 = vld [vmem:[%s5194 + $0x10] sm:$0xff]
    %v5198 = vld [vmem:[%s5194 + $0x18] sm:$0xff]
    %v5200 = vsel %vm570, %v5190, 0
    %v5203 = vsel %vm570, %v5191, 0
    %v5206 = vsel %vm570, %v5192, 0
    %v5209 = vsel %vm570, %v5193, 0
    %5211 = vmatprep.subr.mxu0 0.0
    %5212 = vmatpush1.msra.mxu0 %v5195
    %5213 = vmatprep.subr.mxu0 0.0
    %5214 = vmatpush1.msra.mxu0 %v5196
    %5215 = vmatprep.subr.mxu0 0.0
    %5216 = vmatpush1.msra.mxu0 %v5197
    %5217 = vmatprep.subr.mxu0 0.0
    %5218 = vmatpush1.msra.mxu0 %v5198
    %5219 = vmatprep.subr.mxu0 0.0
    %5220 = vmatpush1.msra.mxu0 0.0
    %5221 = vmatprep.subr.mxu0 0.0
    %5222 = vmatpush1.msra.mxu0 0.0
    %5223 = vmatprep.subr.mxu0 0.0
    %5224 = vmatpush1.msra.mxu0 0.0
    %5225 = vmatprep.subr.mxu0 0.0
    %5226 = vmatpush1.msra.mxu0 0.0
    %5227 = vmatprep.subr.mxu0 0.0
    %5228 = vmatpush1.msra.mxu0 0.0
    %5229 = vmatprep.subr.mxu0 0.0
    %5230 = vmatpush1.msra.mxu0 0.0
    %5231 = vmatprep.subr.mxu0 0.0
    %5232 = vmatpush1.msra.mxu0 0.0
    %5233 = vmatprep.subr.mxu0 0.0
    %5234 = vmatpush1.msra.mxu0 0.0
    %5235 = vmatprep.subr.mxu0 0.0
    %5236 = vmatpush1.msra.mxu0 0.0
    %5237 = vmatprep.subr.mxu0 0.0
    %5238 = vmatpush1.msra.mxu0 0.0
    %5239 = vmatprep.subr.mxu0 0.0
    %5240 = vmatpush1.msra.mxu0 0.0
    %5241 = vmatprep.subr.mxu0 0.0
    %5242 = vmatpush1.msra.mxu0 0.0
    %5243 = vmatprep.subr.mxu0 0.0
    %5244 = vmatpush1.msra.mxu0 0.0
    %5245 = vmatprep.subr.mxu0 0.0
    %5246 = vmatpush1.msra.mxu0 0.0
    %5247 = vmatprep.subr.mxu0 0.0
    %5248 = vmatpush1.msra.mxu0 0.0
    %5249 = vmatprep.subr.mxu0 0.0
    %5250 = vmatpush1.msra.mxu0 0.0
    %5251 = vmatprep.subr.mxu0 0.0
    %5252 = vmatpush1.msra.mxu0 0.0
    %5253 = vmatprep.subr.mxu0 0.0
    %5254 = vmatpush1.msra.mxu0 0.0
    %5255 = vmatprep.subr.mxu0 0.0
    %5256 = vmatpush1.msra.mxu0 0.0
    %5257 = vmatprep.subr.mxu0 0.0
    %5258 = vmatpush1.msra.mxu0 0.0
    %5259 = vmatprep.subr.mxu0 0.0
    %5260 = vmatpush1.msra.mxu0 0.0
    %5261 = vmatprep.subr.mxu0 0.0
    %5262 = vmatpush1.msra.mxu0 0.0
    %5263 = vmatprep.subr.mxu0 0.0
    %5264 = vmatpush1.msra.mxu0 0.0
    %5265 = vmatprep.subr.mxu0 0.0
    %5266 = vmatpush1.msra.mxu0 0.0
    %5267 = vmatprep.subr.mxu0 0.0
    %5268 = vmatpush1.msra.mxu0 0.0
    %5269 = vmatprep.subr.mxu0 0.0
    %5270 = vmatpush1.msra.mxu0 0.0
    %5271 = vmatprep.subr.mxu0 0.0
    %5272 = vmatpush1.msra.mxu0 0.0
    %5273 = vmatprep.subr.mxu0 0.0
    %5274 = vmatpush1.msra.mxu0 0.0
    %5275 = vmatprep.mubr.f32.mxu0 0.0
    %5276 = vmatmul.mubr.f32.gmra.mrb[0].mxu0 %v5200
    %v5277 = vpop.f32.mrb[0].mxu0
    %v5278 = vadd.f32 0.0, %v5277
    %v5279 = vpop.f32.mrb[0].mxu0
    %5280 = vmatprep.mubr.f32.mxu0 0.0
    %5281 = vmatmul.mubr.f32.gmra.mrb[0].mxu0 %v5203
    %v5282 = vpop.f32.mrb[0].mxu0
    %v5283 = vadd.f32 0.0, %v5282
    %v5284 = vpop.f32.mrb[0].mxu0
    %5285 = vmatprep.mubr.f32.mxu0 0.0
    %5286 = vmatmul.mubr.f32.gmra.mrb[0].mxu0 %v5206
    %v5287 = vpop.f32.mrb[0].mxu0
    %v5288 = vadd.f32 0.0, %v5287
    %v5289 = vpop.f32.mrb[0].mxu0
    %5290 = vmatprep.mubr.f32.mxu0 0.0
    %5291 = vmatmul.mubr.f32.gmra.mrb[0].mxu0 %v5209
    %v5292 = vpop.f32.mrb[0].mxu0
    %v5293 = vadd.f32 0.0, %v5292
    %v5294 = vpop.f32.mrb[0].mxu0
    %5295 = vdwg.mxu0
    %5300 = vrot.lane.b32.xlu0 %v3703, 16
    %v5301 = vpop.permute.xlu0 %5300
    %5302 = vrot.lane.b32.xlu0 %v3708, 16
    %v5303 = vpop.permute.xlu0 %5302
    %5304 = vrot.lane.b32.xlu0 %v3713, 16
    %v5305 = vpop.permute.xlu0 %5304
    %5306 = vrot.lane.b32.xlu0 %v3718, 16
    %v5307 = vpop.permute.xlu0 %5306
    %5316 = vrot.lane.b32.xlu0 %v5278, 32
    %v5317 = vpop.permute.xlu0 %5316
    %5318 = vrot.lane.b32.xlu0 %v5283, 32
    %v5319 = vpop.permute.xlu0 %5318
    %5320 = vrot.lane.b32.xlu0 %v5288, 32
    %v5321 = vpop.permute.xlu0 %5320
    %5322 = vrot.lane.b32.xlu0 %v5293, 32
    %v5323 = vpop.permute.xlu0 %5322
    %v5328 = vsel %vm291, %v1990, %v5301
    %v5329 = vsel %vm291, %v1995, %v5303
    %v5330 = vsel %vm291, %v2000, %v5305
    %v5331 = vsel %vm291, %v2005, %v5307
    %v5332 = vsel %vm570, %v5328, %v5317
    %v5333 = vsel %vm570, %v5329, %v5319
    %v5334 = vsel %vm570, %v5330, %v5321
    %v5335 = vsel %vm570, %v5331, %v5323
    %vm5336 = vcmask 392192
    %5337 = vst.msk [vmem:[%s26] sm:$0xff] %vm5336, %v5332
    %5338 = vst.msk [vmem:[%s26 + $0x8] sm:$0xff] %vm5336, %v5333
    %5339 = vst.msk [vmem:[%s26 + $0x10] sm:$0xff] %vm5336, %v5334
    %5340 = vst.msk [vmem:[%s26 + $0x18] sm:$0xff] %vm5336, %v5335
    // Predicated region
    $region130: #{decoder_forward_impl.1} parent=1 // pred_check
      _
    $region131: #{decoder_forward_impl.1} parent=1 // pred_check_branch
      %5342 = sbr.rel (0) target = $region133
    $region132: #{decoder_forward_impl.1} parent=1 // pred_region
      _
    $region133: #{decoder_forward_impl.1} parent=1 // pred_fallthru
      _
    // Predicated region
    $region134: #{decoder_forward_impl.1} parent=1 // pred_check
      _
    $region135: #{decoder_forward_impl.1} parent=1 // pred_check_branch
      %5344 = sbr.rel (0) target = $region137
    $region136: #{decoder_forward_impl.1} parent=1 // pred_region
      _
    $region137: #{decoder_forward_impl.1} parent=1 // pred_fallthru
      _
    %5345 = vsyncpa [#allocation3], 1
    %5346 = vsyncpa [#allocation5], 1
    %5347 = vsyncpa [#allocation8], 1
    %5348 = vsyncpa [#allocation11], 1

</llo_original>
